<compile_context>
chip_gen: v7x
topology: tpu7x:2x2x1
jax: 0.10.0
libtpu: 0.0.40
codegen_flags: <defaults>
</compile_context>

<pallas_src>
import math
from functools import partial

import jax
import jax.numpy as jnp
from jax.experimental import pallas as pl
from jax.experimental.pallas import tpu as pltpu


def _vmem():
    return pl.BlockSpec(memory_space=pltpu.MemorySpace.VMEM)


def _rup128(n):
    return ((n + 127) // 128) * 128


# ------------------------------ fused kernel -------------------------------- #
def _fused_kernel(x_ref, wih_ref, whh_ref, wconv_ref, wqkv_ref, wow1_ref,
                  whd_ref, bias_ref, out_ref,
                  gi_ref, lstm_f_ref, lstm_b_ref,
                  *, num_heads, bias_offsets):
    T, B, H = lstm_f_ref.shape
    H2 = 2 * H
    GT = wih_ref.shape[1] // 4            # gate tile width (>= 2H, multiple of 128)
    F = wconv_ref.shape[1]
    K = wconv_ref.shape[0] // H2
    nh = num_heads
    d = F // nh
    GH = wqkv_ref.shape[1] // (3 * nh)    # per-head tile width
    FT = wow1_ref.shape[1] - H            # offset of fc1 weight inside the pack
    off_bc, off_bo, off_b1, off_bh, off_bqkv = bias_offsets

    # ---------------- BiLSTM ----------------
    # Hoisted input projection for BOTH directions (biases folded via the ones
    # column of x): one 2-D MXU matmul (T*B, 2E+1) x (2E+1, 4*GT).
    gi_ref[...] = jnp.dot(x_ref[...], wih_ref[...],
                          preferred_element_type=jnp.float32)

    h0 = jnp.zeros((B, H2), jnp.float32)
    c0 = jnp.zeros((B, H2), jnp.float32)

    def step(t, carry):
        h, c = carry                      # (B, 2H): lanes 0:H fwd, H:2H bwd
        tb = T - 1 - t
        # ONE block-diagonal recurrent matmul for both directions; gi row t holds
        # fwd projections of x[t] and bwd projections of x[T-1-t].
        gates = (gi_ref[pl.ds(t * B, B), :]
                 + jnp.dot(h, whh_ref[...], preferred_element_type=jnp.float32))
        # Single tanh over all gate tiles; i/f/o columns were pre-scaled by 0.5
        # in the wrapper so sigmoid(z) = 0.5*tanh(0.5 z) + 0.5.
        acts = jnp.tanh(gates)
        i_s = acts[:, 0 * GT:0 * GT + H2] * 0.5 + 0.5
        f_s = acts[:, 1 * GT:1 * GT + H2] * 0.5 + 0.5
        g_t = acts[:, 2 * GT:2 * GT + H2]
        o_s = acts[:, 3 * GT:3 * GT + H2] * 0.5 + 0.5
        c = f_s * c + i_s * g_t
        h = o_s * jnp.tanh(c)
        lstm_f_ref[t] = h[:, :H]          # stores are off the serial chain
        lstm_b_ref[tb] = h[:, H:]
        return h, c

    jax.lax.fori_loop(0, T, step, (h0, c0), unroll=True)

    # ---------------- Conv1d + ReLU + MaxPool1d ----------------
    L = T - K + 1
    P = (L - K) // K + 1
    lstm_f = lstm_f_ref[...]              # (T, B, H)
    lstm_b = lstm_b_ref[...]              # (T, B, H)
    taps = []
    for k in range(K):                    # im2col: per tap channel order [fwd, bwd]
        taps.append(lstm_f[k:k + L])
        taps.append(lstm_b[k:k + L])
    xim = jnp.concatenate(taps, axis=-1)  # (L, B, K*2H)
    conv = jax.lax.dot_general(xim, wconv_ref[...],
                               (((2,), (0,)), ((), ())),
                               preferred_element_type=jnp.float32)   # (L, B, F)
    conv = jnp.maximum(conv + bias_ref[:, off_bc:off_bc + F], 0.0)
    # MaxPool1d(kernel=K, stride=K): dense reshape + max.
    pooled = jnp.max(conv[:P * K].reshape(P, K, B, F), axis=1)       # (P, B, F)

    # --------- MultiheadAttention (torch batch_first=False semantics) ---------
    # pooled is (N=P, L=B, E=F): attention over the model-batch axis, batched
    # over pooled positions (faithful to the reference module).
    qkv = (jnp.einsum('nle,ec->nlc', pooled, wqkv_ref[...],
                      preferred_element_type=jnp.float32)
           + bias_ref[:, off_bqkv:off_bqkv + 3 * nh * GH])           # (P, B, 3*nh*GH)
    ctx_heads = []
    for hh in range(nh):                  # static unrolled; slices are tile-aligned
        qh = qkv[:, :, hh * GH:hh * GH + d]
        kh = qkv[:, :, (nh + hh) * GH:(nh + hh) * GH + d]
        vh = qkv[:, :, (2 * nh + hh) * GH:(2 * nh + hh) * GH + d]
        s = jnp.einsum('nld,nmd->nlm', qh, kh,
                       preferred_element_type=jnp.float32)           # (P, B, B)
        s = s - jnp.max(s, axis=-1, keepdims=True)
        e = jnp.exp(s)
        p = e / jnp.sum(e, axis=-1, keepdims=True)                   # exact softmax
        ctx_heads.append(jnp.einsum('nlm,nmd->nld', p, vh,
                                    preferred_element_type=jnp.float32))
    ctx = jnp.concatenate(ctx_heads, axis=-1)                        # (P, B, F)
    attn = (jnp.einsum('nle,ef->nlf', ctx, wow1_ref[:, :F],
                       preferred_element_type=jnp.float32)
            + bias_ref[:, off_bo:off_bo + F])

    # ---------------- mean over pooled positions + FC head ----------------
    feat_vec = jnp.mean(attn, axis=0)     # == torch.mean(attn, dim=1) -> (B, F)
    # dropout(p=0.5) is identity in eval mode
    h1 = jnp.maximum(
        jnp.dot(feat_vec, wow1_ref[:, FT:FT + H],
                preferred_element_type=jnp.float32)
        + bias_ref[:, off_b1:off_b1 + H], 0.0)
    out_ref[...] = (jnp.dot(h1, whd_ref[...],
                            preferred_element_type=jnp.float32)
                    + bias_ref[:, off_bh:off_bh + whd_ref.shape[1]])


# --------------------------------- glue ------------------------------------ #
def init_params(key, vocab_size, feature_size, embed_dim, H, num_filters,
                kernel_size, num_classes, feature_classes):
    def nrm(k, shape, scale=0.1):
        return scale * jax.random.normal(k, shape, jnp.float32)

    ks = jax.random.split(key, 22)
    p = {}
    p['emb'] = nrm(ks[0], (vocab_size, embed_dim))
    p['feat_emb'] = nrm(ks[1], (feature_size, embed_dim))
    p['wih_f'] = nrm(ks[2], (4 * H, embed_dim))
    p['whh_f'] = nrm(ks[3], (4 * H, H))
    p['bih_f'] = nrm(ks[4], (4 * H,))
    p['bhh_f'] = nrm(ks[5], (4 * H,))
    p['wih_b'] = nrm(ks[6], (4 * H, embed_dim))
    p['whh_b'] = nrm(ks[7], (4 * H, H))
    p['bih_b'] = nrm(ks[8], (4 * H,))
    p['bhh_b'] = nrm(ks[9], (4 * H,))
    p['conv_w'] = nrm(ks[10], (num_filters, 2 * H, kernel_size))
    p['conv_b'] = nrm(ks[11], (num_filters,))
    p['in_proj_w'] = nrm(ks[12], (3 * num_filters, num_filters))
    p['in_proj_b'] = nrm(ks[13], (3 * num_filters,))
    p['out_proj_w'] = nrm(ks[14], (num_filters, num_filters))
    p['out_proj_b'] = nrm(ks[15], (num_filters,))
    p['fc1_w'] = nrm(ks[16], (H, num_filters))
    p['fc1_b'] = nrm(ks[17], (H,))
    p['fce_w'] = nrm(ks[18], (num_classes, H))
    p['fce_b'] = nrm(ks[19], (num_classes,))
    p['fcf_w'] = nrm(ks[20], (feature_classes, H))
    p['fcf_b'] = nrm(ks[21], (feature_classes,))
    return p


def forward(params, text, features, *, num_heads, kernel_size):
    # Embedding lookups (gather) = glue in plain JAX.
    emb_t = params['emb'][text]                                 # (B, Tt, E)
    emb_f = params['feat_emb'][features][:, None, :]            # (B, 1, E)
    embedded = jnp.concatenate([emb_t, emb_f], axis=1).astype(jnp.float32)
    B, T, E = embedded.shape
    H = params['whh_f'].shape[1]
    F = params['conv_w'].shape[0]
    K = kernel_size
    nh = num_heads
    d = F // nh
    nc = params['fce_b'].shape[0]
    nf = params['fcf_b'].shape[0]
    assert d * nh == F
    assert T - K + 1 >= K, "sequence too short for conv + maxpool"

    GT = _rup128(2 * H)       # LSTM gate tile width
    GH = _rup128(d)           # MHA per-head tile width
    FT = _rup128(F)
    HT = _rup128(H)
    OUTW = _rup128(nc + nf)
    off_bc, off_bo, off_b1 = 0, FT, 2 * FT
    off_bh, off_bqkv = 2 * FT + HT, 2 * FT + HT + OUTW
    BW = off_bqkv + 3 * nh * GH

    # Input: (T,B,E) + time-reversed copy (backward direction) + constant-1
    # feature that folds the LSTM biases into the input projection weight.
    x_tbe = jnp.transpose(embedded, (1, 0, 2))                  # (T, B, E)
    x_rev = x_tbe[::-1]
    ones = jnp.ones((T, B, 1), jnp.float32)
    x_aug = jnp.concatenate([x_tbe, x_rev, ones],
                            axis=-1).reshape(T * B, 2 * E + 1)

    # Packed BiLSTM weights: gate tiles [i | f | g | o] of width GT, lanes 0:H
    # fwd, H:2H bwd, rest zero.  Sigmoid gates (i,f,o) pre-scaled by 0.5.
    sig_scale = (0.5, 0.5, 1.0, 0.5)      # PyTorch gate order i, f, g, o

    def gate_tile_ih(g):
        blk = jnp.zeros((2 * E + 1, GT), jnp.float32)
        blk = blk.at[0:E, 0:H].set(params['wih_f'][g * H:(g + 1) * H, :].T)
        blk = blk.at[E:2 * E, H:2 * H].set(params['wih_b'][g * H:(g + 1) * H, :].T)
        blk = blk.at[2 * E, 0:H].set(params['bih_f'][g * H:(g + 1) * H]
                                     + params['bhh_f'][g * H:(g + 1) * H])
        blk = blk.at[2 * E, H:2 * H].set(params['bih_b'][g * H:(g + 1) * H]
                                         + params['bhh_b'][g * H:(g + 1) * H])
        return blk * sig_scale[g]

    def gate_tile_hh(g):
        blk = jnp.zeros((2 * H, GT), jnp.float32)
        blk = blk.at[0:H, 0:H].set(params['whh_f'][g * H:(g + 1) * H, :].T)
        blk = blk.at[H:2 * H, H:2 * H].set(params['whh_b'][g * H:(g + 1) * H, :].T)
        return blk * sig_scale[g]

    wih_pk = jnp.concatenate([gate_tile_ih(g) for g in range(4)], axis=1)
    whh_pk = jnp.concatenate([gate_tile_hh(g) for g in range(4)], axis=1)

    # Conv weight as an im2col matrix (K*2H, F): index k*2H + c.
    w_conv = jnp.transpose(params['conv_w'], (2, 1, 0)).reshape(K * 2 * H, F)

    # Fused QKV projection, one 128-lane tile per head (1/sqrt(d) folded into Q).
    scale = 1.0 / math.sqrt(d)
    Wq = params['in_proj_w'][0:F]
    Wk = params['in_proj_w'][F:2 * F]
    Wv = params['in_proj_w'][2 * F:3 * F]
    bq = params['in_proj_b'][0:F]
    bk = params['in_proj_b'][F:2 * F]
    bv = params['in_proj_b'][2 * F:3 * F]

    def head_w(W, h, s):
        blk = jnp.zeros((F, GH), jnp.float32)
        return blk.at[:, 0:d].set(W[h * d:(h + 1) * d, :].T * s)

    def head_b(b, h, s):
        blk = jnp.zeros((GH,), jnp.float32)
        return blk.at[0:d].set(b[h * d:(h + 1) * d] * s)

    w_qkv = jnp.concatenate(
        [head_w(Wq, h, scale) for h in range(nh)]
        + [head_w(Wk, h, 1.0) for h in range(nh)]
        + [head_w(Wv, h, 1.0) for h in range(nh)], axis=1)          # (F, 3*nh*GH)
    b_qkv = jnp.concatenate(
        [head_b(bq, h, scale) for h in range(nh)]
        + [head_b(bk, h, 1.0) for h in range(nh)]
        + [head_b(bv, h, 1.0) for h in range(nh)])                  # (3*nh*GH,)

    # Small-weight packs (fewer DMA descriptors).
    w_ow1 = jnp.zeros((F, FT + H), jnp.float32)
    w_ow1 = w_ow1.at[:, 0:F].set(params['out_proj_w'].T)
    w_ow1 = w_ow1.at[:, FT:FT + H].set(params['fc1_w'].T)

    w_heads = jnp.zeros((H, OUTW), jnp.float32)
    w_heads = w_heads.at[:, 0:nc].set(params['fce_w'].T)
    w_heads = w_heads.at[:, nc:nc + nf].set(params['fcf_w'].T)

    bias_pack = jnp.zeros((1, BW), jnp.float32)
    bias_pack = bias_pack.at[0, off_bc:off_bc + F].set(params['conv_b'])
    bias_pack = bias_pack.at[0, off_bo:off_bo + F].set(params['out_proj_b'])
    bias_pack = bias_pack.at[0, off_b1:off_b1 + H].set(params['fc1_b'])
    bias_pack = bias_pack.at[0, off_bh:off_bh + nc].set(params['fce_b'])
    bias_pack = bias_pack.at[0, off_bh + nc:off_bh + nc + nf].set(params['fcf_b'])
    bias_pack = bias_pack.at[0, off_bqkv:off_bqkv + 3 * nh * GH].set(b_qkv)

    out = pl.pallas_call(
        partial(_fused_kernel, num_heads=nh,
                bias_offsets=(off_bc, off_bo, off_b1, off_bh, off_bqkv)),
        out_shape=jax.ShapeDtypeStruct((B, OUTW), jnp.float32),
        in_specs=[_vmem()] * 8,
        out_specs=_vmem(),
        scratch_shapes=[pltpu.VMEM((T * B, 4 * GT), jnp.float32),   # hoisted gates
                        pltpu.VMEM((T, B, H), jnp.float32),         # fwd LSTM out
                        pltpu.VMEM((T, B, H), jnp.float32)],        # bwd LSTM out
    )(x_aug, wih_pk, whh_pk, w_conv, w_qkv, w_ow1, w_heads, bias_pack)

    return out[:, :nc], out[:, nc:nc + nf]


if __name__ == "__main__":
    vocab_size, feature_size = 50, 10
    embed_dim, lstm_hidden_dim = 16, 32
    attn_heads, num_classes, feature_classes = 4, 5, 3
    kernel_size, num_filters = 3, 64
    B, seq_len = 2, 11

    key = jax.random.PRNGKey(0)
    pkey, tkey, fkey = jax.random.split(key, 3)
    params = init_params(pkey, vocab_size, feature_size, embed_dim,
                         lstm_hidden_dim, num_filters, kernel_size,
                         num_classes, feature_classes)
    text = jax.random.randint(tkey, (B, seq_len), 0, vocab_size, dtype=jnp.int32)
    features = jax.random.randint(fkey, (B,), 0, feature_size, dtype=jnp.int32)

    fwd = jax.jit(partial(forward, num_heads=attn_heads, kernel_size=kernel_size))
    emo, feat = fwd(params, text, features)
    jax.block_until_ready((emo, feat))
    assert emo.shape == (B, num_classes)
    assert feat.shape == (B, feature_classes)
    print("KERNEL_OK")
</pallas_src>

<mosaic_0001>
module attributes {stable_mosaic.version = 11 : i64} {
  func.func @_fused_kernel(%arg0: memref<24x33xf32, #tpu.memory_space<vmem>>, %arg1: memref<33x512xf32, #tpu.memory_space<vmem>>, %arg2: memref<64x512xf32, #tpu.memory_space<vmem>>, %arg3: memref<192x64xf32, #tpu.memory_space<vmem>>, %arg4: memref<64x1536xf32, #tpu.memory_space<vmem>>, %arg5: memref<64x160xf32, #tpu.memory_space<vmem>>, %arg6: memref<32x128xf32, #tpu.memory_space<vmem>>, %arg7: memref<1x2048xf32, #tpu.memory_space<vmem>>, %arg8: memref<2x128xf32, #tpu.memory_space<vmem>>, %arg9: memref<24x512xf32, #tpu.memory_space<vmem>>, %arg10: memref<12x2x32xf32, #tpu.memory_space<vmem>>, %arg11: memref<12x2x32xf32, #tpu.memory_space<vmem>>) attributes {dimension_semantics = [], scalar_prefetch = 0 : i64, scratch_operands = 3 : i64, tpu.core_type = #tpu.core_type<tc>} {
    %c0 = arith.constant 0 : index
    %c0_0 = arith.constant 0 : index
    %0 = vector.load %arg0[%c0, %c0_0] : memref<24x33xf32, #tpu.memory_space<vmem>>, vector<24x33xf32>
    %c0_1 = arith.constant 0 : index
    %c0_2 = arith.constant 0 : index
    %1 = vector.load %arg1[%c0_1, %c0_2] : memref<33x512xf32, #tpu.memory_space<vmem>>, vector<33x512xf32>
    %cst = arith.constant dense<0.000000e+00> : vector<24x512xf32>
    %2 = tpu.matmul %0, %1, %cst {dimension_numbers = #tpu.dot_dimension_numbers<[1], [0], [0], [1], [0, 0, 1, 1], [], []>} : vector<24x33xf32>, vector<33x512xf32>, vector<24x512xf32> -> vector<24x512xf32>
    %c0_3 = arith.constant 0 : index
    %c0_4 = arith.constant 0 : index
    %3 = vector.load %arg9[%c0_3, %c0_4] : memref<24x512xf32, #tpu.memory_space<vmem>>, vector<24x512xf32>
    tpu.vector_store %arg9[%c0_3, %c0_4], %2 {strides = array<i32>} : memref<24x512xf32, #tpu.memory_space<vmem>>, vector<24x512xf32>,
    %cst_5 = arith.constant 0.000000e+00 : f32
    %4 = vector.broadcast %cst_5 : f32 to vector<2x64xf32>
    %cst_6 = arith.constant 0.000000e+00 : f32
    %5 = vector.broadcast %cst_6 : f32 to vector<2x64xf32>
    %c0_i32 = arith.constant 0 : i32
    %c11_i32 = arith.constant 11 : i32
    %6 = arith.subi %c11_i32, %c0_i32 : i32
    %c2_i32 = arith.constant 2 : i32
    %7 = arith.muli %c0_i32, %c2_i32 : i32
    %8 = arith.index_cast %7 : i32 to index
    %c0_7 = arith.constant 0 : index
    %9 = vector.load %arg9[%8, %c0_7] : memref<24x512xf32, #tpu.memory_space<vmem>>, vector<2x512xf32>
    %c0_8 = arith.constant 0 : index
    %c0_9 = arith.constant 0 : index
    %10 = vector.load %arg2[%c0_8, %c0_9] : memref<64x512xf32, #tpu.memory_space<vmem>>, vector<64x512xf32>
    %cst_10 = arith.constant dense<0.000000e+00> : vector<2x512xf32>
    %11 = tpu.matmul %4, %10, %cst_10 {dimension_numbers = #tpu.dot_dimension_numbers<[1], [0], [0], [1], [0, 0, 1, 1], [], []>} : vector<2x64xf32>, vector<64x512xf32>, vector<2x512xf32> -> vector<2x512xf32>
    %12 = arith.addf %9, %11 : vector<2x512xf32>
    %13 = math.tanh %12 : vector<2x512xf32>
    %14 = vector.extract_strided_slice %13 {offsets = [0, 0], sizes = [2, 64], strides = [1, 1]} : vector<2x512xf32> to vector<2x64xf32>
    %cst_11 = arith.constant 5.000000e-01 : f32
    %15 = vector.broadcast %cst_11 : f32 to vector<2x64xf32>
    %16 = arith.mulf %14, %15 : vector<2x64xf32>
    %cst_12 = arith.constant 5.000000e-01 : f32
    %17 = vector.broadcast %cst_12 : f32 to vector<2x64xf32>
    %18 = arith.addf %16, %17 : vector<2x64xf32>
    %19 = vector.extract_strided_slice %13 {offsets = [0, 128], sizes = [2, 64], strides = [1, 1]} : vector<2x512xf32> to vector<2x64xf32>
    %cst_13 = arith.constant 5.000000e-01 : f32
    %20 = vector.broadcast %cst_13 : f32 to vector<2x64xf32>
    %21 = arith.mulf %19, %20 : vector<2x64xf32>
    %cst_14 = arith.constant 5.000000e-01 : f32
    %22 = vector.broadcast %cst_14 : f32 to vector<2x64xf32>
    %23 = arith.addf %21, %22 : vector<2x64xf32>
    %24 = vector.extract_strided_slice %13 {offsets = [0, 256], sizes = [2, 64], strides = [1, 1]} : vector<2x512xf32> to vector<2x64xf32>
    %25 = vector.extract_strided_slice %13 {offsets = [0, 384], sizes = [2, 64], strides = [1, 1]} : vector<2x512xf32> to vector<2x64xf32>
    %cst_15 = arith.constant 5.000000e-01 : f32
    %26 = vector.broadcast %cst_15 : f32 to vector<2x64xf32>
    %27 = arith.mulf %25, %26 : vector<2x64xf32>
    %cst_16 = arith.constant 5.000000e-01 : f32
    %28 = vector.broadcast %cst_16 : f32 to vector<2x64xf32>
    %29 = arith.addf %27, %28 : vector<2x64xf32>
    %30 = arith.mulf %23, %5 : vector<2x64xf32>
    %31 = arith.mulf %18, %24 : vector<2x64xf32>
    %32 = arith.addf %30, %31 : vector<2x64xf32>
    %33 = math.tanh %32 : vector<2x64xf32>
    %34 = arith.mulf %29, %33 : vector<2x64xf32>
    %35 = vector.extract_strided_slice %34 {offsets = [0, 0], sizes = [2, 32], strides = [1, 1]} : vector<2x64xf32> to vector<2x32xf32>
    %36 = arith.index_cast %c0_i32 : i32 to index
    %c0_17 = arith.constant 0 : index
    %c0_18 = arith.constant 0 : index
    %37 = vector.load %arg10[%36, %c0_17, %c0_18] : memref<12x2x32xf32, #tpu.memory_space<vmem>>, vector<1x2x32xf32>
    %38 = vector.shape_cast %37 : vector<1x2x32xf32> to vector<2x32xf32>
    %39 = vector.shape_cast %35 : vector<2x32xf32> to vector<1x2x32xf32>
    tpu.vector_store %arg10[%36, %c0_17, %c0_18], %39 {strides = array<i32>} : memref<12x2x32xf32, #tpu.memory_space<vmem>>, vector<1x2x32xf32>,
    %40 = vector.extract_strided_slice %34 {offsets = [0, 32], sizes = [2, 32], strides = [1, 1]} : vector<2x64xf32> to vector<2x32xf32>
    %41 = arith.index_cast %6 : i32 to index
    %c0_19 = arith.constant 0 : index
    %c0_20 = arith.constant 0 : index
    %42 = vector.load %arg11[%41, %c0_19, %c0_20] : memref<12x2x32xf32, #tpu.memory_space<vmem>>, vector<1x2x32xf32>
    %43 = vector.shape_cast %42 : vector<1x2x32xf32> to vector<2x32xf32>
    %44 = vector.shape_cast %40 : vector<2x32xf32> to vector<1x2x32xf32>
    tpu.vector_store %arg11[%41, %c0_19, %c0_20], %44 {strides = array<i32>} : memref<12x2x32xf32, #tpu.memory_space<vmem>>, vector<1x2x32xf32>,
    %c1_i32 = arith.constant 1 : i32
    %c11_i32_21 = arith.constant 11 : i32
    %45 = arith.subi %c11_i32_21, %c1_i32 : i32
    %c2_i32_22 = arith.constant 2 : i32
    %46 = arith.muli %c1_i32, %c2_i32_22 : i32
    %47 = arith.index_cast %46 : i32 to index
    %c0_23 = arith.constant 0 : index
    %48 = vector.load %arg9[%47, %c0_23] : memref<24x512xf32, #tpu.memory_space<vmem>>, vector<2x512xf32>
    %c0_24 = arith.constant 0 : index
    %c0_25 = arith.constant 0 : index
    %49 = vector.load %arg2[%c0_24, %c0_25] : memref<64x512xf32, #tpu.memory_space<vmem>>, vector<64x512xf32>
    %cst_26 = arith.constant dense<0.000000e+00> : vector<2x512xf32>
    %50 = tpu.matmul %34, %49, %cst_26 {dimension_numbers = #tpu.dot_dimension_numbers<[1], [0], [0], [1], [0, 0, 1, 1], [], []>} : vector<2x64xf32>, vector<64x512xf32>, vector<2x512xf32> -> vector<2x512xf32>
    %51 = arith.addf %48, %50 : vector<2x512xf32>
    %52 = math.tanh %51 : vector<2x512xf32>
    %53 = vector.extract_strided_slice %52 {offsets = [0, 0], sizes = [2, 64], strides = [1, 1]} : vector<2x512xf32> to vector<2x64xf32>
    %cst_27 = arith.constant 5.000000e-01 : f32
    %54 = vector.broadcast %cst_27 : f32 to vector<2x64xf32>
    %55 = arith.mulf %53, %54 : vector<2x64xf32>
    %cst_28 = arith.constant 5.000000e-01 : f32
    %56 = vector.broadcast %cst_28 : f32 to vector<2x64xf32>
    %57 = arith.addf %55, %56 : vector<2x64xf32>
    %58 = vector.extract_strided_slice %52 {offsets = [0, 128], sizes = [2, 64], strides = [1, 1]} : vector<2x512xf32> to vector<2x64xf32>
    %cst_29 = arith.constant 5.000000e-01 : f32
    %59 = vector.broadcast %cst_29 : f32 to vector<2x64xf32>
    %60 = arith.mulf %58, %59 : vector<2x64xf32>
    %cst_30 = arith.constant 5.000000e-01 : f32
    %61 = vector.broadcast %cst_30 : f32 to vector<2x64xf32>
    %62 = arith.addf %60, %61 : vector<2x64xf32>
    %63 = vector.extract_strided_slice %52 {offsets = [0, 256], sizes = [2, 64], strides = [1, 1]} : vector<2x512xf32> to vector<2x64xf32>
    %64 = vector.extract_strided_slice %52 {offsets = [0, 384], sizes = [2, 64], strides = [1, 1]} : vector<2x512xf32> to vector<2x64xf32>
    %cst_31 = arith.constant 5.000000e-01 : f32
    %65 = vector.broadcast %cst_31 : f32 to vector<2x64xf32>
    %66 = arith.mulf %64, %65 : vector<2x64xf32>
    %cst_32 = arith.constant 5.000000e-01 : f32
    %67 = vector.broadcast %cst_32 : f32 to vector<2x64xf32>
    %68 = arith.addf %66, %67 : vector<2x64xf32>
    %69 = arith.mulf %62, %32 : vector<2x64xf32>
    %70 = arith.mulf %57, %63 : vector<2x64xf32>
    %71 = arith.addf %69, %70 : vector<2x64xf32>
    %72 = math.tanh %71 : vector<2x64xf32>
    %73 = arith.mulf %68, %72 : vector<2x64xf32>
    %74 = vector.extract_strided_slice %73 {offsets = [0, 0], sizes = [2, 32], strides = [1, 1]} : vector<2x64xf32> to vector<2x32xf32>
    %75 = arith.index_cast %c1_i32 : i32 to index
    %c0_33 = arith.constant 0 : index
    %c0_34 = arith.constant 0 : index
    %76 = vector.load %arg10[%75, %c0_33, %c0_34] : memref<12x2x32xf32, #tpu.memory_space<vmem>>, vector<1x2x32xf32>
    %77 = vector.shape_cast %76 : vector<1x2x32xf32> to vector<2x32xf32>
    %78 = vector.shape_cast %74 : vector<2x32xf32> to vector<1x2x32xf32>
    tpu.vector_store %arg10[%75, %c0_33, %c0_34], %78 {strides = array<i32>} : memref<12x2x32xf32, #tpu.memory_space<vmem>>, vector<1x2x32xf32>,
    %79 = vector.extract_strided_slice %73 {offsets = [0, 32], sizes = [2, 32], strides = [1, 1]} : vector<2x64xf32> to vector<2x32xf32>
    %80 = arith.index_cast %45 : i32 to index
    %c0_35 = arith.constant 0 : index
    %c0_36 = arith.constant 0 : index
    %81 = vector.load %arg11[%80, %c0_35, %c0_36] : memref<12x2x32xf32, #tpu.memory_space<vmem>>, vector<1x2x32xf32>
    %82 = vector.shape_cast %81 : vector<1x2x32xf32> to vector<2x32xf32>
    %83 = vector.shape_cast %79 : vector<2x32xf32> to vector<1x2x32xf32>
    tpu.vector_store %arg11[%80, %c0_35, %c0_36], %83 {strides = array<i32>} : memref<12x2x32xf32, #tpu.memory_space<vmem>>, vector<1x2x32xf32>,
    %c2_i32_37 = arith.constant 2 : i32
    %c11_i32_38 = arith.constant 11 : i32
    %84 = arith.subi %c11_i32_38, %c2_i32_37 : i32
    %c2_i32_39 = arith.constant 2 : i32
    %85 = arith.muli %c2_i32_37, %c2_i32_39 : i32
    %86 = arith.index_cast %85 : i32 to index
    %c0_40 = arith.constant 0 : index
    %87 = vector.load %arg9[%86, %c0_40] : memref<24x512xf32, #tpu.memory_space<vmem>>, vector<2x512xf32>
    %c0_41 = arith.constant 0 : index
    %c0_42 = arith.constant 0 : index
    %88 = vector.load %arg2[%c0_41, %c0_42] : memref<64x512xf32, #tpu.memory_space<vmem>>, vector<64x512xf32>
    %cst_43 = arith.constant dense<0.000000e+00> : vector<2x512xf32>
    %89 = tpu.matmul %73, %88, %cst_43 {dimension_numbers = #tpu.dot_dimension_numbers<[1], [0], [0], [1], [0, 0, 1, 1], [], []>} : vector<2x64xf32>, vector<64x512xf32>, vector<2x512xf32> -> vector<2x512xf32>
    %90 = arith.addf %87, %89 : vector<2x512xf32>
    %91 = math.tanh %90 : vector<2x512xf32>
    %92 = vector.extract_strided_slice %91 {offsets = [0, 0], sizes = [2, 64], strides = [1, 1]} : vector<2x512xf32> to vector<2x64xf32>
    %cst_44 = arith.constant 5.000000e-01 : f32
    %93 = vector.broadcast %cst_44 : f32 to vector<2x64xf32>
    %94 = arith.mulf %92, %93 : vector<2x64xf32>
    %cst_45 = arith.constant 5.000000e-01 : f32
    %95 = vector.broadcast %cst_45 : f32 to vector<2x64xf32>
    %96 = arith.addf %94, %95 : vector<2x64xf32>
    %97 = vector.extract_strided_slice %91 {offsets = [0, 128], sizes = [2, 64], strides = [1, 1]} : vector<2x512xf32> to vector<2x64xf32>
    %cst_46 = arith.constant 5.000000e-01 : f32
    %98 = vector.broadcast %cst_46 : f32 to vector<2x64xf32>
    %99 = arith.mulf %97, %98 : vector<2x64xf32>
    %cst_47 = arith.constant 5.000000e-01 : f32
    %100 = vector.broadcast %cst_47 : f32 to vector<2x64xf32>
    %101 = arith.addf %99, %100 : vector<2x64xf32>
    %102 = vector.extract_strided_slice %91 {offsets = [0, 256], sizes = [2, 64], strides = [1, 1]} : vector<2x512xf32> to vector<2x64xf32>
    %103 = vector.extract_strided_slice %91 {offsets = [0, 384], sizes = [2, 64], strides = [1, 1]} : vector<2x512xf32> to vector<2x64xf32>
    %cst_48 = arith.constant 5.000000e-01 : f32
    %104 = vector.broadcast %cst_48 : f32 to vector<2x64xf32>
    %105 = arith.mulf %103, %104 : vector<2x64xf32>
    %cst_49 = arith.constant 5.000000e-01 : f32
    %106 = vector.broadcast %cst_49 : f32 to vector<2x64xf32>
    %107 = arith.addf %105, %106 : vector<2x64xf32>
    %108 = arith.mulf %101, %71 : vector<2x64xf32>
    %109 = arith.mulf %96, %102 : vector<2x64xf32>
    %110 = arith.addf %108, %109 : vector<2x64xf32>
    %111 = math.tanh %110 : vector<2x64xf32>
    %112 = arith.mulf %107, %111 : vector<2x64xf32>
    %113 = vector.extract_strided_slice %112 {offsets = [0, 0], sizes = [2, 32], strides = [1, 1]} : vector<2x64xf32> to vector<2x32xf32>
    %114 = arith.index_cast %c2_i32_37 : i32 to index
    %c0_50 = arith.constant 0 : index
    %c0_51 = arith.constant 0 : index
    %115 = vector.load %arg10[%114, %c0_50, %c0_51] : memref<12x2x32xf32, #tpu.memory_space<vmem>>, vector<1x2x32xf32>
    %116 = vector.shape_cast %115 : vector<1x2x32xf32> to vector<2x32xf32>
    %117 = vector.shape_cast %113 : vector<2x32xf32> to vector<1x2x32xf32>
    tpu.vector_store %arg10[%114, %c0_50, %c0_51], %117 {strides = array<i32>} : memref<12x2x32xf32, #tpu.memory_space<vmem>>, vector<1x2x32xf32>,
    %118 = vector.extract_strided_slice %112 {offsets = [0, 32], sizes = [2, 32], strides = [1, 1]} : vector<2x64xf32> to vector<2x32xf32>
    %119 = arith.index_cast %84 : i32 to index
    %c0_52 = arith.constant 0 : index
    %c0_53 = arith.constant 0 : index
    %120 = vector.load %arg11[%119, %c0_52, %c0_53] : memref<12x2x32xf32, #tpu.memory_space<vmem>>, vector<1x2x32xf32>
    %121 = vector.shape_cast %120 : vector<1x2x32xf32> to vector<2x32xf32>
    %122 = vector.shape_cast %118 : vector<2x32xf32> to vector<1x2x32xf32>
    tpu.vector_store %arg11[%119, %c0_52, %c0_53], %122 {strides = array<i32>} : memref<12x2x32xf32, #tpu.memory_space<vmem>>, vector<1x2x32xf32>,
    %c3_i32 = arith.constant 3 : i32
    %c11_i32_54 = arith.constant 11 : i32
    %123 = arith.subi %c11_i32_54, %c3_i32 : i32
    %c2_i32_55 = arith.constant 2 : i32
    %124 = arith.muli %c3_i32, %c2_i32_55 : i32
    %125 = arith.index_cast %124 : i32 to index
    %c0_56 = arith.constant 0 : index
    %126 = vector.load %arg9[%125, %c0_56] : memref<24x512xf32, #tpu.memory_space<vmem>>, vector<2x512xf32>
    %c0_57 = arith.constant 0 : index
    %c0_58 = arith.constant 0 : index
    %127 = vector.load %arg2[%c0_57, %c0_58] : memref<64x512xf32, #tpu.memory_space<vmem>>, vector<64x512xf32>
    %cst_59 = arith.constant dense<0.000000e+00> : vector<2x512xf32>
    %128 = tpu.matmul %112, %127, %cst_59 {dimension_numbers = #tpu.dot_dimension_numbers<[1], [0], [0], [1], [0, 0, 1, 1], [], []>} : vector<2x64xf32>, vector<64x512xf32>, vector<2x512xf32> -> vector<2x512xf32>
    %129 = arith.addf %126, %128 : vector<2x512xf32>
    %130 = math.tanh %129 : vector<2x512xf32>
    %131 = vector.extract_strided_slice %130 {offsets = [0, 0], sizes = [2, 64], strides = [1, 1]} : vector<2x512xf32> to vector<2x64xf32>
    %cst_60 = arith.constant 5.000000e-01 : f32
    %132 = vector.broadcast %cst_60 : f32 to vector<2x64xf32>
    %133 = arith.mulf %131, %132 : vector<2x64xf32>
    %cst_61 = arith.constant 5.000000e-01 : f32
    %134 = vector.broadcast %cst_61 : f32 to vector<2x64xf32>
    %135 = arith.addf %133, %134 : vector<2x64xf32>
    %136 = vector.extract_strided_slice %130 {offsets = [0, 128], sizes = [2, 64], strides = [1, 1]} : vector<2x512xf32> to vector<2x64xf32>
    %cst_62 = arith.constant 5.000000e-01 : f32
    %137 = vector.broadcast %cst_62 : f32 to vector<2x64xf32>
    %138 = arith.mulf %136, %137 : vector<2x64xf32>
    %cst_63 = arith.constant 5.000000e-01 : f32
    %139 = vector.broadcast %cst_63 : f32 to vector<2x64xf32>
    %140 = arith.addf %138, %139 : vector<2x64xf32>
    %141 = vector.extract_strided_slice %130 {offsets = [0, 256], sizes = [2, 64], strides = [1, 1]} : vector<2x512xf32> to vector<2x64xf32>
    %142 = vector.extract_strided_slice %130 {offsets = [0, 384], sizes = [2, 64], strides = [1, 1]} : vector<2x512xf32> to vector<2x64xf32>
    %cst_64 = arith.constant 5.000000e-01 : f32
    %143 = vector.broadcast %cst_64 : f32 to vector<2x64xf32>
    %144 = arith.mulf %142, %143 : vector<2x64xf32>
    %cst_65 = arith.constant 5.000000e-01 : f32
    %145 = vector.broadcast %cst_65 : f32 to vector<2x64xf32>
    %146 = arith.addf %144, %145 : vector<2x64xf32>
    %147 = arith.mulf %140, %110 : vector<2x64xf32>
    %148 = arith.mulf %135, %141 : vector<2x64xf32>
    %149 = arith.addf %147, %148 : vector<2x64xf32>
    %150 = math.tanh %149 : vector<2x64xf32>
    %151 = arith.mulf %146, %150 : vector<2x64xf32>
    %152 = vector.extract_strided_slice %151 {offsets = [0, 0], sizes = [2, 32], strides = [1, 1]} : vector<2x64xf32> to vector<2x32xf32>
    %153 = arith.index_cast %c3_i32 : i32 to index
    %c0_66 = arith.constant 0 : index
    %c0_67 = arith.constant 0 : index
    %154 = vector.load %arg10[%153, %c0_66, %c0_67] : memref<12x2x32xf32, #tpu.memory_space<vmem>>, vector<1x2x32xf32>
    %155 = vector.shape_cast %154 : vector<1x2x32xf32> to vector<2x32xf32>
    %156 = vector.shape_cast %152 : vector<2x32xf32> to vector<1x2x32xf32>
    tpu.vector_store %arg10[%153, %c0_66, %c0_67], %156 {strides = array<i32>} : memref<12x2x32xf32, #tpu.memory_space<vmem>>, vector<1x2x32xf32>,
    %157 = vector.extract_strided_slice %151 {offsets = [0, 32], sizes = [2, 32], strides = [1, 1]} : vector<2x64xf32> to vector<2x32xf32>
    %158 = arith.index_cast %123 : i32 to index
    %c0_68 = arith.constant 0 : index
    %c0_69 = arith.constant 0 : index
    %159 = vector.load %arg11[%158, %c0_68, %c0_69] : memref<12x2x32xf32, #tpu.memory_space<vmem>>, vector<1x2x32xf32>
    %160 = vector.shape_cast %159 : vector<1x2x32xf32> to vector<2x32xf32>
    %161 = vector.shape_cast %157 : vector<2x32xf32> to vector<1x2x32xf32>
    tpu.vector_store %arg11[%158, %c0_68, %c0_69], %161 {strides = array<i32>} : memref<12x2x32xf32, #tpu.memory_space<vmem>>, vector<1x2x32xf32>,
    %c4_i32 = arith.constant 4 : i32
    %c11_i32_70 = arith.constant 11 : i32
    %162 = arith.subi %c11_i32_70, %c4_i32 : i32
    %c2_i32_71 = arith.constant 2 : i32
    %163 = arith.muli %c4_i32, %c2_i32_71 : i32
    %164 = arith.index_cast %163 : i32 to index
    %c0_72 = arith.constant 0 : index
    %165 = vector.load %arg9[%164, %c0_72] : memref<24x512xf32, #tpu.memory_space<vmem>>, vector<2x512xf32>
    %c0_73 = arith.constant 0 : index
    %c0_74 = arith.constant 0 : index
    %166 = vector.load %arg2[%c0_73, %c0_74] : memref<64x512xf32, #tpu.memory_space<vmem>>, vector<64x512xf32>
    %cst_75 = arith.constant dense<0.000000e+00> : vector<2x512xf32>
    %167 = tpu.matmul %151, %166, %cst_75 {dimension_numbers = #tpu.dot_dimension_numbers<[1], [0], [0], [1], [0, 0, 1, 1], [], []>} : vector<2x64xf32>, vector<64x512xf32>, vector<2x512xf32> -> vector<2x512xf32>
    %168 = arith.addf %165, %167 : vector<2x512xf32>
    %169 = math.tanh %168 : vector<2x512xf32>
    %170 = vector.extract_strided_slice %169 {offsets = [0, 0], sizes = [2, 64], strides = [1, 1]} : vector<2x512xf32> to vector<2x64xf32>
    %cst_76 = arith.constant 5.000000e-01 : f32
    %171 = vector.broadcast %cst_76 : f32 to vector<2x64xf32>
    %172 = arith.mulf %170, %171 : vector<2x64xf32>
    %cst_77 = arith.constant 5.000000e-01 : f32
    %173 = vector.broadcast %cst_77 : f32 to vector<2x64xf32>
    %174 = arith.addf %172, %173 : vector<2x64xf32>
    %175 = vector.extract_strided_slice %169 {offsets = [0, 128], sizes = [2, 64], strides = [1, 1]} : vector<2x512xf32> to vector<2x64xf32>
    %cst_78 = arith.constant 5.000000e-01 : f32
    %176 = vector.broadcast %cst_78 : f32 to vector<2x64xf32>
    %177 = arith.mulf %175, %176 : vector<2x64xf32>
    %cst_79 = arith.constant 5.000000e-01 : f32
    %178 = vector.broadcast %cst_79 : f32 to vector<2x64xf32>
    %179 = arith.addf %177, %178 : vector<2x64xf32>
    %180 = vector.extract_strided_slice %169 {offsets = [0, 256], sizes = [2, 64], strides = [1, 1]} : vector<2x512xf32> to vector<2x64xf32>
    %181 = vector.extract_strided_slice %169 {offsets = [0, 384], sizes = [2, 64], strides = [1, 1]} : vector<2x512xf32> to vector<2x64xf32>
    %cst_80 = arith.constant 5.000000e-01 : f32
    %182 = vector.broadcast %cst_80 : f32 to vector<2x64xf32>
    %183 = arith.mulf %181, %182 : vector<2x64xf32>
    %cst_81 = arith.constant 5.000000e-01 : f32
    %184 = vector.broadcast %cst_81 : f32 to vector<2x64xf32>
    %185 = arith.addf %183, %184 : vector<2x64xf32>
    %186 = arith.mulf %179, %149 : vector<2x64xf32>
    %187 = arith.mulf %174, %180 : vector<2x64xf32>
    %188 = arith.addf %186, %187 : vector<2x64xf32>
    %189 = math.tanh %188 : vector<2x64xf32>
    %190 = arith.mulf %185, %189 : vector<2x64xf32>
    %191 = vector.extract_strided_slice %190 {offsets = [0, 0], sizes = [2, 32], strides = [1, 1]} : vector<2x64xf32> to vector<2x32xf32>
    %192 = arith.index_cast %c4_i32 : i32 to index
    %c0_82 = arith.constant 0 : index
    %c0_83 = arith.constant 0 : index
    %193 = vector.load %arg10[%192, %c0_82, %c0_83] : memref<12x2x32xf32, #tpu.memory_space<vmem>>, vector<1x2x32xf32>
    %194 = vector.shape_cast %193 : vector<1x2x32xf32> to vector<2x32xf32>
    %195 = vector.shape_cast %191 : vector<2x32xf32> to vector<1x2x32xf32>
    tpu.vector_store %arg10[%192, %c0_82, %c0_83], %195 {strides = array<i32>} : memref<12x2x32xf32, #tpu.memory_space<vmem>>, vector<1x2x32xf32>,
    %196 = vector.extract_strided_slice %190 {offsets = [0, 32], sizes = [2, 32], strides = [1, 1]} : vector<2x64xf32> to vector<2x32xf32>
    %197 = arith.index_cast %162 : i32 to index
    %c0_84 = arith.constant 0 : index
    %c0_85 = arith.constant 0 : index
    %198 = vector.load %arg11[%197, %c0_84, %c0_85] : memref<12x2x32xf32, #tpu.memory_space<vmem>>, vector<1x2x32xf32>
    %199 = vector.shape_cast %198 : vector<1x2x32xf32> to vector<2x32xf32>
    %200 = vector.shape_cast %196 : vector<2x32xf32> to vector<1x2x32xf32>
    tpu.vector_store %arg11[%197, %c0_84, %c0_85], %200 {strides = array<i32>} : memref<12x2x32xf32, #tpu.memory_space<vmem>>, vector<1x2x32xf32>,
    %c5_i32 = arith.constant 5 : i32
    %c11_i32_86 = arith.constant 11 : i32
    %201 = arith.subi %c11_i32_86, %c5_i32 : i32
    %c2_i32_87 = arith.constant 2 : i32
    %202 = arith.muli %c5_i32, %c2_i32_87 : i32
    %203 = arith.index_cast %202 : i32 to index
    %c0_88 = arith.constant 0 : index
    %204 = vector.load %arg9[%203, %c0_88] : memref<24x512xf32, #tpu.memory_space<vmem>>, vector<2x512xf32>
    %c0_89 = arith.constant 0 : index
    %c0_90 = arith.constant 0 : index
    %205 = vector.load %arg2[%c0_89, %c0_90] : memref<64x512xf32, #tpu.memory_space<vmem>>, vector<64x512xf32>
    %cst_91 = arith.constant dense<0.000000e+00> : vector<2x512xf32>
    %206 = tpu.matmul %190, %205, %cst_91 {dimension_numbers = #tpu.dot_dimension_numbers<[1], [0], [0], [1], [0, 0, 1, 1], [], []>} : vector<2x64xf32>, vector<64x512xf32>, vector<2x512xf32> -> vector<2x512xf32>
    %207 = arith.addf %204, %206 : vector<2x512xf32>
    %208 = math.tanh %207 : vector<2x512xf32>
    %209 = vector.extract_strided_slice %208 {offsets = [0, 0], sizes = [2, 64], strides = [1, 1]} : vector<2x512xf32> to vector<2x64xf32>
    %cst_92 = arith.constant 5.000000e-01 : f32
    %210 = vector.broadcast %cst_92 : f32 to vector<2x64xf32>
    %211 = arith.mulf %209, %210 : vector<2x64xf32>
    %cst_93 = arith.constant 5.000000e-01 : f32
    %212 = vector.broadcast %cst_93 : f32 to vector<2x64xf32>
    %213 = arith.addf %211, %212 : vector<2x64xf32>
    %214 = vector.extract_strided_slice %208 {offsets = [0, 128], sizes = [2, 64], strides = [1, 1]} : vector<2x512xf32> to vector<2x64xf32>
    %cst_94 = arith.constant 5.000000e-01 : f32
    %215 = vector.broadcast %cst_94 : f32 to vector<2x64xf32>
    %216 = arith.mulf %214, %215 : vector<2x64xf32>
    %cst_95 = arith.constant 5.000000e-01 : f32
    %217 = vector.broadcast %cst_95 : f32 to vector<2x64xf32>
    %218 = arith.addf %216, %217 : vector<2x64xf32>
    %219 = vector.extract_strided_slice %208 {offsets = [0, 256], sizes = [2, 64], strides = [1, 1]} : vector<2x512xf32> to vector<2x64xf32>
    %220 = vector.extract_strided_slice %208 {offsets = [0, 384], sizes = [2, 64], strides = [1, 1]} : vector<2x512xf32> to vector<2x64xf32>
    %cst_96 = arith.constant 5.000000e-01 : f32
    %221 = vector.broadcast %cst_96 : f32 to vector<2x64xf32>
    %222 = arith.mulf %220, %221 : vector<2x64xf32>
    %cst_97 = arith.constant 5.000000e-01 : f32
    %223 = vector.broadcast %cst_97 : f32 to vector<2x64xf32>
    %224 = arith.addf %222, %223 : vector<2x64xf32>
    %225 = arith.mulf %218, %188 : vector<2x64xf32>
    %226 = arith.mulf %213, %219 : vector<2x64xf32>
    %227 = arith.addf %225, %226 : vector<2x64xf32>
    %228 = math.tanh %227 : vector<2x64xf32>
    %229 = arith.mulf %224, %228 : vector<2x64xf32>
    %230 = vector.extract_strided_slice %229 {offsets = [0, 0], sizes = [2, 32], strides = [1, 1]} : vector<2x64xf32> to vector<2x32xf32>
    %231 = arith.index_cast %c5_i32 : i32 to index
    %c0_98 = arith.constant 0 : index
    %c0_99 = arith.constant 0 : index
    %232 = vector.load %arg10[%231, %c0_98, %c0_99] : memref<12x2x32xf32, #tpu.memory_space<vmem>>, vector<1x2x32xf32>
    %233 = vector.shape_cast %232 : vector<1x2x32xf32> to vector<2x32xf32>
    %234 = vector.shape_cast %230 : vector<2x32xf32> to vector<1x2x32xf32>
    tpu.vector_store %arg10[%231, %c0_98, %c0_99], %234 {strides = array<i32>} : memref<12x2x32xf32, #tpu.memory_space<vmem>>, vector<1x2x32xf32>,
    %235 = vector.extract_strided_slice %229 {offsets = [0, 32], sizes = [2, 32], strides = [1, 1]} : vector<2x64xf32> to vector<2x32xf32>
    %236 = arith.index_cast %201 : i32 to index
    %c0_100 = arith.constant 0 : index
    %c0_101 = arith.constant 0 : index
    %237 = vector.load %arg11[%236, %c0_100, %c0_101] : memref<12x2x32xf32, #tpu.memory_space<vmem>>, vector<1x2x32xf32>
    %238 = vector.shape_cast %237 : vector<1x2x32xf32> to vector<2x32xf32>
    %239 = vector.shape_cast %235 : vector<2x32xf32> to vector<1x2x32xf32>
    tpu.vector_store %arg11[%236, %c0_100, %c0_101], %239 {strides = array<i32>} : memref<12x2x32xf32, #tpu.memory_space<vmem>>, vector<1x2x32xf32>,
    %c6_i32 = arith.constant 6 : i32
    %c11_i32_102 = arith.constant 11 : i32
    %240 = arith.subi %c11_i32_102, %c6_i32 : i32
    %c2_i32_103 = arith.constant 2 : i32
    %241 = arith.muli %c6_i32, %c2_i32_103 : i32
    %242 = arith.index_cast %241 : i32 to index
    %c0_104 = arith.constant 0 : index
    %243 = vector.load %arg9[%242, %c0_104] : memref<24x512xf32, #tpu.memory_space<vmem>>, vector<2x512xf32>
    %c0_105 = arith.constant 0 : index
    %c0_106 = arith.constant 0 : index
    %244 = vector.load %arg2[%c0_105, %c0_106] : memref<64x512xf32, #tpu.memory_space<vmem>>, vector<64x512xf32>
    %cst_107 = arith.constant dense<0.000000e+00> : vector<2x512xf32>
    %245 = tpu.matmul %229, %244, %cst_107 {dimension_numbers = #tpu.dot_dimension_numbers<[1], [0], [0], [1], [0, 0, 1, 1], [], []>} : vector<2x64xf32>, vector<64x512xf32>, vector<2x512xf32> -> vector<2x512xf32>
    %246 = arith.addf %243, %245 : vector<2x512xf32>
    %247 = math.tanh %246 : vector<2x512xf32>
    %248 = vector.extract_strided_slice %247 {offsets = [0, 0], sizes = [2, 64], strides = [1, 1]} : vector<2x512xf32> to vector<2x64xf32>
    %cst_108 = arith.constant 5.000000e-01 : f32
    %249 = vector.broadcast %cst_108 : f32 to vector<2x64xf32>
    %250 = arith.mulf %248, %249 : vector<2x64xf32>
    %cst_109 = arith.constant 5.000000e-01 : f32
    %251 = vector.broadcast %cst_109 : f32 to vector<2x64xf32>
    %252 = arith.addf %250, %251 : vector<2x64xf32>
    %253 = vector.extract_strided_slice %247 {offsets = [0, 128], sizes = [2, 64], strides = [1, 1]} : vector<2x512xf32> to vector<2x64xf32>
    %cst_110 = arith.constant 5.000000e-01 : f32
    %254 = vector.broadcast %cst_110 : f32 to vector<2x64xf32>
    %255 = arith.mulf %253, %254 : vector<2x64xf32>
    %cst_111 = arith.constant 5.000000e-01 : f32
    %256 = vector.broadcast %cst_111 : f32 to vector<2x64xf32>
    %257 = arith.addf %255, %256 : vector<2x64xf32>
    %258 = vector.extract_strided_slice %247 {offsets = [0, 256], sizes = [2, 64], strides = [1, 1]} : vector<2x512xf32> to vector<2x64xf32>
    %259 = vector.extract_strided_slice %247 {offsets = [0, 384], sizes = [2, 64], strides = [1, 1]} : vector<2x512xf32> to vector<2x64xf32>
    %cst_112 = arith.constant 5.000000e-01 : f32
    %260 = vector.broadcast %cst_112 : f32 to vector<2x64xf32>
    %261 = arith.mulf %259, %260 : vector<2x64xf32>
    %cst_113 = arith.constant 5.000000e-01 : f32
    %262 = vector.broadcast %cst_113 : f32 to vector<2x64xf32>
    %263 = arith.addf %261, %262 : vector<2x64xf32>
    %264 = arith.mulf %257, %227 : vector<2x64xf32>
    %265 = arith.mulf %252, %258 : vector<2x64xf32>
    %266 = arith.addf %264, %265 : vector<2x64xf32>
    %267 = math.tanh %266 : vector<2x64xf32>
    %268 = arith.mulf %263, %267 : vector<2x64xf32>
    %269 = vector.extract_strided_slice %268 {offsets = [0, 0], sizes = [2, 32], strides = [1, 1]} : vector<2x64xf32> to vector<2x32xf32>
    %270 = arith.index_cast %c6_i32 : i32 to index
    %c0_114 = arith.constant 0 : index
    %c0_115 = arith.constant 0 : index
    %271 = vector.load %arg10[%270, %c0_114, %c0_115] : memref<12x2x32xf32, #tpu.memory_space<vmem>>, vector<1x2x32xf32>
    %272 = vector.shape_cast %271 : vector<1x2x32xf32> to vector<2x32xf32>
    %273 = vector.shape_cast %269 : vector<2x32xf32> to vector<1x2x32xf32>
    tpu.vector_store %arg10[%270, %c0_114, %c0_115], %273 {strides = array<i32>} : memref<12x2x32xf32, #tpu.memory_space<vmem>>, vector<1x2x32xf32>,
    %274 = vector.extract_strided_slice %268 {offsets = [0, 32], sizes = [2, 32], strides = [1, 1]} : vector<2x64xf32> to vector<2x32xf32>
    %275 = arith.index_cast %240 : i32 to index
    %c0_116 = arith.constant 0 : index
    %c0_117 = arith.constant 0 : index
    %276 = vector.load %arg11[%275, %c0_116, %c0_117] : memref<12x2x32xf32, #tpu.memory_space<vmem>>, vector<1x2x32xf32>
    %277 = vector.shape_cast %276 : vector<1x2x32xf32> to vector<2x32xf32>
    %278 = vector.shape_cast %274 : vector<2x32xf32> to vector<1x2x32xf32>
    tpu.vector_store %arg11[%275, %c0_116, %c0_117], %278 {strides = array<i32>} : memref<12x2x32xf32, #tpu.memory_space<vmem>>, vector<1x2x32xf32>,
    %c7_i32 = arith.constant 7 : i32
    %c11_i32_118 = arith.constant 11 : i32
    %279 = arith.subi %c11_i32_118, %c7_i32 : i32
    %c2_i32_119 = arith.constant 2 : i32
    %280 = arith.muli %c7_i32, %c2_i32_119 : i32
    %281 = arith.index_cast %280 : i32 to index
    %c0_120 = arith.constant 0 : index
    %282 = vector.load %arg9[%281, %c0_120] : memref<24x512xf32, #tpu.memory_space<vmem>>, vector<2x512xf32>
    %c0_121 = arith.constant 0 : index
    %c0_122 = arith.constant 0 : index
    %283 = vector.load %arg2[%c0_121, %c0_122] : memref<64x512xf32, #tpu.memory_space<vmem>>, vector<64x512xf32>
    %cst_123 = arith.constant dense<0.000000e+00> : vector<2x512xf32>
    %284 = tpu.matmul %268, %283, %cst_123 {dimension_numbers = #tpu.dot_dimension_numbers<[1], [0], [0], [1], [0, 0, 1, 1], [], []>} : vector<2x64xf32>, vector<64x512xf32>, vector<2x512xf32> -> vector<2x512xf32>
    %285 = arith.addf %282, %284 : vector<2x512xf32>
    %286 = math.tanh %285 : vector<2x512xf32>
    %287 = vector.extract_strided_slice %286 {offsets = [0, 0], sizes = [2, 64], strides = [1, 1]} : vector<2x512xf32> to vector<2x64xf32>
    %cst_124 = arith.constant 5.000000e-01 : f32
    %288 = vector.broadcast %cst_124 : f32 to vector<2x64xf32>
    %289 = arith.mulf %287, %288 : vector<2x64xf32>
    %cst_125 = arith.constant 5.000000e-01 : f32
    %290 = vector.broadcast %cst_125 : f32 to vector<2x64xf32>
    %291 = arith.addf %289, %290 : vector<2x64xf32>
    %292 = vector.extract_strided_slice %286 {offsets = [0, 128], sizes = [2, 64], strides = [1, 1]} : vector<2x512xf32> to vector<2x64xf32>
    %cst_126 = arith.constant 5.000000e-01 : f32
    %293 = vector.broadcast %cst_126 : f32 to vector<2x64xf32>
    %294 = arith.mulf %292, %293 : vector<2x64xf32>
    %cst_127 = arith.constant 5.000000e-01 : f32
    %295 = vector.broadcast %cst_127 : f32 to vector<2x64xf32>
    %296 = arith.addf %294, %295 : vector<2x64xf32>
    %297 = vector.extract_strided_slice %286 {offsets = [0, 256], sizes = [2, 64], strides = [1, 1]} : vector<2x512xf32> to vector<2x64xf32>
    %298 = vector.extract_strided_slice %286 {offsets = [0, 384], sizes = [2, 64], strides = [1, 1]} : vector<2x512xf32> to vector<2x64xf32>
    %cst_128 = arith.constant 5.000000e-01 : f32
    %299 = vector.broadcast %cst_128 : f32 to vector<2x64xf32>
    %300 = arith.mulf %298, %299 : vector<2x64xf32>
    %cst_129 = arith.constant 5.000000e-01 : f32
    %301 = vector.broadcast %cst_129 : f32 to vector<2x64xf32>
    %302 = arith.addf %300, %301 : vector<2x64xf32>
    %303 = arith.mulf %296, %266 : vector<2x64xf32>
    %304 = arith.mulf %291, %297 : vector<2x64xf32>
    %305 = arith.addf %303, %304 : vector<2x64xf32>
    %306 = math.tanh %305 : vector<2x64xf32>
    %307 = arith.mulf %302, %306 : vector<2x64xf32>
    %308 = vector.extract_strided_slice %307 {offsets = [0, 0], sizes = [2, 32], strides = [1, 1]} : vector<2x64xf32> to vector<2x32xf32>
    %309 = arith.index_cast %c7_i32 : i32 to index
    %c0_130 = arith.constant 0 : index
    %c0_131 = arith.constant 0 : index
    %310 = vector.load %arg10[%309, %c0_130, %c0_131] : memref<12x2x32xf32, #tpu.memory_space<vmem>>, vector<1x2x32xf32>
    %311 = vector.shape_cast %310 : vector<1x2x32xf32> to vector<2x32xf32>
    %312 = vector.shape_cast %308 : vector<2x32xf32> to vector<1x2x32xf32>
    tpu.vector_store %arg10[%309, %c0_130, %c0_131], %312 {strides = array<i32>} : memref<12x2x32xf32, #tpu.memory_space<vmem>>, vector<1x2x32xf32>,
    %313 = vector.extract_strided_slice %307 {offsets = [0, 32], sizes = [2, 32], strides = [1, 1]} : vector<2x64xf32> to vector<2x32xf32>
    %314 = arith.index_cast %279 : i32 to index
    %c0_132 = arith.constant 0 : index
    %c0_133 = arith.constant 0 : index
    %315 = vector.load %arg11[%314, %c0_132, %c0_133] : memref<12x2x32xf32, #tpu.memory_space<vmem>>, vector<1x2x32xf32>
    %316 = vector.shape_cast %315 : vector<1x2x32xf32> to vector<2x32xf32>
    %317 = vector.shape_cast %313 : vector<2x32xf32> to vector<1x2x32xf32>
    tpu.vector_store %arg11[%314, %c0_132, %c0_133], %317 {strides = array<i32>} : memref<12x2x32xf32, #tpu.memory_space<vmem>>, vector<1x2x32xf32>,
    %c8_i32 = arith.constant 8 : i32
    %c11_i32_134 = arith.constant 11 : i32
    %318 = arith.subi %c11_i32_134, %c8_i32 : i32
    %c2_i32_135 = arith.constant 2 : i32
    %319 = arith.muli %c8_i32, %c2_i32_135 : i32
    %320 = arith.index_cast %319 : i32 to index
    %c0_136 = arith.constant 0 : index
    %321 = vector.load %arg9[%320, %c0_136] : memref<24x512xf32, #tpu.memory_space<vmem>>, vector<2x512xf32>
    %c0_137 = arith.constant 0 : index
    %c0_138 = arith.constant 0 : index
    %322 = vector.load %arg2[%c0_137, %c0_138] : memref<64x512xf32, #tpu.memory_space<vmem>>, vector<64x512xf32>
    %cst_139 = arith.constant dense<0.000000e+00> : vector<2x512xf32>
    %323 = tpu.matmul %307, %322, %cst_139 {dimension_numbers = #tpu.dot_dimension_numbers<[1], [0], [0], [1], [0, 0, 1, 1], [], []>} : vector<2x64xf32>, vector<64x512xf32>, vector<2x512xf32> -> vector<2x512xf32>
    %324 = arith.addf %321, %323 : vector<2x512xf32>
    %325 = math.tanh %324 : vector<2x512xf32>
    %326 = vector.extract_strided_slice %325 {offsets = [0, 0], sizes = [2, 64], strides = [1, 1]} : vector<2x512xf32> to vector<2x64xf32>
    %cst_140 = arith.constant 5.000000e-01 : f32
    %327 = vector.broadcast %cst_140 : f32 to vector<2x64xf32>
    %328 = arith.mulf %326, %327 : vector<2x64xf32>
    %cst_141 = arith.constant 5.000000e-01 : f32
    %329 = vector.broadcast %cst_141 : f32 to vector<2x64xf32>
    %330 = arith.addf %328, %329 : vector<2x64xf32>
    %331 = vector.extract_strided_slice %325 {offsets = [0, 128], sizes = [2, 64], strides = [1, 1]} : vector<2x512xf32> to vector<2x64xf32>
    %cst_142 = arith.constant 5.000000e-01 : f32
    %332 = vector.broadcast %cst_142 : f32 to vector<2x64xf32>
    %333 = arith.mulf %331, %332 : vector<2x64xf32>
    %cst_143 = arith.constant 5.000000e-01 : f32
    %334 = vector.broadcast %cst_143 : f32 to vector<2x64xf32>
    %335 = arith.addf %333, %334 : vector<2x64xf32>
    %336 = vector.extract_strided_slice %325 {offsets = [0, 256], sizes = [2, 64], strides = [1, 1]} : vector<2x512xf32> to vector<2x64xf32>
    %337 = vector.extract_strided_slice %325 {offsets = [0, 384], sizes = [2, 64], strides = [1, 1]} : vector<2x512xf32> to vector<2x64xf32>
    %cst_144 = arith.constant 5.000000e-01 : f32
    %338 = vector.broadcast %cst_144 : f32 to vector<2x64xf32>
    %339 = arith.mulf %337, %338 : vector<2x64xf32>
    %cst_145 = arith.constant 5.000000e-01 : f32
    %340 = vector.broadcast %cst_145 : f32 to vector<2x64xf32>
    %341 = arith.addf %339, %340 : vector<2x64xf32>
    %342 = arith.mulf %335, %305 : vector<2x64xf32>
    %343 = arith.mulf %330, %336 : vector<2x64xf32>
    %344 = arith.addf %342, %343 : vector<2x64xf32>
    %345 = math.tanh %344 : vector<2x64xf32>
    %346 = arith.mulf %341, %345 : vector<2x64xf32>
    %347 = vector.extract_strided_slice %346 {offsets = [0, 0], sizes = [2, 32], strides = [1, 1]} : vector<2x64xf32> to vector<2x32xf32>
    %348 = arith.index_cast %c8_i32 : i32 to index
    %c0_146 = arith.constant 0 : index
    %c0_147 = arith.constant 0 : index
    %349 = vector.load %arg10[%348, %c0_146, %c0_147] : memref<12x2x32xf32, #tpu.memory_space<vmem>>, vector<1x2x32xf32>
    %350 = vector.shape_cast %349 : vector<1x2x32xf32> to vector<2x32xf32>
    %351 = vector.shape_cast %347 : vector<2x32xf32> to vector<1x2x32xf32>
    tpu.vector_store %arg10[%348, %c0_146, %c0_147], %351 {strides = array<i32>} : memref<12x2x32xf32, #tpu.memory_space<vmem>>, vector<1x2x32xf32>,
    %352 = vector.extract_strided_slice %346 {offsets = [0, 32], sizes = [2, 32], strides = [1, 1]} : vector<2x64xf32> to vector<2x32xf32>
    %353 = arith.index_cast %318 : i32 to index
    %c0_148 = arith.constant 0 : index
    %c0_149 = arith.constant 0 : index
    %354 = vector.load %arg11[%353, %c0_148, %c0_149] : memref<12x2x32xf32, #tpu.memory_space<vmem>>, vector<1x2x32xf32>
    %355 = vector.shape_cast %354 : vector<1x2x32xf32> to vector<2x32xf32>
    %356 = vector.shape_cast %352 : vector<2x32xf32> to vector<1x2x32xf32>
    tpu.vector_store %arg11[%353, %c0_148, %c0_149], %356 {strides = array<i32>} : memref<12x2x32xf32, #tpu.memory_space<vmem>>, vector<1x2x32xf32>,
    %c9_i32 = arith.constant 9 : i32
    %c11_i32_150 = arith.constant 11 : i32
    %357 = arith.subi %c11_i32_150, %c9_i32 : i32
    %c2_i32_151 = arith.constant 2 : i32
    %358 = arith.muli %c9_i32, %c2_i32_151 : i32
    %359 = arith.index_cast %358 : i32 to index
    %c0_152 = arith.constant 0 : index
    %360 = vector.load %arg9[%359, %c0_152] : memref<24x512xf32, #tpu.memory_space<vmem>>, vector<2x512xf32>
    %c0_153 = arith.constant 0 : index
    %c0_154 = arith.constant 0 : index
    %361 = vector.load %arg2[%c0_153, %c0_154] : memref<64x512xf32, #tpu.memory_space<vmem>>, vector<64x512xf32>
    %cst_155 = arith.constant dense<0.000000e+00> : vector<2x512xf32>
    %362 = tpu.matmul %346, %361, %cst_155 {dimension_numbers = #tpu.dot_dimension_numbers<[1], [0], [0], [1], [0, 0, 1, 1], [], []>} : vector<2x64xf32>, vector<64x512xf32>, vector<2x512xf32> -> vector<2x512xf32>
    %363 = arith.addf %360, %362 : vector<2x512xf32>
    %364 = math.tanh %363 : vector<2x512xf32>
    %365 = vector.extract_strided_slice %364 {offsets = [0, 0], sizes = [2, 64], strides = [1, 1]} : vector<2x512xf32> to vector<2x64xf32>
    %cst_156 = arith.constant 5.000000e-01 : f32
    %366 = vector.broadcast %cst_156 : f32 to vector<2x64xf32>
    %367 = arith.mulf %365, %366 : vector<2x64xf32>
    %cst_157 = arith.constant 5.000000e-01 : f32
    %368 = vector.broadcast %cst_157 : f32 to vector<2x64xf32>
    %369 = arith.addf %367, %368 : vector<2x64xf32>
    %370 = vector.extract_strided_slice %364 {offsets = [0, 128], sizes = [2, 64], strides = [1, 1]} : vector<2x512xf32> to vector<2x64xf32>
    %cst_158 = arith.constant 5.000000e-01 : f32
    %371 = vector.broadcast %cst_158 : f32 to vector<2x64xf32>
    %372 = arith.mulf %370, %371 : vector<2x64xf32>
    %cst_159 = arith.constant 5.000000e-01 : f32
    %373 = vector.broadcast %cst_159 : f32 to vector<2x64xf32>
    %374 = arith.addf %372, %373 : vector<2x64xf32>
    %375 = vector.extract_strided_slice %364 {offsets = [0, 256], sizes = [2, 64], strides = [1, 1]} : vector<2x512xf32> to vector<2x64xf32>
    %376 = vector.extract_strided_slice %364 {offsets = [0, 384], sizes = [2, 64], strides = [1, 1]} : vector<2x512xf32> to vector<2x64xf32>
    %cst_160 = arith.constant 5.000000e-01 : f32
    %377 = vector.broadcast %cst_160 : f32 to vector<2x64xf32>
    %378 = arith.mulf %376, %377 : vector<2x64xf32>
    %cst_161 = arith.constant 5.000000e-01 : f32
    %379 = vector.broadcast %cst_161 : f32 to vector<2x64xf32>
    %380 = arith.addf %378, %379 : vector<2x64xf32>
    %381 = arith.mulf %374, %344 : vector<2x64xf32>
    %382 = arith.mulf %369, %375 : vector<2x64xf32>
    %383 = arith.addf %381, %382 : vector<2x64xf32>
    %384 = math.tanh %383 : vector<2x64xf32>
    %385 = arith.mulf %380, %384 : vector<2x64xf32>
    %386 = vector.extract_strided_slice %385 {offsets = [0, 0], sizes = [2, 32], strides = [1, 1]} : vector<2x64xf32> to vector<2x32xf32>
    %387 = arith.index_cast %c9_i32 : i32 to index
    %c0_162 = arith.constant 0 : index
    %c0_163 = arith.constant 0 : index
    %388 = vector.load %arg10[%387, %c0_162, %c0_163] : memref<12x2x32xf32, #tpu.memory_space<vmem>>, vector<1x2x32xf32>
    %389 = vector.shape_cast %388 : vector<1x2x32xf32> to vector<2x32xf32>
    %390 = vector.shape_cast %386 : vector<2x32xf32> to vector<1x2x32xf32>
    tpu.vector_store %arg10[%387, %c0_162, %c0_163], %390 {strides = array<i32>} : memref<12x2x32xf32, #tpu.memory_space<vmem>>, vector<1x2x32xf32>,
    %391 = vector.extract_strided_slice %385 {offsets = [0, 32], sizes = [2, 32], strides = [1, 1]} : vector<2x64xf32> to vector<2x32xf32>
    %392 = arith.index_cast %357 : i32 to index
    %c0_164 = arith.constant 0 : index
    %c0_165 = arith.constant 0 : index
    %393 = vector.load %arg11[%392, %c0_164, %c0_165] : memref<12x2x32xf32, #tpu.memory_space<vmem>>, vector<1x2x32xf32>
    %394 = vector.shape_cast %393 : vector<1x2x32xf32> to vector<2x32xf32>
    %395 = vector.shape_cast %391 : vector<2x32xf32> to vector<1x2x32xf32>
    tpu.vector_store %arg11[%392, %c0_164, %c0_165], %395 {strides = array<i32>} : memref<12x2x32xf32, #tpu.memory_space<vmem>>, vector<1x2x32xf32>,
    %c10_i32 = arith.constant 10 : i32
    %c11_i32_166 = arith.constant 11 : i32
    %396 = arith.subi %c11_i32_166, %c10_i32 : i32
    %c2_i32_167 = arith.constant 2 : i32
    %397 = arith.muli %c10_i32, %c2_i32_167 : i32
    %398 = arith.index_cast %397 : i32 to index
    %c0_168 = arith.constant 0 : index
    %399 = vector.load %arg9[%398, %c0_168] : memref<24x512xf32, #tpu.memory_space<vmem>>, vector<2x512xf32>
    %c0_169 = arith.constant 0 : index
    %c0_170 = arith.constant 0 : index
    %400 = vector.load %arg2[%c0_169, %c0_170] : memref<64x512xf32, #tpu.memory_space<vmem>>, vector<64x512xf32>
    %cst_171 = arith.constant dense<0.000000e+00> : vector<2x512xf32>
    %401 = tpu.matmul %385, %400, %cst_171 {dimension_numbers = #tpu.dot_dimension_numbers<[1], [0], [0], [1], [0, 0, 1, 1], [], []>} : vector<2x64xf32>, vector<64x512xf32>, vector<2x512xf32> -> vector<2x512xf32>
    %402 = arith.addf %399, %401 : vector<2x512xf32>
    %403 = math.tanh %402 : vector<2x512xf32>
    %404 = vector.extract_strided_slice %403 {offsets = [0, 0], sizes = [2, 64], strides = [1, 1]} : vector<2x512xf32> to vector<2x64xf32>
    %cst_172 = arith.constant 5.000000e-01 : f32
    %405 = vector.broadcast %cst_172 : f32 to vector<2x64xf32>
    %406 = arith.mulf %404, %405 : vector<2x64xf32>
    %cst_173 = arith.constant 5.000000e-01 : f32
    %407 = vector.broadcast %cst_173 : f32 to vector<2x64xf32>
    %408 = arith.addf %406, %407 : vector<2x64xf32>
    %409 = vector.extract_strided_slice %403 {offsets = [0, 128], sizes = [2, 64], strides = [1, 1]} : vector<2x512xf32> to vector<2x64xf32>
    %cst_174 = arith.constant 5.000000e-01 : f32
    %410 = vector.broadcast %cst_174 : f32 to vector<2x64xf32>
    %411 = arith.mulf %409, %410 : vector<2x64xf32>
    %cst_175 = arith.constant 5.000000e-01 : f32
    %412 = vector.broadcast %cst_175 : f32 to vector<2x64xf32>
    %413 = arith.addf %411, %412 : vector<2x64xf32>
    %414 = vector.extract_strided_slice %403 {offsets = [0, 256], sizes = [2, 64], strides = [1, 1]} : vector<2x512xf32> to vector<2x64xf32>
    %415 = vector.extract_strided_slice %403 {offsets = [0, 384], sizes = [2, 64], strides = [1, 1]} : vector<2x512xf32> to vector<2x64xf32>
    %cst_176 = arith.constant 5.000000e-01 : f32
    %416 = vector.broadcast %cst_176 : f32 to vector<2x64xf32>
    %417 = arith.mulf %415, %416 : vector<2x64xf32>
    %cst_177 = arith.constant 5.000000e-01 : f32
    %418 = vector.broadcast %cst_177 : f32 to vector<2x64xf32>
    %419 = arith.addf %417, %418 : vector<2x64xf32>
    %420 = arith.mulf %413, %383 : vector<2x64xf32>
    %421 = arith.mulf %408, %414 : vector<2x64xf32>
    %422 = arith.addf %420, %421 : vector<2x64xf32>
    %423 = math.tanh %422 : vector<2x64xf32>
    %424 = arith.mulf %419, %423 : vector<2x64xf32>
    %425 = vector.extract_strided_slice %424 {offsets = [0, 0], sizes = [2, 32], strides = [1, 1]} : vector<2x64xf32> to vector<2x32xf32>
    %426 = arith.index_cast %c10_i32 : i32 to index
    %c0_178 = arith.constant 0 : index
    %c0_179 = arith.constant 0 : index
    %427 = vector.load %arg10[%426, %c0_178, %c0_179] : memref<12x2x32xf32, #tpu.memory_space<vmem>>, vector<1x2x32xf32>
    %428 = vector.shape_cast %427 : vector<1x2x32xf32> to vector<2x32xf32>
    %429 = vector.shape_cast %425 : vector<2x32xf32> to vector<1x2x32xf32>
    tpu.vector_store %arg10[%426, %c0_178, %c0_179], %429 {strides = array<i32>} : memref<12x2x32xf32, #tpu.memory_space<vmem>>, vector<1x2x32xf32>,
    %430 = vector.extract_strided_slice %424 {offsets = [0, 32], sizes = [2, 32], strides = [1, 1]} : vector<2x64xf32> to vector<2x32xf32>
    %431 = arith.index_cast %396 : i32 to index
    %c0_180 = arith.constant 0 : index
    %c0_181 = arith.constant 0 : index
    %432 = vector.load %arg11[%431, %c0_180, %c0_181] : memref<12x2x32xf32, #tpu.memory_space<vmem>>, vector<1x2x32xf32>
    %433 = vector.shape_cast %432 : vector<1x2x32xf32> to vector<2x32xf32>
    %434 = vector.shape_cast %430 : vector<2x32xf32> to vector<1x2x32xf32>
    tpu.vector_store %arg11[%431, %c0_180, %c0_181], %434 {strides = array<i32>} : memref<12x2x32xf32, #tpu.memory_space<vmem>>, vector<1x2x32xf32>,
    %c11_i32_182 = arith.constant 11 : i32
    %c11_i32_183 = arith.constant 11 : i32
    %435 = arith.subi %c11_i32_183, %c11_i32_182 : i32
    %c2_i32_184 = arith.constant 2 : i32
    %436 = arith.muli %c11_i32_182, %c2_i32_184 : i32
    %437 = arith.index_cast %436 : i32 to index
    %c0_185 = arith.constant 0 : index
    %438 = vector.load %arg9[%437, %c0_185] : memref<24x512xf32, #tpu.memory_space<vmem>>, vector<2x512xf32>
    %c0_186 = arith.constant 0 : index
    %c0_187 = arith.constant 0 : index
    %439 = vector.load %arg2[%c0_186, %c0_187] : memref<64x512xf32, #tpu.memory_space<vmem>>, vector<64x512xf32>
    %cst_188 = arith.constant dense<0.000000e+00> : vector<2x512xf32>
    %440 = tpu.matmul %424, %439, %cst_188 {dimension_numbers = #tpu.dot_dimension_numbers<[1], [0], [0], [1], [0, 0, 1, 1], [], []>} : vector<2x64xf32>, vector<64x512xf32>, vector<2x512xf32> -> vector<2x512xf32>
    %441 = arith.addf %438, %440 : vector<2x512xf32>
    %442 = math.tanh %441 : vector<2x512xf32>
    %443 = vector.extract_strided_slice %442 {offsets = [0, 0], sizes = [2, 64], strides = [1, 1]} : vector<2x512xf32> to vector<2x64xf32>
    %cst_189 = arith.constant 5.000000e-01 : f32
    %444 = vector.broadcast %cst_189 : f32 to vector<2x64xf32>
    %445 = arith.mulf %443, %444 : vector<2x64xf32>
    %cst_190 = arith.constant 5.000000e-01 : f32
    %446 = vector.broadcast %cst_190 : f32 to vector<2x64xf32>
    %447 = arith.addf %445, %446 : vector<2x64xf32>
    %448 = vector.extract_strided_slice %442 {offsets = [0, 128], sizes = [2, 64], strides = [1, 1]} : vector<2x512xf32> to vector<2x64xf32>
    %cst_191 = arith.constant 5.000000e-01 : f32
    %449 = vector.broadcast %cst_191 : f32 to vector<2x64xf32>
    %450 = arith.mulf %448, %449 : vector<2x64xf32>
    %cst_192 = arith.constant 5.000000e-01 : f32
    %451 = vector.broadcast %cst_192 : f32 to vector<2x64xf32>
    %452 = arith.addf %450, %451 : vector<2x64xf32>
    %453 = vector.extract_strided_slice %442 {offsets = [0, 256], sizes = [2, 64], strides = [1, 1]} : vector<2x512xf32> to vector<2x64xf32>
    %454 = vector.extract_strided_slice %442 {offsets = [0, 384], sizes = [2, 64], strides = [1, 1]} : vector<2x512xf32> to vector<2x64xf32>
    %cst_193 = arith.constant 5.000000e-01 : f32
    %455 = vector.broadcast %cst_193 : f32 to vector<2x64xf32>
    %456 = arith.mulf %454, %455 : vector<2x64xf32>
    %cst_194 = arith.constant 5.000000e-01 : f32
    %457 = vector.broadcast %cst_194 : f32 to vector<2x64xf32>
    %458 = arith.addf %456, %457 : vector<2x64xf32>
    %459 = arith.mulf %452, %422 : vector<2x64xf32>
    %460 = arith.mulf %447, %453 : vector<2x64xf32>
    %461 = arith.addf %459, %460 : vector<2x64xf32>
    %462 = math.tanh %461 : vector<2x64xf32>
    %463 = arith.mulf %458, %462 : vector<2x64xf32>
    %464 = vector.extract_strided_slice %463 {offsets = [0, 0], sizes = [2, 32], strides = [1, 1]} : vector<2x64xf32> to vector<2x32xf32>
    %465 = arith.index_cast %c11_i32_182 : i32 to index
    %c0_195 = arith.constant 0 : index
    %c0_196 = arith.constant 0 : index
    %466 = vector.load %arg10[%465, %c0_195, %c0_196] : memref<12x2x32xf32, #tpu.memory_space<vmem>>, vector<1x2x32xf32>
    %467 = vector.shape_cast %466 : vector<1x2x32xf32> to vector<2x32xf32>
    %468 = vector.shape_cast %464 : vector<2x32xf32> to vector<1x2x32xf32>
    tpu.vector_store %arg10[%465, %c0_195, %c0_196], %468 {strides = array<i32>} : memref<12x2x32xf32, #tpu.memory_space<vmem>>, vector<1x2x32xf32>,
    %469 = vector.extract_strided_slice %463 {offsets = [0, 32], sizes = [2, 32], strides = [1, 1]} : vector<2x64xf32> to vector<2x32xf32>
    %470 = arith.index_cast %435 : i32 to index
    %c0_197 = arith.constant 0 : index
    %c0_198 = arith.constant 0 : index
    %471 = vector.load %arg11[%470, %c0_197, %c0_198] : memref<12x2x32xf32, #tpu.memory_space<vmem>>, vector<1x2x32xf32>
    %472 = vector.shape_cast %471 : vector<1x2x32xf32> to vector<2x32xf32>
    %473 = vector.shape_cast %469 : vector<2x32xf32> to vector<1x2x32xf32>
    tpu.vector_store %arg11[%470, %c0_197, %c0_198], %473 {strides = array<i32>} : memref<12x2x32xf32, #tpu.memory_space<vmem>>, vector<1x2x32xf32>,
    %c12_i32 = arith.constant 12 : i32
    %c0_199 = arith.constant 0 : index
    %c0_200 = arith.constant 0 : index
    %c0_201 = arith.constant 0 : index
    %474 = vector.load %arg10[%c0_199, %c0_200, %c0_201] : memref<12x2x32xf32, #tpu.memory_space<vmem>>, vector<12x2x32xf32>
    %c0_202 = arith.constant 0 : index
    %c0_203 = arith.constant 0 : index
    %c0_204 = arith.constant 0 : index
    %475 = vector.load %arg11[%c0_202, %c0_203, %c0_204] : memref<12x2x32xf32, #tpu.memory_space<vmem>>, vector<12x2x32xf32>
    %476 = vector.extract_strided_slice %474 {offsets = [0, 0, 0], sizes = [10, 2, 32], strides = [1, 1, 1]} : vector<12x2x32xf32> to vector<10x2x32xf32>
    %477 = vector.extract_strided_slice %475 {offsets = [0, 0, 0], sizes = [10, 2, 32], strides = [1, 1, 1]} : vector<12x2x32xf32> to vector<10x2x32xf32>
    %478 = vector.extract_strided_slice %474 {offsets = [1, 0, 0], sizes = [10, 2, 32], strides = [1, 1, 1]} : vector<12x2x32xf32> to vector<10x2x32xf32>
    %479 = vector.extract_strided_slice %475 {offsets = [1, 0, 0], sizes = [10, 2, 32], strides = [1, 1, 1]} : vector<12x2x32xf32> to vector<10x2x32xf32>
    %480 = vector.extract_strided_slice %474 {offsets = [2, 0, 0], sizes = [10, 2, 32], strides = [1, 1, 1]} : vector<12x2x32xf32> to vector<10x2x32xf32>
    %481 = vector.extract_strided_slice %475 {offsets = [2, 0, 0], sizes = [10, 2, 32], strides = [1, 1, 1]} : vector<12x2x32xf32> to vector<10x2x32xf32>
    %482 = tpu.concatenate %476, %477, %478, %479, %480, %481 in 2 : vector<10x2x32xf32>, vector<10x2x32xf32>, vector<10x2x32xf32>, vector<10x2x32xf32>, vector<10x2x32xf32>, vector<10x2x32xf32> -> vector<10x2x192xf32>
    %c0_205 = arith.constant 0 : index
    %c0_206 = arith.constant 0 : index
    %483 = vector.load %arg3[%c0_205, %c0_206] : memref<192x64xf32, #tpu.memory_space<vmem>>, vector<192x64xf32>
    %cst_207 = arith.constant dense<0.000000e+00> : vector<10x2x64xf32>
    %484 = tpu.matmul %482, %483, %cst_207 {dimension_numbers = #tpu.dot_dimension_numbers<[2], [0], [0, 1], [1], [0, 0, 0, 1, 1, 1], [], []>} : vector<10x2x192xf32>, vector<192x64xf32>, vector<10x2x64xf32> -> vector<10x2x64xf32>
    %c0_208 = arith.constant 0 : index
    %c0_209 = arith.constant 0 : index
    %485 = vector.load %arg7[%c0_208, %c0_209] : memref<1x2048xf32, #tpu.memory_space<vmem>>, vector<1x64xf32>
    %486 = vector.shape_cast %485 : vector<1x64xf32> to vector<1x1x64xf32>
    %487 = vector.broadcast %486 : vector<1x1x64xf32> to vector<10x2x64xf32>
    %488 = arith.addf %484, %487 : vector<10x2x64xf32>
    %cst_210 = arith.constant 0.000000e+00 : f32
    %489 = vector.broadcast %cst_210 : f32 to vector<10x2x64xf32>
    %490 = arith.maximumf %488, %489 : vector<10x2x64xf32>
    %491 = vector.extract_strided_slice %490 {offsets = [0, 0, 0], sizes = [9, 2, 64], strides = [1, 1, 1]} : vector<10x2x64xf32> to vector<9x2x64xf32>
    %492 = vector.shape_cast %491 : vector<9x2x64xf32> to vector<3x3x2x64xf32>
    %cst_211 = arith.constant dense<0xFF800000> : vector<3x2x64xf32>
    %493 = vector.multi_reduction <maximumf>, %492, %cst_211 [1] : vector<3x3x2x64xf32> to vector<3x2x64xf32>
    %c0_212 = arith.constant 0 : index
    %c0_213 = arith.constant 0 : index
    %494 = vector.load %arg4[%c0_212, %c0_213] : memref<64x1536xf32, #tpu.memory_space<vmem>>, vector<64x1536xf32>
    "tpu.trace_start"() <{level = 10 : i32, message = "nle,ec->nlc"}> : () -> ()
    %cst_214 = arith.constant dense<0.000000e+00> : vector<3x2x1536xf32>
    %495 = tpu.matmul %493, %494, %cst_214 {dimension_numbers = #tpu.dot_dimension_numbers<[2], [0], [0, 1], [1], [0, 0, 0, 1, 1, 1], [], []>} : vector<3x2x64xf32>, vector<64x1536xf32>, vector<3x2x1536xf32> -> vector<3x2x1536xf32>
    "tpu.trace_stop"() : () -> ()
    %c0_215 = arith.constant 0 : index
    %c512 = arith.constant 512 : index
    %496 = vector.load %arg7[%c0_215, %c512] : memref<1x2048xf32, #tpu.memory_space<vmem>>, vector<1x1536xf32>
    %497 = vector.shape_cast %496 : vector<1x1536xf32> to vector<1x1x1536xf32>
    %498 = vector.broadcast %497 : vector<1x1x1536xf32> to vector<3x2x1536xf32>
    %499 = arith.addf %495, %498 : vector<3x2x1536xf32>
    %500 = vector.extract_strided_slice %499 {offsets = [0, 0, 0], sizes = [3, 2, 16], strides = [1, 1, 1]} : vector<3x2x1536xf32> to vector<3x2x16xf32>
    %501 = vector.extract_strided_slice %499 {offsets = [0, 0, 512], sizes = [3, 2, 16], strides = [1, 1, 1]} : vector<3x2x1536xf32> to vector<3x2x16xf32>
    %502 = vector.extract_strided_slice %499 {offsets = [0, 0, 1024], sizes = [3, 2, 16], strides = [1, 1, 1]} : vector<3x2x1536xf32> to vector<3x2x16xf32>
    "tpu.trace_start"() <{level = 10 : i32, message = "nld,nmd->nlm"}> : () -> ()
    %cst_216 = arith.constant dense<0.000000e+00> : vector<3x2x2xf32>
    %503 = tpu.matmul %500, %501, %cst_216 {dimension_numbers = #tpu.dot_dimension_numbers<[2], [2], [1], [1], [0, 0, 0, 1, 1, 1], [0], [0]>} : vector<3x2x16xf32>, vector<3x2x16xf32>, vector<3x2x2xf32> -> vector<3x2x2xf32>
    "tpu.trace_stop"() : () -> ()
    %cst_217 = arith.constant dense<0xFF800000> : vector<3x2xf32>
    %504 = vector.multi_reduction <maximumf>, %503, %cst_217 [2] : vector<3x2x2xf32> to vector<3x2xf32>
    %505 = vector.shape_cast %504 : vector<3x2xf32> to vector<3x2x1xf32>
    %506 = vector.broadcast %505 : vector<3x2x1xf32> to vector<3x2x2xf32>
    %507 = arith.subf %503, %506 : vector<3x2x2xf32>
    %508 = math.exp %507 : vector<3x2x2xf32>
    %cst_218 = arith.constant dense<0.000000e+00> : vector<3x2xf32>
    %509 = vector.multi_reduction <add>, %508, %cst_218 [2] : vector<3x2x2xf32> to vector<3x2xf32>
    %510 = vector.shape_cast %509 : vector<3x2xf32> to vector<3x2x1xf32>
    %511 = vector.broadcast %510 : vector<3x2x1xf32> to vector<3x2x2xf32>
    %512 = arith.divf %508, %511 : vector<3x2x2xf32>
    "tpu.trace_start"() <{level = 10 : i32, message = "nlm,nmd->nld"}> : () -> ()
    %cst_219 = arith.constant dense<0.000000e+00> : vector<3x2x16xf32>
    %513 = tpu.matmul %512, %502, %cst_219 {dimension_numbers = #tpu.dot_dimension_numbers<[2], [1], [1], [2], [0, 0, 0, 1, 1, 2], [0], [0]>} : vector<3x2x2xf32>, vector<3x2x16xf32>, vector<3x2x16xf32> -> vector<3x2x16xf32>
    "tpu.trace_stop"() : () -> ()
    %514 = vector.extract_strided_slice %499 {offsets = [0, 0, 128], sizes = [3, 2, 16], strides = [1, 1, 1]} : vector<3x2x1536xf32> to vector<3x2x16xf32>
    %515 = vector.extract_strided_slice %499 {offsets = [0, 0, 640], sizes = [3, 2, 16], strides = [1, 1, 1]} : vector<3x2x1536xf32> to vector<3x2x16xf32>
    %516 = vector.extract_strided_slice %499 {offsets = [0, 0, 1152], sizes = [3, 2, 16], strides = [1, 1, 1]} : vector<3x2x1536xf32> to vector<3x2x16xf32>
    "tpu.trace_start"() <{level = 10 : i32, message = "nld,nmd->nlm"}> : () -> ()
    %cst_220 = arith.constant dense<0.000000e+00> : vector<3x2x2xf32>
    %517 = tpu.matmul %514, %515, %cst_220 {dimension_numbers = #tpu.dot_dimension_numbers<[2], [2], [1], [1], [0, 0, 0, 1, 1, 1], [0], [0]>} : vector<3x2x16xf32>, vector<3x2x16xf32>, vector<3x2x2xf32> -> vector<3x2x2xf32>
    "tpu.trace_stop"() : () -> ()
    %cst_221 = arith.constant dense<0xFF800000> : vector<3x2xf32>
    %518 = vector.multi_reduction <maximumf>, %517, %cst_221 [2] : vector<3x2x2xf32> to vector<3x2xf32>
    %519 = vector.shape_cast %518 : vector<3x2xf32> to vector<3x2x1xf32>
    %520 = vector.broadcast %519 : vector<3x2x1xf32> to vector<3x2x2xf32>
    %521 = arith.subf %517, %520 : vector<3x2x2xf32>
    %522 = math.exp %521 : vector<3x2x2xf32>
    %cst_222 = arith.constant dense<0.000000e+00> : vector<3x2xf32>
    %523 = vector.multi_reduction <add>, %522, %cst_222 [2] : vector<3x2x2xf32> to vector<3x2xf32>
    %524 = vector.shape_cast %523 : vector<3x2xf32> to vector<3x2x1xf32>
    %525 = vector.broadcast %524 : vector<3x2x1xf32> to vector<3x2x2xf32>
    %526 = arith.divf %522, %525 : vector<3x2x2xf32>
    "tpu.trace_start"() <{level = 10 : i32, message = "nlm,nmd->nld"}> : () -> ()
    %cst_223 = arith.constant dense<0.000000e+00> : vector<3x2x16xf32>
    %527 = tpu.matmul %526, %516, %cst_223 {dimension_numbers = #tpu.dot_dimension_numbers<[2], [1], [1], [2], [0, 0, 0, 1, 1, 2], [0], [0]>} : vector<3x2x2xf32>, vector<3x2x16xf32>, vector<3x2x16xf32> -> vector<3x2x16xf32>
    "tpu.trace_stop"() : () -> ()
    %528 = vector.extract_strided_slice %499 {offsets = [0, 0, 256], sizes = [3, 2, 16], strides = [1, 1, 1]} : vector<3x2x1536xf32> to vector<3x2x16xf32>
    %529 = vector.extract_strided_slice %499 {offsets = [0, 0, 768], sizes = [3, 2, 16], strides = [1, 1, 1]} : vector<3x2x1536xf32> to vector<3x2x16xf32>
    %530 = vector.extract_strided_slice %499 {offsets = [0, 0, 1280], sizes = [3, 2, 16], strides = [1, 1, 1]} : vector<3x2x1536xf32> to vector<3x2x16xf32>
    "tpu.trace_start"() <{level = 10 : i32, message = "nld,nmd->nlm"}> : () -> ()
    %cst_224 = arith.constant dense<0.000000e+00> : vector<3x2x2xf32>
    %531 = tpu.matmul %528, %529, %cst_224 {dimension_numbers = #tpu.dot_dimension_numbers<[2], [2], [1], [1], [0, 0, 0, 1, 1, 1], [0], [0]>} : vector<3x2x16xf32>, vector<3x2x16xf32>, vector<3x2x2xf32> -> vector<3x2x2xf32>
    "tpu.trace_stop"() : () -> ()
    %cst_225 = arith.constant dense<0xFF800000> : vector<3x2xf32>
    %532 = vector.multi_reduction <maximumf>, %531, %cst_225 [2] : vector<3x2x2xf32> to vector<3x2xf32>
    %533 = vector.shape_cast %532 : vector<3x2xf32> to vector<3x2x1xf32>
    %534 = vector.broadcast %533 : vector<3x2x1xf32> to vector<3x2x2xf32>
    %535 = arith.subf %531, %534 : vector<3x2x2xf32>
    %536 = math.exp %535 : vector<3x2x2xf32>
    %cst_226 = arith.constant dense<0.000000e+00> : vector<3x2xf32>
    %537 = vector.multi_reduction <add>, %536, %cst_226 [2] : vector<3x2x2xf32> to vector<3x2xf32>
    %538 = vector.shape_cast %537 : vector<3x2xf32> to vector<3x2x1xf32>
    %539 = vector.broadcast %538 : vector<3x2x1xf32> to vector<3x2x2xf32>
    %540 = arith.divf %536, %539 : vector<3x2x2xf32>
    "tpu.trace_start"() <{level = 10 : i32, message = "nlm,nmd->nld"}> : () -> ()
    %cst_227 = arith.constant dense<0.000000e+00> : vector<3x2x16xf32>
    %541 = tpu.matmul %540, %530, %cst_227 {dimension_numbers = #tpu.dot_dimension_numbers<[2], [1], [1], [2], [0, 0, 0, 1, 1, 2], [0], [0]>} : vector<3x2x2xf32>, vector<3x2x16xf32>, vector<3x2x16xf32> -> vector<3x2x16xf32>
    "tpu.trace_stop"() : () -> ()
    %542 = vector.extract_strided_slice %499 {offsets = [0, 0, 384], sizes = [3, 2, 16], strides = [1, 1, 1]} : vector<3x2x1536xf32> to vector<3x2x16xf32>
    %543 = vector.extract_strided_slice %499 {offsets = [0, 0, 896], sizes = [3, 2, 16], strides = [1, 1, 1]} : vector<3x2x1536xf32> to vector<3x2x16xf32>
    %544 = vector.extract_strided_slice %499 {offsets = [0, 0, 1408], sizes = [3, 2, 16], strides = [1, 1, 1]} : vector<3x2x1536xf32> to vector<3x2x16xf32>
    "tpu.trace_start"() <{level = 10 : i32, message = "nld,nmd->nlm"}> : () -> ()
    %cst_228 = arith.constant dense<0.000000e+00> : vector<3x2x2xf32>
    %545 = tpu.matmul %542, %543, %cst_228 {dimension_numbers = #tpu.dot_dimension_numbers<[2], [2], [1], [1], [0, 0, 0, 1, 1, 1], [0], [0]>} : vector<3x2x16xf32>, vector<3x2x16xf32>, vector<3x2x2xf32> -> vector<3x2x2xf32>
    "tpu.trace_stop"() : () -> ()
    %cst_229 = arith.constant dense<0xFF800000> : vector<3x2xf32>
    %546 = vector.multi_reduction <maximumf>, %545, %cst_229 [2] : vector<3x2x2xf32> to vector<3x2xf32>
    %547 = vector.shape_cast %546 : vector<3x2xf32> to vector<3x2x1xf32>
    %548 = vector.broadcast %547 : vector<3x2x1xf32> to vector<3x2x2xf32>
    %549 = arith.subf %545, %548 : vector<3x2x2xf32>
    %550 = math.exp %549 : vector<3x2x2xf32>
    %cst_230 = arith.constant dense<0.000000e+00> : vector<3x2xf32>
    %551 = vector.multi_reduction <add>, %550, %cst_230 [2] : vector<3x2x2xf32> to vector<3x2xf32>
    %552 = vector.shape_cast %551 : vector<3x2xf32> to vector<3x2x1xf32>
    %553 = vector.broadcast %552 : vector<3x2x1xf32> to vector<3x2x2xf32>
    %554 = arith.divf %550, %553 : vector<3x2x2xf32>
    "tpu.trace_start"() <{level = 10 : i32, message = "nlm,nmd->nld"}> : () -> ()
    %cst_231 = arith.constant dense<0.000000e+00> : vector<3x2x16xf32>
    %555 = tpu.matmul %554, %544, %cst_231 {dimension_numbers = #tpu.dot_dimension_numbers<[2], [1], [1], [2], [0, 0, 0, 1, 1, 2], [0], [0]>} : vector<3x2x2xf32>, vector<3x2x16xf32>, vector<3x2x16xf32> -> vector<3x2x16xf32>
    "tpu.trace_stop"() : () -> ()
    %556 = tpu.concatenate %513, %527, %541, %555 in 2 : vector<3x2x16xf32>, vector<3x2x16xf32>, vector<3x2x16xf32>, vector<3x2x16xf32> -> vector<3x2x64xf32>
    %c0_232 = arith.constant 0 : index
    %c0_233 = arith.constant 0 : index
    %557 = vector.load %arg5[%c0_232, %c0_233] : memref<64x160xf32, #tpu.memory_space<vmem>>, vector<64x64xf32>
    "tpu.trace_start"() <{level = 10 : i32, message = "nle,ef->nlf"}> : () -> ()
    %cst_234 = arith.constant dense<0.000000e+00> : vector<3x2x64xf32>
    %558 = tpu.matmul %556, %557, %cst_234 {dimension_numbers = #tpu.dot_dimension_numbers<[2], [0], [0, 1], [1], [0, 0, 0, 1, 1, 1], [], []>} : vector<3x2x64xf32>, vector<64x64xf32>, vector<3x2x64xf32> -> vector<3x2x64xf32>
    "tpu.trace_stop"() : () -> ()
    %c0_235 = arith.constant 0 : index
    %c128 = arith.constant 128 : index
    %559 = vector.load %arg7[%c0_235, %c128] : memref<1x2048xf32, #tpu.memory_space<vmem>>, vector<1x64xf32>
    %560 = vector.shape_cast %559 : vector<1x64xf32> to vector<1x1x64xf32>
    %561 = vector.broadcast %560 : vector<1x1x64xf32> to vector<3x2x64xf32>
    %562 = arith.addf %558, %561 : vector<3x2x64xf32>
    %cst_236 = arith.constant dense<0.000000e+00> : vector<2x64xf32>
    %563 = vector.multi_reduction <add>, %562, %cst_236 [0] : vector<3x2x64xf32> to vector<2x64xf32>
    %cst_237 = arith.constant 3.000000e+00 : f32
    %564 = vector.broadcast %cst_237 : f32 to vector<2x64xf32>
    %565 = arith.divf %563, %564 : vector<2x64xf32>
    %c0_238 = arith.constant 0 : index
    %c128_239 = arith.constant 128 : index
    %566 = vector.load %arg5[%c0_238, %c128_239] : memref<64x160xf32, #tpu.memory_space<vmem>>, vector<64x32xf32>
    %cst_240 = arith.constant dense<0.000000e+00> : vector<2x32xf32>
    %567 = tpu.matmul %565, %566, %cst_240 {dimension_numbers = #tpu.dot_dimension_numbers<[1], [0], [0], [1], [0, 0, 1, 1], [], []>} : vector<2x64xf32>, vector<64x32xf32>, vector<2x32xf32> -> vector<2x32xf32>
    %c0_241 = arith.constant 0 : index
    %c256 = arith.constant 256 : index
    %568 = vector.load %arg7[%c0_241, %c256] : memref<1x2048xf32, #tpu.memory_space<vmem>>, vector<1x32xf32>
    %569 = vector.broadcast %568 : vector<1x32xf32> to vector<2x32xf32>
    %570 = arith.addf %567, %569 : vector<2x32xf32>
    %cst_242 = arith.constant 0.000000e+00 : f32
    %571 = vector.broadcast %cst_242 : f32 to vector<2x32xf32>
    %572 = arith.maximumf %570, %571 : vector<2x32xf32>
    %c0_243 = arith.constant 0 : index
    %c0_244 = arith.constant 0 : index
    %573 = vector.load %arg6[%c0_243, %c0_244] : memref<32x128xf32, #tpu.memory_space<vmem>>, vector<32x128xf32>
    %cst_245 = arith.constant dense<0.000000e+00> : vector<2x128xf32>
    %574 = tpu.matmul %572, %573, %cst_245 {dimension_numbers = #tpu.dot_dimension_numbers<[1], [0], [0], [1], [0, 0, 1, 1], [], []>} : vector<2x32xf32>, vector<32x128xf32>, vector<2x128xf32> -> vector<2x128xf32>
    %c0_246 = arith.constant 0 : index
    %c384 = arith.constant 384 : index
    %575 = vector.load %arg7[%c0_246, %c384] : memref<1x2048xf32, #tpu.memory_space<vmem>>, vector<1x128xf32>
    %576 = vector.broadcast %575 : vector<1x128xf32> to vector<2x128xf32>
    %577 = arith.addf %574, %576 : vector<2x128xf32>
    %c0_247 = arith.constant 0 : index
    %c0_248 = arith.constant 0 : index
    %578 = vector.load %arg8[%c0_247, %c0_248] : memref<2x128xf32, #tpu.memory_space<vmem>>, vector<2x128xf32>
    tpu.vector_store %arg8[%c0_247, %c0_248], %577 {strides = array<i32>} : memref<2x128xf32, #tpu.memory_space<vmem>>, vector<2x128xf32>,
    return
  }
}

</mosaic_0001>

<llo_original>
// kernel: custom-call
$region0: #{custom-call}
  %s0 = inlined_call_operand.vmem [shape: f32[1536], index: 0, kind: output, shape index: {}]

// kernel: forward.1
$region0: #{forward.1}
  #allocation0 [shape = 'u32[]', space=smem, size = 0x4, offset = 0x4, fixed_abs, tag = 'smem constant byte address 0x4 - core index']
  #allocation1 [shape = 'u32[144,128]{1,0:T(1,128)}', space=vmem, size = 0x12000, scoped, tag = 'internal scratch']
  #allocation2 [shape = 'f32[24,512]{1,0:T(8,128)}', space=vmem, size = 0xc000, scoped, tag = 'scratch operand']
  #allocation3 [shape = 'f32[12,2,32]{2,1,0:T(2,128)}', space=vmem, size = 0x3000, scoped, tag = 'scratch operand']
  #allocation4 [shape = 'f32[12,2,32]{2,1,0:T(2,128)}', space=vmem, size = 0x3000, scoped, tag = 'scratch operand']
  %s0 = inlined_call_operand.vmem [shape: f32[24,33], index: 0, kind: input, shape index: {}]
  %s1 = inlined_call_operand.vmem [shape: f32[33,512], index: 1, kind: input, shape index: {}]
  %s2 = inlined_call_operand.vmem [shape: f32[64,512], index: 2, kind: input, shape index: {}]
  %s3 = inlined_call_operand.vmem [shape: f32[192,64], index: 3, kind: input, shape index: {}]
  %s4 = inlined_call_operand.vmem [shape: f32[64,1536], index: 4, kind: input, shape index: {}]
  %s5 = inlined_call_operand.vmem [shape: f32[64,160], index: 5, kind: input, shape index: {}]
  %s6 = inlined_call_operand.vmem [shape: f32[32,128], index: 6, kind: input, shape index: {}]
  %s7 = inlined_call_operand.vmem [shape: f32[1,2048], index: 7, kind: input, shape index: {}]
  %s8 = inlined_call_operand.vmem [shape: f32[2,128], index: 8, kind: output, shape index: {}]
  %s9 = sld [smem:[#allocation0]]
  $region42: #{forward.1} parent=0
    _
  %s11 = ssub.s32 1, %s9
  %s12 = scalar_select 0, %s11, %s9
  // Predicated region
  $region2: #{forward.1} parent=0 // pred_check
    _
  $region3: #{forward.1} parent=0 // pred_check_branch
    %14 = sbr.rel (0) target = $region5
  $region4: #{forward.1} parent=0 // pred_region
    _
  $region5: #{forward.1} parent=0 // pred_fallthru
    _
  // Predicated region
  $region6: #{forward.1} parent=0 // pred_check
    _
  $region7: #{forward.1} parent=0 // pred_check_branch
    %16 = sbr.rel (0) target = $region9
  $region8: #{forward.1} parent=0 // pred_region
    _
  $region9: #{forward.1} parent=0 // pred_fallthru
    _
  // Predicated region
  $region10: #{forward.1} parent=0 // pred_check
    _
  $region11: #{forward.1} parent=0 // pred_check_branch
    %18 = sbr.rel (0) target = $region13
  $region12: #{forward.1} parent=0 // pred_region
    _
  $region13: #{forward.1} parent=0 // pred_fallthru
    _
  // Predicated region
  $region14: #{forward.1} parent=0 // pred_check
    _
  $region15: #{forward.1} parent=0 // pred_check_branch
    %20 = sbr.rel (0) target = $region17
  $region16: #{forward.1} parent=0 // pred_region
    _
  $region17: #{forward.1} parent=0 // pred_fallthru
    _
  // Predicated region
  $region18: #{forward.1} parent=0 // pred_check
    _
  $region19: #{forward.1} parent=0 // pred_check_branch
    %22 = sbr.rel (0) target = $region21
  $region20: #{forward.1} parent=0 // pred_region
    _
  $region21: #{forward.1} parent=0 // pred_fallthru
    _
  // Predicated region
  $region22: #{forward.1} parent=0 // pred_check
    _
  $region23: #{forward.1} parent=0 // pred_check_branch
    %24 = sbr.rel (0) target = $region25
  $region24: #{forward.1} parent=0 // pred_region
    _
  $region25: #{forward.1} parent=0 // pred_fallthru
    _
  // Predicated region
  $region26: #{forward.1} parent=0 // pred_check
    _
  $region27: #{forward.1} parent=0 // pred_check_branch
    %26 = sbr.rel (0) target = $region29
  $region28: #{forward.1} parent=0 // pred_region
    _
  $region29: #{forward.1} parent=0 // pred_fallthru
    _
  // Predicated region
  $region30: #{forward.1} parent=0 // pred_check
    _
  $region31: #{forward.1} parent=0 // pred_check_branch
    %28 = sbr.rel (0) target = $region33
  $region32: #{forward.1} parent=0 // pred_region
    _
  $region33: #{forward.1} parent=0 // pred_fallthru
    _
  %v29 = vld [vmem:[%s0] sm:$0xff]
  %v30 = vld [vmem:[%s0 + $0x8] sm:$0xff]
  %v31 = vld [vmem:[%s0 + $0x10] sm:$0xff]
  %v32 = vld [vmem:[%s1] sm:$0xff]
  %v33 = vld [vmem:[%s1 + $0x8] sm:$0xff]
  %v34 = vld [vmem:[%s1 + $0x10] sm:$0xff]
  %v35 = vld [vmem:[%s1 + $0x18] sm:$0xff]
  %v36 = vld [vmem:[%s1 + $0x20] sm:$0xff]
  %v37 = vld [vmem:[%s1 + $0x28] sm:$0xff]
  %v38 = vld [vmem:[%s1 + $0x30] sm:$0xff]
  %v39 = vld [vmem:[%s1 + $0x38] sm:$0xff]
  %v40 = vld [vmem:[%s1 + $0x40] sm:$0xff]
  %v41 = vld [vmem:[%s1 + $0x48] sm:$0xff]
  %v42 = vld [vmem:[%s1 + $0x50] sm:$0xff]
  %v43 = vld [vmem:[%s1 + $0x58] sm:$0xff]
  %v44 = vld [vmem:[%s1 + $0x60] sm:$0xff]
  %v45 = vld [vmem:[%s1 + $0x68] sm:$0xff]
  %v46 = vld [vmem:[%s1 + $0x70] sm:$0xff]
  %v47 = vld [vmem:[%s1 + $0x78] sm:$0xff]
  %v48 = vld [vmem:[%s1 + $0x80] sm:$0x1]
  %v49 = vld [vmem:[%s1 + $0x88] sm:$0x1]
  %v50 = vld [vmem:[%s1 + $0x90] sm:$0x1]
  %v51 = vld [vmem:[%s1 + $0x98] sm:$0x1]
  %vm52 = vcmask 269312
  %v54 = vsel %vm52, %v29, 0
  %v57 = vsel %vm52, %v30, 0
  %v60 = vsel %vm52, %v31, 0
  %vm62 = vcmask 1040384
  %v64 = vsel %vm62, %v48, 0
  %v67 = vsel %vm62, %v49, 0
  %v70 = vsel %vm62, %v50, 0
  %v73 = vsel %vm62, %v51, 0
  %75 = vmatprep.subr.mxu0 %v33
  %76 = vmatpush1.msra.mxu0 %v32
  %77 = vmatprep.subr.mxu0 %v37
  %78 = vmatpush1.msra.mxu0 %v36
  %79 = vmatprep.subr.mxu0 %v41
  %80 = vmatpush1.msra.mxu0 %v40
  %81 = vmatprep.subr.mxu0 %v45
  %82 = vmatpush1.msra.mxu0 %v44
  %83 = vmatprep.subr.mxu0 %v67
  %84 = vmatpush1.msra.mxu0 %v64
  %85 = vmatprep.subr.mxu0 0.0
  %86 = vmatpush1.msra.mxu0 0.0
  %87 = vmatprep.subr.mxu0 0.0
  %88 = vmatpush1.msra.mxu0 0.0
  %89 = vmatprep.subr.mxu0 0.0
  %90 = vmatpush1.msra.mxu0 0.0
  %91 = vmatprep.subr.mxu0 0.0
  %92 = vmatpush1.msra.mxu0 0.0
  %93 = vmatprep.subr.mxu0 0.0
  %94 = vmatpush1.msra.mxu0 0.0
  %95 = vmatprep.subr.mxu0 0.0
  %96 = vmatpush1.msra.mxu0 0.0
  %97 = vmatprep.subr.mxu0 0.0
  %98 = vmatpush1.msra.mxu0 0.0
  %99 = vmatprep.subr.mxu0 0.0
  %100 = vmatpush1.msra.mxu0 0.0
  %101 = vmatprep.subr.mxu0 0.0
  %102 = vmatpush1.msra.mxu0 0.0
  %103 = vmatprep.subr.mxu0 0.0
  %104 = vmatpush1.msra.mxu0 0.0
  %105 = vmatprep.subr.mxu0 0.0
  %106 = vmatpush1.msra.mxu0 0.0
  %107 = vmatprep.subr.mxu0 0.0
  %108 = vmatpush1.msra.mxu0 0.0
  %109 = vmatprep.subr.mxu0 0.0
  %110 = vmatpush1.msra.mxu0 0.0
  %111 = vmatprep.subr.mxu0 0.0
  %112 = vmatpush1.msra.mxu0 0.0
  %113 = vmatprep.subr.mxu0 0.0
  %114 = vmatpush1.msra.mxu0 0.0
  %115 = vmatprep.subr.mxu0 0.0
  %116 = vmatpush1.msra.mxu0 0.0
  %117 = vmatprep.subr.mxu0 0.0
  %118 = vmatpush1.msra.mxu0 0.0
  %119 = vmatprep.subr.mxu0 0.0
  %120 = vmatpush1.msra.mxu0 0.0
  %121 = vmatprep.subr.mxu0 0.0
  %122 = vmatpush1.msra.mxu0 0.0
  %123 = vmatprep.subr.mxu0 0.0
  %124 = vmatpush1.msra.mxu0 0.0
  %125 = vmatprep.subr.mxu0 0.0
  %126 = vmatpush1.msra.mxu0 0.0
  %127 = vmatprep.subr.mxu0 0.0
  %128 = vmatpush1.msra.mxu0 0.0
  %129 = vmatprep.subr.mxu0 0.0
  %130 = vmatpush1.msra.mxu0 0.0
  %131 = vmatprep.subr.mxu0 0.0
  %132 = vmatpush1.msra.mxu0 0.0
  %133 = vmatprep.subr.mxu0 0.0
  %134 = vmatpush1.msra.mxu0 0.0
  %135 = vmatprep.subr.mxu0 0.0
  %136 = vmatpush1.msra.mxu0 0.0
  %137 = vmatprep.subr.mxu0 0.0
  %138 = vmatpush1.msra.mxu0 0.0
  %139 = vmatprep.mubr.f32.mxu0 0.0
  %140 = vmatmul.mubr.f32.gmra.mrb[0].mxu0 %v54
  %v141 = vpop.f32.mrb[0].mxu0
  %v142 = vadd.f32 0.0, %v141
  %v143 = vpop.f32.mrb[0].mxu0
  %v144 = vadd.f32 0.0, %v143
  %145 = vmatprep.mubr.f32.mxu0 0.0
  %146 = vmatmul.mubr.f32.gmra.mrb[0].mxu0 %v57
  %v147 = vpop.f32.mrb[0].mxu0
  %v148 = vadd.f32 0.0, %v147
  %v149 = vpop.f32.mrb[0].mxu0
  %v150 = vadd.f32 0.0, %v149
  %151 = vmatprep.mubr.f32.mxu0 0.0
  %152 = vmatmul.mubr.f32.gmra.mrb[0].mxu0 %v60
  %v153 = vpop.f32.mrb[0].mxu0
  %v154 = vadd.f32 0.0, %v153
  %v155 = vpop.f32.mrb[0].mxu0
  %v156 = vadd.f32 0.0, %v155
  %157 = vdwg.mxu0
  %158 = vmatprep.subr.mxu0 %v35
  %159 = vmatpush1.msra.mxu0 %v34
  %160 = vmatprep.subr.mxu0 %v39
  %161 = vmatpush1.msra.mxu0 %v38
  %162 = vmatprep.subr.mxu0 %v43
  %163 = vmatpush1.msra.mxu0 %v42
  %164 = vmatprep.subr.mxu0 %v47
  %165 = vmatpush1.msra.mxu0 %v46
  %166 = vmatprep.subr.mxu0 %v73
  %167 = vmatpush1.msra.mxu0 %v70
  %168 = vmatprep.subr.mxu0 0.0
  %169 = vmatpush1.msra.mxu0 0.0
  %170 = vmatprep.subr.mxu0 0.0
  %171 = vmatpush1.msra.mxu0 0.0
  %172 = vmatprep.subr.mxu0 0.0
  %173 = vmatpush1.msra.mxu0 0.0
  %174 = vmatprep.subr.mxu0 0.0
  %175 = vmatpush1.msra.mxu0 0.0
  %176 = vmatprep.subr.mxu0 0.0
  %177 = vmatpush1.msra.mxu0 0.0
  %178 = vmatprep.subr.mxu0 0.0
  %179 = vmatpush1.msra.mxu0 0.0
  %180 = vmatprep.subr.mxu0 0.0
  %181 = vmatpush1.msra.mxu0 0.0
  %182 = vmatprep.subr.mxu0 0.0
  %183 = vmatpush1.msra.mxu0 0.0
  %184 = vmatprep.subr.mxu0 0.0
  %185 = vmatpush1.msra.mxu0 0.0
  %186 = vmatprep.subr.mxu0 0.0
  %187 = vmatpush1.msra.mxu0 0.0
  %188 = vmatprep.subr.mxu0 0.0
  %189 = vmatpush1.msra.mxu0 0.0
  %190 = vmatprep.subr.mxu0 0.0
  %191 = vmatpush1.msra.mxu0 0.0
  %192 = vmatprep.subr.mxu0 0.0
  %193 = vmatpush1.msra.mxu0 0.0
  %194 = vmatprep.subr.mxu0 0.0
  %195 = vmatpush1.msra.mxu0 0.0
  %196 = vmatprep.subr.mxu0 0.0
  %197 = vmatpush1.msra.mxu0 0.0
  %198 = vmatprep.subr.mxu0 0.0
  %199 = vmatpush1.msra.mxu0 0.0
  %200 = vmatprep.subr.mxu0 0.0
  %201 = vmatpush1.msra.mxu0 0.0
  %202 = vmatprep.subr.mxu0 0.0
  %203 = vmatpush1.msra.mxu0 0.0
  %204 = vmatprep.subr.mxu0 0.0
  %205 = vmatpush1.msra.mxu0 0.0
  %206 = vmatprep.subr.mxu0 0.0
  %207 = vmatpush1.msra.mxu0 0.0
  %208 = vmatprep.subr.mxu0 0.0
  %209 = vmatpush1.msra.mxu0 0.0
  %210 = vmatprep.subr.mxu0 0.0
  %211 = vmatpush1.msra.mxu0 0.0
  %212 = vmatprep.subr.mxu0 0.0
  %213 = vmatpush1.msra.mxu0 0.0
  %214 = vmatprep.subr.mxu0 0.0
  %215 = vmatpush1.msra.mxu0 0.0
  %216 = vmatprep.subr.mxu0 0.0
  %217 = vmatpush1.msra.mxu0 0.0
  %218 = vmatprep.subr.mxu0 0.0
  %219 = vmatpush1.msra.mxu0 0.0
  %220 = vmatprep.subr.mxu0 0.0
  %221 = vmatpush1.msra.mxu0 0.0
  %222 = vmatprep.mubr.f32.mxu0 0.0
  %223 = vmatmul.mubr.f32.gmra.mrb[0].mxu0 %v54
  %v224 = vpop.f32.mrb[0].mxu0
  %v225 = vadd.f32 0.0, %v224
  %v226 = vpop.f32.mrb[0].mxu0
  %v227 = vadd.f32 0.0, %v226
  %228 = vmatprep.mubr.f32.mxu0 0.0
  %229 = vmatmul.mubr.f32.gmra.mrb[0].mxu0 %v57
  %v230 = vpop.f32.mrb[0].mxu0
  %v231 = vadd.f32 0.0, %v230
  %v232 = vpop.f32.mrb[0].mxu0
  %v233 = vadd.f32 0.0, %v232
  %234 = vmatprep.mubr.f32.mxu0 0.0
  %235 = vmatmul.mubr.f32.gmra.mrb[0].mxu0 %v60
  %v236 = vpop.f32.mrb[0].mxu0
  %v237 = vadd.f32 0.0, %v236
  %v238 = vpop.f32.mrb[0].mxu0
  %v239 = vadd.f32 0.0, %v238
  %240 = vdwg.mxu0
  %241 = vst [vmem:[#allocation2] sm:$0xff] %v142
  %242 = vst [vmem:[#allocation2 + $0x8] sm:$0xff] %v144
  %243 = vst [vmem:[#allocation2 + $0x10] sm:$0xff] %v225
  %244 = vst [vmem:[#allocation2 + $0x18] sm:$0xff] %v227
  %245 = vst [vmem:[#allocation2 + $0x20] sm:$0xff] %v148
  %246 = vst [vmem:[#allocation2 + $0x28] sm:$0xff] %v150
  %247 = vst [vmem:[#allocation2 + $0x30] sm:$0xff] %v231
  %248 = vst [vmem:[#allocation2 + $0x38] sm:$0xff] %v233
  %249 = vst [vmem:[#allocation2 + $0x40] sm:$0xff] %v154
  %250 = vst [vmem:[#allocation2 + $0x48] sm:$0xff] %v156
  %251 = vst [vmem:[#allocation2 + $0x50] sm:$0xff] %v237
  %252 = vst [vmem:[#allocation2 + $0x58] sm:$0xff] %v239
  %v253 = vld [vmem:[#allocation2] sm:$0x3]
  %v254 = vld [vmem:[#allocation2 + $0x8] sm:$0x3]
  %v255 = vld [vmem:[#allocation2 + $0x10] sm:$0x3]
  %v256 = vld [vmem:[#allocation2 + $0x18] sm:$0x3]
  %v257 = vld [vmem:[%s2] sm:$0xff]
  %v258 = vld [vmem:[%s2 + $0x8] sm:$0xff]
  %v259 = vld [vmem:[%s2 + $0x10] sm:$0xff]
  %v260 = vld [vmem:[%s2 + $0x18] sm:$0xff]
  %v261 = vld [vmem:[%s2 + $0x20] sm:$0xff]
  %v262 = vld [vmem:[%s2 + $0x28] sm:$0xff]
  %v263 = vld [vmem:[%s2 + $0x30] sm:$0xff]
  %v264 = vld [vmem:[%s2 + $0x38] sm:$0xff]
  %v265 = vld [vmem:[%s2 + $0x40] sm:$0xff]
  %v266 = vld [vmem:[%s2 + $0x48] sm:$0xff]
  %v267 = vld [vmem:[%s2 + $0x50] sm:$0xff]
  %v268 = vld [vmem:[%s2 + $0x58] sm:$0xff]
  %v269 = vld [vmem:[%s2 + $0x60] sm:$0xff]
  %v270 = vld [vmem:[%s2 + $0x68] sm:$0xff]
  %v271 = vld [vmem:[%s2 + $0x70] sm:$0xff]
  %v272 = vld [vmem:[%s2 + $0x78] sm:$0xff]
  %v273 = vld [vmem:[%s2 + $0x80] sm:$0xff]
  %v274 = vld [vmem:[%s2 + $0x88] sm:$0xff]
  %v275 = vld [vmem:[%s2 + $0x90] sm:$0xff]
  %v276 = vld [vmem:[%s2 + $0x98] sm:$0xff]
  %v277 = vld [vmem:[%s2 + $0xa0] sm:$0xff]
  %v278 = vld [vmem:[%s2 + $0xa8] sm:$0xff]
  %v279 = vld [vmem:[%s2 + $0xb0] sm:$0xff]
  %v280 = vld [vmem:[%s2 + $0xb8] sm:$0xff]
  %v281 = vld [vmem:[%s2 + $0xc0] sm:$0xff]
  %v282 = vld [vmem:[%s2 + $0xc8] sm:$0xff]
  %v283 = vld [vmem:[%s2 + $0xd0] sm:$0xff]
  %v284 = vld [vmem:[%s2 + $0xd8] sm:$0xff]
  %v285 = vld [vmem:[%s2 + $0xe0] sm:$0xff]
  %v286 = vld [vmem:[%s2 + $0xe8] sm:$0xff]
  %v287 = vld [vmem:[%s2 + $0xf0] sm:$0xff]
  %v288 = vld [vmem:[%s2 + $0xf8] sm:$0xff]
  %vm289 = vcmask 523264
  %v291 = vsel %vm289, 0.0, 0
  %293 = vmatprep.subr.mxu0 %v258
  %294 = vmatpush1.msra.mxu0 %v257
  %295 = vmatprep.subr.mxu0 %v262
  %296 = vmatpush1.msra.mxu0 %v261
  %297 = vmatprep.subr.mxu0 %v266
  %298 = vmatpush1.msra.mxu0 %v265
  %299 = vmatprep.subr.mxu0 %v270
  %300 = vmatpush1.msra.mxu0 %v269
  %301 = vmatprep.subr.mxu0 %v274
  %302 = vmatpush1.msra.mxu0 %v273
  %303 = vmatprep.subr.mxu0 %v278
  %304 = vmatpush1.msra.mxu0 %v277
  %305 = vmatprep.subr.mxu0 %v282
  %306 = vmatpush1.msra.mxu0 %v281
  %307 = vmatprep.subr.mxu0 %v286
  %308 = vmatpush1.msra.mxu0 %v285
  %309 = vmatprep.subr.mxu0 0.0
  %310 = vmatpush1.msra.mxu0 0.0
  %311 = vmatprep.subr.mxu0 0.0
  %312 = vmatpush1.msra.mxu0 0.0
  %313 = vmatprep.subr.mxu0 0.0
  %314 = vmatpush1.msra.mxu0 0.0
  %315 = vmatprep.subr.mxu0 0.0
  %316 = vmatpush1.msra.mxu0 0.0
  %317 = vmatprep.subr.mxu0 0.0
  %318 = vmatpush1.msra.mxu0 0.0
  %319 = vmatprep.subr.mxu0 0.0
  %320 = vmatpush1.msra.mxu0 0.0
  %321 = vmatprep.subr.mxu0 0.0
  %322 = vmatpush1.msra.mxu0 0.0
  %323 = vmatprep.subr.mxu0 0.0
  %324 = vmatpush1.msra.mxu0 0.0
  %325 = vmatprep.subr.mxu0 0.0
  %326 = vmatpush1.msra.mxu0 0.0
  %327 = vmatprep.subr.mxu0 0.0
  %328 = vmatpush1.msra.mxu0 0.0
  %329 = vmatprep.subr.mxu0 0.0
  %330 = vmatpush1.msra.mxu0 0.0
  %331 = vmatprep.subr.mxu0 0.0
  %332 = vmatpush1.msra.mxu0 0.0
  %333 = vmatprep.subr.mxu0 0.0
  %334 = vmatpush1.msra.mxu0 0.0
  %335 = vmatprep.subr.mxu0 0.0
  %336 = vmatpush1.msra.mxu0 0.0
  %337 = vmatprep.subr.mxu0 0.0
  %338 = vmatpush1.msra.mxu0 0.0
  %339 = vmatprep.subr.mxu0 0.0
  %340 = vmatpush1.msra.mxu0 0.0
  %341 = vmatprep.subr.mxu0 0.0
  %342 = vmatpush1.msra.mxu0 0.0
  %343 = vmatprep.subr.mxu0 0.0
  %344 = vmatpush1.msra.mxu0 0.0
  %345 = vmatprep.subr.mxu0 0.0
  %346 = vmatpush1.msra.mxu0 0.0
  %347 = vmatprep.subr.mxu0 0.0
  %348 = vmatpush1.msra.mxu0 0.0
  %349 = vmatprep.subr.mxu0 0.0
  %350 = vmatpush1.msra.mxu0 0.0
  %351 = vmatprep.subr.mxu0 0.0
  %352 = vmatpush1.msra.mxu0 0.0
  %353 = vmatprep.subr.mxu0 0.0
  %354 = vmatpush1.msra.mxu0 0.0
  %355 = vmatprep.subr.mxu0 0.0
  %356 = vmatpush1.msra.mxu0 0.0
  %357 = vmatprep.mubr.f32.mxu0 0.0
  %358 = vmatmul.mubr.f32.gmra.mrb[0].mxu0 %v291
  %v359 = vpop.f32.mrb[0].mxu0
  %v360 = vadd.f32 0.0, %v359
  %v361 = vpop.f32.mrb[0].mxu0
  %v362 = vadd.f32 0.0, %v361
  %363 = vdwg.mxu0
  %364 = vmatprep.subr.mxu0 %v260
  %365 = vmatpush1.msra.mxu0 %v259
  %366 = vmatprep.subr.mxu0 %v264
  %367 = vmatpush1.msra.mxu0 %v263
  %368 = vmatprep.subr.mxu0 %v268
  %369 = vmatpush1.msra.mxu0 %v267
  %370 = vmatprep.subr.mxu0 %v272
  %371 = vmatpush1.msra.mxu0 %v271
  %372 = vmatprep.subr.mxu0 %v276
  %373 = vmatpush1.msra.mxu0 %v275
  %374 = vmatprep.subr.mxu0 %v280
  %375 = vmatpush1.msra.mxu0 %v279
  %376 = vmatprep.subr.mxu0 %v284
  %377 = vmatpush1.msra.mxu0 %v283
  %378 = vmatprep.subr.mxu0 %v288
  %379 = vmatpush1.msra.mxu0 %v287
  %380 = vmatprep.subr.mxu0 0.0
  %381 = vmatpush1.msra.mxu0 0.0
  %382 = vmatprep.subr.mxu0 0.0
  %383 = vmatpush1.msra.mxu0 0.0
  %384 = vmatprep.subr.mxu0 0.0
  %385 = vmatpush1.msra.mxu0 0.0
  %386 = vmatprep.subr.mxu0 0.0
  %387 = vmatpush1.msra.mxu0 0.0
  %388 = vmatprep.subr.mxu0 0.0
  %389 = vmatpush1.msra.mxu0 0.0
  %390 = vmatprep.subr.mxu0 0.0
  %391 = vmatpush1.msra.mxu0 0.0
  %392 = vmatprep.subr.mxu0 0.0
  %393 = vmatpush1.msra.mxu0 0.0
  %394 = vmatprep.subr.mxu0 0.0
  %395 = vmatpush1.msra.mxu0 0.0
  %396 = vmatprep.subr.mxu0 0.0
  %397 = vmatpush1.msra.mxu0 0.0
  %398 = vmatprep.subr.mxu0 0.0
  %399 = vmatpush1.msra.mxu0 0.0
  %400 = vmatprep.subr.mxu0 0.0
  %401 = vmatpush1.msra.mxu0 0.0
  %402 = vmatprep.subr.mxu0 0.0
  %403 = vmatpush1.msra.mxu0 0.0
  %404 = vmatprep.subr.mxu0 0.0
  %405 = vmatpush1.msra.mxu0 0.0
  %406 = vmatprep.subr.mxu0 0.0
  %407 = vmatpush1.msra.mxu0 0.0
  %408 = vmatprep.subr.mxu0 0.0
  %409 = vmatpush1.msra.mxu0 0.0
  %410 = vmatprep.subr.mxu0 0.0
  %411 = vmatpush1.msra.mxu0 0.0
  %412 = vmatprep.subr.mxu0 0.0
  %413 = vmatpush1.msra.mxu0 0.0
  %414 = vmatprep.subr.mxu0 0.0
  %415 = vmatpush1.msra.mxu0 0.0
  %416 = vmatprep.subr.mxu0 0.0
  %417 = vmatpush1.msra.mxu0 0.0
  %418 = vmatprep.subr.mxu0 0.0
  %419 = vmatpush1.msra.mxu0 0.0
  %420 = vmatprep.subr.mxu0 0.0
  %421 = vmatpush1.msra.mxu0 0.0
  %422 = vmatprep.subr.mxu0 0.0
  %423 = vmatpush1.msra.mxu0 0.0
  %424 = vmatprep.subr.mxu0 0.0
  %425 = vmatpush1.msra.mxu0 0.0
  %426 = vmatprep.subr.mxu0 0.0
  %427 = vmatpush1.msra.mxu0 0.0
  %428 = vmatprep.mubr.f32.mxu0 0.0
  %429 = vmatmul.mubr.f32.gmra.mrb[0].mxu0 %v291
  %v430 = vpop.f32.mrb[0].mxu0
  %v431 = vadd.f32 0.0, %v430
  %v432 = vpop.f32.mrb[0].mxu0
  %v433 = vadd.f32 0.0, %v432
  %434 = vdwg.mxu0
  %v435 = vadd.f32 %v253, %v360
  %v436 = vadd.f32 %v254, %v362
  %v437 = vadd.f32 %v255, %v431
  %v438 = vadd.f32 %v256, %v433
  %v439 = vtanh.pop %v435
  %v440 = vtanh.pop %v436
  %v441 = vtanh.pop %v437
  %v442 = vtanh.pop %v438
  %v443 = vmul.f32 %v439, 0.5
  %v444 = vadd.f32 %v443, 0.5
  %v445 = vmul.f32 %v440, 0.5
  %v446 = vadd.f32 %v445, 0.5
  %v447 = vmul.f32 %v442, 0.5
  %v448 = vadd.f32 %v447, 0.5
  %v449 = vmul.f32 %v446, 0.0
  %v450 = vmul.f32 %v444, %v441
  %v451 = vadd.f32 %v449, %v450
  %v452 = vtanh.pop %v451
  %v453 = vmul.f32 %v448, %v452
  %vm454 = vcmask 254976
  %455 = vst.msk [vmem:[#allocation3] sm:$0x3] %vm454, %v453
  %457 = vrot.lane.b32.xlu0 %v453, 96
  %v458 = vpop.permute.xlu0 %457
  %s460 = scalar_lea.vmem [#allocation4], 22
  %461 = vst.msk [vmem:[%s460] sm:$0x3] %vm454, %v458
  %v462 = vld [vmem:[#allocation2] sm:$0xc]
  %v463 = vld [vmem:[#allocation2 + $0x8] sm:$0xc]
  %v464 = vld [vmem:[#allocation2 + $0x10] sm:$0xc]
  %v465 = vld [vmem:[#allocation2 + $0x18] sm:$0xc]
  %v466 = vld [vmem:[%s2] sm:$0xff]
  %v467 = vld [vmem:[%s2 + $0x8] sm:$0xff]
  %v468 = vld [vmem:[%s2 + $0x10] sm:$0xff]
  %v469 = vld [vmem:[%s2 + $0x18] sm:$0xff]
  %v470 = vld [vmem:[%s2 + $0x20] sm:$0xff]
  %v471 = vld [vmem:[%s2 + $0x28] sm:$0xff]
  %v472 = vld [vmem:[%s2 + $0x30] sm:$0xff]
  %v473 = vld [vmem:[%s2 + $0x38] sm:$0xff]
  %v474 = vld [vmem:[%s2 + $0x40] sm:$0xff]
  %v475 = vld [vmem:[%s2 + $0x48] sm:$0xff]
  %v476 = vld [vmem:[%s2 + $0x50] sm:$0xff]
  %v477 = vld [vmem:[%s2 + $0x58] sm:$0xff]
  %v478 = vld [vmem:[%s2 + $0x60] sm:$0xff]
  %v479 = vld [vmem:[%s2 + $0x68] sm:$0xff]
  %v480 = vld [vmem:[%s2 + $0x70] sm:$0xff]
  %v481 = vld [vmem:[%s2 + $0x78] sm:$0xff]
  %v482 = vld [vmem:[%s2 + $0x80] sm:$0xff]
  %v483 = vld [vmem:[%s2 + $0x88] sm:$0xff]
  %v484 = vld [vmem:[%s2 + $0x90] sm:$0xff]
  %v485 = vld [vmem:[%s2 + $0x98] sm:$0xff]
  %v486 = vld [vmem:[%s2 + $0xa0] sm:$0xff]
  %v487 = vld [vmem:[%s2 + $0xa8] sm:$0xff]
  %v488 = vld [vmem:[%s2 + $0xb0] sm:$0xff]
  %v489 = vld [vmem:[%s2 + $0xb8] sm:$0xff]
  %v490 = vld [vmem:[%s2 + $0xc0] sm:$0xff]
  %v491 = vld [vmem:[%s2 + $0xc8] sm:$0xff]
  %v492 = vld [vmem:[%s2 + $0xd0] sm:$0xff]
  %v493 = vld [vmem:[%s2 + $0xd8] sm:$0xff]
  %v494 = vld [vmem:[%s2 + $0xe0] sm:$0xff]
  %v495 = vld [vmem:[%s2 + $0xe8] sm:$0xff]
  %v496 = vld [vmem:[%s2 + $0xf0] sm:$0xff]
  %v497 = vld [vmem:[%s2 + $0xf8] sm:$0xff]
  %v498 = vsel %vm289, %v453, 0
  %500 = vmatprep.subr.mxu0 %v467
  %501 = vmatpush1.msra.mxu0 %v466
  %502 = vmatprep.subr.mxu0 %v471
  %503 = vmatpush1.msra.mxu0 %v470
  %504 = vmatprep.subr.mxu0 %v475
  %505 = vmatpush1.msra.mxu0 %v474
  %506 = vmatprep.subr.mxu0 %v479
  %507 = vmatpush1.msra.mxu0 %v478
  %508 = vmatprep.subr.mxu0 %v483
  %509 = vmatpush1.msra.mxu0 %v482
  %510 = vmatprep.subr.mxu0 %v487
  %511 = vmatpush1.msra.mxu0 %v486
  %512 = vmatprep.subr.mxu0 %v491
  %513 = vmatpush1.msra.mxu0 %v490
  %514 = vmatprep.subr.mxu0 %v495
  %515 = vmatpush1.msra.mxu0 %v494
  %516 = vmatprep.subr.mxu0 0.0
  %517 = vmatpush1.msra.mxu0 0.0
  %518 = vmatprep.subr.mxu0 0.0
  %519 = vmatpush1.msra.mxu0 0.0
  %520 = vmatprep.subr.mxu0 0.0
  %521 = vmatpush1.msra.mxu0 0.0
  %522 = vmatprep.subr.mxu0 0.0
  %523 = vmatpush1.msra.mxu0 0.0
  %524 = vmatprep.subr.mxu0 0.0
  %525 = vmatpush1.msra.mxu0 0.0
  %526 = vmatprep.subr.mxu0 0.0
  %527 = vmatpush1.msra.mxu0 0.0
  %528 = vmatprep.subr.mxu0 0.0
  %529 = vmatpush1.msra.mxu0 0.0
  %530 = vmatprep.subr.mxu0 0.0
  %531 = vmatpush1.msra.mxu0 0.0
  %532 = vmatprep.subr.mxu0 0.0
  %533 = vmatpush1.msra.mxu0 0.0
  %534 = vmatprep.subr.mxu0 0.0
  %535 = vmatpush1.msra.mxu0 0.0
  %536 = vmatprep.subr.mxu0 0.0
  %537 = vmatpush1.msra.mxu0 0.0
  %538 = vmatprep.subr.mxu0 0.0
  %539 = vmatpush1.msra.mxu0 0.0
  %540 = vmatprep.subr.mxu0 0.0
  %541 = vmatpush1.msra.mxu0 0.0
  %542 = vmatprep.subr.mxu0 0.0
  %543 = vmatpush1.msra.mxu0 0.0
  %544 = vmatprep.subr.mxu0 0.0
  %545 = vmatpush1.msra.mxu0 0.0
  %546 = vmatprep.subr.mxu0 0.0
  %547 = vmatpush1.msra.mxu0 0.0
  %548 = vmatprep.subr.mxu0 0.0
  %549 = vmatpush1.msra.mxu0 0.0
  %550 = vmatprep.subr.mxu0 0.0
  %551 = vmatpush1.msra.mxu0 0.0
  %552 = vmatprep.subr.mxu0 0.0
  %553 = vmatpush1.msra.mxu0 0.0
  %554 = vmatprep.subr.mxu0 0.0
  %555 = vmatpush1.msra.mxu0 0.0
  %556 = vmatprep.subr.mxu0 0.0
  %557 = vmatpush1.msra.mxu0 0.0
  %558 = vmatprep.subr.mxu0 0.0
  %559 = vmatpush1.msra.mxu0 0.0
  %560 = vmatprep.subr.mxu0 0.0
  %561 = vmatpush1.msra.mxu0 0.0
  %562 = vmatprep.subr.mxu0 0.0
  %563 = vmatpush1.msra.mxu0 0.0
  %564 = vmatprep.mubr.f32.mxu0 0.0
  %565 = vmatmul.mubr.f32.gmra.mrb[0].mxu0 %v498
  %v566 = vpop.f32.mrb[0].mxu0
  %v567 = vadd.f32 0.0, %v566
  %v568 = vpop.f32.mrb[0].mxu0
  %v569 = vadd.f32 0.0, %v568
  %570 = vdwg.mxu0
  %571 = vmatprep.subr.mxu0 %v469
  %572 = vmatpush1.msra.mxu0 %v468
  %573 = vmatprep.subr.mxu0 %v473
  %574 = vmatpush1.msra.mxu0 %v472
  %575 = vmatprep.subr.mxu0 %v477
  %576 = vmatpush1.msra.mxu0 %v476
  %577 = vmatprep.subr.mxu0 %v481
  %578 = vmatpush1.msra.mxu0 %v480
  %579 = vmatprep.subr.mxu0 %v485
  %580 = vmatpush1.msra.mxu0 %v484
  %581 = vmatprep.subr.mxu0 %v489
  %582 = vmatpush1.msra.mxu0 %v488
  %583 = vmatprep.subr.mxu0 %v493
  %584 = vmatpush1.msra.mxu0 %v492
  %585 = vmatprep.subr.mxu0 %v497
  %586 = vmatpush1.msra.mxu0 %v496
  %587 = vmatprep.subr.mxu0 0.0
  %588 = vmatpush1.msra.mxu0 0.0
  %589 = vmatprep.subr.mxu0 0.0
  %590 = vmatpush1.msra.mxu0 0.0
  %591 = vmatprep.subr.mxu0 0.0
  %592 = vmatpush1.msra.mxu0 0.0
  %593 = vmatprep.subr.mxu0 0.0
  %594 = vmatpush1.msra.mxu0 0.0
  %595 = vmatprep.subr.mxu0 0.0
  %596 = vmatpush1.msra.mxu0 0.0
  %597 = vmatprep.subr.mxu0 0.0
  %598 = vmatpush1.msra.mxu0 0.0
  %599 = vmatprep.subr.mxu0 0.0
  %600 = vmatpush1.msra.mxu0 0.0
  %601 = vmatprep.subr.mxu0 0.0
  %602 = vmatpush1.msra.mxu0 0.0
  %603 = vmatprep.subr.mxu0 0.0
  %604 = vmatpush1.msra.mxu0 0.0
  %605 = vmatprep.subr.mxu0 0.0
  %606 = vmatpush1.msra.mxu0 0.0
  %607 = vmatprep.subr.mxu0 0.0
  %608 = vmatpush1.msra.mxu0 0.0
  %609 = vmatprep.subr.mxu0 0.0
  %610 = vmatpush1.msra.mxu0 0.0
  %611 = vmatprep.subr.mxu0 0.0
  %612 = vmatpush1.msra.mxu0 0.0
  %613 = vmatprep.subr.mxu0 0.0
  %614 = vmatpush1.msra.mxu0 0.0
  %615 = vmatprep.subr.mxu0 0.0
  %616 = vmatpush1.msra.mxu0 0.0
  %617 = vmatprep.subr.mxu0 0.0
  %618 = vmatpush1.msra.mxu0 0.0
  %619 = vmatprep.subr.mxu0 0.0
  %620 = vmatpush1.msra.mxu0 0.0
  %621 = vmatprep.subr.mxu0 0.0
  %622 = vmatpush1.msra.mxu0 0.0
  %623 = vmatprep.subr.mxu0 0.0
  %624 = vmatpush1.msra.mxu0 0.0
  %625 = vmatprep.subr.mxu0 0.0
  %626 = vmatpush1.msra.mxu0 0.0
  %627 = vmatprep.subr.mxu0 0.0
  %628 = vmatpush1.msra.mxu0 0.0
  %629 = vmatprep.subr.mxu0 0.0
  %630 = vmatpush1.msra.mxu0 0.0
  %631 = vmatprep.subr.mxu0 0.0
  %632 = vmatpush1.msra.mxu0 0.0
  %633 = vmatprep.subr.mxu0 0.0
  %634 = vmatpush1.msra.mxu0 0.0
  %635 = vmatprep.mubr.f32.mxu0 0.0
  %636 = vmatmul.mubr.f32.gmra.mrb[0].mxu0 %v498
  %v637 = vpop.f32.mrb[0].mxu0
  %v638 = vadd.f32 0.0, %v637
  %v639 = vpop.f32.mrb[0].mxu0
  %v640 = vadd.f32 0.0, %v639
  %641 = vdwg.mxu0
  %v646 = vrot.slane %v567, 6
  %v647 = vrot.slane %v569, 6
  %v648 = vrot.slane %v638, 6
  %v649 = vrot.slane %v640, 6
  %v654 = vadd.f32 %v462, %v646
  %v655 = vadd.f32 %v463, %v647
  %v656 = vadd.f32 %v464, %v648
  %v657 = vadd.f32 %v465, %v649
  %v658 = vtanh.pop %v654
  %v659 = vtanh.pop %v655
  %v660 = vtanh.pop %v656
  %v661 = vtanh.pop %v657
  %v662 = vmul.f32 %v658, 0.5
  %v663 = vadd.f32 %v662, 0.5
  %v664 = vmul.f32 %v659, 0.5
  %v665 = vadd.f32 %v664, 0.5
  %v666 = vmul.f32 %v661, 0.5
  %v667 = vadd.f32 %v666, 0.5
  %v669 = vrot.slane %v451, 6
  %v671 = vmul.f32 %v665, %v669
  %v672 = vmul.f32 %v663, %v660
  %v673 = vadd.f32 %v671, %v672
  %v674 = vtanh.pop %v673
  %v675 = vmul.f32 %v667, %v674
  %s676 = scalar_lea.vmem [#allocation3], 2
  %vm677 = vcmask 257026
  %678 = vst.msk [vmem:[%s676 - $0x2] sm:$0xc] %vm677, %v675
  %680 = vrot.lane.b32.xlu0 %v675, 96
  %v681 = vpop.permute.xlu0 %680
  %s683 = scalar_lea.vmem [#allocation4], 20
  %684 = vst.msk [vmem:[%s683 - $0x2] sm:$0xc] %vm677, %v681
  %v685 = vld [vmem:[#allocation2] sm:$0x30]
  %v686 = vld [vmem:[#allocation2 + $0x8] sm:$0x30]
  %v687 = vld [vmem:[#allocation2 + $0x10] sm:$0x30]
  %v688 = vld [vmem:[#allocation2 + $0x18] sm:$0x30]
  %v689 = vld [vmem:[%s2] sm:$0xff]
  %v690 = vld [vmem:[%s2 + $0x8] sm:$0xff]
  %v691 = vld [vmem:[%s2 + $0x10] sm:$0xff]
  %v692 = vld [vmem:[%s2 + $0x18] sm:$0xff]
  %v693 = vld [vmem:[%s2 + $0x20] sm:$0xff]
  %v694 = vld [vmem:[%s2 + $0x28] sm:$0xff]
  %v695 = vld [vmem:[%s2 + $0x30] sm:$0xff]
  %v696 = vld [vmem:[%s2 + $0x38] sm:$0xff]
  %v697 = vld [vmem:[%s2 + $0x40] sm:$0xff]
  %v698 = vld [vmem:[%s2 + $0x48] sm:$0xff]
  %v699 = vld [vmem:[%s2 + $0x50] sm:$0xff]
  %v700 = vld [vmem:[%s2 + $0x58] sm:$0xff]
  %v701 = vld [vmem:[%s2 + $0x60] sm:$0xff]
  %v702 = vld [vmem:[%s2 + $0x68] sm:$0xff]
  %v703 = vld [vmem:[%s2 + $0x70] sm:$0xff]
  %v704 = vld [vmem:[%s2 + $0x78] sm:$0xff]
  %v705 = vld [vmem:[%s2 + $0x80] sm:$0xff]
  %v706 = vld [vmem:[%s2 + $0x88] sm:$0xff]
  %v707 = vld [vmem:[%s2 + $0x90] sm:$0xff]
  %v708 = vld [vmem:[%s2 + $0x98] sm:$0xff]
  %v709 = vld [vmem:[%s2 + $0xa0] sm:$0xff]
  %v710 = vld [vmem:[%s2 + $0xa8] sm:$0xff]
  %v711 = vld [vmem:[%s2 + $0xb0] sm:$0xff]
  %v712 = vld [vmem:[%s2 + $0xb8] sm:$0xff]
  %v713 = vld [vmem:[%s2 + $0xc0] sm:$0xff]
  %v714 = vld [vmem:[%s2 + $0xc8] sm:$0xff]
  %v715 = vld [vmem:[%s2 + $0xd0] sm:$0xff]
  %v716 = vld [vmem:[%s2 + $0xd8] sm:$0xff]
  %v717 = vld [vmem:[%s2 + $0xe0] sm:$0xff]
  %v718 = vld [vmem:[%s2 + $0xe8] sm:$0xff]
  %v719 = vld [vmem:[%s2 + $0xf0] sm:$0xff]
  %v720 = vld [vmem:[%s2 + $0xf8] sm:$0xff]
  %v721 = vrot.slane %v675, 2
  %v722 = vsel %vm289, %v721, 0
  %724 = vmatprep.subr.mxu0 %v690
  %725 = vmatpush1.msra.mxu0 %v689
  %726 = vmatprep.subr.mxu0 %v694
  %727 = vmatpush1.msra.mxu0 %v693
  %728 = vmatprep.subr.mxu0 %v698
  %729 = vmatpush1.msra.mxu0 %v697
  %730 = vmatprep.subr.mxu0 %v702
  %731 = vmatpush1.msra.mxu0 %v701
  %732 = vmatprep.subr.mxu0 %v706
  %733 = vmatpush1.msra.mxu0 %v705
  %734 = vmatprep.subr.mxu0 %v710
  %735 = vmatpush1.msra.mxu0 %v709
  %736 = vmatprep.subr.mxu0 %v714
  %737 = vmatpush1.msra.mxu0 %v713
  %738 = vmatprep.subr.mxu0 %v718
  %739 = vmatpush1.msra.mxu0 %v717
  %740 = vmatprep.subr.mxu0 0.0
  %741 = vmatpush1.msra.mxu0 0.0
  %742 = vmatprep.subr.mxu0 0.0
  %743 = vmatpush1.msra.mxu0 0.0
  %744 = vmatprep.subr.mxu0 0.0
  %745 = vmatpush1.msra.mxu0 0.0
  %746 = vmatprep.subr.mxu0 0.0
  %747 = vmatpush1.msra.mxu0 0.0
  %748 = vmatprep.subr.mxu0 0.0
  %749 = vmatpush1.msra.mxu0 0.0
  %750 = vmatprep.subr.mxu0 0.0
  %751 = vmatpush1.msra.mxu0 0.0
  %752 = vmatprep.subr.mxu0 0.0
  %753 = vmatpush1.msra.mxu0 0.0
  %754 = vmatprep.subr.mxu0 0.0
  %755 = vmatpush1.msra.mxu0 0.0
  %756 = vmatprep.subr.mxu0 0.0
  %757 = vmatpush1.msra.mxu0 0.0
  %758 = vmatprep.subr.mxu0 0.0
  %759 = vmatpush1.msra.mxu0 0.0
  %760 = vmatprep.subr.mxu0 0.0
  %761 = vmatpush1.msra.mxu0 0.0
  %762 = vmatprep.subr.mxu0 0.0
  %763 = vmatpush1.msra.mxu0 0.0
  %764 = vmatprep.subr.mxu0 0.0
  %765 = vmatpush1.msra.mxu0 0.0
  %766 = vmatprep.subr.mxu0 0.0
  %767 = vmatpush1.msra.mxu0 0.0
  %768 = vmatprep.subr.mxu0 0.0
  %769 = vmatpush1.msra.mxu0 0.0
  %770 = vmatprep.subr.mxu0 0.0
  %771 = vmatpush1.msra.mxu0 0.0
  %772 = vmatprep.subr.mxu0 0.0
  %773 = vmatpush1.msra.mxu0 0.0
  %774 = vmatprep.subr.mxu0 0.0
  %775 = vmatpush1.msra.mxu0 0.0
  %776 = vmatprep.subr.mxu0 0.0
  %777 = vmatpush1.msra.mxu0 0.0
  %778 = vmatprep.subr.mxu0 0.0
  %779 = vmatpush1.msra.mxu0 0.0
  %780 = vmatprep.subr.mxu0 0.0
  %781 = vmatpush1.msra.mxu0 0.0
  %782 = vmatprep.subr.mxu0 0.0
  %783 = vmatpush1.msra.mxu0 0.0
  %784 = vmatprep.subr.mxu0 0.0
  %785 = vmatpush1.msra.mxu0 0.0
  %786 = vmatprep.subr.mxu0 0.0
  %787 = vmatpush1.msra.mxu0 0.0
  %788 = vmatprep.mubr.f32.mxu0 0.0
  %789 = vmatmul.mubr.f32.gmra.mrb[0].mxu0 %v722
  %v790 = vpop.f32.mrb[0].mxu0
  %v791 = vadd.f32 0.0, %v790
  %v792 = vpop.f32.mrb[0].mxu0
  %v793 = vadd.f32 0.0, %v792
  %794 = vdwg.mxu0
  %795 = vmatprep.subr.mxu0 %v692
  %796 = vmatpush1.msra.mxu0 %v691
  %797 = vmatprep.subr.mxu0 %v696
  %798 = vmatpush1.msra.mxu0 %v695
  %799 = vmatprep.subr.mxu0 %v700
  %800 = vmatpush1.msra.mxu0 %v699
  %801 = vmatprep.subr.mxu0 %v704
  %802 = vmatpush1.msra.mxu0 %v703
  %803 = vmatprep.subr.mxu0 %v708
  %804 = vmatpush1.msra.mxu0 %v707
  %805 = vmatprep.subr.mxu0 %v712
  %806 = vmatpush1.msra.mxu0 %v711
  %807 = vmatprep.subr.mxu0 %v716
  %808 = vmatpush1.msra.mxu0 %v715
  %809 = vmatprep.subr.mxu0 %v720
  %810 = vmatpush1.msra.mxu0 %v719
  %811 = vmatprep.subr.mxu0 0.0
  %812 = vmatpush1.msra.mxu0 0.0
  %813 = vmatprep.subr.mxu0 0.0
  %814 = vmatpush1.msra.mxu0 0.0
  %815 = vmatprep.subr.mxu0 0.0
  %816 = vmatpush1.msra.mxu0 0.0
  %817 = vmatprep.subr.mxu0 0.0
  %818 = vmatpush1.msra.mxu0 0.0
  %819 = vmatprep.subr.mxu0 0.0
  %820 = vmatpush1.msra.mxu0 0.0
  %821 = vmatprep.subr.mxu0 0.0
  %822 = vmatpush1.msra.mxu0 0.0
  %823 = vmatprep.subr.mxu0 0.0
  %824 = vmatpush1.msra.mxu0 0.0
  %825 = vmatprep.subr.mxu0 0.0
  %826 = vmatpush1.msra.mxu0 0.0
  %827 = vmatprep.subr.mxu0 0.0
  %828 = vmatpush1.msra.mxu0 0.0
  %829 = vmatprep.subr.mxu0 0.0
  %830 = vmatpush1.msra.mxu0 0.0
  %831 = vmatprep.subr.mxu0 0.0
  %832 = vmatpush1.msra.mxu0 0.0
  %833 = vmatprep.subr.mxu0 0.0
  %834 = vmatpush1.msra.mxu0 0.0
  %835 = vmatprep.subr.mxu0 0.0
  %836 = vmatpush1.msra.mxu0 0.0
  %837 = vmatprep.subr.mxu0 0.0
  %838 = vmatpush1.msra.mxu0 0.0
  %839 = vmatprep.subr.mxu0 0.0
  %840 = vmatpush1.msra.mxu0 0.0
  %841 = vmatprep.subr.mxu0 0.0
  %842 = vmatpush1.msra.mxu0 0.0
  %843 = vmatprep.subr.mxu0 0.0
  %844 = vmatpush1.msra.mxu0 0.0
  %845 = vmatprep.subr.mxu0 0.0
  %846 = vmatpush1.msra.mxu0 0.0
  %847 = vmatprep.subr.mxu0 0.0
  %848 = vmatpush1.msra.mxu0 0.0
  %849 = vmatprep.subr.mxu0 0.0
  %850 = vmatpush1.msra.mxu0 0.0
  %851 = vmatprep.subr.mxu0 0.0
  %852 = vmatpush1.msra.mxu0 0.0
  %853 = vmatprep.subr.mxu0 0.0
  %854 = vmatpush1.msra.mxu0 0.0
  %855 = vmatprep.subr.mxu0 0.0
  %856 = vmatpush1.msra.mxu0 0.0
  %857 = vmatprep.subr.mxu0 0.0
  %858 = vmatpush1.msra.mxu0 0.0
  %859 = vmatprep.mubr.f32.mxu0 0.0
  %860 = vmatmul.mubr.f32.gmra.mrb[0].mxu0 %v722
  %v861 = vpop.f32.mrb[0].mxu0
  %v862 = vadd.f32 0.0, %v861
  %v863 = vpop.f32.mrb[0].mxu0
  %v864 = vadd.f32 0.0, %v863
  %865 = vdwg.mxu0
  %v870 = vrot.slane %v791, 4
  %v871 = vrot.slane %v793, 4
  %v872 = vrot.slane %v862, 4
  %v873 = vrot.slane %v864, 4
  %v878 = vadd.f32 %v685, %v870
  %v879 = vadd.f32 %v686, %v871
  %v880 = vadd.f32 %v687, %v872
  %v881 = vadd.f32 %v688, %v873
  %v882 = vtanh.pop %v878
  %v883 = vtanh.pop %v879
  %v884 = vtanh.pop %v880
  %v885 = vtanh.pop %v881
  %v886 = vmul.f32 %v882, 0.5
  %v887 = vadd.f32 %v886, 0.5
  %v888 = vmul.f32 %v883, 0.5
  %v889 = vadd.f32 %v888, 0.5
  %v890 = vmul.f32 %v885, 0.5
  %v891 = vadd.f32 %v890, 0.5
  %v893 = vrot.slane %v673, 6
  %v895 = vmul.f32 %v889, %v893
  %v896 = vmul.f32 %v887, %v884
  %v897 = vadd.f32 %v895, %v896
  %v898 = vtanh.pop %v897
  %v899 = vmul.f32 %v891, %v898
  %s900 = scalar_lea.vmem [#allocation3], 4
  %vm901 = vcmask 259076
  %902 = vst.msk [vmem:[%s900 - $0x4] sm:$0x30] %vm901, %v899
  %904 = vrot.lane.b32.xlu0 %v899, 96
  %v905 = vpop.permute.xlu0 %904
  %s907 = scalar_lea.vmem [#allocation4], 18
  %908 = vst.msk [vmem:[%s907 - $0x4] sm:$0x30] %vm901, %v905
  %v909 = vld [vmem:[#allocation2] sm:$0xc0]
  %v910 = vld [vmem:[#allocation2 + $0x8] sm:$0xc0]
  %v911 = vld [vmem:[#allocation2 + $0x10] sm:$0xc0]
  %v912 = vld [vmem:[#allocation2 + $0x18] sm:$0xc0]
  %v913 = vld [vmem:[%s2] sm:$0xff]
  %v914 = vld [vmem:[%s2 + $0x8] sm:$0xff]
  %v915 = vld [vmem:[%s2 + $0x10] sm:$0xff]
  %v916 = vld [vmem:[%s2 + $0x18] sm:$0xff]
  %v917 = vld [vmem:[%s2 + $0x20] sm:$0xff]
  %v918 = vld [vmem:[%s2 + $0x28] sm:$0xff]
  %v919 = vld [vmem:[%s2 + $0x30] sm:$0xff]
  %v920 = vld [vmem:[%s2 + $0x38] sm:$0xff]
  %v921 = vld [vmem:[%s2 + $0x40] sm:$0xff]
  %v922 = vld [vmem:[%s2 + $0x48] sm:$0xff]
  %v923 = vld [vmem:[%s2 + $0x50] sm:$0xff]
  %v924 = vld [vmem:[%s2 + $0x58] sm:$0xff]
  %v925 = vld [vmem:[%s2 + $0x60] sm:$0xff]
  %v926 = vld [vmem:[%s2 + $0x68] sm:$0xff]
  %v927 = vld [vmem:[%s2 + $0x70] sm:$0xff]
  %v928 = vld [vmem:[%s2 + $0x78] sm:$0xff]
  %v929 = vld [vmem:[%s2 + $0x80] sm:$0xff]
  %v930 = vld [vmem:[%s2 + $0x88] sm:$0xff]
  %v931 = vld [vmem:[%s2 + $0x90] sm:$0xff]
  %v932 = vld [vmem:[%s2 + $0x98] sm:$0xff]
  %v933 = vld [vmem:[%s2 + $0xa0] sm:$0xff]
  %v934 = vld [vmem:[%s2 + $0xa8] sm:$0xff]
  %v935 = vld [vmem:[%s2 + $0xb0] sm:$0xff]
  %v936 = vld [vmem:[%s2 + $0xb8] sm:$0xff]
  %v937 = vld [vmem:[%s2 + $0xc0] sm:$0xff]
  %v938 = vld [vmem:[%s2 + $0xc8] sm:$0xff]
  %v939 = vld [vmem:[%s2 + $0xd0] sm:$0xff]
  %v940 = vld [vmem:[%s2 + $0xd8] sm:$0xff]
  %v941 = vld [vmem:[%s2 + $0xe0] sm:$0xff]
  %v942 = vld [vmem:[%s2 + $0xe8] sm:$0xff]
  %v943 = vld [vmem:[%s2 + $0xf0] sm:$0xff]
  %v944 = vld [vmem:[%s2 + $0xf8] sm:$0xff]
  %v945 = vrot.slane %v899, 4
  %v946 = vsel %vm289, %v945, 0
  %948 = vmatprep.subr.mxu0 %v914
  %949 = vmatpush1.msra.mxu0 %v913
  %950 = vmatprep.subr.mxu0 %v918
  %951 = vmatpush1.msra.mxu0 %v917
  %952 = vmatprep.subr.mxu0 %v922
  %953 = vmatpush1.msra.mxu0 %v921
  %954 = vmatprep.subr.mxu0 %v926
  %955 = vmatpush1.msra.mxu0 %v925
  %956 = vmatprep.subr.mxu0 %v930
  %957 = vmatpush1.msra.mxu0 %v929
  %958 = vmatprep.subr.mxu0 %v934
  %959 = vmatpush1.msra.mxu0 %v933
  %960 = vmatprep.subr.mxu0 %v938
  %961 = vmatpush1.msra.mxu0 %v937
  %962 = vmatprep.subr.mxu0 %v942
  %963 = vmatpush1.msra.mxu0 %v941
  %964 = vmatprep.subr.mxu0 0.0
  %965 = vmatpush1.msra.mxu0 0.0
  %966 = vmatprep.subr.mxu0 0.0
  %967 = vmatpush1.msra.mxu0 0.0
  %968 = vmatprep.subr.mxu0 0.0
  %969 = vmatpush1.msra.mxu0 0.0
  %970 = vmatprep.subr.mxu0 0.0
  %971 = vmatpush1.msra.mxu0 0.0
  %972 = vmatprep.subr.mxu0 0.0
  %973 = vmatpush1.msra.mxu0 0.0
  %974 = vmatprep.subr.mxu0 0.0
  %975 = vmatpush1.msra.mxu0 0.0
  %976 = vmatprep.subr.mxu0 0.0
  %977 = vmatpush1.msra.mxu0 0.0
  %978 = vmatprep.subr.mxu0 0.0
  %979 = vmatpush1.msra.mxu0 0.0
  %980 = vmatprep.subr.mxu0 0.0
  %981 = vmatpush1.msra.mxu0 0.0
  %982 = vmatprep.subr.mxu0 0.0
  %983 = vmatpush1.msra.mxu0 0.0
  %984 = vmatprep.subr.mxu0 0.0
  %985 = vmatpush1.msra.mxu0 0.0
  %986 = vmatprep.subr.mxu0 0.0
  %987 = vmatpush1.msra.mxu0 0.0
  %988 = vmatprep.subr.mxu0 0.0
  %989 = vmatpush1.msra.mxu0 0.0
  %990 = vmatprep.subr.mxu0 0.0
  %991 = vmatpush1.msra.mxu0 0.0
  %992 = vmatprep.subr.mxu0 0.0
  %993 = vmatpush1.msra.mxu0 0.0
  %994 = vmatprep.subr.mxu0 0.0
  %995 = vmatpush1.msra.mxu0 0.0
  %996 = vmatprep.subr.mxu0 0.0
  %997 = vmatpush1.msra.mxu0 0.0
  %998 = vmatprep.subr.mxu0 0.0
  %999 = vmatpush1.msra.mxu0 0.0
  %1000 = vmatprep.subr.mxu0 0.0
  %1001 = vmatpush1.msra.mxu0 0.0
  %1002 = vmatprep.subr.mxu0 0.0
  %1003 = vmatpush1.msra.mxu0 0.0
  %1004 = vmatprep.subr.mxu0 0.0
  %1005 = vmatpush1.msra.mxu0 0.0
  %1006 = vmatprep.subr.mxu0 0.0
  %1007 = vmatpush1.msra.mxu0 0.0
  %1008 = vmatprep.subr.mxu0 0.0
  %1009 = vmatpush1.msra.mxu0 0.0
  %1010 = vmatprep.subr.mxu0 0.0
  %1011 = vmatpush1.msra.mxu0 0.0
  %1012 = vmatprep.mubr.f32.mxu0 0.0
  %1013 = vmatmul.mubr.f32.gmra.mrb[0].mxu0 %v946
  %v1014 = vpop.f32.mrb[0].mxu0
  %v1015 = vadd.f32 0.0, %v1014
  %v1016 = vpop.f32.mrb[0].mxu0
  %v1017 = vadd.f32 0.0, %v1016
  %1018 = vdwg.mxu0
  %1019 = vmatprep.subr.mxu0 %v916
  %1020 = vmatpush1.msra.mxu0 %v915
  %1021 = vmatprep.subr.mxu0 %v920
  %1022 = vmatpush1.msra.mxu0 %v919
  %1023 = vmatprep.subr.mxu0 %v924
  %1024 = vmatpush1.msra.mxu0 %v923
  %1025 = vmatprep.subr.mxu0 %v928
  %1026 = vmatpush1.msra.mxu0 %v927
  %1027 = vmatprep.subr.mxu0 %v932
  %1028 = vmatpush1.msra.mxu0 %v931
  %1029 = vmatprep.subr.mxu0 %v936
  %1030 = vmatpush1.msra.mxu0 %v935
  %1031 = vmatprep.subr.mxu0 %v940
  %1032 = vmatpush1.msra.mxu0 %v939
  %1033 = vmatprep.subr.mxu0 %v944
  %1034 = vmatpush1.msra.mxu0 %v943
  %1035 = vmatprep.subr.mxu0 0.0
  %1036 = vmatpush1.msra.mxu0 0.0
  %1037 = vmatprep.subr.mxu0 0.0
  %1038 = vmatpush1.msra.mxu0 0.0
  %1039 = vmatprep.subr.mxu0 0.0
  %1040 = vmatpush1.msra.mxu0 0.0
  %1041 = vmatprep.subr.mxu0 0.0
  %1042 = vmatpush1.msra.mxu0 0.0
  %1043 = vmatprep.subr.mxu0 0.0
  %1044 = vmatpush1.msra.mxu0 0.0
  %1045 = vmatprep.subr.mxu0 0.0
  %1046 = vmatpush1.msra.mxu0 0.0
  %1047 = vmatprep.subr.mxu0 0.0
  %1048 = vmatpush1.msra.mxu0 0.0
  %1049 = vmatprep.subr.mxu0 0.0
  %1050 = vmatpush1.msra.mxu0 0.0
  %1051 = vmatprep.subr.mxu0 0.0
  %1052 = vmatpush1.msra.mxu0 0.0
  %1053 = vmatprep.subr.mxu0 0.0
  %1054 = vmatpush1.msra.mxu0 0.0
  %1055 = vmatprep.subr.mxu0 0.0
  %1056 = vmatpush1.msra.mxu0 0.0
  %1057 = vmatprep.subr.mxu0 0.0
  %1058 = vmatpush1.msra.mxu0 0.0
  %1059 = vmatprep.subr.mxu0 0.0
  %1060 = vmatpush1.msra.mxu0 0.0
  %1061 = vmatprep.subr.mxu0 0.0
  %1062 = vmatpush1.msra.mxu0 0.0
  %1063 = vmatprep.subr.mxu0 0.0
  %1064 = vmatpush1.msra.mxu0 0.0
  %1065 = vmatprep.subr.mxu0 0.0
  %1066 = vmatpush1.msra.mxu0 0.0
  %1067 = vmatprep.subr.mxu0 0.0
  %1068 = vmatpush1.msra.mxu0 0.0
  %1069 = vmatprep.subr.mxu0 0.0
  %1070 = vmatpush1.msra.mxu0 0.0
  %1071 = vmatprep.subr.mxu0 0.0
  %1072 = vmatpush1.msra.mxu0 0.0
  %1073 = vmatprep.subr.mxu0 0.0
  %1074 = vmatpush1.msra.mxu0 0.0
  %1075 = vmatprep.subr.mxu0 0.0
  %1076 = vmatpush1.msra.mxu0 0.0
  %1077 = vmatprep.subr.mxu0 0.0
  %1078 = vmatpush1.msra.mxu0 0.0
  %1079 = vmatprep.subr.mxu0 0.0
  %1080 = vmatpush1.msra.mxu0 0.0
  %1081 = vmatprep.subr.mxu0 0.0
  %1082 = vmatpush1.msra.mxu0 0.0
  %1083 = vmatprep.mubr.f32.mxu0 0.0
  %1084 = vmatmul.mubr.f32.gmra.mrb[0].mxu0 %v946
  %v1085 = vpop.f32.mrb[0].mxu0
  %v1086 = vadd.f32 0.0, %v1085
  %v1087 = vpop.f32.mrb[0].mxu0
  %v1088 = vadd.f32 0.0, %v1087
  %1089 = vdwg.mxu0
  %v1094 = vrot.slane %v1015, 2
  %v1095 = vrot.slane %v1017, 2
  %v1096 = vrot.slane %v1086, 2
  %v1097 = vrot.slane %v1088, 2
  %v1102 = vadd.f32 %v909, %v1094
  %v1103 = vadd.f32 %v910, %v1095
  %v1104 = vadd.f32 %v911, %v1096
  %v1105 = vadd.f32 %v912, %v1097
  %v1106 = vtanh.pop %v1102
  %v1107 = vtanh.pop %v1103
  %v1108 = vtanh.pop %v1104
  %v1109 = vtanh.pop %v1105
  %v1110 = vmul.f32 %v1106, 0.5
  %v1111 = vadd.f32 %v1110, 0.5
  %v1112 = vmul.f32 %v1107, 0.5
  %v1113 = vadd.f32 %v1112, 0.5
  %v1114 = vmul.f32 %v1109, 0.5
  %v1115 = vadd.f32 %v1114, 0.5
  %v1117 = vrot.slane %v897, 6
  %v1119 = vmul.f32 %v1113, %v1117
  %v1120 = vmul.f32 %v1111, %v1108
  %v1121 = vadd.f32 %v1119, %v1120
  %v1122 = vtanh.pop %v1121
  %v1123 = vmul.f32 %v1115, %v1122
  %s1124 = scalar_lea.vmem [#allocation3], 6
  %vm1125 = vcmask 261126
  %1126 = vst.msk [vmem:[%s1124 - $0x6] sm:$0xc0] %vm1125, %v1123
  %1128 = vrot.lane.b32.xlu0 %v1123, 96
  %v1129 = vpop.permute.xlu0 %1128
  %s1131 = scalar_lea.vmem [#allocation4], 16
  %1132 = vst.msk [vmem:[%s1131 - $0x6] sm:$0xc0] %vm1125, %v1129
  %v1133 = vld [vmem:[#allocation2 + $0x20] sm:$0x3]
  %v1134 = vld [vmem:[#allocation2 + $0x28] sm:$0x3]
  %v1135 = vld [vmem:[#allocation2 + $0x30] sm:$0x3]
  %v1136 = vld [vmem:[#allocation2 + $0x38] sm:$0x3]
  %v1137 = vld [vmem:[%s2] sm:$0xff]
  %v1138 = vld [vmem:[%s2 + $0x8] sm:$0xff]
  %v1139 = vld [vmem:[%s2 + $0x10] sm:$0xff]
  %v1140 = vld [vmem:[%s2 + $0x18] sm:$0xff]
  %v1141 = vld [vmem:[%s2 + $0x20] sm:$0xff]
  %v1142 = vld [vmem:[%s2 + $0x28] sm:$0xff]
  %v1143 = vld [vmem:[%s2 + $0x30] sm:$0xff]
  %v1144 = vld [vmem:[%s2 + $0x38] sm:$0xff]
  %v1145 = vld [vmem:[%s2 + $0x40] sm:$0xff]
  %v1146 = vld [vmem:[%s2 + $0x48] sm:$0xff]
  %v1147 = vld [vmem:[%s2 + $0x50] sm:$0xff]
  %v1148 = vld [vmem:[%s2 + $0x58] sm:$0xff]
  %v1149 = vld [vmem:[%s2 + $0x60] sm:$0xff]
  %v1150 = vld [vmem:[%s2 + $0x68] sm:$0xff]
  %v1151 = vld [vmem:[%s2 + $0x70] sm:$0xff]
  %v1152 = vld [vmem:[%s2 + $0x78] sm:$0xff]
  %v1153 = vld [vmem:[%s2 + $0x80] sm:$0xff]
  %v1154 = vld [vmem:[%s2 + $0x88] sm:$0xff]
  %v1155 = vld [vmem:[%s2 + $0x90] sm:$0xff]
  %v1156 = vld [vmem:[%s2 + $0x98] sm:$0xff]
  %v1157 = vld [vmem:[%s2 + $0xa0] sm:$0xff]
  %v1158 = vld [vmem:[%s2 + $0xa8] sm:$0xff]
  %v1159 = vld [vmem:[%s2 + $0xb0] sm:$0xff]
  %v1160 = vld [vmem:[%s2 + $0xb8] sm:$0xff]
  %v1161 = vld [vmem:[%s2 + $0xc0] sm:$0xff]
  %v1162 = vld [vmem:[%s2 + $0xc8] sm:$0xff]
  %v1163 = vld [vmem:[%s2 + $0xd0] sm:$0xff]
  %v1164 = vld [vmem:[%s2 + $0xd8] sm:$0xff]
  %v1165 = vld [vmem:[%s2 + $0xe0] sm:$0xff]
  %v1166 = vld [vmem:[%s2 + $0xe8] sm:$0xff]
  %v1167 = vld [vmem:[%s2 + $0xf0] sm:$0xff]
  %v1168 = vld [vmem:[%s2 + $0xf8] sm:$0xff]
  %v1169 = vrot.slane %v1123, 6
  %v1170 = vsel %vm289, %v1169, 0
  %1172 = vmatprep.subr.mxu0 %v1138
  %1173 = vmatpush1.msra.mxu0 %v1137
  %1174 = vmatprep.subr.mxu0 %v1142
  %1175 = vmatpush1.msra.mxu0 %v1141
  %1176 = vmatprep.subr.mxu0 %v1146
  %1177 = vmatpush1.msra.mxu0 %v1145
  %1178 = vmatprep.subr.mxu0 %v1150
  %1179 = vmatpush1.msra.mxu0 %v1149
  %1180 = vmatprep.subr.mxu0 %v1154
  %1181 = vmatpush1.msra.mxu0 %v1153
  %1182 = vmatprep.subr.mxu0 %v1158
  %1183 = vmatpush1.msra.mxu0 %v1157
  %1184 = vmatprep.subr.mxu0 %v1162
  %1185 = vmatpush1.msra.mxu0 %v1161
  %1186 = vmatprep.subr.mxu0 %v1166
  %1187 = vmatpush1.msra.mxu0 %v1165
  %1188 = vmatprep.subr.mxu0 0.0
  %1189 = vmatpush1.msra.mxu0 0.0
  %1190 = vmatprep.subr.mxu0 0.0
  %1191 = vmatpush1.msra.mxu0 0.0
  %1192 = vmatprep.subr.mxu0 0.0
  %1193 = vmatpush1.msra.mxu0 0.0
  %1194 = vmatprep.subr.mxu0 0.0
  %1195 = vmatpush1.msra.mxu0 0.0
  %1196 = vmatprep.subr.mxu0 0.0
  %1197 = vmatpush1.msra.mxu0 0.0
  %1198 = vmatprep.subr.mxu0 0.0
  %1199 = vmatpush1.msra.mxu0 0.0
  %1200 = vmatprep.subr.mxu0 0.0
  %1201 = vmatpush1.msra.mxu0 0.0
  %1202 = vmatprep.subr.mxu0 0.0
  %1203 = vmatpush1.msra.mxu0 0.0
  %1204 = vmatprep.subr.mxu0 0.0
  %1205 = vmatpush1.msra.mxu0 0.0
  %1206 = vmatprep.subr.mxu0 0.0
  %1207 = vmatpush1.msra.mxu0 0.0
  %1208 = vmatprep.subr.mxu0 0.0
  %1209 = vmatpush1.msra.mxu0 0.0
  %1210 = vmatprep.subr.mxu0 0.0
  %1211 = vmatpush1.msra.mxu0 0.0
  %1212 = vmatprep.subr.mxu0 0.0
  %1213 = vmatpush1.msra.mxu0 0.0
  %1214 = vmatprep.subr.mxu0 0.0
  %1215 = vmatpush1.msra.mxu0 0.0
  %1216 = vmatprep.subr.mxu0 0.0
  %1217 = vmatpush1.msra.mxu0 0.0
  %1218 = vmatprep.subr.mxu0 0.0
  %1219 = vmatpush1.msra.mxu0 0.0
  %1220 = vmatprep.subr.mxu0 0.0
  %1221 = vmatpush1.msra.mxu0 0.0
  %1222 = vmatprep.subr.mxu0 0.0
  %1223 = vmatpush1.msra.mxu0 0.0
  %1224 = vmatprep.subr.mxu0 0.0
  %1225 = vmatpush1.msra.mxu0 0.0
  %1226 = vmatprep.subr.mxu0 0.0
  %1227 = vmatpush1.msra.mxu0 0.0
  %1228 = vmatprep.subr.mxu0 0.0
  %1229 = vmatpush1.msra.mxu0 0.0
  %1230 = vmatprep.subr.mxu0 0.0
  %1231 = vmatpush1.msra.mxu0 0.0
  %1232 = vmatprep.subr.mxu0 0.0
  %1233 = vmatpush1.msra.mxu0 0.0
  %1234 = vmatprep.subr.mxu0 0.0
  %1235 = vmatpush1.msra.mxu0 0.0
  %1236 = vmatprep.mubr.f32.mxu0 0.0
  %1237 = vmatmul.mubr.f32.gmra.mrb[0].mxu0 %v1170
  %v1238 = vpop.f32.mrb[0].mxu0
  %v1239 = vadd.f32 0.0, %v1238
  %v1240 = vpop.f32.mrb[0].mxu0
  %v1241 = vadd.f32 0.0, %v1240
  %1242 = vdwg.mxu0
  %1243 = vmatprep.subr.mxu0 %v1140
  %1244 = vmatpush1.msra.mxu0 %v1139
  %1245 = vmatprep.subr.mxu0 %v1144
  %1246 = vmatpush1.msra.mxu0 %v1143
  %1247 = vmatprep.subr.mxu0 %v1148
  %1248 = vmatpush1.msra.mxu0 %v1147
  %1249 = vmatprep.subr.mxu0 %v1152
  %1250 = vmatpush1.msra.mxu0 %v1151
  %1251 = vmatprep.subr.mxu0 %v1156
  %1252 = vmatpush1.msra.mxu0 %v1155
  %1253 = vmatprep.subr.mxu0 %v1160
  %1254 = vmatpush1.msra.mxu0 %v1159
  %1255 = vmatprep.subr.mxu0 %v1164
  %1256 = vmatpush1.msra.mxu0 %v1163
  %1257 = vmatprep.subr.mxu0 %v1168
  %1258 = vmatpush1.msra.mxu0 %v1167
  %1259 = vmatprep.subr.mxu0 0.0
  %1260 = vmatpush1.msra.mxu0 0.0
  %1261 = vmatprep.subr.mxu0 0.0
  %1262 = vmatpush1.msra.mxu0 0.0
  %1263 = vmatprep.subr.mxu0 0.0
  %1264 = vmatpush1.msra.mxu0 0.0
  %1265 = vmatprep.subr.mxu0 0.0
  %1266 = vmatpush1.msra.mxu0 0.0
  %1267 = vmatprep.subr.mxu0 0.0
  %1268 = vmatpush1.msra.mxu0 0.0
  %1269 = vmatprep.subr.mxu0 0.0
  %1270 = vmatpush1.msra.mxu0 0.0
  %1271 = vmatprep.subr.mxu0 0.0
  %1272 = vmatpush1.msra.mxu0 0.0
  %1273 = vmatprep.subr.mxu0 0.0
  %1274 = vmatpush1.msra.mxu0 0.0
  %1275 = vmatprep.subr.mxu0 0.0
  %1276 = vmatpush1.msra.mxu0 0.0
  %1277 = vmatprep.subr.mxu0 0.0
  %1278 = vmatpush1.msra.mxu0 0.0
  %1279 = vmatprep.subr.mxu0 0.0
  %1280 = vmatpush1.msra.mxu0 0.0
  %1281 = vmatprep.subr.mxu0 0.0
  %1282 = vmatpush1.msra.mxu0 0.0
  %1283 = vmatprep.subr.mxu0 0.0
  %1284 = vmatpush1.msra.mxu0 0.0
  %1285 = vmatprep.subr.mxu0 0.0
  %1286 = vmatpush1.msra.mxu0 0.0
  %1287 = vmatprep.subr.mxu0 0.0
  %1288 = vmatpush1.msra.mxu0 0.0
  %1289 = vmatprep.subr.mxu0 0.0
  %1290 = vmatpush1.msra.mxu0 0.0
  %1291 = vmatprep.subr.mxu0 0.0
  %1292 = vmatpush1.msra.mxu0 0.0
  %1293 = vmatprep.subr.mxu0 0.0
  %1294 = vmatpush1.msra.mxu0 0.0
  %1295 = vmatprep.subr.mxu0 0.0
  %1296 = vmatpush1.msra.mxu0 0.0
  %1297 = vmatprep.subr.mxu0 0.0
  %1298 = vmatpush1.msra.mxu0 0.0
  %1299 = vmatprep.subr.mxu0 0.0
  %1300 = vmatpush1.msra.mxu0 0.0
  %1301 = vmatprep.subr.mxu0 0.0
  %1302 = vmatpush1.msra.mxu0 0.0
  %1303 = vmatprep.subr.mxu0 0.0
  %1304 = vmatpush1.msra.mxu0 0.0
  %1305 = vmatprep.subr.mxu0 0.0
  %1306 = vmatpush1.msra.mxu0 0.0
  %1307 = vmatprep.mubr.f32.mxu0 0.0
  %1308 = vmatmul.mubr.f32.gmra.mrb[0].mxu0 %v1170
  %v1309 = vpop.f32.mrb[0].mxu0
  %v1310 = vadd.f32 0.0, %v1309
  %v1311 = vpop.f32.mrb[0].mxu0
  %v1312 = vadd.f32 0.0, %v1311
  %1313 = vdwg.mxu0
  %v1314 = vadd.f32 %v1133, %v1239
  %v1315 = vadd.f32 %v1134, %v1241
  %v1316 = vadd.f32 %v1135, %v1310
  %v1317 = vadd.f32 %v1136, %v1312
  %v1318 = vtanh.pop %v1314
  %v1319 = vtanh.pop %v1315
  %v1320 = vtanh.pop %v1316
  %v1321 = vtanh.pop %v1317
  %v1322 = vmul.f32 %v1318, 0.5
  %v1323 = vadd.f32 %v1322, 0.5
  %v1324 = vmul.f32 %v1319, 0.5
  %v1325 = vadd.f32 %v1324, 0.5
  %v1326 = vmul.f32 %v1321, 0.5
  %v1327 = vadd.f32 %v1326, 0.5
  %v1329 = vrot.slane %v1121, 6
  %v1331 = vmul.f32 %v1325, %v1329
  %v1332 = vmul.f32 %v1323, %v1320
  %v1333 = vadd.f32 %v1331, %v1332
  %v1334 = vtanh.pop %v1333
  %v1335 = vmul.f32 %v1327, %v1334
  %s1336 = scalar_lea.vmem [#allocation3], 8
  %1337 = vst.msk [vmem:[%s1336] sm:$0x3] %vm454, %v1335
  %1339 = vrot.lane.b32.xlu0 %v1335, 96
  %v1340 = vpop.permute.xlu0 %1339
  %s1342 = scalar_lea.vmem [#allocation4], 14
  %1343 = vst.msk [vmem:[%s1342] sm:$0x3] %vm454, %v1340
  %v1344 = vld [vmem:[#allocation2 + $0x20] sm:$0xc]
  %v1345 = vld [vmem:[#allocation2 + $0x28] sm:$0xc]
  %v1346 = vld [vmem:[#allocation2 + $0x30] sm:$0xc]
  %v1347 = vld [vmem:[#allocation2 + $0x38] sm:$0xc]
  %v1348 = vld [vmem:[%s2] sm:$0xff]
  %v1349 = vld [vmem:[%s2 + $0x8] sm:$0xff]
  %v1350 = vld [vmem:[%s2 + $0x10] sm:$0xff]
  %v1351 = vld [vmem:[%s2 + $0x18] sm:$0xff]
  %v1352 = vld [vmem:[%s2 + $0x20] sm:$0xff]
  %v1353 = vld [vmem:[%s2 + $0x28] sm:$0xff]
  %v1354 = vld [vmem:[%s2 + $0x30] sm:$0xff]
  %v1355 = vld [vmem:[%s2 + $0x38] sm:$0xff]
  %v1356 = vld [vmem:[%s2 + $0x40] sm:$0xff]
  %v1357 = vld [vmem:[%s2 + $0x48] sm:$0xff]
  %v1358 = vld [vmem:[%s2 + $0x50] sm:$0xff]
  %v1359 = vld [vmem:[%s2 + $0x58] sm:$0xff]
  %v1360 = vld [vmem:[%s2 + $0x60] sm:$0xff]
  %v1361 = vld [vmem:[%s2 + $0x68] sm:$0xff]
  %v1362 = vld [vmem:[%s2 + $0x70] sm:$0xff]
  %v1363 = vld [vmem:[%s2 + $0x78] sm:$0xff]
  %v1364 = vld [vmem:[%s2 + $0x80] sm:$0xff]
  %v1365 = vld [vmem:[%s2 + $0x88] sm:$0xff]
  %v1366 = vld [vmem:[%s2 + $0x90] sm:$0xff]
  %v1367 = vld [vmem:[%s2 + $0x98] sm:$0xff]
  %v1368 = vld [vmem:[%s2 + $0xa0] sm:$0xff]
  %v1369 = vld [vmem:[%s2 + $0xa8] sm:$0xff]
  %v1370 = vld [vmem:[%s2 + $0xb0] sm:$0xff]
  %v1371 = vld [vmem:[%s2 + $0xb8] sm:$0xff]
  %v1372 = vld [vmem:[%s2 + $0xc0] sm:$0xff]
  %v1373 = vld [vmem:[%s2 + $0xc8] sm:$0xff]
  %v1374 = vld [vmem:[%s2 + $0xd0] sm:$0xff]
  %v1375 = vld [vmem:[%s2 + $0xd8] sm:$0xff]
  %v1376 = vld [vmem:[%s2 + $0xe0] sm:$0xff]
  %v1377 = vld [vmem:[%s2 + $0xe8] sm:$0xff]
  %v1378 = vld [vmem:[%s2 + $0xf0] sm:$0xff]
  %v1379 = vld [vmem:[%s2 + $0xf8] sm:$0xff]
  %v1380 = vsel %vm289, %v1335, 0
  %1382 = vmatprep.subr.mxu0 %v1349
  %1383 = vmatpush1.msra.mxu0 %v1348
  %1384 = vmatprep.subr.mxu0 %v1353
  %1385 = vmatpush1.msra.mxu0 %v1352
  %1386 = vmatprep.subr.mxu0 %v1357
  %1387 = vmatpush1.msra.mxu0 %v1356
  %1388 = vmatprep.subr.mxu0 %v1361
  %1389 = vmatpush1.msra.mxu0 %v1360
  %1390 = vmatprep.subr.mxu0 %v1365
  %1391 = vmatpush1.msra.mxu0 %v1364
  %1392 = vmatprep.subr.mxu0 %v1369
  %1393 = vmatpush1.msra.mxu0 %v1368
  %1394 = vmatprep.subr.mxu0 %v1373
  %1395 = vmatpush1.msra.mxu0 %v1372
  %1396 = vmatprep.subr.mxu0 %v1377
  %1397 = vmatpush1.msra.mxu0 %v1376
  %1398 = vmatprep.subr.mxu0 0.0
  %1399 = vmatpush1.msra.mxu0 0.0
  %1400 = vmatprep.subr.mxu0 0.0
  %1401 = vmatpush1.msra.mxu0 0.0
  %1402 = vmatprep.subr.mxu0 0.0
  %1403 = vmatpush1.msra.mxu0 0.0
  %1404 = vmatprep.subr.mxu0 0.0
  %1405 = vmatpush1.msra.mxu0 0.0
  %1406 = vmatprep.subr.mxu0 0.0
  %1407 = vmatpush1.msra.mxu0 0.0
  %1408 = vmatprep.subr.mxu0 0.0
  %1409 = vmatpush1.msra.mxu0 0.0
  %1410 = vmatprep.subr.mxu0 0.0
  %1411 = vmatpush1.msra.mxu0 0.0
  %1412 = vmatprep.subr.mxu0 0.0
  %1413 = vmatpush1.msra.mxu0 0.0
  %1414 = vmatprep.subr.mxu0 0.0
  %1415 = vmatpush1.msra.mxu0 0.0
  %1416 = vmatprep.subr.mxu0 0.0
  %1417 = vmatpush1.msra.mxu0 0.0
  %1418 = vmatprep.subr.mxu0 0.0
  %1419 = vmatpush1.msra.mxu0 0.0
  %1420 = vmatprep.subr.mxu0 0.0
  %1421 = vmatpush1.msra.mxu0 0.0
  %1422 = vmatprep.subr.mxu0 0.0
  %1423 = vmatpush1.msra.mxu0 0.0
  %1424 = vmatprep.subr.mxu0 0.0
  %1425 = vmatpush1.msra.mxu0 0.0
  %1426 = vmatprep.subr.mxu0 0.0
  %1427 = vmatpush1.msra.mxu0 0.0
  %1428 = vmatprep.subr.mxu0 0.0
  %1429 = vmatpush1.msra.mxu0 0.0
  %1430 = vmatprep.subr.mxu0 0.0
  %1431 = vmatpush1.msra.mxu0 0.0
  %1432 = vmatprep.subr.mxu0 0.0
  %1433 = vmatpush1.msra.mxu0 0.0
  %1434 = vmatprep.subr.mxu0 0.0
  %1435 = vmatpush1.msra.mxu0 0.0
  %1436 = vmatprep.subr.mxu0 0.0
  %1437 = vmatpush1.msra.mxu0 0.0
  %1438 = vmatprep.subr.mxu0 0.0
  %1439 = vmatpush1.msra.mxu0 0.0
  %1440 = vmatprep.subr.mxu0 0.0
  %1441 = vmatpush1.msra.mxu0 0.0
  %1442 = vmatprep.subr.mxu0 0.0
  %1443 = vmatpush1.msra.mxu0 0.0
  %1444 = vmatprep.subr.mxu0 0.0
  %1445 = vmatpush1.msra.mxu0 0.0
  %1446 = vmatprep.mubr.f32.mxu0 0.0
  %1447 = vmatmul.mubr.f32.gmra.mrb[0].mxu0 %v1380
  %v1448 = vpop.f32.mrb[0].mxu0
  %v1449 = vadd.f32 0.0, %v1448
  %v1450 = vpop.f32.mrb[0].mxu0
  %v1451 = vadd.f32 0.0, %v1450
  %1452 = vdwg.mxu0
  %1453 = vmatprep.subr.mxu0 %v1351
  %1454 = vmatpush1.msra.mxu0 %v1350
  %1455 = vmatprep.subr.mxu0 %v1355
  %1456 = vmatpush1.msra.mxu0 %v1354
  %1457 = vmatprep.subr.mxu0 %v1359
  %1458 = vmatpush1.msra.mxu0 %v1358
  %1459 = vmatprep.subr.mxu0 %v1363
  %1460 = vmatpush1.msra.mxu0 %v1362
  %1461 = vmatprep.subr.mxu0 %v1367
  %1462 = vmatpush1.msra.mxu0 %v1366
  %1463 = vmatprep.subr.mxu0 %v1371
  %1464 = vmatpush1.msra.mxu0 %v1370
  %1465 = vmatprep.subr.mxu0 %v1375
  %1466 = vmatpush1.msra.mxu0 %v1374
  %1467 = vmatprep.subr.mxu0 %v1379
  %1468 = vmatpush1.msra.mxu0 %v1378
  %1469 = vmatprep.subr.mxu0 0.0
  %1470 = vmatpush1.msra.mxu0 0.0
  %1471 = vmatprep.subr.mxu0 0.0
  %1472 = vmatpush1.msra.mxu0 0.0
  %1473 = vmatprep.subr.mxu0 0.0
  %1474 = vmatpush1.msra.mxu0 0.0
  %1475 = vmatprep.subr.mxu0 0.0
  %1476 = vmatpush1.msra.mxu0 0.0
  %1477 = vmatprep.subr.mxu0 0.0
  %1478 = vmatpush1.msra.mxu0 0.0
  %1479 = vmatprep.subr.mxu0 0.0
  %1480 = vmatpush1.msra.mxu0 0.0
  %1481 = vmatprep.subr.mxu0 0.0
  %1482 = vmatpush1.msra.mxu0 0.0
  %1483 = vmatprep.subr.mxu0 0.0
  %1484 = vmatpush1.msra.mxu0 0.0
  %1485 = vmatprep.subr.mxu0 0.0
  %1486 = vmatpush1.msra.mxu0 0.0
  %1487 = vmatprep.subr.mxu0 0.0
  %1488 = vmatpush1.msra.mxu0 0.0
  %1489 = vmatprep.subr.mxu0 0.0
  %1490 = vmatpush1.msra.mxu0 0.0
  %1491 = vmatprep.subr.mxu0 0.0
  %1492 = vmatpush1.msra.mxu0 0.0
  %1493 = vmatprep.subr.mxu0 0.0
  %1494 = vmatpush1.msra.mxu0 0.0
  %1495 = vmatprep.subr.mxu0 0.0
  %1496 = vmatpush1.msra.mxu0 0.0
  %1497 = vmatprep.subr.mxu0 0.0
  %1498 = vmatpush1.msra.mxu0 0.0
  %1499 = vmatprep.subr.mxu0 0.0
  %1500 = vmatpush1.msra.mxu0 0.0
  %1501 = vmatprep.subr.mxu0 0.0
  %1502 = vmatpush1.msra.mxu0 0.0
  %1503 = vmatprep.subr.mxu0 0.0
  %1504 = vmatpush1.msra.mxu0 0.0
  %1505 = vmatprep.subr.mxu0 0.0
  %1506 = vmatpush1.msra.mxu0 0.0
  %1507 = vmatprep.subr.mxu0 0.0
  %1508 = vmatpush1.msra.mxu0 0.0
  %1509 = vmatprep.subr.mxu0 0.0
  %1510 = vmatpush1.msra.mxu0 0.0
  %1511 = vmatprep.subr.mxu0 0.0
  %1512 = vmatpush1.msra.mxu0 0.0
  %1513 = vmatprep.subr.mxu0 0.0
  %1514 = vmatpush1.msra.mxu0 0.0
  %1515 = vmatprep.subr.mxu0 0.0
  %1516 = vmatpush1.msra.mxu0 0.0
  %1517 = vmatprep.mubr.f32.mxu0 0.0
  %1518 = vmatmul.mubr.f32.gmra.mrb[0].mxu0 %v1380
  %v1519 = vpop.f32.mrb[0].mxu0
  %v1520 = vadd.f32 0.0, %v1519
  %v1521 = vpop.f32.mrb[0].mxu0
  %v1522 = vadd.f32 0.0, %v1521
  %1523 = vdwg.mxu0
  %v1528 = vrot.slane %v1449, 6
  %v1529 = vrot.slane %v1451, 6
  %v1530 = vrot.slane %v1520, 6
  %v1531 = vrot.slane %v1522, 6
  %v1536 = vadd.f32 %v1344, %v1528
  %v1537 = vadd.f32 %v1345, %v1529
  %v1538 = vadd.f32 %v1346, %v1530
  %v1539 = vadd.f32 %v1347, %v1531
  %v1540 = vtanh.pop %v1536
  %v1541 = vtanh.pop %v1537
  %v1542 = vtanh.pop %v1538
  %v1543 = vtanh.pop %v1539
  %v1544 = vmul.f32 %v1540, 0.5
  %v1545 = vadd.f32 %v1544, 0.5
  %v1546 = vmul.f32 %v1541, 0.5
  %v1547 = vadd.f32 %v1546, 0.5
  %v1548 = vmul.f32 %v1543, 0.5
  %v1549 = vadd.f32 %v1548, 0.5
  %v1551 = vrot.slane %v1333, 6
  %v1553 = vmul.f32 %v1547, %v1551
  %v1554 = vmul.f32 %v1545, %v1542
  %v1555 = vadd.f32 %v1553, %v1554
  %v1556 = vtanh.pop %v1555
  %v1557 = vmul.f32 %v1549, %v1556
  %s1558 = scalar_lea.vmem [#allocation3], 10
  %1559 = vst.msk [vmem:[%s1558 - $0x2] sm:$0xc] %vm677, %v1557
  %1561 = vrot.lane.b32.xlu0 %v1557, 96
  %v1562 = vpop.permute.xlu0 %1561
  %s1564 = scalar_lea.vmem [#allocation4], 12
  %1565 = vst.msk [vmem:[%s1564 - $0x2] sm:$0xc] %vm677, %v1562
  %v1566 = vld [vmem:[#allocation2 + $0x20] sm:$0x30]
  %v1567 = vld [vmem:[#allocation2 + $0x28] sm:$0x30]
  %v1568 = vld [vmem:[#allocation2 + $0x30] sm:$0x30]
  %v1569 = vld [vmem:[#allocation2 + $0x38] sm:$0x30]
  %v1570 = vld [vmem:[%s2] sm:$0xff]
  %v1571 = vld [vmem:[%s2 + $0x8] sm:$0xff]
  %v1572 = vld [vmem:[%s2 + $0x10] sm:$0xff]
  %v1573 = vld [vmem:[%s2 + $0x18] sm:$0xff]
  %v1574 = vld [vmem:[%s2 + $0x20] sm:$0xff]
  %v1575 = vld [vmem:[%s2 + $0x28] sm:$0xff]
  %v1576 = vld [vmem:[%s2 + $0x30] sm:$0xff]
  %v1577 = vld [vmem:[%s2 + $0x38] sm:$0xff]
  %v1578 = vld [vmem:[%s2 + $0x40] sm:$0xff]
  %v1579 = vld [vmem:[%s2 + $0x48] sm:$0xff]
  %v1580 = vld [vmem:[%s2 + $0x50] sm:$0xff]
  %v1581 = vld [vmem:[%s2 + $0x58] sm:$0xff]
  %v1582 = vld [vmem:[%s2 + $0x60] sm:$0xff]
  %v1583 = vld [vmem:[%s2 + $0x68] sm:$0xff]
  %v1584 = vld [vmem:[%s2 + $0x70] sm:$0xff]
  %v1585 = vld [vmem:[%s2 + $0x78] sm:$0xff]
  %v1586 = vld [vmem:[%s2 + $0x80] sm:$0xff]
  %v1587 = vld [vmem:[%s2 + $0x88] sm:$0xff]
  %v1588 = vld [vmem:[%s2 + $0x90] sm:$0xff]
  %v1589 = vld [vmem:[%s2 + $0x98] sm:$0xff]
  %v1590 = vld [vmem:[%s2 + $0xa0] sm:$0xff]
  %v1591 = vld [vmem:[%s2 + $0xa8] sm:$0xff]
  %v1592 = vld [vmem:[%s2 + $0xb0] sm:$0xff]
  %v1593 = vld [vmem:[%s2 + $0xb8] sm:$0xff]
  %v1594 = vld [vmem:[%s2 + $0xc0] sm:$0xff]
  %v1595 = vld [vmem:[%s2 + $0xc8] sm:$0xff]
  %v1596 = vld [vmem:[%s2 + $0xd0] sm:$0xff]
  %v1597 = vld [vmem:[%s2 + $0xd8] sm:$0xff]
  %v1598 = vld [vmem:[%s2 + $0xe0] sm:$0xff]
  %v1599 = vld [vmem:[%s2 + $0xe8] sm:$0xff]
  %v1600 = vld [vmem:[%s2 + $0xf0] sm:$0xff]
  %v1601 = vld [vmem:[%s2 + $0xf8] sm:$0xff]
  %v1602 = vrot.slane %v1557, 2
  %v1603 = vsel %vm289, %v1602, 0
  %1605 = vmatprep.subr.mxu0 %v1571
  %1606 = vmatpush1.msra.mxu0 %v1570
  %1607 = vmatprep.subr.mxu0 %v1575
  %1608 = vmatpush1.msra.mxu0 %v1574
  %1609 = vmatprep.subr.mxu0 %v1579
  %1610 = vmatpush1.msra.mxu0 %v1578
  %1611 = vmatprep.subr.mxu0 %v1583
  %1612 = vmatpush1.msra.mxu0 %v1582
  %1613 = vmatprep.subr.mxu0 %v1587
  %1614 = vmatpush1.msra.mxu0 %v1586
  %1615 = vmatprep.subr.mxu0 %v1591
  %1616 = vmatpush1.msra.mxu0 %v1590
  %1617 = vmatprep.subr.mxu0 %v1595
  %1618 = vmatpush1.msra.mxu0 %v1594
  %1619 = vmatprep.subr.mxu0 %v1599
  %1620 = vmatpush1.msra.mxu0 %v1598
  %1621 = vmatprep.subr.mxu0 0.0
  %1622 = vmatpush1.msra.mxu0 0.0
  %1623 = vmatprep.subr.mxu0 0.0
  %1624 = vmatpush1.msra.mxu0 0.0
  %1625 = vmatprep.subr.mxu0 0.0
  %1626 = vmatpush1.msra.mxu0 0.0
  %1627 = vmatprep.subr.mxu0 0.0
  %1628 = vmatpush1.msra.mxu0 0.0
  %1629 = vmatprep.subr.mxu0 0.0
  %1630 = vmatpush1.msra.mxu0 0.0
  %1631 = vmatprep.subr.mxu0 0.0
  %1632 = vmatpush1.msra.mxu0 0.0
  %1633 = vmatprep.subr.mxu0 0.0
  %1634 = vmatpush1.msra.mxu0 0.0
  %1635 = vmatprep.subr.mxu0 0.0
  %1636 = vmatpush1.msra.mxu0 0.0
  %1637 = vmatprep.subr.mxu0 0.0
  %1638 = vmatpush1.msra.mxu0 0.0
  %1639 = vmatprep.subr.mxu0 0.0
  %1640 = vmatpush1.msra.mxu0 0.0
  %1641 = vmatprep.subr.mxu0 0.0
  %1642 = vmatpush1.msra.mxu0 0.0
  %1643 = vmatprep.subr.mxu0 0.0
  %1644 = vmatpush1.msra.mxu0 0.0
  %1645 = vmatprep.subr.mxu0 0.0
  %1646 = vmatpush1.msra.mxu0 0.0
  %1647 = vmatprep.subr.mxu0 0.0
  %1648 = vmatpush1.msra.mxu0 0.0
  %1649 = vmatprep.subr.mxu0 0.0
  %1650 = vmatpush1.msra.mxu0 0.0
  %1651 = vmatprep.subr.mxu0 0.0
  %1652 = vmatpush1.msra.mxu0 0.0
  %1653 = vmatprep.subr.mxu0 0.0
  %1654 = vmatpush1.msra.mxu0 0.0
  %1655 = vmatprep.subr.mxu0 0.0
  %1656 = vmatpush1.msra.mxu0 0.0
  %1657 = vmatprep.subr.mxu0 0.0
  %1658 = vmatpush1.msra.mxu0 0.0
  %1659 = vmatprep.subr.mxu0 0.0
  %1660 = vmatpush1.msra.mxu0 0.0
  %1661 = vmatprep.subr.mxu0 0.0
  %1662 = vmatpush1.msra.mxu0 0.0
  %1663 = vmatprep.subr.mxu0 0.0
  %1664 = vmatpush1.msra.mxu0 0.0
  %1665 = vmatprep.subr.mxu0 0.0
  %1666 = vmatpush1.msra.mxu0 0.0
  %1667 = vmatprep.subr.mxu0 0.0
  %1668 = vmatpush1.msra.mxu0 0.0
  %1669 = vmatprep.mubr.f32.mxu0 0.0
  %1670 = vmatmul.mubr.f32.gmra.mrb[0].mxu0 %v1603
  %v1671 = vpop.f32.mrb[0].mxu0
  %v1672 = vadd.f32 0.0, %v1671
  %v1673 = vpop.f32.mrb[0].mxu0
  %v1674 = vadd.f32 0.0, %v1673
  %1675 = vdwg.mxu0
  %1676 = vmatprep.subr.mxu0 %v1573
  %1677 = vmatpush1.msra.mxu0 %v1572
  %1678 = vmatprep.subr.mxu0 %v1577
  %1679 = vmatpush1.msra.mxu0 %v1576
  %1680 = vmatprep.subr.mxu0 %v1581
  %1681 = vmatpush1.msra.mxu0 %v1580
  %1682 = vmatprep.subr.mxu0 %v1585
  %1683 = vmatpush1.msra.mxu0 %v1584
  %1684 = vmatprep.subr.mxu0 %v1589
  %1685 = vmatpush1.msra.mxu0 %v1588
  %1686 = vmatprep.subr.mxu0 %v1593
  %1687 = vmatpush1.msra.mxu0 %v1592
  %1688 = vmatprep.subr.mxu0 %v1597
  %1689 = vmatpush1.msra.mxu0 %v1596
  %1690 = vmatprep.subr.mxu0 %v1601
  %1691 = vmatpush1.msra.mxu0 %v1600
  %1692 = vmatprep.subr.mxu0 0.0
  %1693 = vmatpush1.msra.mxu0 0.0
  %1694 = vmatprep.subr.mxu0 0.0
  %1695 = vmatpush1.msra.mxu0 0.0
  %1696 = vmatprep.subr.mxu0 0.0
  %1697 = vmatpush1.msra.mxu0 0.0
  %1698 = vmatprep.subr.mxu0 0.0
  %1699 = vmatpush1.msra.mxu0 0.0
  %1700 = vmatprep.subr.mxu0 0.0
  %1701 = vmatpush1.msra.mxu0 0.0
  %1702 = vmatprep.subr.mxu0 0.0
  %1703 = vmatpush1.msra.mxu0 0.0
  %1704 = vmatprep.subr.mxu0 0.0
  %1705 = vmatpush1.msra.mxu0 0.0
  %1706 = vmatprep.subr.mxu0 0.0
  %1707 = vmatpush1.msra.mxu0 0.0
  %1708 = vmatprep.subr.mxu0 0.0
  %1709 = vmatpush1.msra.mxu0 0.0
  %1710 = vmatprep.subr.mxu0 0.0
  %1711 = vmatpush1.msra.mxu0 0.0
  %1712 = vmatprep.subr.mxu0 0.0
  %1713 = vmatpush1.msra.mxu0 0.0
  %1714 = vmatprep.subr.mxu0 0.0
  %1715 = vmatpush1.msra.mxu0 0.0
  %1716 = vmatprep.subr.mxu0 0.0
  %1717 = vmatpush1.msra.mxu0 0.0
  %1718 = vmatprep.subr.mxu0 0.0
  %1719 = vmatpush1.msra.mxu0 0.0
  %1720 = vmatprep.subr.mxu0 0.0
  %1721 = vmatpush1.msra.mxu0 0.0
  %1722 = vmatprep.subr.mxu0 0.0
  %1723 = vmatpush1.msra.mxu0 0.0
  %1724 = vmatprep.subr.mxu0 0.0
  %1725 = vmatpush1.msra.mxu0 0.0
  %1726 = vmatprep.subr.mxu0 0.0
  %1727 = vmatpush1.msra.mxu0 0.0
  %1728 = vmatprep.subr.mxu0 0.0
  %1729 = vmatpush1.msra.mxu0 0.0
  %1730 = vmatprep.subr.mxu0 0.0
  %1731 = vmatpush1.msra.mxu0 0.0
  %1732 = vmatprep.subr.mxu0 0.0
  %1733 = vmatpush1.msra.mxu0 0.0
  %1734 = vmatprep.subr.mxu0 0.0
  %1735 = vmatpush1.msra.mxu0 0.0
  %1736 = vmatprep.subr.mxu0 0.0
  %1737 = vmatpush1.msra.mxu0 0.0
  %1738 = vmatprep.subr.mxu0 0.0
  %1739 = vmatpush1.msra.mxu0 0.0
  %1740 = vmatprep.mubr.f32.mxu0 0.0
  %1741 = vmatmul.mubr.f32.gmra.mrb[0].mxu0 %v1603
  %v1742 = vpop.f32.mrb[0].mxu0
  %v1743 = vadd.f32 0.0, %v1742
  %v1744 = vpop.f32.mrb[0].mxu0
  %v1745 = vadd.f32 0.0, %v1744
  %1746 = vdwg.mxu0
  %v1751 = vrot.slane %v1672, 4
  %v1752 = vrot.slane %v1674, 4
  %v1753 = vrot.slane %v1743, 4
  %v1754 = vrot.slane %v1745, 4
  %v1759 = vadd.f32 %v1566, %v1751
  %v1760 = vadd.f32 %v1567, %v1752
  %v1761 = vadd.f32 %v1568, %v1753
  %v1762 = vadd.f32 %v1569, %v1754
  %v1763 = vtanh.pop %v1759
  %v1764 = vtanh.pop %v1760
  %v1765 = vtanh.pop %v1761
  %v1766 = vtanh.pop %v1762
  %v1767 = vmul.f32 %v1763, 0.5
  %v1768 = vadd.f32 %v1767, 0.5
  %v1769 = vmul.f32 %v1764, 0.5
  %v1770 = vadd.f32 %v1769, 0.5
  %v1771 = vmul.f32 %v1766, 0.5
  %v1772 = vadd.f32 %v1771, 0.5
  %v1774 = vrot.slane %v1555, 6
  %v1776 = vmul.f32 %v1770, %v1774
  %v1777 = vmul.f32 %v1768, %v1765
  %v1778 = vadd.f32 %v1776, %v1777
  %v1779 = vtanh.pop %v1778
  %v1780 = vmul.f32 %v1772, %v1779
  %s1781 = scalar_lea.vmem [#allocation3], 12
  %1782 = vst.msk [vmem:[%s1781 - $0x4] sm:$0x30] %vm901, %v1780
  %1784 = vrot.lane.b32.xlu0 %v1780, 96
  %v1785 = vpop.permute.xlu0 %1784
  %s1787 = scalar_lea.vmem [#allocation4], 10
  %1788 = vst.msk [vmem:[%s1787 - $0x4] sm:$0x30] %vm901, %v1785
  %v1789 = vld [vmem:[#allocation2 + $0x20] sm:$0xc0]
  %v1790 = vld [vmem:[#allocation2 + $0x28] sm:$0xc0]
  %v1791 = vld [vmem:[#allocation2 + $0x30] sm:$0xc0]
  %v1792 = vld [vmem:[#allocation2 + $0x38] sm:$0xc0]
  %v1793 = vld [vmem:[%s2] sm:$0xff]
  %v1794 = vld [vmem:[%s2 + $0x8] sm:$0xff]
  %v1795 = vld [vmem:[%s2 + $0x10] sm:$0xff]
  %v1796 = vld [vmem:[%s2 + $0x18] sm:$0xff]
  %v1797 = vld [vmem:[%s2 + $0x20] sm:$0xff]
  %v1798 = vld [vmem:[%s2 + $0x28] sm:$0xff]
  %v1799 = vld [vmem:[%s2 + $0x30] sm:$0xff]
  %v1800 = vld [vmem:[%s2 + $0x38] sm:$0xff]
  %v1801 = vld [vmem:[%s2 + $0x40] sm:$0xff]
  %v1802 = vld [vmem:[%s2 + $0x48] sm:$0xff]
  %v1803 = vld [vmem:[%s2 + $0x50] sm:$0xff]
  %v1804 = vld [vmem:[%s2 + $0x58] sm:$0xff]
  %v1805 = vld [vmem:[%s2 + $0x60] sm:$0xff]
  %v1806 = vld [vmem:[%s2 + $0x68] sm:$0xff]
  %v1807 = vld [vmem:[%s2 + $0x70] sm:$0xff]
  %v1808 = vld [vmem:[%s2 + $0x78] sm:$0xff]
  %v1809 = vld [vmem:[%s2 + $0x80] sm:$0xff]
  %v1810 = vld [vmem:[%s2 + $0x88] sm:$0xff]
  %v1811 = vld [vmem:[%s2 + $0x90] sm:$0xff]
  %v1812 = vld [vmem:[%s2 + $0x98] sm:$0xff]
  %v1813 = vld [vmem:[%s2 + $0xa0] sm:$0xff]
  %v1814 = vld [vmem:[%s2 + $0xa8] sm:$0xff]
  %v1815 = vld [vmem:[%s2 + $0xb0] sm:$0xff]
  %v1816 = vld [vmem:[%s2 + $0xb8] sm:$0xff]
  %v1817 = vld [vmem:[%s2 + $0xc0] sm:$0xff]
  %v1818 = vld [vmem:[%s2 + $0xc8] sm:$0xff]
  %v1819 = vld [vmem:[%s2 + $0xd0] sm:$0xff]
  %v1820 = vld [vmem:[%s2 + $0xd8] sm:$0xff]
  %v1821 = vld [vmem:[%s2 + $0xe0] sm:$0xff]
  %v1822 = vld [vmem:[%s2 + $0xe8] sm:$0xff]
  %v1823 = vld [vmem:[%s2 + $0xf0] sm:$0xff]
  %v1824 = vld [vmem:[%s2 + $0xf8] sm:$0xff]
  %v1825 = vrot.slane %v1780, 4
  %v1826 = vsel %vm289, %v1825, 0
  %1828 = vmatprep.subr.mxu0 %v1794
  %1829 = vmatpush1.msra.mxu0 %v1793
  %1830 = vmatprep.subr.mxu0 %v1798
  %1831 = vmatpush1.msra.mxu0 %v1797
  %1832 = vmatprep.subr.mxu0 %v1802
  %1833 = vmatpush1.msra.mxu0 %v1801
  %1834 = vmatprep.subr.mxu0 %v1806
  %1835 = vmatpush1.msra.mxu0 %v1805
  %1836 = vmatprep.subr.mxu0 %v1810
  %1837 = vmatpush1.msra.mxu0 %v1809
  %1838 = vmatprep.subr.mxu0 %v1814
  %1839 = vmatpush1.msra.mxu0 %v1813
  %1840 = vmatprep.subr.mxu0 %v1818
  %1841 = vmatpush1.msra.mxu0 %v1817
  %1842 = vmatprep.subr.mxu0 %v1822
  %1843 = vmatpush1.msra.mxu0 %v1821
  %1844 = vmatprep.subr.mxu0 0.0
  %1845 = vmatpush1.msra.mxu0 0.0
  %1846 = vmatprep.subr.mxu0 0.0
  %1847 = vmatpush1.msra.mxu0 0.0
  %1848 = vmatprep.subr.mxu0 0.0
  %1849 = vmatpush1.msra.mxu0 0.0
  %1850 = vmatprep.subr.mxu0 0.0
  %1851 = vmatpush1.msra.mxu0 0.0
  %1852 = vmatprep.subr.mxu0 0.0
  %1853 = vmatpush1.msra.mxu0 0.0
  %1854 = vmatprep.subr.mxu0 0.0
  %1855 = vmatpush1.msra.mxu0 0.0
  %1856 = vmatprep.subr.mxu0 0.0
  %1857 = vmatpush1.msra.mxu0 0.0
  %1858 = vmatprep.subr.mxu0 0.0
  %1859 = vmatpush1.msra.mxu0 0.0
  %1860 = vmatprep.subr.mxu0 0.0
  %1861 = vmatpush1.msra.mxu0 0.0
  %1862 = vmatprep.subr.mxu0 0.0
  %1863 = vmatpush1.msra.mxu0 0.0
  %1864 = vmatprep.subr.mxu0 0.0
  %1865 = vmatpush1.msra.mxu0 0.0
  %1866 = vmatprep.subr.mxu0 0.0
  %1867 = vmatpush1.msra.mxu0 0.0
  %1868 = vmatprep.subr.mxu0 0.0
  %1869 = vmatpush1.msra.mxu0 0.0
  %1870 = vmatprep.subr.mxu0 0.0
  %1871 = vmatpush1.msra.mxu0 0.0
  %1872 = vmatprep.subr.mxu0 0.0
  %1873 = vmatpush1.msra.mxu0 0.0
  %1874 = vmatprep.subr.mxu0 0.0
  %1875 = vmatpush1.msra.mxu0 0.0
  %1876 = vmatprep.subr.mxu0 0.0
  %1877 = vmatpush1.msra.mxu0 0.0
  %1878 = vmatprep.subr.mxu0 0.0
  %1879 = vmatpush1.msra.mxu0 0.0
  %1880 = vmatprep.subr.mxu0 0.0
  %1881 = vmatpush1.msra.mxu0 0.0
  %1882 = vmatprep.subr.mxu0 0.0
  %1883 = vmatpush1.msra.mxu0 0.0
  %1884 = vmatprep.subr.mxu0 0.0
  %1885 = vmatpush1.msra.mxu0 0.0
  %1886 = vmatprep.subr.mxu0 0.0
  %1887 = vmatpush1.msra.mxu0 0.0
  %1888 = vmatprep.subr.mxu0 0.0
  %1889 = vmatpush1.msra.mxu0 0.0
  %1890 = vmatprep.subr.mxu0 0.0
  %1891 = vmatpush1.msra.mxu0 0.0
  %1892 = vmatprep.mubr.f32.mxu0 0.0
  %1893 = vmatmul.mubr.f32.gmra.mrb[0].mxu0 %v1826
  %v1894 = vpop.f32.mrb[0].mxu0
  %v1895 = vadd.f32 0.0, %v1894
  %v1896 = vpop.f32.mrb[0].mxu0
  %v1897 = vadd.f32 0.0, %v1896
  %1898 = vdwg.mxu0
  %1899 = vmatprep.subr.mxu0 %v1796
  %1900 = vmatpush1.msra.mxu0 %v1795
  %1901 = vmatprep.subr.mxu0 %v1800
  %1902 = vmatpush1.msra.mxu0 %v1799
  %1903 = vmatprep.subr.mxu0 %v1804
  %1904 = vmatpush1.msra.mxu0 %v1803
  %1905 = vmatprep.subr.mxu0 %v1808
  %1906 = vmatpush1.msra.mxu0 %v1807
  %1907 = vmatprep.subr.mxu0 %v1812
  %1908 = vmatpush1.msra.mxu0 %v1811
  %1909 = vmatprep.subr.mxu0 %v1816
  %1910 = vmatpush1.msra.mxu0 %v1815
  %1911 = vmatprep.subr.mxu0 %v1820
  %1912 = vmatpush1.msra.mxu0 %v1819
  %1913 = vmatprep.subr.mxu0 %v1824
  %1914 = vmatpush1.msra.mxu0 %v1823
  %1915 = vmatprep.subr.mxu0 0.0
  %1916 = vmatpush1.msra.mxu0 0.0
  %1917 = vmatprep.subr.mxu0 0.0
  %1918 = vmatpush1.msra.mxu0 0.0
  %1919 = vmatprep.subr.mxu0 0.0
  %1920 = vmatpush1.msra.mxu0 0.0
  %1921 = vmatprep.subr.mxu0 0.0
  %1922 = vmatpush1.msra.mxu0 0.0
  %1923 = vmatprep.subr.mxu0 0.0
  %1924 = vmatpush1.msra.mxu0 0.0
  %1925 = vmatprep.subr.mxu0 0.0
  %1926 = vmatpush1.msra.mxu0 0.0
  %1927 = vmatprep.subr.mxu0 0.0
  %1928 = vmatpush1.msra.mxu0 0.0
  %1929 = vmatprep.subr.mxu0 0.0
  %1930 = vmatpush1.msra.mxu0 0.0
  %1931 = vmatprep.subr.mxu0 0.0
  %1932 = vmatpush1.msra.mxu0 0.0
  %1933 = vmatprep.subr.mxu0 0.0
  %1934 = vmatpush1.msra.mxu0 0.0
  %1935 = vmatprep.subr.mxu0 0.0
  %1936 = vmatpush1.msra.mxu0 0.0
  %1937 = vmatprep.subr.mxu0 0.0
  %1938 = vmatpush1.msra.mxu0 0.0
  %1939 = vmatprep.subr.mxu0 0.0
  %1940 = vmatpush1.msra.mxu0 0.0
  %1941 = vmatprep.subr.mxu0 0.0
  %1942 = vmatpush1.msra.mxu0 0.0
  %1943 = vmatprep.subr.mxu0 0.0
  %1944 = vmatpush1.msra.mxu0 0.0
  %1945 = vmatprep.subr.mxu0 0.0
  %1946 = vmatpush1.msra.mxu0 0.0
  %1947 = vmatprep.subr.mxu0 0.0
  %1948 = vmatpush1.msra.mxu0 0.0
  %1949 = vmatprep.subr.mxu0 0.0
  %1950 = vmatpush1.msra.mxu0 0.0
  %1951 = vmatprep.subr.mxu0 0.0
  %1952 = vmatpush1.msra.mxu0 0.0
  %1953 = vmatprep.subr.mxu0 0.0
  %1954 = vmatpush1.msra.mxu0 0.0
  %1955 = vmatprep.subr.mxu0 0.0
  %1956 = vmatpush1.msra.mxu0 0.0
  %1957 = vmatprep.subr.mxu0 0.0
  %1958 = vmatpush1.msra.mxu0 0.0
  %1959 = vmatprep.subr.mxu0 0.0
  %1960 = vmatpush1.msra.mxu0 0.0
  %1961 = vmatprep.subr.mxu0 0.0
  %1962 = vmatpush1.msra.mxu0 0.0
  %1963 = vmatprep.mubr.f32.mxu0 0.0
  %1964 = vmatmul.mubr.f32.gmra.mrb[0].mxu0 %v1826
  %v1965 = vpop.f32.mrb[0].mxu0
  %v1966 = vadd.f32 0.0, %v1965
  %v1967 = vpop.f32.mrb[0].mxu0
  %v1968 = vadd.f32 0.0, %v1967
  %1969 = vdwg.mxu0
  %v1974 = vrot.slane %v1895, 2
  %v1975 = vrot.slane %v1897, 2
  %v1976 = vrot.slane %v1966, 2
  %v1977 = vrot.slane %v1968, 2
  %v1982 = vadd.f32 %v1789, %v1974
  %v1983 = vadd.f32 %v1790, %v1975
  %v1984 = vadd.f32 %v1791, %v1976
  %v1985 = vadd.f32 %v1792, %v1977
  %v1986 = vtanh.pop %v1982
  %v1987 = vtanh.pop %v1983
  %v1988 = vtanh.pop %v1984
  %v1989 = vtanh.pop %v1985
  %v1990 = vmul.f32 %v1986, 0.5
  %v1991 = vadd.f32 %v1990, 0.5
  %v1992 = vmul.f32 %v1987, 0.5
  %v1993 = vadd.f32 %v1992, 0.5
  %v1994 = vmul.f32 %v1989, 0.5
  %v1995 = vadd.f32 %v1994, 0.5
  %v1997 = vrot.slane %v1778, 6
  %v1999 = vmul.f32 %v1993, %v1997
  %v2000 = vmul.f32 %v1991, %v1988
  %v2001 = vadd.f32 %v1999, %v2000
  %v2002 = vtanh.pop %v2001
  %v2003 = vmul.f32 %v1995, %v2002
  %s2004 = scalar_lea.vmem [#allocation3], 14
  %2005 = vst.msk [vmem:[%s2004 - $0x6] sm:$0xc0] %vm1125, %v2003
  %2007 = vrot.lane.b32.xlu0 %v2003, 96
  %v2008 = vpop.permute.xlu0 %2007
  %s2010 = scalar_lea.vmem [#allocation4], 8
  %2011 = vst.msk [vmem:[%s2010 - $0x6] sm:$0xc0] %vm1125, %v2008
  %v2012 = vld [vmem:[#allocation2 + $0x40] sm:$0x3]
  %v2013 = vld [vmem:[#allocation2 + $0x48] sm:$0x3]
  %v2014 = vld [vmem:[#allocation2 + $0x50] sm:$0x3]
  %v2015 = vld [vmem:[#allocation2 + $0x58] sm:$0x3]
  %v2016 = vld [vmem:[%s2] sm:$0xff]
  %v2017 = vld [vmem:[%s2 + $0x8] sm:$0xff]
  %v2018 = vld [vmem:[%s2 + $0x10] sm:$0xff]
  %v2019 = vld [vmem:[%s2 + $0x18] sm:$0xff]
  %v2020 = vld [vmem:[%s2 + $0x20] sm:$0xff]
  %v2021 = vld [vmem:[%s2 + $0x28] sm:$0xff]
  %v2022 = vld [vmem:[%s2 + $0x30] sm:$0xff]
  %v2023 = vld [vmem:[%s2 + $0x38] sm:$0xff]
  %v2024 = vld [vmem:[%s2 + $0x40] sm:$0xff]
  %v2025 = vld [vmem:[%s2 + $0x48] sm:$0xff]
  %v2026 = vld [vmem:[%s2 + $0x50] sm:$0xff]
  %v2027 = vld [vmem:[%s2 + $0x58] sm:$0xff]
  %v2028 = vld [vmem:[%s2 + $0x60] sm:$0xff]
  %v2029 = vld [vmem:[%s2 + $0x68] sm:$0xff]
  %v2030 = vld [vmem:[%s2 + $0x70] sm:$0xff]
  %v2031 = vld [vmem:[%s2 + $0x78] sm:$0xff]
  %v2032 = vld [vmem:[%s2 + $0x80] sm:$0xff]
  %v2033 = vld [vmem:[%s2 + $0x88] sm:$0xff]
  %v2034 = vld [vmem:[%s2 + $0x90] sm:$0xff]
  %v2035 = vld [vmem:[%s2 + $0x98] sm:$0xff]
  %v2036 = vld [vmem:[%s2 + $0xa0] sm:$0xff]
  %v2037 = vld [vmem:[%s2 + $0xa8] sm:$0xff]
  %v2038 = vld [vmem:[%s2 + $0xb0] sm:$0xff]
  %v2039 = vld [vmem:[%s2 + $0xb8] sm:$0xff]
  %v2040 = vld [vmem:[%s2 + $0xc0] sm:$0xff]
  %v2041 = vld [vmem:[%s2 + $0xc8] sm:$0xff]
  %v2042 = vld [vmem:[%s2 + $0xd0] sm:$0xff]
  %v2043 = vld [vmem:[%s2 + $0xd8] sm:$0xff]
  %v2044 = vld [vmem:[%s2 + $0xe0] sm:$0xff]
  %v2045 = vld [vmem:[%s2 + $0xe8] sm:$0xff]
  %v2046 = vld [vmem:[%s2 + $0xf0] sm:$0xff]
  %v2047 = vld [vmem:[%s2 + $0xf8] sm:$0xff]
  %v2048 = vrot.slane %v2003, 6
  %v2049 = vsel %vm289, %v2048, 0
  %2051 = vmatprep.subr.mxu0 %v2017
  %2052 = vmatpush1.msra.mxu0 %v2016
  %2053 = vmatprep.subr.mxu0 %v2021
  %2054 = vmatpush1.msra.mxu0 %v2020
  %2055 = vmatprep.subr.mxu0 %v2025
  %2056 = vmatpush1.msra.mxu0 %v2024
  %2057 = vmatprep.subr.mxu0 %v2029
  %2058 = vmatpush1.msra.mxu0 %v2028
  %2059 = vmatprep.subr.mxu0 %v2033
  %2060 = vmatpush1.msra.mxu0 %v2032
  %2061 = vmatprep.subr.mxu0 %v2037
  %2062 = vmatpush1.msra.mxu0 %v2036
  %2063 = vmatprep.subr.mxu0 %v2041
  %2064 = vmatpush1.msra.mxu0 %v2040
  %2065 = vmatprep.subr.mxu0 %v2045
  %2066 = vmatpush1.msra.mxu0 %v2044
  %2067 = vmatprep.subr.mxu0 0.0
  %2068 = vmatpush1.msra.mxu0 0.0
  %2069 = vmatprep.subr.mxu0 0.0
  %2070 = vmatpush1.msra.mxu0 0.0
  %2071 = vmatprep.subr.mxu0 0.0
  %2072 = vmatpush1.msra.mxu0 0.0
  %2073 = vmatprep.subr.mxu0 0.0
  %2074 = vmatpush1.msra.mxu0 0.0
  %2075 = vmatprep.subr.mxu0 0.0
  %2076 = vmatpush1.msra.mxu0 0.0
  %2077 = vmatprep.subr.mxu0 0.0
  %2078 = vmatpush1.msra.mxu0 0.0
  %2079 = vmatprep.subr.mxu0 0.0
  %2080 = vmatpush1.msra.mxu0 0.0
  %2081 = vmatprep.subr.mxu0 0.0
  %2082 = vmatpush1.msra.mxu0 0.0
  %2083 = vmatprep.subr.mxu0 0.0
  %2084 = vmatpush1.msra.mxu0 0.0
  %2085 = vmatprep.subr.mxu0 0.0
  %2086 = vmatpush1.msra.mxu0 0.0
  %2087 = vmatprep.subr.mxu0 0.0
  %2088 = vmatpush1.msra.mxu0 0.0
  %2089 = vmatprep.subr.mxu0 0.0
  %2090 = vmatpush1.msra.mxu0 0.0
  %2091 = vmatprep.subr.mxu0 0.0
  %2092 = vmatpush1.msra.mxu0 0.0
  %2093 = vmatprep.subr.mxu0 0.0
  %2094 = vmatpush1.msra.mxu0 0.0
  %2095 = vmatprep.subr.mxu0 0.0
  %2096 = vmatpush1.msra.mxu0 0.0
  %2097 = vmatprep.subr.mxu0 0.0
  %2098 = vmatpush1.msra.mxu0 0.0
  %2099 = vmatprep.subr.mxu0 0.0
  %2100 = vmatpush1.msra.mxu0 0.0
  %2101 = vmatprep.subr.mxu0 0.0
  %2102 = vmatpush1.msra.mxu0 0.0
  %2103 = vmatprep.subr.mxu0 0.0
  %2104 = vmatpush1.msra.mxu0 0.0
  %2105 = vmatprep.subr.mxu0 0.0
  %2106 = vmatpush1.msra.mxu0 0.0
  %2107 = vmatprep.subr.mxu0 0.0
  %2108 = vmatpush1.msra.mxu0 0.0
  %2109 = vmatprep.subr.mxu0 0.0
  %2110 = vmatpush1.msra.mxu0 0.0
  %2111 = vmatprep.subr.mxu0 0.0
  %2112 = vmatpush1.msra.mxu0 0.0
  %2113 = vmatprep.subr.mxu0 0.0
  %2114 = vmatpush1.msra.mxu0 0.0
  %2115 = vmatprep.mubr.f32.mxu0 0.0
  %2116 = vmatmul.mubr.f32.gmra.mrb[0].mxu0 %v2049
  %v2117 = vpop.f32.mrb[0].mxu0
  %v2118 = vadd.f32 0.0, %v2117
  %v2119 = vpop.f32.mrb[0].mxu0
  %v2120 = vadd.f32 0.0, %v2119
  %2121 = vdwg.mxu0
  %2122 = vmatprep.subr.mxu0 %v2019
  %2123 = vmatpush1.msra.mxu0 %v2018
  %2124 = vmatprep.subr.mxu0 %v2023
  %2125 = vmatpush1.msra.mxu0 %v2022
  %2126 = vmatprep.subr.mxu0 %v2027
  %2127 = vmatpush1.msra.mxu0 %v2026
  %2128 = vmatprep.subr.mxu0 %v2031
  %2129 = vmatpush1.msra.mxu0 %v2030
  %2130 = vmatprep.subr.mxu0 %v2035
  %2131 = vmatpush1.msra.mxu0 %v2034
  %2132 = vmatprep.subr.mxu0 %v2039
  %2133 = vmatpush1.msra.mxu0 %v2038
  %2134 = vmatprep.subr.mxu0 %v2043
  %2135 = vmatpush1.msra.mxu0 %v2042
  %2136 = vmatprep.subr.mxu0 %v2047
  %2137 = vmatpush1.msra.mxu0 %v2046
  %2138 = vmatprep.subr.mxu0 0.0
  %2139 = vmatpush1.msra.mxu0 0.0
  %2140 = vmatprep.subr.mxu0 0.0
  %2141 = vmatpush1.msra.mxu0 0.0
  %2142 = vmatprep.subr.mxu0 0.0
  %2143 = vmatpush1.msra.mxu0 0.0
  %2144 = vmatprep.subr.mxu0 0.0
  %2145 = vmatpush1.msra.mxu0 0.0
  %2146 = vmatprep.subr.mxu0 0.0
  %2147 = vmatpush1.msra.mxu0 0.0
  %2148 = vmatprep.subr.mxu0 0.0
  %2149 = vmatpush1.msra.mxu0 0.0
  %2150 = vmatprep.subr.mxu0 0.0
  %2151 = vmatpush1.msra.mxu0 0.0
  %2152 = vmatprep.subr.mxu0 0.0
  %2153 = vmatpush1.msra.mxu0 0.0
  %2154 = vmatprep.subr.mxu0 0.0
  %2155 = vmatpush1.msra.mxu0 0.0
  %2156 = vmatprep.subr.mxu0 0.0
  %2157 = vmatpush1.msra.mxu0 0.0
  %2158 = vmatprep.subr.mxu0 0.0
  %2159 = vmatpush1.msra.mxu0 0.0
  %2160 = vmatprep.subr.mxu0 0.0
  %2161 = vmatpush1.msra.mxu0 0.0
  %2162 = vmatprep.subr.mxu0 0.0
  %2163 = vmatpush1.msra.mxu0 0.0
  %2164 = vmatprep.subr.mxu0 0.0
  %2165 = vmatpush1.msra.mxu0 0.0
  %2166 = vmatprep.subr.mxu0 0.0
  %2167 = vmatpush1.msra.mxu0 0.0
  %2168 = vmatprep.subr.mxu0 0.0
  %2169 = vmatpush1.msra.mxu0 0.0
  %2170 = vmatprep.subr.mxu0 0.0
  %2171 = vmatpush1.msra.mxu0 0.0
  %2172 = vmatprep.subr.mxu0 0.0
  %2173 = vmatpush1.msra.mxu0 0.0
  %2174 = vmatprep.subr.mxu0 0.0
  %2175 = vmatpush1.msra.mxu0 0.0
  %2176 = vmatprep.subr.mxu0 0.0
  %2177 = vmatpush1.msra.mxu0 0.0
  %2178 = vmatprep.subr.mxu0 0.0
  %2179 = vmatpush1.msra.mxu0 0.0
  %2180 = vmatprep.subr.mxu0 0.0
  %2181 = vmatpush1.msra.mxu0 0.0
  %2182 = vmatprep.subr.mxu0 0.0
  %2183 = vmatpush1.msra.mxu0 0.0
  %2184 = vmatprep.subr.mxu0 0.0
  %2185 = vmatpush1.msra.mxu0 0.0
  %2186 = vmatprep.mubr.f32.mxu0 0.0
  %2187 = vmatmul.mubr.f32.gmra.mrb[0].mxu0 %v2049
  %v2188 = vpop.f32.mrb[0].mxu0
  %v2189 = vadd.f32 0.0, %v2188
  %v2190 = vpop.f32.mrb[0].mxu0
  %v2191 = vadd.f32 0.0, %v2190
  %2192 = vdwg.mxu0
  %v2193 = vadd.f32 %v2012, %v2118
  %v2194 = vadd.f32 %v2013, %v2120
  %v2195 = vadd.f32 %v2014, %v2189
  %v2196 = vadd.f32 %v2015, %v2191
  %v2197 = vtanh.pop %v2193
  %v2198 = vtanh.pop %v2194
  %v2199 = vtanh.pop %v2195
  %v2200 = vtanh.pop %v2196
  %v2201 = vmul.f32 %v2197, 0.5
  %v2202 = vadd.f32 %v2201, 0.5
  %v2203 = vmul.f32 %v2198, 0.5
  %v2204 = vadd.f32 %v2203, 0.5
  %v2205 = vmul.f32 %v2200, 0.5
  %v2206 = vadd.f32 %v2205, 0.5
  %v2208 = vrot.slane %v2001, 6
  %v2210 = vmul.f32 %v2204, %v2208
  %v2211 = vmul.f32 %v2202, %v2199
  %v2212 = vadd.f32 %v2210, %v2211
  %v2213 = vtanh.pop %v2212
  %v2214 = vmul.f32 %v2206, %v2213
  %s2215 = scalar_lea.vmem [#allocation3], 16
  %2216 = vst.msk [vmem:[%s2215] sm:$0x3] %vm454, %v2214
  %2218 = vrot.lane.b32.xlu0 %v2214, 96
  %v2219 = vpop.permute.xlu0 %2218
  %s2221 = scalar_lea.vmem [#allocation4], 6
  %2222 = vst.msk [vmem:[%s2221] sm:$0x3] %vm454, %v2219
  %v2223 = vld [vmem:[#allocation2 + $0x40] sm:$0xc]
  %v2224 = vld [vmem:[#allocation2 + $0x48] sm:$0xc]
  %v2225 = vld [vmem:[#allocation2 + $0x50] sm:$0xc]
  %v2226 = vld [vmem:[#allocation2 + $0x58] sm:$0xc]
  %v2227 = vld [vmem:[%s2] sm:$0xff]
  %v2228 = vld [vmem:[%s2 + $0x8] sm:$0xff]
  %v2229 = vld [vmem:[%s2 + $0x10] sm:$0xff]
  %v2230 = vld [vmem:[%s2 + $0x18] sm:$0xff]
  %v2231 = vld [vmem:[%s2 + $0x20] sm:$0xff]
  %v2232 = vld [vmem:[%s2 + $0x28] sm:$0xff]
  %v2233 = vld [vmem:[%s2 + $0x30] sm:$0xff]
  %v2234 = vld [vmem:[%s2 + $0x38] sm:$0xff]
  %v2235 = vld [vmem:[%s2 + $0x40] sm:$0xff]
  %v2236 = vld [vmem:[%s2 + $0x48] sm:$0xff]
  %v2237 = vld [vmem:[%s2 + $0x50] sm:$0xff]
  %v2238 = vld [vmem:[%s2 + $0x58] sm:$0xff]
  %v2239 = vld [vmem:[%s2 + $0x60] sm:$0xff]
  %v2240 = vld [vmem:[%s2 + $0x68] sm:$0xff]
  %v2241 = vld [vmem:[%s2 + $0x70] sm:$0xff]
  %v2242 = vld [vmem:[%s2 + $0x78] sm:$0xff]
  %v2243 = vld [vmem:[%s2 + $0x80] sm:$0xff]
  %v2244 = vld [vmem:[%s2 + $0x88] sm:$0xff]
  %v2245 = vld [vmem:[%s2 + $0x90] sm:$0xff]
  %v2246 = vld [vmem:[%s2 + $0x98] sm:$0xff]
  %v2247 = vld [vmem:[%s2 + $0xa0] sm:$0xff]
  %v2248 = vld [vmem:[%s2 + $0xa8] sm:$0xff]
  %v2249 = vld [vmem:[%s2 + $0xb0] sm:$0xff]
  %v2250 = vld [vmem:[%s2 + $0xb8] sm:$0xff]
  %v2251 = vld [vmem:[%s2 + $0xc0] sm:$0xff]
  %v2252 = vld [vmem:[%s2 + $0xc8] sm:$0xff]
  %v2253 = vld [vmem:[%s2 + $0xd0] sm:$0xff]
  %v2254 = vld [vmem:[%s2 + $0xd8] sm:$0xff]
  %v2255 = vld [vmem:[%s2 + $0xe0] sm:$0xff]
  %v2256 = vld [vmem:[%s2 + $0xe8] sm:$0xff]
  %v2257 = vld [vmem:[%s2 + $0xf0] sm:$0xff]
  %v2258 = vld [vmem:[%s2 + $0xf8] sm:$0xff]
  %v2259 = vsel %vm289, %v2214, 0
  %2261 = vmatprep.subr.mxu0 %v2228
  %2262 = vmatpush1.msra.mxu0 %v2227
  %2263 = vmatprep.subr.mxu0 %v2232
  %2264 = vmatpush1.msra.mxu0 %v2231
  %2265 = vmatprep.subr.mxu0 %v2236
  %2266 = vmatpush1.msra.mxu0 %v2235
  %2267 = vmatprep.subr.mxu0 %v2240
  %2268 = vmatpush1.msra.mxu0 %v2239
  %2269 = vmatprep.subr.mxu0 %v2244
  %2270 = vmatpush1.msra.mxu0 %v2243
  %2271 = vmatprep.subr.mxu0 %v2248
  %2272 = vmatpush1.msra.mxu0 %v2247
  %2273 = vmatprep.subr.mxu0 %v2252
  %2274 = vmatpush1.msra.mxu0 %v2251
  %2275 = vmatprep.subr.mxu0 %v2256
  %2276 = vmatpush1.msra.mxu0 %v2255
  %2277 = vmatprep.subr.mxu0 0.0
  %2278 = vmatpush1.msra.mxu0 0.0
  %2279 = vmatprep.subr.mxu0 0.0
  %2280 = vmatpush1.msra.mxu0 0.0
  %2281 = vmatprep.subr.mxu0 0.0
  %2282 = vmatpush1.msra.mxu0 0.0
  %2283 = vmatprep.subr.mxu0 0.0
  %2284 = vmatpush1.msra.mxu0 0.0
  %2285 = vmatprep.subr.mxu0 0.0
  %2286 = vmatpush1.msra.mxu0 0.0
  %2287 = vmatprep.subr.mxu0 0.0
  %2288 = vmatpush1.msra.mxu0 0.0
  %2289 = vmatprep.subr.mxu0 0.0
  %2290 = vmatpush1.msra.mxu0 0.0
  %2291 = vmatprep.subr.mxu0 0.0
  %2292 = vmatpush1.msra.mxu0 0.0
  %2293 = vmatprep.subr.mxu0 0.0
  %2294 = vmatpush1.msra.mxu0 0.0
  %2295 = vmatprep.subr.mxu0 0.0
  %2296 = vmatpush1.msra.mxu0 0.0
  %2297 = vmatprep.subr.mxu0 0.0
  %2298 = vmatpush1.msra.mxu0 0.0
  %2299 = vmatprep.subr.mxu0 0.0
  %2300 = vmatpush1.msra.mxu0 0.0
  %2301 = vmatprep.subr.mxu0 0.0
  %2302 = vmatpush1.msra.mxu0 0.0
  %2303 = vmatprep.subr.mxu0 0.0
  %2304 = vmatpush1.msra.mxu0 0.0
  %2305 = vmatprep.subr.mxu0 0.0
  %2306 = vmatpush1.msra.mxu0 0.0
  %2307 = vmatprep.subr.mxu0 0.0
  %2308 = vmatpush1.msra.mxu0 0.0
  %2309 = vmatprep.subr.mxu0 0.0
  %2310 = vmatpush1.msra.mxu0 0.0
  %2311 = vmatprep.subr.mxu0 0.0
  %2312 = vmatpush1.msra.mxu0 0.0
  %2313 = vmatprep.subr.mxu0 0.0
  %2314 = vmatpush1.msra.mxu0 0.0
  %2315 = vmatprep.subr.mxu0 0.0
  %2316 = vmatpush1.msra.mxu0 0.0
  %2317 = vmatprep.subr.mxu0 0.0
  %2318 = vmatpush1.msra.mxu0 0.0
  %2319 = vmatprep.subr.mxu0 0.0
  %2320 = vmatpush1.msra.mxu0 0.0
  %2321 = vmatprep.subr.mxu0 0.0
  %2322 = vmatpush1.msra.mxu0 0.0
  %2323 = vmatprep.subr.mxu0 0.0
  %2324 = vmatpush1.msra.mxu0 0.0
  %2325 = vmatprep.mubr.f32.mxu0 0.0
  %2326 = vmatmul.mubr.f32.gmra.mrb[0].mxu0 %v2259
  %v2327 = vpop.f32.mrb[0].mxu0
  %v2328 = vadd.f32 0.0, %v2327
  %v2329 = vpop.f32.mrb[0].mxu0
  %v2330 = vadd.f32 0.0, %v2329
  %2331 = vdwg.mxu0
  %2332 = vmatprep.subr.mxu0 %v2230
  %2333 = vmatpush1.msra.mxu0 %v2229
  %2334 = vmatprep.subr.mxu0 %v2234
  %2335 = vmatpush1.msra.mxu0 %v2233
  %2336 = vmatprep.subr.mxu0 %v2238
  %2337 = vmatpush1.msra.mxu0 %v2237
  %2338 = vmatprep.subr.mxu0 %v2242
  %2339 = vmatpush1.msra.mxu0 %v2241
  %2340 = vmatprep.subr.mxu0 %v2246
  %2341 = vmatpush1.msra.mxu0 %v2245
  %2342 = vmatprep.subr.mxu0 %v2250
  %2343 = vmatpush1.msra.mxu0 %v2249
  %2344 = vmatprep.subr.mxu0 %v2254
  %2345 = vmatpush1.msra.mxu0 %v2253
  %2346 = vmatprep.subr.mxu0 %v2258
  %2347 = vmatpush1.msra.mxu0 %v2257
  %2348 = vmatprep.subr.mxu0 0.0
  %2349 = vmatpush1.msra.mxu0 0.0
  %2350 = vmatprep.subr.mxu0 0.0
  %2351 = vmatpush1.msra.mxu0 0.0
  %2352 = vmatprep.subr.mxu0 0.0
  %2353 = vmatpush1.msra.mxu0 0.0
  %2354 = vmatprep.subr.mxu0 0.0
  %2355 = vmatpush1.msra.mxu0 0.0
  %2356 = vmatprep.subr.mxu0 0.0
  %2357 = vmatpush1.msra.mxu0 0.0
  %2358 = vmatprep.subr.mxu0 0.0
  %2359 = vmatpush1.msra.mxu0 0.0
  %2360 = vmatprep.subr.mxu0 0.0
  %2361 = vmatpush1.msra.mxu0 0.0
  %2362 = vmatprep.subr.mxu0 0.0
  %2363 = vmatpush1.msra.mxu0 0.0
  %2364 = vmatprep.subr.mxu0 0.0
  %2365 = vmatpush1.msra.mxu0 0.0
  %2366 = vmatprep.subr.mxu0 0.0
  %2367 = vmatpush1.msra.mxu0 0.0
  %2368 = vmatprep.subr.mxu0 0.0
  %2369 = vmatpush1.msra.mxu0 0.0
  %2370 = vmatprep.subr.mxu0 0.0
  %2371 = vmatpush1.msra.mxu0 0.0
  %2372 = vmatprep.subr.mxu0 0.0
  %2373 = vmatpush1.msra.mxu0 0.0
  %2374 = vmatprep.subr.mxu0 0.0
  %2375 = vmatpush1.msra.mxu0 0.0
  %2376 = vmatprep.subr.mxu0 0.0
  %2377 = vmatpush1.msra.mxu0 0.0
  %2378 = vmatprep.subr.mxu0 0.0
  %2379 = vmatpush1.msra.mxu0 0.0
  %2380 = vmatprep.subr.mxu0 0.0
  %2381 = vmatpush1.msra.mxu0 0.0
  %2382 = vmatprep.subr.mxu0 0.0
  %2383 = vmatpush1.msra.mxu0 0.0
  %2384 = vmatprep.subr.mxu0 0.0
  %2385 = vmatpush1.msra.mxu0 0.0
  %2386 = vmatprep.subr.mxu0 0.0
  %2387 = vmatpush1.msra.mxu0 0.0
  %2388 = vmatprep.subr.mxu0 0.0
  %2389 = vmatpush1.msra.mxu0 0.0
  %2390 = vmatprep.subr.mxu0 0.0
  %2391 = vmatpush1.msra.mxu0 0.0
  %2392 = vmatprep.subr.mxu0 0.0
  %2393 = vmatpush1.msra.mxu0 0.0
  %2394 = vmatprep.subr.mxu0 0.0
  %2395 = vmatpush1.msra.mxu0 0.0
  %2396 = vmatprep.mubr.f32.mxu0 0.0
  %2397 = vmatmul.mubr.f32.gmra.mrb[0].mxu0 %v2259
  %v2398 = vpop.f32.mrb[0].mxu0
  %v2399 = vadd.f32 0.0, %v2398
  %v2400 = vpop.f32.mrb[0].mxu0
  %v2401 = vadd.f32 0.0, %v2400
  %2402 = vdwg.mxu0
  %v2407 = vrot.slane %v2328, 6
  %v2408 = vrot.slane %v2330, 6
  %v2409 = vrot.slane %v2399, 6
  %v2410 = vrot.slane %v2401, 6
  %v2415 = vadd.f32 %v2223, %v2407
  %v2416 = vadd.f32 %v2224, %v2408
  %v2417 = vadd.f32 %v2225, %v2409
  %v2418 = vadd.f32 %v2226, %v2410
  %v2419 = vtanh.pop %v2415
  %v2420 = vtanh.pop %v2416
  %v2421 = vtanh.pop %v2417
  %v2422 = vtanh.pop %v2418
  %v2423 = vmul.f32 %v2419, 0.5
  %v2424 = vadd.f32 %v2423, 0.5
  %v2425 = vmul.f32 %v2420, 0.5
  %v2426 = vadd.f32 %v2425, 0.5
  %v2427 = vmul.f32 %v2422, 0.5
  %v2428 = vadd.f32 %v2427, 0.5
  %v2430 = vrot.slane %v2212, 6
  %v2432 = vmul.f32 %v2426, %v2430
  %v2433 = vmul.f32 %v2424, %v2421
  %v2434 = vadd.f32 %v2432, %v2433
  %v2435 = vtanh.pop %v2434
  %v2436 = vmul.f32 %v2428, %v2435
  %s2437 = scalar_lea.vmem [#allocation3], 18
  %2438 = vst.msk [vmem:[%s2437 - $0x2] sm:$0xc] %vm677, %v2436
  %2440 = vrot.lane.b32.xlu0 %v2436, 96
  %v2441 = vpop.permute.xlu0 %2440
  %s2443 = scalar_lea.vmem [#allocation4], 4
  %2444 = vst.msk [vmem:[%s2443 - $0x2] sm:$0xc] %vm677, %v2441
  %v2445 = vld [vmem:[#allocation2 + $0x40] sm:$0x30]
  %v2446 = vld [vmem:[#allocation2 + $0x48] sm:$0x30]
  %v2447 = vld [vmem:[#allocation2 + $0x50] sm:$0x30]
  %v2448 = vld [vmem:[#allocation2 + $0x58] sm:$0x30]
  %v2449 = vld [vmem:[%s2] sm:$0xff]
  %v2450 = vld [vmem:[%s2 + $0x8] sm:$0xff]
  %v2451 = vld [vmem:[%s2 + $0x10] sm:$0xff]
  %v2452 = vld [vmem:[%s2 + $0x18] sm:$0xff]
  %v2453 = vld [vmem:[%s2 + $0x20] sm:$0xff]
  %v2454 = vld [vmem:[%s2 + $0x28] sm:$0xff]
  %v2455 = vld [vmem:[%s2 + $0x30] sm:$0xff]
  %v2456 = vld [vmem:[%s2 + $0x38] sm:$0xff]
  %v2457 = vld [vmem:[%s2 + $0x40] sm:$0xff]
  %v2458 = vld [vmem:[%s2 + $0x48] sm:$0xff]
  %v2459 = vld [vmem:[%s2 + $0x50] sm:$0xff]
  %v2460 = vld [vmem:[%s2 + $0x58] sm:$0xff]
  %v2461 = vld [vmem:[%s2 + $0x60] sm:$0xff]
  %v2462 = vld [vmem:[%s2 + $0x68] sm:$0xff]
  %v2463 = vld [vmem:[%s2 + $0x70] sm:$0xff]
  %v2464 = vld [vmem:[%s2 + $0x78] sm:$0xff]
  %v2465 = vld [vmem:[%s2 + $0x80] sm:$0xff]
  %v2466 = vld [vmem:[%s2 + $0x88] sm:$0xff]
  %v2467 = vld [vmem:[%s2 + $0x90] sm:$0xff]
  %v2468 = vld [vmem:[%s2 + $0x98] sm:$0xff]
  %v2469 = vld [vmem:[%s2 + $0xa0] sm:$0xff]
  %v2470 = vld [vmem:[%s2 + $0xa8] sm:$0xff]
  %v2471 = vld [vmem:[%s2 + $0xb0] sm:$0xff]
  %v2472 = vld [vmem:[%s2 + $0xb8] sm:$0xff]
  %v2473 = vld [vmem:[%s2 + $0xc0] sm:$0xff]
  %v2474 = vld [vmem:[%s2 + $0xc8] sm:$0xff]
  %v2475 = vld [vmem:[%s2 + $0xd0] sm:$0xff]
  %v2476 = vld [vmem:[%s2 + $0xd8] sm:$0xff]
  %v2477 = vld [vmem:[%s2 + $0xe0] sm:$0xff]
  %v2478 = vld [vmem:[%s2 + $0xe8] sm:$0xff]
  %v2479 = vld [vmem:[%s2 + $0xf0] sm:$0xff]
  %v2480 = vld [vmem:[%s2 + $0xf8] sm:$0xff]
  %v2481 = vrot.slane %v2436, 2
  %v2482 = vsel %vm289, %v2481, 0
  %2484 = vmatprep.subr.mxu0 %v2450
  %2485 = vmatpush1.msra.mxu0 %v2449
  %2486 = vmatprep.subr.mxu0 %v2454
  %2487 = vmatpush1.msra.mxu0 %v2453
  %2488 = vmatprep.subr.mxu0 %v2458
  %2489 = vmatpush1.msra.mxu0 %v2457
  %2490 = vmatprep.subr.mxu0 %v2462
  %2491 = vmatpush1.msra.mxu0 %v2461
  %2492 = vmatprep.subr.mxu0 %v2466
  %2493 = vmatpush1.msra.mxu0 %v2465
  %2494 = vmatprep.subr.mxu0 %v2470
  %2495 = vmatpush1.msra.mxu0 %v2469
  %2496 = vmatprep.subr.mxu0 %v2474
  %2497 = vmatpush1.msra.mxu0 %v2473
  %2498 = vmatprep.subr.mxu0 %v2478
  %2499 = vmatpush1.msra.mxu0 %v2477
  %2500 = vmatprep.subr.mxu0 0.0
  %2501 = vmatpush1.msra.mxu0 0.0
  %2502 = vmatprep.subr.mxu0 0.0
  %2503 = vmatpush1.msra.mxu0 0.0
  %2504 = vmatprep.subr.mxu0 0.0
  %2505 = vmatpush1.msra.mxu0 0.0
  %2506 = vmatprep.subr.mxu0 0.0
  %2507 = vmatpush1.msra.mxu0 0.0
  %2508 = vmatprep.subr.mxu0 0.0
  %2509 = vmatpush1.msra.mxu0 0.0
  %2510 = vmatprep.subr.mxu0 0.0
  %2511 = vmatpush1.msra.mxu0 0.0
  %2512 = vmatprep.subr.mxu0 0.0
  %2513 = vmatpush1.msra.mxu0 0.0
  %2514 = vmatprep.subr.mxu0 0.0
  %2515 = vmatpush1.msra.mxu0 0.0
  %2516 = vmatprep.subr.mxu0 0.0
  %2517 = vmatpush1.msra.mxu0 0.0
  %2518 = vmatprep.subr.mxu0 0.0
  %2519 = vmatpush1.msra.mxu0 0.0
  %2520 = vmatprep.subr.mxu0 0.0
  %2521 = vmatpush1.msra.mxu0 0.0
  %2522 = vmatprep.subr.mxu0 0.0
  %2523 = vmatpush1.msra.mxu0 0.0
  %2524 = vmatprep.subr.mxu0 0.0
  %2525 = vmatpush1.msra.mxu0 0.0
  %2526 = vmatprep.subr.mxu0 0.0
  %2527 = vmatpush1.msra.mxu0 0.0
  %2528 = vmatprep.subr.mxu0 0.0
  %2529 = vmatpush1.msra.mxu0 0.0
  %2530 = vmatprep.subr.mxu0 0.0
  %2531 = vmatpush1.msra.mxu0 0.0
  %2532 = vmatprep.subr.mxu0 0.0
  %2533 = vmatpush1.msra.mxu0 0.0
  %2534 = vmatprep.subr.mxu0 0.0
  %2535 = vmatpush1.msra.mxu0 0.0
  %2536 = vmatprep.subr.mxu0 0.0
  %2537 = vmatpush1.msra.mxu0 0.0
  %2538 = vmatprep.subr.mxu0 0.0
  %2539 = vmatpush1.msra.mxu0 0.0
  %2540 = vmatprep.subr.mxu0 0.0
  %2541 = vmatpush1.msra.mxu0 0.0
  %2542 = vmatprep.subr.mxu0 0.0
  %2543 = vmatpush1.msra.mxu0 0.0
  %2544 = vmatprep.subr.mxu0 0.0
  %2545 = vmatpush1.msra.mxu0 0.0
  %2546 = vmatprep.subr.mxu0 0.0
  %2547 = vmatpush1.msra.mxu0 0.0
  %2548 = vmatprep.mubr.f32.mxu0 0.0
  %2549 = vmatmul.mubr.f32.gmra.mrb[0].mxu0 %v2482
  %v2550 = vpop.f32.mrb[0].mxu0
  %v2551 = vadd.f32 0.0, %v2550
  %v2552 = vpop.f32.mrb[0].mxu0
  %v2553 = vadd.f32 0.0, %v2552
  %2554 = vdwg.mxu0
  %2555 = vmatprep.subr.mxu0 %v2452
  %2556 = vmatpush1.msra.mxu0 %v2451
  %2557 = vmatprep.subr.mxu0 %v2456
  %2558 = vmatpush1.msra.mxu0 %v2455
  %2559 = vmatprep.subr.mxu0 %v2460
  %2560 = vmatpush1.msra.mxu0 %v2459
  %2561 = vmatprep.subr.mxu0 %v2464
  %2562 = vmatpush1.msra.mxu0 %v2463
  %2563 = vmatprep.subr.mxu0 %v2468
  %2564 = vmatpush1.msra.mxu0 %v2467
  %2565 = vmatprep.subr.mxu0 %v2472
  %2566 = vmatpush1.msra.mxu0 %v2471
  %2567 = vmatprep.subr.mxu0 %v2476
  %2568 = vmatpush1.msra.mxu0 %v2475
  %2569 = vmatprep.subr.mxu0 %v2480
  %2570 = vmatpush1.msra.mxu0 %v2479
  %2571 = vmatprep.subr.mxu0 0.0
  %2572 = vmatpush1.msra.mxu0 0.0
  %2573 = vmatprep.subr.mxu0 0.0
  %2574 = vmatpush1.msra.mxu0 0.0
  %2575 = vmatprep.subr.mxu0 0.0
  %2576 = vmatpush1.msra.mxu0 0.0
  %2577 = vmatprep.subr.mxu0 0.0
  %2578 = vmatpush1.msra.mxu0 0.0
  %2579 = vmatprep.subr.mxu0 0.0
  %2580 = vmatpush1.msra.mxu0 0.0
  %2581 = vmatprep.subr.mxu0 0.0
  %2582 = vmatpush1.msra.mxu0 0.0
  %2583 = vmatprep.subr.mxu0 0.0
  %2584 = vmatpush1.msra.mxu0 0.0
  %2585 = vmatprep.subr.mxu0 0.0
  %2586 = vmatpush1.msra.mxu0 0.0
  %2587 = vmatprep.subr.mxu0 0.0
  %2588 = vmatpush1.msra.mxu0 0.0
  %2589 = vmatprep.subr.mxu0 0.0
  %2590 = vmatpush1.msra.mxu0 0.0
  %2591 = vmatprep.subr.mxu0 0.0
  %2592 = vmatpush1.msra.mxu0 0.0
  %2593 = vmatprep.subr.mxu0 0.0
  %2594 = vmatpush1.msra.mxu0 0.0
  %2595 = vmatprep.subr.mxu0 0.0
  %2596 = vmatpush1.msra.mxu0 0.0
  %2597 = vmatprep.subr.mxu0 0.0
  %2598 = vmatpush1.msra.mxu0 0.0
  %2599 = vmatprep.subr.mxu0 0.0
  %2600 = vmatpush1.msra.mxu0 0.0
  %2601 = vmatprep.subr.mxu0 0.0
  %2602 = vmatpush1.msra.mxu0 0.0
  %2603 = vmatprep.subr.mxu0 0.0
  %2604 = vmatpush1.msra.mxu0 0.0
  %2605 = vmatprep.subr.mxu0 0.0
  %2606 = vmatpush1.msra.mxu0 0.0
  %2607 = vmatprep.subr.mxu0 0.0
  %2608 = vmatpush1.msra.mxu0 0.0
  %2609 = vmatprep.subr.mxu0 0.0
  %2610 = vmatpush1.msra.mxu0 0.0
  %2611 = vmatprep.subr.mxu0 0.0
  %2612 = vmatpush1.msra.mxu0 0.0
  %2613 = vmatprep.subr.mxu0 0.0
  %2614 = vmatpush1.msra.mxu0 0.0
  %2615 = vmatprep.subr.mxu0 0.0
  %2616 = vmatpush1.msra.mxu0 0.0
  %2617 = vmatprep.subr.mxu0 0.0
  %2618 = vmatpush1.msra.mxu0 0.0
  %2619 = vmatprep.mubr.f32.mxu0 0.0
  %2620 = vmatmul.mubr.f32.gmra.mrb[0].mxu0 %v2482
  %v2621 = vpop.f32.mrb[0].mxu0
  %v2622 = vadd.f32 0.0, %v2621
  %v2623 = vpop.f32.mrb[0].mxu0
  %v2624 = vadd.f32 0.0, %v2623
  %2625 = vdwg.mxu0
  %v2630 = vrot.slane %v2551, 4
  %v2631 = vrot.slane %v2553, 4
  %v2632 = vrot.slane %v2622, 4
  %v2633 = vrot.slane %v2624, 4
  %v2638 = vadd.f32 %v2445, %v2630
  %v2639 = vadd.f32 %v2446, %v2631
  %v2640 = vadd.f32 %v2447, %v2632
  %v2641 = vadd.f32 %v2448, %v2633
  %v2642 = vtanh.pop %v2638
  %v2643 = vtanh.pop %v2639
  %v2644 = vtanh.pop %v2640
  %v2645 = vtanh.pop %v2641
  %v2646 = vmul.f32 %v2642, 0.5
  %v2647 = vadd.f32 %v2646, 0.5
  %v2648 = vmul.f32 %v2643, 0.5
  %v2649 = vadd.f32 %v2648, 0.5
  %v2650 = vmul.f32 %v2645, 0.5
  %v2651 = vadd.f32 %v2650, 0.5
  %v2653 = vrot.slane %v2434, 6
  %v2655 = vmul.f32 %v2649, %v2653
  %v2656 = vmul.f32 %v2647, %v2644
  %v2657 = vadd.f32 %v2655, %v2656
  %v2658 = vtanh.pop %v2657
  %v2659 = vmul.f32 %v2651, %v2658
  %s2660 = scalar_lea.vmem [#allocation3], 20
  %2661 = vst.msk [vmem:[%s2660 - $0x4] sm:$0x30] %vm901, %v2659
  %2663 = vrot.lane.b32.xlu0 %v2659, 96
  %v2664 = vpop.permute.xlu0 %2663
  %s2666 = scalar_lea.vmem [#allocation4], 2
  %2667 = vst.msk [vmem:[%s2666 - $0x4] sm:$0x30] %vm901, %v2664
  %v2668 = vld [vmem:[#allocation2 + $0x40] sm:$0xc0]
  %v2669 = vld [vmem:[#allocation2 + $0x48] sm:$0xc0]
  %v2670 = vld [vmem:[#allocation2 + $0x50] sm:$0xc0]
  %v2671 = vld [vmem:[#allocation2 + $0x58] sm:$0xc0]
  %v2672 = vld [vmem:[%s2] sm:$0xff]
  %v2673 = vld [vmem:[%s2 + $0x8] sm:$0xff]
  %v2674 = vld [vmem:[%s2 + $0x10] sm:$0xff]
  %v2675 = vld [vmem:[%s2 + $0x18] sm:$0xff]
  %v2676 = vld [vmem:[%s2 + $0x20] sm:$0xff]
  %v2677 = vld [vmem:[%s2 + $0x28] sm:$0xff]
  %v2678 = vld [vmem:[%s2 + $0x30] sm:$0xff]
  %v2679 = vld [vmem:[%s2 + $0x38] sm:$0xff]
  %v2680 = vld [vmem:[%s2 + $0x40] sm:$0xff]
  %v2681 = vld [vmem:[%s2 + $0x48] sm:$0xff]
  %v2682 = vld [vmem:[%s2 + $0x50] sm:$0xff]
  %v2683 = vld [vmem:[%s2 + $0x58] sm:$0xff]
  %v2684 = vld [vmem:[%s2 + $0x60] sm:$0xff]
  %v2685 = vld [vmem:[%s2 + $0x68] sm:$0xff]
  %v2686 = vld [vmem:[%s2 + $0x70] sm:$0xff]
  %v2687 = vld [vmem:[%s2 + $0x78] sm:$0xff]
  %v2688 = vld [vmem:[%s2 + $0x80] sm:$0xff]
  %v2689 = vld [vmem:[%s2 + $0x88] sm:$0xff]
  %v2690 = vld [vmem:[%s2 + $0x90] sm:$0xff]
  %v2691 = vld [vmem:[%s2 + $0x98] sm:$0xff]
  %v2692 = vld [vmem:[%s2 + $0xa0] sm:$0xff]
  %v2693 = vld [vmem:[%s2 + $0xa8] sm:$0xff]
  %v2694 = vld [vmem:[%s2 + $0xb0] sm:$0xff]
  %v2695 = vld [vmem:[%s2 + $0xb8] sm:$0xff]
  %v2696 = vld [vmem:[%s2 + $0xc0] sm:$0xff]
  %v2697 = vld [vmem:[%s2 + $0xc8] sm:$0xff]
  %v2698 = vld [vmem:[%s2 + $0xd0] sm:$0xff]
  %v2699 = vld [vmem:[%s2 + $0xd8] sm:$0xff]
  %v2700 = vld [vmem:[%s2 + $0xe0] sm:$0xff]
  %v2701 = vld [vmem:[%s2 + $0xe8] sm:$0xff]
  %v2702 = vld [vmem:[%s2 + $0xf0] sm:$0xff]
  %v2703 = vld [vmem:[%s2 + $0xf8] sm:$0xff]
  %v2704 = vrot.slane %v2659, 4
  %v2705 = vsel %vm289, %v2704, 0
  %2707 = vmatprep.subr.mxu0 %v2673
  %2708 = vmatpush1.msra.mxu0 %v2672
  %2709 = vmatprep.subr.mxu0 %v2677
  %2710 = vmatpush1.msra.mxu0 %v2676
  %2711 = vmatprep.subr.mxu0 %v2681
  %2712 = vmatpush1.msra.mxu0 %v2680
  %2713 = vmatprep.subr.mxu0 %v2685
  %2714 = vmatpush1.msra.mxu0 %v2684
  %2715 = vmatprep.subr.mxu0 %v2689
  %2716 = vmatpush1.msra.mxu0 %v2688
  %2717 = vmatprep.subr.mxu0 %v2693
  %2718 = vmatpush1.msra.mxu0 %v2692
  %2719 = vmatprep.subr.mxu0 %v2697
  %2720 = vmatpush1.msra.mxu0 %v2696
  %2721 = vmatprep.subr.mxu0 %v2701
  %2722 = vmatpush1.msra.mxu0 %v2700
  %2723 = vmatprep.subr.mxu0 0.0
  %2724 = vmatpush1.msra.mxu0 0.0
  %2725 = vmatprep.subr.mxu0 0.0
  %2726 = vmatpush1.msra.mxu0 0.0
  %2727 = vmatprep.subr.mxu0 0.0
  %2728 = vmatpush1.msra.mxu0 0.0
  %2729 = vmatprep.subr.mxu0 0.0
  %2730 = vmatpush1.msra.mxu0 0.0
  %2731 = vmatprep.subr.mxu0 0.0
  %2732 = vmatpush1.msra.mxu0 0.0
  %2733 = vmatprep.subr.mxu0 0.0
  %2734 = vmatpush1.msra.mxu0 0.0
  %2735 = vmatprep.subr.mxu0 0.0
  %2736 = vmatpush1.msra.mxu0 0.0
  %2737 = vmatprep.subr.mxu0 0.0
  %2738 = vmatpush1.msra.mxu0 0.0
  %2739 = vmatprep.subr.mxu0 0.0
  %2740 = vmatpush1.msra.mxu0 0.0
  %2741 = vmatprep.subr.mxu0 0.0
  %2742 = vmatpush1.msra.mxu0 0.0
  %2743 = vmatprep.subr.mxu0 0.0
  %2744 = vmatpush1.msra.mxu0 0.0
  %2745 = vmatprep.subr.mxu0 0.0
  %2746 = vmatpush1.msra.mxu0 0.0
  %2747 = vmatprep.subr.mxu0 0.0
  %2748 = vmatpush1.msra.mxu0 0.0
  %2749 = vmatprep.subr.mxu0 0.0
  %2750 = vmatpush1.msra.mxu0 0.0
  %2751 = vmatprep.subr.mxu0 0.0
  %2752 = vmatpush1.msra.mxu0 0.0
  %2753 = vmatprep.subr.mxu0 0.0
  %2754 = vmatpush1.msra.mxu0 0.0
  %2755 = vmatprep.subr.mxu0 0.0
  %2756 = vmatpush1.msra.mxu0 0.0
  %2757 = vmatprep.subr.mxu0 0.0
  %2758 = vmatpush1.msra.mxu0 0.0
  %2759 = vmatprep.subr.mxu0 0.0
  %2760 = vmatpush1.msra.mxu0 0.0
  %2761 = vmatprep.subr.mxu0 0.0
  %2762 = vmatpush1.msra.mxu0 0.0
  %2763 = vmatprep.subr.mxu0 0.0
  %2764 = vmatpush1.msra.mxu0 0.0
  %2765 = vmatprep.subr.mxu0 0.0
  %2766 = vmatpush1.msra.mxu0 0.0
  %2767 = vmatprep.subr.mxu0 0.0
  %2768 = vmatpush1.msra.mxu0 0.0
  %2769 = vmatprep.subr.mxu0 0.0
  %2770 = vmatpush1.msra.mxu0 0.0
  %2771 = vmatprep.mubr.f32.mxu0 0.0
  %2772 = vmatmul.mubr.f32.gmra.mrb[0].mxu0 %v2705
  %v2773 = vpop.f32.mrb[0].mxu0
  %v2774 = vadd.f32 0.0, %v2773
  %v2775 = vpop.f32.mrb[0].mxu0
  %v2776 = vadd.f32 0.0, %v2775
  %2777 = vdwg.mxu0
  %2778 = vmatprep.subr.mxu0 %v2675
  %2779 = vmatpush1.msra.mxu0 %v2674
  %2780 = vmatprep.subr.mxu0 %v2679
  %2781 = vmatpush1.msra.mxu0 %v2678
  %2782 = vmatprep.subr.mxu0 %v2683
  %2783 = vmatpush1.msra.mxu0 %v2682
  %2784 = vmatprep.subr.mxu0 %v2687
  %2785 = vmatpush1.msra.mxu0 %v2686
  %2786 = vmatprep.subr.mxu0 %v2691
  %2787 = vmatpush1.msra.mxu0 %v2690
  %2788 = vmatprep.subr.mxu0 %v2695
  %2789 = vmatpush1.msra.mxu0 %v2694
  %2790 = vmatprep.subr.mxu0 %v2699
  %2791 = vmatpush1.msra.mxu0 %v2698
  %2792 = vmatprep.subr.mxu0 %v2703
  %2793 = vmatpush1.msra.mxu0 %v2702
  %2794 = vmatprep.subr.mxu0 0.0
  %2795 = vmatpush1.msra.mxu0 0.0
  %2796 = vmatprep.subr.mxu0 0.0
  %2797 = vmatpush1.msra.mxu0 0.0
  %2798 = vmatprep.subr.mxu0 0.0
  %2799 = vmatpush1.msra.mxu0 0.0
  %2800 = vmatprep.subr.mxu0 0.0
  %2801 = vmatpush1.msra.mxu0 0.0
  %2802 = vmatprep.subr.mxu0 0.0
  %2803 = vmatpush1.msra.mxu0 0.0
  %2804 = vmatprep.subr.mxu0 0.0
  %2805 = vmatpush1.msra.mxu0 0.0
  %2806 = vmatprep.subr.mxu0 0.0
  %2807 = vmatpush1.msra.mxu0 0.0
  %2808 = vmatprep.subr.mxu0 0.0
  %2809 = vmatpush1.msra.mxu0 0.0
  %2810 = vmatprep.subr.mxu0 0.0
  %2811 = vmatpush1.msra.mxu0 0.0
  %2812 = vmatprep.subr.mxu0 0.0
  %2813 = vmatpush1.msra.mxu0 0.0
  %2814 = vmatprep.subr.mxu0 0.0
  %2815 = vmatpush1.msra.mxu0 0.0
  %2816 = vmatprep.subr.mxu0 0.0
  %2817 = vmatpush1.msra.mxu0 0.0
  %2818 = vmatprep.subr.mxu0 0.0
  %2819 = vmatpush1.msra.mxu0 0.0
  %2820 = vmatprep.subr.mxu0 0.0
  %2821 = vmatpush1.msra.mxu0 0.0
  %2822 = vmatprep.subr.mxu0 0.0
  %2823 = vmatpush1.msra.mxu0 0.0
  %2824 = vmatprep.subr.mxu0 0.0
  %2825 = vmatpush1.msra.mxu0 0.0
  %2826 = vmatprep.subr.mxu0 0.0
  %2827 = vmatpush1.msra.mxu0 0.0
  %2828 = vmatprep.subr.mxu0 0.0
  %2829 = vmatpush1.msra.mxu0 0.0
  %2830 = vmatprep.subr.mxu0 0.0
  %2831 = vmatpush1.msra.mxu0 0.0
  %2832 = vmatprep.subr.mxu0 0.0
  %2833 = vmatpush1.msra.mxu0 0.0
  %2834 = vmatprep.subr.mxu0 0.0
  %2835 = vmatpush1.msra.mxu0 0.0
  %2836 = vmatprep.subr.mxu0 0.0
  %2837 = vmatpush1.msra.mxu0 0.0
  %2838 = vmatprep.subr.mxu0 0.0
  %2839 = vmatpush1.msra.mxu0 0.0
  %2840 = vmatprep.subr.mxu0 0.0
  %2841 = vmatpush1.msra.mxu0 0.0
  %2842 = vmatprep.mubr.f32.mxu0 0.0
  %2843 = vmatmul.mubr.f32.gmra.mrb[0].mxu0 %v2705
  %v2844 = vpop.f32.mrb[0].mxu0
  %v2845 = vadd.f32 0.0, %v2844
  %v2846 = vpop.f32.mrb[0].mxu0
  %v2847 = vadd.f32 0.0, %v2846
  %2848 = vdwg.mxu0
  %v2853 = vrot.slane %v2774, 2
  %v2854 = vrot.slane %v2776, 2
  %v2855 = vrot.slane %v2845, 2
  %v2856 = vrot.slane %v2847, 2
  %v2861 = vadd.f32 %v2668, %v2853
  %v2862 = vadd.f32 %v2669, %v2854
  %v2863 = vadd.f32 %v2670, %v2855
  %v2864 = vadd.f32 %v2671, %v2856
  %v2865 = vtanh.pop %v2861
  %v2866 = vtanh.pop %v2862
  %v2867 = vtanh.pop %v2863
  %v2868 = vtanh.pop %v2864
  %v2869 = vmul.f32 %v2865, 0.5
  %v2870 = vadd.f32 %v2869, 0.5
  %v2871 = vmul.f32 %v2866, 0.5
  %v2872 = vadd.f32 %v2871, 0.5
  %v2873 = vmul.f32 %v2868, 0.5
  %v2874 = vadd.f32 %v2873, 0.5
  %v2876 = vrot.slane %v2657, 6
  %v2878 = vmul.f32 %v2872, %v2876
  %v2879 = vmul.f32 %v2870, %v2867
  %v2880 = vadd.f32 %v2878, %v2879
  %v2881 = vtanh.pop %v2880
  %v2882 = vmul.f32 %v2874, %v2881
  %s2883 = scalar_lea.vmem [#allocation3], 22
  %2884 = vst.msk [vmem:[%s2883 - $0x6] sm:$0xc0] %vm1125, %v2882
  %2886 = vrot.lane.b32.xlu0 %v2882, 96
  %v2887 = vpop.permute.xlu0 %2886
  %2889 = vst.msk [vmem:[#allocation4 - $0x6] sm:$0xc0] %vm1125, %v2887
  %v2890 = vld [vmem:[#allocation3] sm:$0x3]
  %v2891 = vld [vmem:[#allocation3 + $0x2] sm:$0x3]
  %v2892 = vld [vmem:[#allocation3 + $0x4] sm:$0x3]
  %v2893 = vld [vmem:[#allocation3 + $0x6] sm:$0x3]
  %v2894 = vld [vmem:[#allocation3 + $0x8] sm:$0x3]
  %v2895 = vld [vmem:[#allocation3 + $0xa] sm:$0x3]
  %v2896 = vld [vmem:[#allocation3 + $0xc] sm:$0x3]
  %v2897 = vld [vmem:[#allocation3 + $0xe] sm:$0x3]
  %v2898 = vld [vmem:[#allocation3 + $0x10] sm:$0x3]
  %v2899 = vld [vmem:[#allocation3 + $0x12] sm:$0x3]
  %v2900 = vld [vmem:[#allocation3 + $0x14] sm:$0x3]
  %v2901 = vld [vmem:[#allocation3 + $0x16] sm:$0x3]
  %v2902 = vld [vmem:[#allocation4] sm:$0x3]
  %v2903 = vld [vmem:[#allocation4 + $0x2] sm:$0x3]
  %v2904 = vld [vmem:[#allocation4 + $0x4] sm:$0x3]
  %v2905 = vld [vmem:[#allocation4 + $0x6] sm:$0x3]
  %v2906 = vld [vmem:[#allocation4 + $0x8] sm:$0x3]
  %v2907 = vld [vmem:[#allocation4 + $0xa] sm:$0x3]
  %v2908 = vld [vmem:[#allocation4 + $0xc] sm:$0x3]
  %v2909 = vld [vmem:[#allocation4 + $0xe] sm:$0x3]
  %v2910 = vld [vmem:[#allocation4 + $0x10] sm:$0x3]
  %v2911 = vld [vmem:[#allocation4 + $0x12] sm:$0x3]
  %v2912 = vld [vmem:[#allocation4 + $0x14] sm:$0x3]
  %v2913 = vld [vmem:[#allocation4 + $0x16] sm:$0x3]
  %2924 = vrot.lane.b32.xlu0 %v2902, 32
  %v2925 = vpop.permute.xlu0 %2924
  %2926 = vrot.lane.b32.xlu0 %v2903, 32
  %v2927 = vpop.permute.xlu0 %2926
  %2928 = vrot.lane.b32.xlu0 %v2904, 32
  %v2929 = vpop.permute.xlu0 %2928
  %2930 = vrot.lane.b32.xlu0 %v2905, 32
  %v2931 = vpop.permute.xlu0 %2930
  %2932 = vrot.lane.b32.xlu0 %v2906, 32
  %v2933 = vpop.permute.xlu0 %2932
  %2934 = vrot.lane.b32.xlu0 %v2907, 32
  %v2935 = vpop.permute.xlu0 %2934
  %2936 = vrot.lane.b32.xlu0 %v2908, 32
  %v2937 = vpop.permute.xlu0 %2936
  %2938 = vrot.lane.b32.xlu0 %v2909, 32
  %v2939 = vpop.permute.xlu0 %2938
  %2940 = vrot.lane.b32.xlu0 %v2910, 32
  %v2941 = vpop.permute.xlu0 %2940
  %2942 = vrot.lane.b32.xlu0 %v2911, 32
  %v2943 = vpop.permute.xlu0 %2942
  %2964 = vrot.lane.b32.xlu0 %v2891, 64
  %v2965 = vpop.permute.xlu0 %2964
  %2966 = vrot.lane.b32.xlu0 %v2892, 64
  %v2967 = vpop.permute.xlu0 %2966
  %2968 = vrot.lane.b32.xlu0 %v2893, 64
  %v2969 = vpop.permute.xlu0 %2968
  %2970 = vrot.lane.b32.xlu0 %v2894, 64
  %v2971 = vpop.permute.xlu0 %2970
  %2972 = vrot.lane.b32.xlu0 %v2895, 64
  %v2973 = vpop.permute.xlu0 %2972
  %2974 = vrot.lane.b32.xlu0 %v2896, 64
  %v2975 = vpop.permute.xlu0 %2974
  %2976 = vrot.lane.b32.xlu0 %v2897, 64
  %v2977 = vpop.permute.xlu0 %2976
  %2978 = vrot.lane.b32.xlu0 %v2898, 64
  %v2979 = vpop.permute.xlu0 %2978
  %2980 = vrot.lane.b32.xlu0 %v2899, 64
  %v2981 = vpop.permute.xlu0 %2980
  %2982 = vrot.lane.b32.xlu0 %v2900, 64
  %v2983 = vpop.permute.xlu0 %2982
  %2995 = vrot.lane.b32.xlu0 %v2903, 96
  %v2996 = vpop.permute.xlu0 %2995
  %2997 = vrot.lane.b32.xlu0 %v2904, 96
  %v2998 = vpop.permute.xlu0 %2997
  %2999 = vrot.lane.b32.xlu0 %v2905, 96
  %v3000 = vpop.permute.xlu0 %2999
  %3001 = vrot.lane.b32.xlu0 %v2906, 96
  %v3002 = vpop.permute.xlu0 %3001
  %3003 = vrot.lane.b32.xlu0 %v2907, 96
  %v3004 = vpop.permute.xlu0 %3003
  %3005 = vrot.lane.b32.xlu0 %v2908, 96
  %v3006 = vpop.permute.xlu0 %3005
  %3007 = vrot.lane.b32.xlu0 %v2909, 96
  %v3008 = vpop.permute.xlu0 %3007
  %3009 = vrot.lane.b32.xlu0 %v2910, 96
  %v3010 = vpop.permute.xlu0 %3009
  %3011 = vrot.lane.b32.xlu0 %v2911, 96
  %v3012 = vpop.permute.xlu0 %3011
  %3013 = vrot.lane.b32.xlu0 %v2912, 96
  %v3014 = vpop.permute.xlu0 %3013
  %3026 = vrot.lane.b32.xlu0 %v2912, 32
  %v3027 = vpop.permute.xlu0 %3026
  %3028 = vrot.lane.b32.xlu0 %v2913, 32
  %v3029 = vpop.permute.xlu0 %3028
  %vm3032 = vcmask 261120
  %v3033 = vsel %vm3032, %v2890, %v2925
  %v3034 = vsel %vm3032, %v2891, %v2927
  %v3035 = vsel %vm3032, %v2892, %v2929
  %v3036 = vsel %vm3032, %v2893, %v2931
  %v3037 = vsel %vm3032, %v2894, %v2933
  %v3038 = vsel %vm3032, %v2895, %v2935
  %v3039 = vsel %vm3032, %v2896, %v2937
  %v3040 = vsel %vm3032, %v2897, %v2939
  %v3041 = vsel %vm3032, %v2898, %v2941
  %v3042 = vsel %vm3032, %v2899, %v2943
  %v3043 = vsel %vm289, %v3033, %v2965
  %v3044 = vsel %vm289, %v3034, %v2967
  %v3045 = vsel %vm289, %v3035, %v2969
  %v3046 = vsel %vm289, %v3036, %v2971
  %v3047 = vsel %vm289, %v3037, %v2973
  %v3048 = vsel %vm289, %v3038, %v2975
  %v3049 = vsel %vm289, %v3039, %v2977
  %v3050 = vsel %vm289, %v3040, %v2979
  %v3051 = vsel %vm289, %v3041, %v2981
  %v3052 = vsel %vm289, %v3042, %v2983
  %vm3053 = vcmask 785408
  %v3054 = vsel %vm3053, %v3043, %v2996
  %v3055 = vsel %vm3053, %v3044, %v2998
  %v3056 = vsel %vm3053, %v3045, %v3000
  %v3057 = vsel %vm3053, %v3046, %v3002
  %v3058 = vsel %vm3053, %v3047, %v3004
  %v3059 = vsel %vm3053, %v3048, %v3006
  %v3060 = vsel %vm3053, %v3049, %v3008
  %v3061 = vsel %vm3053, %v3050, %v3010
  %v3062 = vsel %vm3053, %v3051, %v3012
  %v3063 = vsel %vm3053, %v3052, %v3014
  %v3064 = vsel %vm3032, %v2900, %v3027
  %v3065 = vsel %vm3032, %v2901, %v3029
  %v3066 = vld [vmem:[%s3] sm:$0xff]
  %v3067 = vld [vmem:[%s3 + $0x8] sm:$0xff]
  %v3068 = vld [vmem:[%s3 + $0x10] sm:$0xff]
  %v3069 = vld [vmem:[%s3 + $0x18] sm:$0xff]
  %v3070 = vld [vmem:[%s3 + $0x20] sm:$0xff]
  %v3071 = vld [vmem:[%s3 + $0x28] sm:$0xff]
  %v3072 = vld [vmem:[%s3 + $0x30] sm:$0xff]
  %v3073 = vld [vmem:[%s3 + $0x38] sm:$0xff]
  %v3074 = vld [vmem:[%s3 + $0x40] sm:$0xff]
  %v3075 = vld [vmem:[%s3 + $0x48] sm:$0xff]
  %v3076 = vld [vmem:[%s3 + $0x50] sm:$0xff]
  %v3077 = vld [vmem:[%s3 + $0x58] sm:$0xff]
  %v3078 = vld [vmem:[%s3 + $0x60] sm:$0xff]
  %v3079 = vld [vmem:[%s3 + $0x68] sm:$0xff]
  %v3080 = vld [vmem:[%s3 + $0x70] sm:$0xff]
  %v3081 = vld [vmem:[%s3 + $0x78] sm:$0xff]
  %v3082 = vld [vmem:[%s3 + $0x80] sm:$0xff]
  %v3083 = vld [vmem:[%s3 + $0x88] sm:$0xff]
  %v3084 = vld [vmem:[%s3 + $0x90] sm:$0xff]
  %v3085 = vld [vmem:[%s3 + $0x98] sm:$0xff]
  %v3086 = vld [vmem:[%s3 + $0xa0] sm:$0xff]
  %v3087 = vld [vmem:[%s3 + $0xa8] sm:$0xff]
  %v3088 = vld [vmem:[%s3 + $0xb0] sm:$0xff]
  %v3089 = vld [vmem:[%s3 + $0xb8] sm:$0xff]
  %v3090 = vld [vmem:[%s7] sm:$0x1]
  %v3092 = vlaneseq
  %v3093 = vshrl.u32 %v3092, 7
  %v3094 = vsub.s32 0, %v3093
  %v3095 = vrot.slane %v3090, %v3094
  %v3116 = vcombine.low %v3054, %v3035
  %v3118 = vunpack.c.l.s4 1983009808
  %v3119 = vunpack.c.0.s8 %v3118
  %v3120 = vlaneseq
  %v3121 = vshrl.u32 %v3120, 7
  %v3122 = vsub.s32 %v3119, %v3121
  %v3123 = vrot.slane %v3116, %v3122
  %v3124 = vcombine.low %v3055, %v3036
  %v3126 = vunpack.c.l.s4 1983009808
  %v3127 = vunpack.c.0.s8 %v3126
  %v3128 = vlaneseq
  %v3129 = vshrl.u32 %v3128, 7
  %v3130 = vsub.s32 %v3127, %v3129
  %v3131 = vrot.slane %v3124, %v3130
  %v3132 = vcombine.low %v3056, %v3037
  %v3134 = vunpack.c.l.s4 1983009808
  %v3135 = vunpack.c.0.s8 %v3134
  %v3136 = vlaneseq
  %v3137 = vshrl.u32 %v3136, 7
  %v3138 = vsub.s32 %v3135, %v3137
  %v3139 = vrot.slane %v3132, %v3138
  %v3140 = vcombine.low %v3057, %v3038
  %v3142 = vunpack.c.l.s4 1983009808
  %v3143 = vunpack.c.0.s8 %v3142
  %v3144 = vlaneseq
  %v3145 = vshrl.u32 %v3144, 7
  %v3146 = vsub.s32 %v3143, %v3145
  %v3147 = vrot.slane %v3140, %v3146
  %v3148 = vcombine.low %v3058, %v3039
  %v3150 = vunpack.c.l.s4 1983009808
  %v3151 = vunpack.c.0.s8 %v3150
  %v3152 = vlaneseq
  %v3153 = vshrl.u32 %v3152, 7
  %v3154 = vsub.s32 %v3151, %v3153
  %v3155 = vrot.slane %v3148, %v3154
  %v3156 = vcombine.low %v3059, %v3040
  %v3158 = vunpack.c.l.s4 1983009808
  %v3159 = vunpack.c.0.s8 %v3158
  %v3160 = vlaneseq
  %v3161 = vshrl.u32 %v3160, 7
  %v3162 = vsub.s32 %v3159, %v3161
  %v3163 = vrot.slane %v3156, %v3162
  %v3164 = vcombine.low %v3060, %v3041
  %v3166 = vunpack.c.l.s4 1983009808
  %v3167 = vunpack.c.0.s8 %v3166
  %v3168 = vlaneseq
  %v3169 = vshrl.u32 %v3168, 7
  %v3170 = vsub.s32 %v3167, %v3169
  %v3171 = vrot.slane %v3164, %v3170
  %v3172 = vcombine.low %v3061, %v3042
  %v3174 = vunpack.c.l.s4 1983009808
  %v3175 = vunpack.c.0.s8 %v3174
  %v3176 = vlaneseq
  %v3177 = vshrl.u32 %v3176, 7
  %v3178 = vsub.s32 %v3175, %v3177
  %v3179 = vrot.slane %v3172, %v3178
  %v3180 = vcombine.low %v3062, %v3064
  %v3182 = vunpack.c.l.s4 1983009808
  %v3183 = vunpack.c.0.s8 %v3182
  %v3184 = vlaneseq
  %v3185 = vshrl.u32 %v3184, 7
  %v3186 = vsub.s32 %v3183, %v3185
  %v3187 = vrot.slane %v3180, %v3186
  %v3188 = vcombine.low %v3063, %v3065
  %v3190 = vunpack.c.l.s4 1983009808
  %v3191 = vunpack.c.0.s8 %v3190
  %v3192 = vlaneseq
  %v3193 = vshrl.u32 %v3192, 7
  %v3194 = vsub.s32 %v3191, %v3193
  %v3195 = vrot.slane %v3188, %v3194
  %v3196 = vcombine.low %v3123, %v3131
  %v3197 = vcombine.low %v3139, %v3147
  %v3199 = vunpack.c.l.s4 1983009808
  %v3200 = vunpack.c.0.s8 %v3199
  %v3201 = vlaneseq
  %v3202 = vshrl.u32 %v3201, 7
  %v3203 = vsub.s32 %v3200, %v3202
  %v3204 = vrot.slane %v3196, %v3203
  %v3206 = vunpack.c.l.s4 1983009808
  %v3207 = vunpack.c.0.s8 %v3206
  %v3208 = vlaneseq
  %v3209 = vshrl.u32 %v3208, 7
  %v3210 = vsub.s32 %v3207, %v3209
  %v3211 = vrot.slane %v3197, %v3210
  %v3212 = vcombine.low %v3204, %v3211
  %v3213 = vcombine.high %v3204, %v3211
  %v3214 = vcombine.low %v3155, %v3163
  %v3215 = vcombine.low %v3171, %v3179
  %v3217 = vunpack.c.l.s4 1983009808
  %v3218 = vunpack.c.0.s8 %v3217
  %v3219 = vlaneseq
  %v3220 = vshrl.u32 %v3219, 7
  %v3221 = vsub.s32 %v3218, %v3220
  %v3222 = vrot.slane %v3214, %v3221
  %v3224 = vunpack.c.l.s4 1983009808
  %v3225 = vunpack.c.0.s8 %v3224
  %v3226 = vlaneseq
  %v3227 = vshrl.u32 %v3226, 7
  %v3228 = vsub.s32 %v3225, %v3227
  %v3229 = vrot.slane %v3215, %v3228
  %v3230 = vcombine.low %v3222, %v3229
  %v3231 = vcombine.high %v3222, %v3229
  %v3232 = vcombine.low %v3187, %v3195
  %v3234 = vunpack.c.l.s4 1983009808
  %v3235 = vunpack.c.0.s8 %v3234
  %v3236 = vlaneseq
  %v3237 = vshrl.u32 %v3236, 7
  %v3238 = vsub.s32 %v3235, %v3237
  %v3239 = vrot.slane %v3232, %v3238
  %v3240 = vcombine.high %v3239, %v3239
  %v3244 = vcombine.low %v3095, %v3095
  %v3246 = vunpack.c.l.s4 1983009808
  %v3247 = vunpack.c.0.s8 %v3246
  %v3248 = vlaneseq
  %v3249 = vshrl.u32 %v3248, 7
  %v3250 = vsub.s32 %v3247, %v3249
  %v3251 = vrot.slane %v3244, %v3250
  %v3252 = vcombine.low %v3251, %v3251
  %v3255 = vsel %vm289, %v3213, 0
  %v3257 = vsel %vm289, %v3231, 0
  %v3259 = vsel %vm289, %v3240, 0
  %3261 = vmatprep.subr.mxu0 0.0
  %3262 = vmatpush1.msra.mxu0 %v3066
  %3263 = vmatprep.subr.mxu0 0.0
  %3264 = vmatpush1.msra.mxu0 %v3067
  %3265 = vmatprep.subr.mxu0 0.0
  %3266 = vmatpush1.msra.mxu0 %v3068
  %3267 = vmatprep.subr.mxu0 0.0
  %3268 = vmatpush1.msra.mxu0 %v3069
  %3269 = vmatprep.subr.mxu0 0.0
  %3270 = vmatpush1.msra.mxu0 %v3070
  %3271 = vmatprep.subr.mxu0 0.0
  %3272 = vmatpush1.msra.mxu0 %v3071
  %3273 = vmatprep.subr.mxu0 0.0
  %3274 = vmatpush1.msra.mxu0 %v3072
  %3275 = vmatprep.subr.mxu0 0.0
  %3276 = vmatpush1.msra.mxu0 %v3073
  %3277 = vmatprep.subr.mxu0 0.0
  %3278 = vmatpush1.msra.mxu0 %v3074
  %3279 = vmatprep.subr.mxu0 0.0
  %3280 = vmatpush1.msra.mxu0 %v3075
  %3281 = vmatprep.subr.mxu0 0.0
  %3282 = vmatpush1.msra.mxu0 %v3076
  %3283 = vmatprep.subr.mxu0 0.0
  %3284 = vmatpush1.msra.mxu0 %v3077
  %3285 = vmatprep.subr.mxu0 0.0
  %3286 = vmatpush1.msra.mxu0 %v3078
  %3287 = vmatprep.subr.mxu0 0.0
  %3288 = vmatpush1.msra.mxu0 %v3079
  %3289 = vmatprep.subr.mxu0 0.0
  %3290 = vmatpush1.msra.mxu0 %v3080
  %3291 = vmatprep.subr.mxu0 0.0
  %3292 = vmatpush1.msra.mxu0 %v3081
  %3293 = vmatprep.subr.mxu0 0.0
  %3294 = vmatpush1.msra.mxu0 %v3082
  %3295 = vmatprep.subr.mxu0 0.0
  %3296 = vmatpush1.msra.mxu0 %v3083
  %3297 = vmatprep.subr.mxu0 0.0
  %3298 = vmatpush1.msra.mxu0 %v3084
  %3299 = vmatprep.subr.mxu0 0.0
  %3300 = vmatpush1.msra.mxu0 %v3085
  %3301 = vmatprep.subr.mxu0 0.0
  %3302 = vmatpush1.msra.mxu0 %v3086
  %3303 = vmatprep.subr.mxu0 0.0
  %3304 = vmatpush1.msra.mxu0 %v3087
  %3305 = vmatprep.subr.mxu0 0.0
  %3306 = vmatpush1.msra.mxu0 %v3088
  %3307 = vmatprep.subr.mxu0 0.0
  %3308 = vmatpush1.msra.mxu0 %v3089
  %3309 = vmatprep.subr.mxu0 0.0
  %3310 = vmatpush1.msra.mxu0 0.0
  %3311 = vmatprep.subr.mxu0 0.0
  %3312 = vmatpush1.msra.mxu0 0.0
  %3313 = vmatprep.subr.mxu0 0.0
  %3314 = vmatpush1.msra.mxu0 0.0
  %3315 = vmatprep.subr.mxu0 0.0
  %3316 = vmatpush1.msra.mxu0 0.0
  %3317 = vmatprep.subr.mxu0 0.0
  %3318 = vmatpush1.msra.mxu0 0.0
  %3319 = vmatprep.subr.mxu0 0.0
  %3320 = vmatpush1.msra.mxu0 0.0
  %3321 = vmatprep.subr.mxu0 0.0
  %3322 = vmatpush1.msra.mxu0 0.0
  %3323 = vmatprep.subr.mxu0 0.0
  %3324 = vmatpush1.msra.mxu0 0.0
  %3325 = vmatprep.mubr.f32.mxu0 %v3255
  %3326 = vmatmul.mubr.f32.gmra.mrb[0].mxu0 %v3212
  %v3327 = vpop.f32.mrb[0].mxu0
  %v3328 = vadd.f32 %v3252, %v3327
  %v3329 = vpop.f32.mrb[0].mxu0
  %3330 = vmatprep.mubr.f32.mxu0 %v3257
  %3331 = vmatmul.mubr.f32.gmra.mrb[0].mxu0 %v3230
  %v3332 = vpop.f32.mrb[0].mxu0
  %v3333 = vadd.f32 %v3252, %v3332
  %v3334 = vpop.f32.mrb[0].mxu0
  %3335 = vmatprep.mubr.f32.mxu0 %v3259
  %3336 = vmatmul.mubr.f32.gmra.mrb[0].mxu0 %v3239
  %v3337 = vpop.f32.mrb[0].mxu0
  %v3338 = vadd.f32 %v3251, %v3337
  %v3339 = vpop.f32.mrb[0].mxu0
  %3340 = vdwg.mxu0
  %v3344 = vcombine.high %v3328, %v3328
  %v3346 = vunpack.c.l.s4 1983009808
  %v3347 = vunpack.c.0.s8 %v3346
  %v3348 = vlaneseq
  %v3349 = vshrl.u32 %v3348, 7
  %v3350 = vsub.s32 %v3347, %v3349
  %v3351 = vrot.slane %v3328, %v3350
  %v3353 = vunpack.c.l.s4 1983009808
  %v3354 = vunpack.c.0.s8 %v3353
  %v3355 = vlaneseq
  %v3356 = vshrl.u32 %v3355, 7
  %v3357 = vsub.s32 %v3354, %v3356
  %v3358 = vrot.slane %v3344, %v3357
  %v3359 = vcombine.high %v3351, %v3351
  %v3360 = vcombine.high %v3358, %v3358
  %v3361 = vcombine.high %v3333, %v3333
  %v3363 = vunpack.c.l.s4 1983009808
  %v3364 = vunpack.c.0.s8 %v3363
  %v3365 = vlaneseq
  %v3366 = vshrl.u32 %v3365, 7
  %v3367 = vsub.s32 %v3364, %v3366
  %v3368 = vrot.slane %v3333, %v3367
  %v3370 = vunpack.c.l.s4 1983009808
  %v3371 = vunpack.c.0.s8 %v3370
  %v3372 = vlaneseq
  %v3373 = vshrl.u32 %v3372, 7
  %v3374 = vsub.s32 %v3371, %v3373
  %v3375 = vrot.slane %v3361, %v3374
  %v3376 = vcombine.high %v3368, %v3368
  %v3377 = vcombine.high %v3375, %v3375
  %v3379 = vunpack.c.l.s4 1983009808
  %v3380 = vunpack.c.0.s8 %v3379
  %v3381 = vlaneseq
  %v3382 = vshrl.u32 %v3381, 7
  %v3383 = vsub.s32 %v3380, %v3382
  %v3384 = vrot.slane %v3338, %v3383
  %v3394 = vmax.f32 %v3351, 0.0
  %v3395 = vmax.f32 %v3359, 0.0
  %v3396 = vmax.f32 %v3358, 0.0
  %v3397 = vmax.f32 %v3360, 0.0
  %v3398 = vmax.f32 %v3368, 0.0
  %v3399 = vmax.f32 %v3376, 0.0
  %v3400 = vmax.f32 %v3375, 0.0
  %v3401 = vmax.f32 %v3377, 0.0
  %v3402 = vmax.f32 %v3384, 0.0
  %vm3403 = vcmask 517120
  %v3404 = vsel %vm3403, %v3394, -inf
  %v3405 = vsel %vm3403, %v3395, -inf
  %v3406 = vsel %vm3403, %v3396, -inf
  %v3407 = vmax.f32 %v3404, %v3406
  %v3408 = vmax.f32 %v3407, %v3405
  %v3409 = vsel %vm3403, %v3397, -inf
  %v3410 = vsel %vm3403, %v3398, -inf
  %v3411 = vsel %vm3403, %v3399, -inf
  %v3412 = vmax.f32 %v3409, %v3411
  %v3413 = vmax.f32 %v3412, %v3410
  %v3414 = vsel %vm3403, %v3400, -inf
  %v3415 = vsel %vm3403, %v3401, -inf
  %v3416 = vsel %vm3403, %v3402, -inf
  %v3417 = vmax.f32 %v3414, %v3416
  %v3418 = vmax.f32 %v3417, %v3415
  %v3419 = vld [vmem:[%s4] sm:$0xff]
  %v3420 = vld [vmem:[%s4 + $0x8] sm:$0xff]
  %v3421 = vld [vmem:[%s4 + $0x10] sm:$0xff]
  %v3422 = vld [vmem:[%s4 + $0x18] sm:$0xff]
  %v3423 = vld [vmem:[%s4 + $0x20] sm:$0xff]
  %v3424 = vld [vmem:[%s4 + $0x28] sm:$0xff]
  %v3425 = vld [vmem:[%s4 + $0x30] sm:$0xff]
  %v3426 = vld [vmem:[%s4 + $0x38] sm:$0xff]
  %v3427 = vld [vmem:[%s4 + $0x40] sm:$0xff]
  %v3428 = vld [vmem:[%s4 + $0x48] sm:$0xff]
  %v3429 = vld [vmem:[%s4 + $0x50] sm:$0xff]
  %v3430 = vld [vmem:[%s4 + $0x58] sm:$0xff]
  %v3431 = vld [vmem:[%s4 + $0x60] sm:$0xff]
  %v3432 = vld [vmem:[%s4 + $0x68] sm:$0xff]
  %v3433 = vld [vmem:[%s4 + $0x70] sm:$0xff]
  %v3434 = vld [vmem:[%s4 + $0x78] sm:$0xff]
  %v3435 = vld [vmem:[%s4 + $0x80] sm:$0xff]
  %v3436 = vld [vmem:[%s4 + $0x88] sm:$0xff]
  %v3437 = vld [vmem:[%s4 + $0x90] sm:$0xff]
  %v3438 = vld [vmem:[%s4 + $0x98] sm:$0xff]
  %v3439 = vld [vmem:[%s4 + $0xa0] sm:$0xff]
  %v3440 = vld [vmem:[%s4 + $0xa8] sm:$0xff]
  %v3441 = vld [vmem:[%s4 + $0xb0] sm:$0xff]
  %v3442 = vld [vmem:[%s4 + $0xb8] sm:$0xff]
  %v3443 = vld [vmem:[%s4 + $0xc0] sm:$0xff]
  %v3444 = vld [vmem:[%s4 + $0xc8] sm:$0xff]
  %v3445 = vld [vmem:[%s4 + $0xd0] sm:$0xff]
  %v3446 = vld [vmem:[%s4 + $0xd8] sm:$0xff]
  %v3447 = vld [vmem:[%s4 + $0xe0] sm:$0xff]
  %v3448 = vld [vmem:[%s4 + $0xe8] sm:$0xff]
  %v3449 = vld [vmem:[%s4 + $0xf0] sm:$0xff]
  %v3450 = vld [vmem:[%s4 + $0xf8] sm:$0xff]
  %v3451 = vld [vmem:[%s4 + $0x100] sm:$0xff]
  %v3452 = vld [vmem:[%s4 + $0x108] sm:$0xff]
  %v3453 = vld [vmem:[%s4 + $0x110] sm:$0xff]
  %v3454 = vld [vmem:[%s4 + $0x118] sm:$0xff]
  %v3455 = vld [vmem:[%s4 + $0x120] sm:$0xff]
  %v3456 = vld [vmem:[%s4 + $0x128] sm:$0xff]
  %v3457 = vld [vmem:[%s4 + $0x130] sm:$0xff]
  %v3458 = vld [vmem:[%s4 + $0x138] sm:$0xff]
  %v3459 = vld [vmem:[%s4 + $0x140] sm:$0xff]
  %v3460 = vld [vmem:[%s4 + $0x148] sm:$0xff]
  %v3461 = vld [vmem:[%s4 + $0x150] sm:$0xff]
  %v3462 = vld [vmem:[%s4 + $0x158] sm:$0xff]
  %v3463 = vld [vmem:[%s4 + $0x160] sm:$0xff]
  %v3464 = vld [vmem:[%s4 + $0x168] sm:$0xff]
  %v3465 = vld [vmem:[%s4 + $0x170] sm:$0xff]
  %v3466 = vld [vmem:[%s4 + $0x178] sm:$0xff]
  %v3467 = vld [vmem:[%s4 + $0x180] sm:$0xff]
  %v3468 = vld [vmem:[%s4 + $0x188] sm:$0xff]
  %v3469 = vld [vmem:[%s4 + $0x190] sm:$0xff]
  %v3470 = vld [vmem:[%s4 + $0x198] sm:$0xff]
  %v3471 = vld [vmem:[%s4 + $0x1a0] sm:$0xff]
  %v3472 = vld [vmem:[%s4 + $0x1a8] sm:$0xff]
  %v3473 = vld [vmem:[%s4 + $0x1b0] sm:$0xff]
  %v3474 = vld [vmem:[%s4 + $0x1b8] sm:$0xff]
  %v3475 = vld [vmem:[%s4 + $0x1c0] sm:$0xff]
  %v3476 = vld [vmem:[%s4 + $0x1c8] sm:$0xff]
  %v3477 = vld [vmem:[%s4 + $0x1d0] sm:$0xff]
  %v3478 = vld [vmem:[%s4 + $0x1d8] sm:$0xff]
  %v3479 = vld [vmem:[%s4 + $0x1e0] sm:$0xff]
  %v3480 = vld [vmem:[%s4 + $0x1e8] sm:$0xff]
  %v3481 = vld [vmem:[%s4 + $0x1f0] sm:$0xff]
  %v3482 = vld [vmem:[%s4 + $0x1f8] sm:$0xff]
  %v3483 = vld [vmem:[%s4 + $0x200] sm:$0xff]
  %v3484 = vld [vmem:[%s4 + $0x208] sm:$0xff]
  %v3485 = vld [vmem:[%s4 + $0x210] sm:$0xff]
  %v3486 = vld [vmem:[%s4 + $0x218] sm:$0xff]
  %v3487 = vld [vmem:[%s4 + $0x220] sm:$0xff]
  %v3488 = vld [vmem:[%s4 + $0x228] sm:$0xff]
  %v3489 = vld [vmem:[%s4 + $0x230] sm:$0xff]
  %v3490 = vld [vmem:[%s4 + $0x238] sm:$0xff]
  %v3491 = vld [vmem:[%s4 + $0x240] sm:$0xff]
  %v3492 = vld [vmem:[%s4 + $0x248] sm:$0xff]
  %v3493 = vld [vmem:[%s4 + $0x250] sm:$0xff]
  %v3494 = vld [vmem:[%s4 + $0x258] sm:$0xff]
  %v3495 = vld [vmem:[%s4 + $0x260] sm:$0xff]
  %v3496 = vld [vmem:[%s4 + $0x268] sm:$0xff]
  %v3497 = vld [vmem:[%s4 + $0x270] sm:$0xff]
  %v3498 = vld [vmem:[%s4 + $0x278] sm:$0xff]
  %v3499 = vld [vmem:[%s4 + $0x280] sm:$0xff]
  %v3500 = vld [vmem:[%s4 + $0x288] sm:$0xff]
  %v3501 = vld [vmem:[%s4 + $0x290] sm:$0xff]
  %v3502 = vld [vmem:[%s4 + $0x298] sm:$0xff]
  %v3503 = vld [vmem:[%s4 + $0x2a0] sm:$0xff]
  %v3504 = vld [vmem:[%s4 + $0x2a8] sm:$0xff]
  %v3505 = vld [vmem:[%s4 + $0x2b0] sm:$0xff]
  %v3506 = vld [vmem:[%s4 + $0x2b8] sm:$0xff]
  %v3507 = vld [vmem:[%s4 + $0x2c0] sm:$0xff]
  %v3508 = vld [vmem:[%s4 + $0x2c8] sm:$0xff]
  %v3509 = vld [vmem:[%s4 + $0x2d0] sm:$0xff]
  %v3510 = vld [vmem:[%s4 + $0x2d8] sm:$0xff]
  %v3511 = vld [vmem:[%s4 + $0x2e0] sm:$0xff]
  %v3512 = vld [vmem:[%s4 + $0x2e8] sm:$0xff]
  %v3513 = vld [vmem:[%s4 + $0x2f0] sm:$0xff]
  %v3514 = vld [vmem:[%s4 + $0x2f8] sm:$0xff]
  %v3515 = vld [vmem:[%s7 + $0x4] sm:$0xff]
  %v3516 = vld [vmem:[%s7 + $0xc] sm:$0xf]
  %v3519 = vlaneseq
  %v3520 = vshrl.u32 %v3519, 7
  %v3521 = vsub.s32 0, %v3520
  %v3522 = vrot.slane %v3515, %v3521
  %v3523 = vlaneseq
  %v3524 = vshrl.u32 %v3523, 7
  %v3525 = vsub.s32 1, %v3524
  %v3526 = vrot.slane %v3515, %v3525
  %v3527 = vlaneseq
  %v3528 = vshrl.u32 %v3527, 7
  %v3529 = vsub.s32 2, %v3528
  %v3530 = vrot.slane %v3515, %v3529
  %v3531 = vlaneseq
  %v3532 = vshrl.u32 %v3531, 7
  %v3533 = vsub.s32 3, %v3532
  %v3534 = vrot.slane %v3515, %v3533
  %v3535 = vlaneseq
  %v3536 = vshrl.u32 %v3535, 7
  %v3537 = vsub.s32 4, %v3536
  %v3538 = vrot.slane %v3515, %v3537
  %v3539 = vlaneseq
  %v3540 = vshrl.u32 %v3539, 7
  %v3541 = vsub.s32 5, %v3540
  %v3542 = vrot.slane %v3515, %v3541
  %v3543 = vlaneseq
  %v3544 = vshrl.u32 %v3543, 7
  %v3545 = vsub.s32 6, %v3544
  %v3546 = vrot.slane %v3515, %v3545
  %v3547 = vlaneseq
  %v3548 = vshrl.u32 %v3547, 7
  %v3549 = vsub.s32 7, %v3548
  %v3550 = vrot.slane %v3515, %v3549
  %v3551 = vlaneseq
  %v3552 = vshrl.u32 %v3551, 7
  %v3553 = vsub.s32 0, %v3552
  %v3554 = vrot.slane %v3516, %v3553
  %v3555 = vlaneseq
  %v3556 = vshrl.u32 %v3555, 7
  %v3557 = vsub.s32 1, %v3556
  %v3558 = vrot.slane %v3516, %v3557
  %v3559 = vlaneseq
  %v3560 = vshrl.u32 %v3559, 7
  %v3561 = vsub.s32 2, %v3560
  %v3562 = vrot.slane %v3516, %v3561
  %v3563 = vlaneseq
  %v3564 = vshrl.u32 %v3563, 7
  %v3565 = vsub.s32 3, %v3564
  %v3566 = vrot.slane %v3516, %v3565
  %v3567 = vcombine.low %v3522, %v3526
  %v3568 = vcombine.low %v3530, %v3534
  %v3570 = vunpack.c.l.s4 1983009808
  %v3571 = vunpack.c.0.s8 %v3570
  %v3572 = vlaneseq
  %v3573 = vshrl.u32 %v3572, 7
  %v3574 = vsub.s32 %v3571, %v3573
  %v3575 = vrot.slane %v3567, %v3574
  %v3577 = vunpack.c.l.s4 1983009808
  %v3578 = vunpack.c.0.s8 %v3577
  %v3579 = vlaneseq
  %v3580 = vshrl.u32 %v3579, 7
  %v3581 = vsub.s32 %v3578, %v3580
  %v3582 = vrot.slane %v3568, %v3581
  %v3583 = vcombine.low %v3575, %v3582
  %v3584 = vcombine.low %v3538, %v3542
  %v3585 = vcombine.low %v3546, %v3550
  %v3587 = vunpack.c.l.s4 1983009808
  %v3588 = vunpack.c.0.s8 %v3587
  %v3589 = vlaneseq
  %v3590 = vshrl.u32 %v3589, 7
  %v3591 = vsub.s32 %v3588, %v3590
  %v3592 = vrot.slane %v3584, %v3591
  %v3594 = vunpack.c.l.s4 1983009808
  %v3595 = vunpack.c.0.s8 %v3594
  %v3596 = vlaneseq
  %v3597 = vshrl.u32 %v3596, 7
  %v3598 = vsub.s32 %v3595, %v3597
  %v3599 = vrot.slane %v3585, %v3598
  %v3600 = vcombine.low %v3592, %v3599
  %v3601 = vcombine.low %v3554, %v3558
  %v3602 = vcombine.low %v3562, %v3566
  %v3604 = vunpack.c.l.s4 1983009808
  %v3605 = vunpack.c.0.s8 %v3604
  %v3606 = vlaneseq
  %v3607 = vshrl.u32 %v3606, 7
  %v3608 = vsub.s32 %v3605, %v3607
  %v3609 = vrot.slane %v3601, %v3608
  %v3611 = vunpack.c.l.s4 1983009808
  %v3612 = vunpack.c.0.s8 %v3611
  %v3613 = vlaneseq
  %v3614 = vshrl.u32 %v3613, 7
  %v3615 = vsub.s32 %v3612, %v3614
  %v3616 = vrot.slane %v3602, %v3615
  %v3617 = vcombine.low %v3609, %v3616
  %v3621 = vcombine.low %v3408, %v3413
  %v3623 = vunpack.c.l.s4 1983009808
  %v3624 = vunpack.c.0.s8 %v3623
  %v3625 = vlaneseq
  %v3626 = vshrl.u32 %v3625, 7
  %v3627 = vsub.s32 %v3624, %v3626
  %v3628 = vrot.slane %v3621, %v3627
  %v3630 = vunpack.c.l.s4 1983009808
  %v3631 = vunpack.c.0.s8 %v3630
  %v3632 = vlaneseq
  %v3633 = vshrl.u32 %v3632, 7
  %v3634 = vsub.s32 %v3631, %v3633
  %v3635 = vrot.slane %v3418, %v3634
  %v3636 = vcombine.low %v3628, %v3635
  %v3637 = vcombine.low %v3583, %v3583
  %v3638 = vcombine.high %v3583, %v3583
  %v3640 = vunpack.c.l.s4 1983009808
  %v3641 = vunpack.c.0.s8 %v3640
  %v3642 = vlaneseq
  %v3643 = vshrl.u32 %v3642, 7
  %v3644 = vsub.s32 %v3641, %v3643
  %v3645 = vrot.slane %v3637, %v3644
  %v3647 = vunpack.c.l.s4 1983009808
  %v3648 = vunpack.c.0.s8 %v3647
  %v3649 = vlaneseq
  %v3650 = vshrl.u32 %v3649, 7
  %v3651 = vsub.s32 %v3648, %v3650
  %v3652 = vrot.slane %v3638, %v3651
  %v3654 = vunpack.c.l.s4 1983009808
  %v3655 = vunpack.c.0.s8 %v3654
  %v3656 = vlaneseq
  %v3657 = vshrl.u32 %v3656, 7
  %v3658 = vsub.s32 %v3655, %v3657
  %v3659 = vrot.slane %v3583, %v3658
  %v3660 = vcombine.low %v3645, %v3659
  %v3661 = vcombine.high %v3645, %v3659
  %v3662 = vcombine.low %v3652, %v3652
  %v3663 = vcombine.high %v3652, %v3652
  %v3664 = vcombine.low %v3600, %v3600
  %v3665 = vcombine.high %v3600, %v3600
  %v3667 = vunpack.c.l.s4 1983009808
  %v3668 = vunpack.c.0.s8 %v3667
  %v3669 = vlaneseq
  %v3670 = vshrl.u32 %v3669, 7
  %v3671 = vsub.s32 %v3668, %v3670
  %v3672 = vrot.slane %v3664, %v3671
  %v3674 = vunpack.c.l.s4 1983009808
  %v3675 = vunpack.c.0.s8 %v3674
  %v3676 = vlaneseq
  %v3677 = vshrl.u32 %v3676, 7
  %v3678 = vsub.s32 %v3675, %v3677
  %v3679 = vrot.slane %v3665, %v3678
  %v3681 = vunpack.c.l.s4 1983009808
  %v3682 = vunpack.c.0.s8 %v3681
  %v3683 = vlaneseq
  %v3684 = vshrl.u32 %v3683, 7
  %v3685 = vsub.s32 %v3682, %v3684
  %v3686 = vrot.slane %v3600, %v3685
  %v3687 = vcombine.low %v3672, %v3686
  %v3688 = vcombine.high %v3672, %v3686
  %v3689 = vcombine.low %v3679, %v3679
  %v3690 = vcombine.high %v3679, %v3679
  %v3691 = vcombine.low %v3617, %v3617
  %v3692 = vcombine.high %v3617, %v3617
  %v3694 = vunpack.c.l.s4 1983009808
  %v3695 = vunpack.c.0.s8 %v3694
  %v3696 = vlaneseq
  %v3697 = vshrl.u32 %v3696, 7
  %v3698 = vsub.s32 %v3695, %v3697
  %v3699 = vrot.slane %v3691, %v3698
  %v3701 = vunpack.c.l.s4 1983009808
  %v3702 = vunpack.c.0.s8 %v3701
  %v3703 = vlaneseq
  %v3704 = vshrl.u32 %v3703, 7
  %v3705 = vsub.s32 %v3702, %v3704
  %v3706 = vrot.slane %v3692, %v3705
  %v3708 = vunpack.c.l.s4 1983009808
  %v3709 = vunpack.c.0.s8 %v3708
  %v3710 = vlaneseq
  %v3711 = vshrl.u32 %v3710, 7
  %v3712 = vsub.s32 %v3709, %v3711
  %v3713 = vrot.slane %v3617, %v3712
  %v3714 = vcombine.low %v3699, %v3713
  %v3715 = vcombine.high %v3699, %v3713
  %v3716 = vcombine.low %v3706, %v3706
  %v3717 = vcombine.high %v3706, %v3706
  %v3730 = vsel %vm289, %v3636, 0
  %3732 = vmatprep.subr.mxu0 %v3420
  %3733 = vmatpush1.msra.mxu0 %v3419
  %3734 = vmatprep.subr.mxu0 %v3432
  %3735 = vmatpush1.msra.mxu0 %v3431
  %3736 = vmatprep.subr.mxu0 %v3444
  %3737 = vmatpush1.msra.mxu0 %v3443
  %3738 = vmatprep.subr.mxu0 %v3456
  %3739 = vmatpush1.msra.mxu0 %v3455
  %3740 = vmatprep.subr.mxu0 %v3468
  %3741 = vmatpush1.msra.mxu0 %v3467
  %3742 = vmatprep.subr.mxu0 %v3480
  %3743 = vmatpush1.msra.mxu0 %v3479
  %3744 = vmatprep.subr.mxu0 %v3492
  %3745 = vmatpush1.msra.mxu0 %v3491
  %3746 = vmatprep.subr.mxu0 %v3504
  %3747 = vmatpush1.msra.mxu0 %v3503
  %3748 = vmatprep.subr.mxu0 0.0
  %3749 = vmatpush1.msra.mxu0 0.0
  %3750 = vmatprep.subr.mxu0 0.0
  %3751 = vmatpush1.msra.mxu0 0.0
  %3752 = vmatprep.subr.mxu0 0.0
  %3753 = vmatpush1.msra.mxu0 0.0
  %3754 = vmatprep.subr.mxu0 0.0
  %3755 = vmatpush1.msra.mxu0 0.0
  %3756 = vmatprep.subr.mxu0 0.0
  %3757 = vmatpush1.msra.mxu0 0.0
  %3758 = vmatprep.subr.mxu0 0.0
  %3759 = vmatpush1.msra.mxu0 0.0
  %3760 = vmatprep.subr.mxu0 0.0
  %3761 = vmatpush1.msra.mxu0 0.0
  %3762 = vmatprep.subr.mxu0 0.0
  %3763 = vmatpush1.msra.mxu0 0.0
  %3764 = vmatprep.subr.mxu0 0.0
  %3765 = vmatpush1.msra.mxu0 0.0
  %3766 = vmatprep.subr.mxu0 0.0
  %3767 = vmatpush1.msra.mxu0 0.0
  %3768 = vmatprep.subr.mxu0 0.0
  %3769 = vmatpush1.msra.mxu0 0.0
  %3770 = vmatprep.subr.mxu0 0.0
  %3771 = vmatpush1.msra.mxu0 0.0
  %3772 = vmatprep.subr.mxu0 0.0
  %3773 = vmatpush1.msra.mxu0 0.0
  %3774 = vmatprep.subr.mxu0 0.0
  %3775 = vmatpush1.msra.mxu0 0.0
  %3776 = vmatprep.subr.mxu0 0.0
  %3777 = vmatpush1.msra.mxu0 0.0
  %3778 = vmatprep.subr.mxu0 0.0
  %3779 = vmatpush1.msra.mxu0 0.0
  %3780 = vmatprep.subr.mxu0 0.0
  %3781 = vmatpush1.msra.mxu0 0.0
  %3782 = vmatprep.subr.mxu0 0.0
  %3783 = vmatpush1.msra.mxu0 0.0
  %3784 = vmatprep.subr.mxu0 0.0
  %3785 = vmatpush1.msra.mxu0 0.0
  %3786 = vmatprep.subr.mxu0 0.0
  %3787 = vmatpush1.msra.mxu0 0.0
  %3788 = vmatprep.subr.mxu0 0.0
  %3789 = vmatpush1.msra.mxu0 0.0
  %3790 = vmatprep.subr.mxu0 0.0
  %3791 = vmatpush1.msra.mxu0 0.0
  %3792 = vmatprep.subr.mxu0 0.0
  %3793 = vmatpush1.msra.mxu0 0.0
  %3794 = vmatprep.subr.mxu0 0.0
  %3795 = vmatpush1.msra.mxu0 0.0
  %3796 = vmatprep.mubr.f32.mxu0 0.0
  %3797 = vmatmul.mubr.f32.gmra.mrb[0].mxu0 %v3730
  %v3798 = vpop.f32.mrb[0].mxu0
  %v3799 = vadd.f32 %v3660, %v3798
  %v3800 = vpop.f32.mrb[0].mxu0
  %v3801 = vadd.f32 %v3661, %v3800
  %3802 = vdwg.mxu0
  %3803 = vmatprep.subr.mxu0 %v3422
  %3804 = vmatpush1.msra.mxu0 %v3421
  %3805 = vmatprep.subr.mxu0 %v3434
  %3806 = vmatpush1.msra.mxu0 %v3433
  %3807 = vmatprep.subr.mxu0 %v3446
  %3808 = vmatpush1.msra.mxu0 %v3445
  %3809 = vmatprep.subr.mxu0 %v3458
  %3810 = vmatpush1.msra.mxu0 %v3457
  %3811 = vmatprep.subr.mxu0 %v3470
  %3812 = vmatpush1.msra.mxu0 %v3469
  %3813 = vmatprep.subr.mxu0 %v3482
  %3814 = vmatpush1.msra.mxu0 %v3481
  %3815 = vmatprep.subr.mxu0 %v3494
  %3816 = vmatpush1.msra.mxu0 %v3493
  %3817 = vmatprep.subr.mxu0 %v3506
  %3818 = vmatpush1.msra.mxu0 %v3505
  %3819 = vmatprep.subr.mxu0 0.0
  %3820 = vmatpush1.msra.mxu0 0.0
  %3821 = vmatprep.subr.mxu0 0.0
  %3822 = vmatpush1.msra.mxu0 0.0
  %3823 = vmatprep.subr.mxu0 0.0
  %3824 = vmatpush1.msra.mxu0 0.0
  %3825 = vmatprep.subr.mxu0 0.0
  %3826 = vmatpush1.msra.mxu0 0.0
  %3827 = vmatprep.subr.mxu0 0.0
  %3828 = vmatpush1.msra.mxu0 0.0
  %3829 = vmatprep.subr.mxu0 0.0
  %3830 = vmatpush1.msra.mxu0 0.0
  %3831 = vmatprep.subr.mxu0 0.0
  %3832 = vmatpush1.msra.mxu0 0.0
  %3833 = vmatprep.subr.mxu0 0.0
  %3834 = vmatpush1.msra.mxu0 0.0
  %3835 = vmatprep.subr.mxu0 0.0
  %3836 = vmatpush1.msra.mxu0 0.0
  %3837 = vmatprep.subr.mxu0 0.0
  %3838 = vmatpush1.msra.mxu0 0.0
  %3839 = vmatprep.subr.mxu0 0.0
  %3840 = vmatpush1.msra.mxu0 0.0
  %3841 = vmatprep.subr.mxu0 0.0
  %3842 = vmatpush1.msra.mxu0 0.0
  %3843 = vmatprep.subr.mxu0 0.0
  %3844 = vmatpush1.msra.mxu0 0.0
  %3845 = vmatprep.subr.mxu0 0.0
  %3846 = vmatpush1.msra.mxu0 0.0
  %3847 = vmatprep.subr.mxu0 0.0
  %3848 = vmatpush1.msra.mxu0 0.0
  %3849 = vmatprep.subr.mxu0 0.0
  %3850 = vmatpush1.msra.mxu0 0.0
  %3851 = vmatprep.subr.mxu0 0.0
  %3852 = vmatpush1.msra.mxu0 0.0
  %3853 = vmatprep.subr.mxu0 0.0
  %3854 = vmatpush1.msra.mxu0 0.0
  %3855 = vmatprep.subr.mxu0 0.0
  %3856 = vmatpush1.msra.mxu0 0.0
  %3857 = vmatprep.subr.mxu0 0.0
  %3858 = vmatpush1.msra.mxu0 0.0
  %3859 = vmatprep.subr.mxu0 0.0
  %3860 = vmatpush1.msra.mxu0 0.0
  %3861 = vmatprep.subr.mxu0 0.0
  %3862 = vmatpush1.msra.mxu0 0.0
  %3863 = vmatprep.subr.mxu0 0.0
  %3864 = vmatpush1.msra.mxu0 0.0
  %3865 = vmatprep.subr.mxu0 0.0
  %3866 = vmatpush1.msra.mxu0 0.0
  %3867 = vmatprep.mubr.f32.mxu0 0.0
  %3868 = vmatmul.mubr.f32.gmra.mrb[0].mxu0 %v3730
  %v3869 = vpop.f32.mrb[0].mxu0
  %v3870 = vadd.f32 %v3662, %v3869
  %v3871 = vpop.f32.mrb[0].mxu0
  %v3872 = vadd.f32 %v3663, %v3871
  %3873 = vdwg.mxu0
  %3874 = vmatprep.subr.mxu0 %v3424
  %3875 = vmatpush1.msra.mxu0 %v3423
  %3876 = vmatprep.subr.mxu0 %v3436
  %3877 = vmatpush1.msra.mxu0 %v3435
  %3878 = vmatprep.subr.mxu0 %v3448
  %3879 = vmatpush1.msra.mxu0 %v3447
  %3880 = vmatprep.subr.mxu0 %v3460
  %3881 = vmatpush1.msra.mxu0 %v3459
  %3882 = vmatprep.subr.mxu0 %v3472
  %3883 = vmatpush1.msra.mxu0 %v3471
  %3884 = vmatprep.subr.mxu0 %v3484
  %3885 = vmatpush1.msra.mxu0 %v3483
  %3886 = vmatprep.subr.mxu0 %v3496
  %3887 = vmatpush1.msra.mxu0 %v3495
  %3888 = vmatprep.subr.mxu0 %v3508
  %3889 = vmatpush1.msra.mxu0 %v3507
  %3890 = vmatprep.subr.mxu0 0.0
  %3891 = vmatpush1.msra.mxu0 0.0
  %3892 = vmatprep.subr.mxu0 0.0
  %3893 = vmatpush1.msra.mxu0 0.0
  %3894 = vmatprep.subr.mxu0 0.0
  %3895 = vmatpush1.msra.mxu0 0.0
  %3896 = vmatprep.subr.mxu0 0.0
  %3897 = vmatpush1.msra.mxu0 0.0
  %3898 = vmatprep.subr.mxu0 0.0
  %3899 = vmatpush1.msra.mxu0 0.0
  %3900 = vmatprep.subr.mxu0 0.0
  %3901 = vmatpush1.msra.mxu0 0.0
  %3902 = vmatprep.subr.mxu0 0.0
  %3903 = vmatpush1.msra.mxu0 0.0
  %3904 = vmatprep.subr.mxu0 0.0
  %3905 = vmatpush1.msra.mxu0 0.0
  %3906 = vmatprep.subr.mxu0 0.0
  %3907 = vmatpush1.msra.mxu0 0.0
  %3908 = vmatprep.subr.mxu0 0.0
  %3909 = vmatpush1.msra.mxu0 0.0
  %3910 = vmatprep.subr.mxu0 0.0
  %3911 = vmatpush1.msra.mxu0 0.0
  %3912 = vmatprep.subr.mxu0 0.0
  %3913 = vmatpush1.msra.mxu0 0.0
  %3914 = vmatprep.subr.mxu0 0.0
  %3915 = vmatpush1.msra.mxu0 0.0
  %3916 = vmatprep.subr.mxu0 0.0
  %3917 = vmatpush1.msra.mxu0 0.0
  %3918 = vmatprep.subr.mxu0 0.0
  %3919 = vmatpush1.msra.mxu0 0.0
  %3920 = vmatprep.subr.mxu0 0.0
  %3921 = vmatpush1.msra.mxu0 0.0
  %3922 = vmatprep.subr.mxu0 0.0
  %3923 = vmatpush1.msra.mxu0 0.0
  %3924 = vmatprep.subr.mxu0 0.0
  %3925 = vmatpush1.msra.mxu0 0.0
  %3926 = vmatprep.subr.mxu0 0.0
  %3927 = vmatpush1.msra.mxu0 0.0
  %3928 = vmatprep.subr.mxu0 0.0
  %3929 = vmatpush1.msra.mxu0 0.0
  %3930 = vmatprep.subr.mxu0 0.0
  %3931 = vmatpush1.msra.mxu0 0.0
  %3932 = vmatprep.subr.mxu0 0.0
  %3933 = vmatpush1.msra.mxu0 0.0
  %3934 = vmatprep.subr.mxu0 0.0
  %3935 = vmatpush1.msra.mxu0 0.0
  %3936 = vmatprep.subr.mxu0 0.0
  %3937 = vmatpush1.msra.mxu0 0.0
  %3938 = vmatprep.mubr.f32.mxu0 0.0
  %3939 = vmatmul.mubr.f32.gmra.mrb[0].mxu0 %v3730
  %v3940 = vpop.f32.mrb[0].mxu0
  %v3941 = vadd.f32 %v3687, %v3940
  %v3942 = vpop.f32.mrb[0].mxu0
  %v3943 = vadd.f32 %v3688, %v3942
  %3944 = vdwg.mxu0
  %3945 = vmatprep.subr.mxu0 %v3426
  %3946 = vmatpush1.msra.mxu0 %v3425
  %3947 = vmatprep.subr.mxu0 %v3438
  %3948 = vmatpush1.msra.mxu0 %v3437
  %3949 = vmatprep.subr.mxu0 %v3450
  %3950 = vmatpush1.msra.mxu0 %v3449
  %3951 = vmatprep.subr.mxu0 %v3462
  %3952 = vmatpush1.msra.mxu0 %v3461
  %3953 = vmatprep.subr.mxu0 %v3474
  %3954 = vmatpush1.msra.mxu0 %v3473
  %3955 = vmatprep.subr.mxu0 %v3486
  %3956 = vmatpush1.msra.mxu0 %v3485
  %3957 = vmatprep.subr.mxu0 %v3498
  %3958 = vmatpush1.msra.mxu0 %v3497
  %3959 = vmatprep.subr.mxu0 %v3510
  %3960 = vmatpush1.msra.mxu0 %v3509
  %3961 = vmatprep.subr.mxu0 0.0
  %3962 = vmatpush1.msra.mxu0 0.0
  %3963 = vmatprep.subr.mxu0 0.0
  %3964 = vmatpush1.msra.mxu0 0.0
  %3965 = vmatprep.subr.mxu0 0.0
  %3966 = vmatpush1.msra.mxu0 0.0
  %3967 = vmatprep.subr.mxu0 0.0
  %3968 = vmatpush1.msra.mxu0 0.0
  %3969 = vmatprep.subr.mxu0 0.0
  %3970 = vmatpush1.msra.mxu0 0.0
  %3971 = vmatprep.subr.mxu0 0.0
  %3972 = vmatpush1.msra.mxu0 0.0
  %3973 = vmatprep.subr.mxu0 0.0
  %3974 = vmatpush1.msra.mxu0 0.0
  %3975 = vmatprep.subr.mxu0 0.0
  %3976 = vmatpush1.msra.mxu0 0.0
  %3977 = vmatprep.subr.mxu0 0.0
  %3978 = vmatpush1.msra.mxu0 0.0
  %3979 = vmatprep.subr.mxu0 0.0
  %3980 = vmatpush1.msra.mxu0 0.0
  %3981 = vmatprep.subr.mxu0 0.0
  %3982 = vmatpush1.msra.mxu0 0.0
  %3983 = vmatprep.subr.mxu0 0.0
  %3984 = vmatpush1.msra.mxu0 0.0
  %3985 = vmatprep.subr.mxu0 0.0
  %3986 = vmatpush1.msra.mxu0 0.0
  %3987 = vmatprep.subr.mxu0 0.0
  %3988 = vmatpush1.msra.mxu0 0.0
  %3989 = vmatprep.subr.mxu0 0.0
  %3990 = vmatpush1.msra.mxu0 0.0
  %3991 = vmatprep.subr.mxu0 0.0
  %3992 = vmatpush1.msra.mxu0 0.0
  %3993 = vmatprep.subr.mxu0 0.0
  %3994 = vmatpush1.msra.mxu0 0.0
  %3995 = vmatprep.subr.mxu0 0.0
  %3996 = vmatpush1.msra.mxu0 0.0
  %3997 = vmatprep.subr.mxu0 0.0
  %3998 = vmatpush1.msra.mxu0 0.0
  %3999 = vmatprep.subr.mxu0 0.0
  %4000 = vmatpush1.msra.mxu0 0.0
  %4001 = vmatprep.subr.mxu0 0.0
  %4002 = vmatpush1.msra.mxu0 0.0
  %4003 = vmatprep.subr.mxu0 0.0
  %4004 = vmatpush1.msra.mxu0 0.0
  %4005 = vmatprep.subr.mxu0 0.0
  %4006 = vmatpush1.msra.mxu0 0.0
  %4007 = vmatprep.subr.mxu0 0.0
  %4008 = vmatpush1.msra.mxu0 0.0
  %4009 = vmatprep.mubr.f32.mxu0 0.0
  %4010 = vmatmul.mubr.f32.gmra.mrb[0].mxu0 %v3730
  %v4011 = vpop.f32.mrb[0].mxu0
  %v4012 = vadd.f32 %v3689, %v4011
  %v4013 = vpop.f32.mrb[0].mxu0
  %v4014 = vadd.f32 %v3690, %v4013
  %4015 = vdwg.mxu0
  %4016 = vmatprep.subr.mxu0 %v3428
  %4017 = vmatpush1.msra.mxu0 %v3427
  %4018 = vmatprep.subr.mxu0 %v3440
  %4019 = vmatpush1.msra.mxu0 %v3439
  %4020 = vmatprep.subr.mxu0 %v3452
  %4021 = vmatpush1.msra.mxu0 %v3451
  %4022 = vmatprep.subr.mxu0 %v3464
  %4023 = vmatpush1.msra.mxu0 %v3463
  %4024 = vmatprep.subr.mxu0 %v3476
  %4025 = vmatpush1.msra.mxu0 %v3475
  %4026 = vmatprep.subr.mxu0 %v3488
  %4027 = vmatpush1.msra.mxu0 %v3487
  %4028 = vmatprep.subr.mxu0 %v3500
  %4029 = vmatpush1.msra.mxu0 %v3499
  %4030 = vmatprep.subr.mxu0 %v3512
  %4031 = vmatpush1.msra.mxu0 %v3511
  %4032 = vmatprep.subr.mxu0 0.0
  %4033 = vmatpush1.msra.mxu0 0.0
  %4034 = vmatprep.subr.mxu0 0.0
  %4035 = vmatpush1.msra.mxu0 0.0
  %4036 = vmatprep.subr.mxu0 0.0
  %4037 = vmatpush1.msra.mxu0 0.0
  %4038 = vmatprep.subr.mxu0 0.0
  %4039 = vmatpush1.msra.mxu0 0.0
  %4040 = vmatprep.subr.mxu0 0.0
  %4041 = vmatpush1.msra.mxu0 0.0
  %4042 = vmatprep.subr.mxu0 0.0
  %4043 = vmatpush1.msra.mxu0 0.0
  %4044 = vmatprep.subr.mxu0 0.0
  %4045 = vmatpush1.msra.mxu0 0.0
  %4046 = vmatprep.subr.mxu0 0.0
  %4047 = vmatpush1.msra.mxu0 0.0
  %4048 = vmatprep.subr.mxu0 0.0
  %4049 = vmatpush1.msra.mxu0 0.0
  %4050 = vmatprep.subr.mxu0 0.0
  %4051 = vmatpush1.msra.mxu0 0.0
  %4052 = vmatprep.subr.mxu0 0.0
  %4053 = vmatpush1.msra.mxu0 0.0
  %4054 = vmatprep.subr.mxu0 0.0
  %4055 = vmatpush1.msra.mxu0 0.0
  %4056 = vmatprep.subr.mxu0 0.0
  %4057 = vmatpush1.msra.mxu0 0.0
  %4058 = vmatprep.subr.mxu0 0.0
  %4059 = vmatpush1.msra.mxu0 0.0
  %4060 = vmatprep.subr.mxu0 0.0
  %4061 = vmatpush1.msra.mxu0 0.0
  %4062 = vmatprep.subr.mxu0 0.0
  %4063 = vmatpush1.msra.mxu0 0.0
  %4064 = vmatprep.subr.mxu0 0.0
  %4065 = vmatpush1.msra.mxu0 0.0
  %4066 = vmatprep.subr.mxu0 0.0
  %4067 = vmatpush1.msra.mxu0 0.0
  %4068 = vmatprep.subr.mxu0 0.0
  %4069 = vmatpush1.msra.mxu0 0.0
  %4070 = vmatprep.subr.mxu0 0.0
  %4071 = vmatpush1.msra.mxu0 0.0
  %4072 = vmatprep.subr.mxu0 0.0
  %4073 = vmatpush1.msra.mxu0 0.0
  %4074 = vmatprep.subr.mxu0 0.0
  %4075 = vmatpush1.msra.mxu0 0.0
  %4076 = vmatprep.subr.mxu0 0.0
  %4077 = vmatpush1.msra.mxu0 0.0
  %4078 = vmatprep.subr.mxu0 0.0
  %4079 = vmatpush1.msra.mxu0 0.0
  %4080 = vmatprep.mubr.f32.mxu0 0.0
  %4081 = vmatmul.mubr.f32.gmra.mrb[0].mxu0 %v3730
  %v4082 = vpop.f32.mrb[0].mxu0
  %v4083 = vadd.f32 %v3714, %v4082
  %v4084 = vpop.f32.mrb[0].mxu0
  %v4085 = vadd.f32 %v3715, %v4084
  %4086 = vdwg.mxu0
  %4087 = vmatprep.subr.mxu0 %v3430
  %4088 = vmatpush1.msra.mxu0 %v3429
  %4089 = vmatprep.subr.mxu0 %v3442
  %4090 = vmatpush1.msra.mxu0 %v3441
  %4091 = vmatprep.subr.mxu0 %v3454
  %4092 = vmatpush1.msra.mxu0 %v3453
  %4093 = vmatprep.subr.mxu0 %v3466
  %4094 = vmatpush1.msra.mxu0 %v3465
  %4095 = vmatprep.subr.mxu0 %v3478
  %4096 = vmatpush1.msra.mxu0 %v3477
  %4097 = vmatprep.subr.mxu0 %v3490
  %4098 = vmatpush1.msra.mxu0 %v3489
  %4099 = vmatprep.subr.mxu0 %v3502
  %4100 = vmatpush1.msra.mxu0 %v3501
  %4101 = vmatprep.subr.mxu0 %v3514
  %4102 = vmatpush1.msra.mxu0 %v3513
  %4103 = vmatprep.subr.mxu0 0.0
  %4104 = vmatpush1.msra.mxu0 0.0
  %4105 = vmatprep.subr.mxu0 0.0
  %4106 = vmatpush1.msra.mxu0 0.0
  %4107 = vmatprep.subr.mxu0 0.0
  %4108 = vmatpush1.msra.mxu0 0.0
  %4109 = vmatprep.subr.mxu0 0.0
  %4110 = vmatpush1.msra.mxu0 0.0
  %4111 = vmatprep.subr.mxu0 0.0
  %4112 = vmatpush1.msra.mxu0 0.0
  %4113 = vmatprep.subr.mxu0 0.0
  %4114 = vmatpush1.msra.mxu0 0.0
  %4115 = vmatprep.subr.mxu0 0.0
  %4116 = vmatpush1.msra.mxu0 0.0
  %4117 = vmatprep.subr.mxu0 0.0
  %4118 = vmatpush1.msra.mxu0 0.0
  %4119 = vmatprep.subr.mxu0 0.0
  %4120 = vmatpush1.msra.mxu0 0.0
  %4121 = vmatprep.subr.mxu0 0.0
  %4122 = vmatpush1.msra.mxu0 0.0
  %4123 = vmatprep.subr.mxu0 0.0
  %4124 = vmatpush1.msra.mxu0 0.0
  %4125 = vmatprep.subr.mxu0 0.0
  %4126 = vmatpush1.msra.mxu0 0.0
  %4127 = vmatprep.subr.mxu0 0.0
  %4128 = vmatpush1.msra.mxu0 0.0
  %4129 = vmatprep.subr.mxu0 0.0
  %4130 = vmatpush1.msra.mxu0 0.0
  %4131 = vmatprep.subr.mxu0 0.0
  %4132 = vmatpush1.msra.mxu0 0.0
  %4133 = vmatprep.subr.mxu0 0.0
  %4134 = vmatpush1.msra.mxu0 0.0
  %4135 = vmatprep.subr.mxu0 0.0
  %4136 = vmatpush1.msra.mxu0 0.0
  %4137 = vmatprep.subr.mxu0 0.0
  %4138 = vmatpush1.msra.mxu0 0.0
  %4139 = vmatprep.subr.mxu0 0.0
  %4140 = vmatpush1.msra.mxu0 0.0
  %4141 = vmatprep.subr.mxu0 0.0
  %4142 = vmatpush1.msra.mxu0 0.0
  %4143 = vmatprep.subr.mxu0 0.0
  %4144 = vmatpush1.msra.mxu0 0.0
  %4145 = vmatprep.subr.mxu0 0.0
  %4146 = vmatpush1.msra.mxu0 0.0
  %4147 = vmatprep.subr.mxu0 0.0
  %4148 = vmatpush1.msra.mxu0 0.0
  %4149 = vmatprep.subr.mxu0 0.0
  %4150 = vmatpush1.msra.mxu0 0.0
  %4151 = vmatprep.mubr.f32.mxu0 0.0
  %4152 = vmatmul.mubr.f32.gmra.mrb[0].mxu0 %v3730
  %v4153 = vpop.f32.mrb[0].mxu0
  %v4154 = vadd.f32 %v3716, %v4153
  %v4155 = vpop.f32.mrb[0].mxu0
  %v4156 = vadd.f32 %v3717, %v4155
  %4157 = vdwg.mxu0
  %v4170 = vcombine.low %v3799, %v3801
  %v4171 = vcombine.high %v3799, %v3801
  %v4172 = vcombine.low %v3870, %v3872
  %v4173 = vcombine.high %v3870, %v3872
  %v4175 = vunpack.c.l.s4 1983009808
  %v4176 = vunpack.c.0.s8 %v4175
  %v4177 = vlaneseq
  %v4178 = vshrl.u32 %v4177, 7
  %v4179 = vsub.s32 %v4176, %v4178
  %v4180 = vrot.slane %v4170, %v4179
  %v4182 = vunpack.c.l.s4 1983009808
  %v4183 = vunpack.c.0.s8 %v4182
  %v4184 = vlaneseq
  %v4185 = vshrl.u32 %v4184, 7
  %v4186 = vsub.s32 %v4183, %v4185
  %v4187 = vrot.slane %v4171, %v4186
  %v4189 = vunpack.c.l.s4 1983009808
  %v4190 = vunpack.c.0.s8 %v4189
  %v4191 = vlaneseq
  %v4192 = vshrl.u32 %v4191, 7
  %v4193 = vsub.s32 %v4190, %v4192
  %v4194 = vrot.slane %v4172, %v4193
  %v4196 = vunpack.c.l.s4 1983009808
  %v4197 = vunpack.c.0.s8 %v4196
  %v4198 = vlaneseq
  %v4199 = vshrl.u32 %v4198, 7
  %v4200 = vsub.s32 %v4197, %v4199
  %v4201 = vrot.slane %v4173, %v4200
  %v4202 = vcombine.low %v4180, %v4194
  %v4203 = vcombine.high %v4180, %v4194
  %v4204 = vcombine.low %v4187, %v4201
  %v4205 = vcombine.low %v3941, %v3943
  %v4206 = vcombine.high %v3941, %v3943
  %v4207 = vcombine.low %v4012, %v4014
  %v4208 = vcombine.high %v4012, %v4014
  %v4210 = vunpack.c.l.s4 1983009808
  %v4211 = vunpack.c.0.s8 %v4210
  %v4212 = vlaneseq
  %v4213 = vshrl.u32 %v4212, 7
  %v4214 = vsub.s32 %v4211, %v4213
  %v4215 = vrot.slane %v4205, %v4214
  %v4217 = vunpack.c.l.s4 1983009808
  %v4218 = vunpack.c.0.s8 %v4217
  %v4219 = vlaneseq
  %v4220 = vshrl.u32 %v4219, 7
  %v4221 = vsub.s32 %v4218, %v4220
  %v4222 = vrot.slane %v4206, %v4221
  %v4224 = vunpack.c.l.s4 1983009808
  %v4225 = vunpack.c.0.s8 %v4224
  %v4226 = vlaneseq
  %v4227 = vshrl.u32 %v4226, 7
  %v4228 = vsub.s32 %v4225, %v4227
  %v4229 = vrot.slane %v4207, %v4228
  %v4231 = vunpack.c.l.s4 1983009808
  %v4232 = vunpack.c.0.s8 %v4231
  %v4233 = vlaneseq
  %v4234 = vshrl.u32 %v4233, 7
  %v4235 = vsub.s32 %v4232, %v4234
  %v4236 = vrot.slane %v4208, %v4235
  %v4237 = vcombine.low %v4215, %v4229
  %v4238 = vcombine.high %v4215, %v4229
  %v4239 = vcombine.low %v4222, %v4236
  %v4240 = vcombine.low %v4083, %v4085
  %v4241 = vcombine.high %v4083, %v4085
  %v4242 = vcombine.low %v4154, %v4156
  %v4243 = vcombine.high %v4154, %v4156
  %v4245 = vunpack.c.l.s4 1983009808
  %v4246 = vunpack.c.0.s8 %v4245
  %v4247 = vlaneseq
  %v4248 = vshrl.u32 %v4247, 7
  %v4249 = vsub.s32 %v4246, %v4248
  %v4250 = vrot.slane %v4240, %v4249
  %v4252 = vunpack.c.l.s4 1983009808
  %v4253 = vunpack.c.0.s8 %v4252
  %v4254 = vlaneseq
  %v4255 = vshrl.u32 %v4254, 7
  %v4256 = vsub.s32 %v4253, %v4255
  %v4257 = vrot.slane %v4241, %v4256
  %v4259 = vunpack.c.l.s4 1983009808
  %v4260 = vunpack.c.0.s8 %v4259
  %v4261 = vlaneseq
  %v4262 = vshrl.u32 %v4261, 7
  %v4263 = vsub.s32 %v4260, %v4262
  %v4264 = vrot.slane %v4242, %v4263
  %v4266 = vunpack.c.l.s4 1983009808
  %v4267 = vunpack.c.0.s8 %v4266
  %v4268 = vlaneseq
  %v4269 = vshrl.u32 %v4268, 7
  %v4270 = vsub.s32 %v4267, %v4269
  %v4271 = vrot.slane %v4243, %v4270
  %v4272 = vcombine.low %v4250, %v4264
  %v4273 = vcombine.high %v4250, %v4264
  %v4274 = vcombine.low %v4257, %v4271
  %vm4275 = vcmask 130048
  %v4276 = vsel %vm4275, %v4202, 0
  %v4278 = vsel %vm4275, %v4237, 0
  %4280 = vmatprep.subr.mxu0 0.0
  %4281 = vmatpush1.xpose.msra.mxu0 %v4278
  %4282 = vmatprep.subr.mxu0 0.0
  %4283 = vmatpush1.xpose.msra.mxu0 0.0
  %4284 = vmatprep.subr.mxu0 0.0
  %4285 = vmatpush1.xpose.msra.mxu0 0.0
  %4286 = vmatprep.subr.mxu0 0.0
  %4287 = vmatpush1.xpose.msra.mxu0 0.0
  %4288 = vmatprep.subr.mxu0 0.0
  %4289 = vmatpush1.xpose.msra.mxu0 0.0
  %4290 = vmatprep.subr.mxu0 0.0
  %4291 = vmatpush1.xpose.msra.mxu0 0.0
  %4292 = vmatprep.subr.mxu0 0.0
  %4293 = vmatpush1.xpose.msra.mxu0 0.0
  %4294 = vmatprep.subr.mxu0 0.0
  %4295 = vmatpush1.xpose.msra.mxu0 0.0
  %4296 = vmatprep.subr.mxu0 0.0
  %4297 = vmatpush1.xpose.msra.mxu0 0.0
  %4298 = vmatprep.subr.mxu0 0.0
  %4299 = vmatpush1.xpose.msra.mxu0 0.0
  %4300 = vmatprep.subr.mxu0 0.0
  %4301 = vmatpush1.xpose.msra.mxu0 0.0
  %4302 = vmatprep.subr.mxu0 0.0
  %4303 = vmatpush1.xpose.msra.mxu0 0.0
  %4304 = vmatprep.subr.mxu0 0.0
  %4305 = vmatpush1.xpose.msra.mxu0 0.0
  %4306 = vmatprep.subr.mxu0 0.0
  %4307 = vmatpush1.xpose.msra.mxu0 0.0
  %4308 = vmatprep.subr.mxu0 0.0
  %4309 = vmatpush1.xpose.msra.mxu0 0.0
  %4310 = vmatprep.subr.mxu0 0.0
  %4311 = vmatpush1.xpose.msra.mxu0 0.0
  %4312 = vmatprep.subr.mxu0 0.0
  %4313 = vmatpush1.xpose.msra.mxu0 0.0
  %4314 = vmatprep.subr.mxu0 0.0
  %4315 = vmatpush1.xpose.msra.mxu0 0.0
  %4316 = vmatprep.subr.mxu0 0.0
  %4317 = vmatpush1.xpose.msra.mxu0 0.0
  %4318 = vmatprep.subr.mxu0 0.0
  %4319 = vmatpush1.xpose.msra.mxu0 0.0
  %4320 = vmatprep.subr.mxu0 0.0
  %4321 = vmatpush1.xpose.msra.mxu0 0.0
  %4322 = vmatprep.subr.mxu0 0.0
  %4323 = vmatpush1.xpose.msra.mxu0 0.0
  %4324 = vmatprep.subr.mxu0 0.0
  %4325 = vmatpush1.xpose.msra.mxu0 0.0
  %4326 = vmatprep.subr.mxu0 0.0
  %4327 = vmatpush1.xpose.msra.mxu0 0.0
  %4328 = vmatprep.subr.mxu0 0.0
  %4329 = vmatpush1.xpose.msra.mxu0 0.0
  %4330 = vmatprep.subr.mxu0 0.0
  %4331 = vmatpush1.xpose.msra.mxu0 0.0
  %4332 = vmatprep.subr.mxu0 0.0
  %4333 = vmatpush1.xpose.msra.mxu0 0.0
  %4334 = vmatprep.subr.mxu0 0.0
  %4335 = vmatpush1.xpose.msra.mxu0 0.0
  %4336 = vmatprep.subr.mxu0 0.0
  %4337 = vmatpush1.xpose.msra.mxu0 0.0
  %4338 = vmatprep.subr.mxu0 0.0
  %4339 = vmatpush1.xpose.msra.mxu0 0.0
  %4340 = vmatprep.subr.mxu0 0.0
  %4341 = vmatpush1.xpose.msra.mxu0 0.0
  %4342 = vmatprep.subr.mxu0 0.0
  %4343 = vmatpush1.xpose.msra.mxu0 0.0
  %4344 = vmatprep.mubr.f32.mxu0 0.0
  %4345 = vmatmul.mubr.f32.gmra.mrb[0].mxu0 %v4276
  %v4346 = vpop.f32.mrb[0].mxu0
  %v4347 = vadd.f32 0.0, %v4346
  %v4348 = vpop.f32.mrb[0].mxu0
  %4349 = vdwg.mxu0
  %v4350 = vsel %vm4275, %v4203, 0
  %v4352 = vsel %vm4275, %v4238, 0
  %4354 = vmatprep.subr.mxu0 0.0
  %4355 = vmatpush1.xpose.msra.mxu0 %v4352
  %4356 = vmatprep.subr.mxu0 0.0
  %4357 = vmatpush1.xpose.msra.mxu0 0.0
  %4358 = vmatprep.subr.mxu0 0.0
  %4359 = vmatpush1.xpose.msra.mxu0 0.0
  %4360 = vmatprep.subr.mxu0 0.0
  %4361 = vmatpush1.xpose.msra.mxu0 0.0
  %4362 = vmatprep.subr.mxu0 0.0
  %4363 = vmatpush1.xpose.msra.mxu0 0.0
  %4364 = vmatprep.subr.mxu0 0.0
  %4365 = vmatpush1.xpose.msra.mxu0 0.0
  %4366 = vmatprep.subr.mxu0 0.0
  %4367 = vmatpush1.xpose.msra.mxu0 0.0
  %4368 = vmatprep.subr.mxu0 0.0
  %4369 = vmatpush1.xpose.msra.mxu0 0.0
  %4370 = vmatprep.subr.mxu0 0.0
  %4371 = vmatpush1.xpose.msra.mxu0 0.0
  %4372 = vmatprep.subr.mxu0 0.0
  %4373 = vmatpush1.xpose.msra.mxu0 0.0
  %4374 = vmatprep.subr.mxu0 0.0
  %4375 = vmatpush1.xpose.msra.mxu0 0.0
  %4376 = vmatprep.subr.mxu0 0.0
  %4377 = vmatpush1.xpose.msra.mxu0 0.0
  %4378 = vmatprep.subr.mxu0 0.0
  %4379 = vmatpush1.xpose.msra.mxu0 0.0
  %4380 = vmatprep.subr.mxu0 0.0
  %4381 = vmatpush1.xpose.msra.mxu0 0.0
  %4382 = vmatprep.subr.mxu0 0.0
  %4383 = vmatpush1.xpose.msra.mxu0 0.0
  %4384 = vmatprep.subr.mxu0 0.0
  %4385 = vmatpush1.xpose.msra.mxu0 0.0
  %4386 = vmatprep.subr.mxu0 0.0
  %4387 = vmatpush1.xpose.msra.mxu0 0.0
  %4388 = vmatprep.subr.mxu0 0.0
  %4389 = vmatpush1.xpose.msra.mxu0 0.0
  %4390 = vmatprep.subr.mxu0 0.0
  %4391 = vmatpush1.xpose.msra.mxu0 0.0
  %4392 = vmatprep.subr.mxu0 0.0
  %4393 = vmatpush1.xpose.msra.mxu0 0.0
  %4394 = vmatprep.subr.mxu0 0.0
  %4395 = vmatpush1.xpose.msra.mxu0 0.0
  %4396 = vmatprep.subr.mxu0 0.0
  %4397 = vmatpush1.xpose.msra.mxu0 0.0
  %4398 = vmatprep.subr.mxu0 0.0
  %4399 = vmatpush1.xpose.msra.mxu0 0.0
  %4400 = vmatprep.subr.mxu0 0.0
  %4401 = vmatpush1.xpose.msra.mxu0 0.0
  %4402 = vmatprep.subr.mxu0 0.0
  %4403 = vmatpush1.xpose.msra.mxu0 0.0
  %4404 = vmatprep.subr.mxu0 0.0
  %4405 = vmatpush1.xpose.msra.mxu0 0.0
  %4406 = vmatprep.subr.mxu0 0.0
  %4407 = vmatpush1.xpose.msra.mxu0 0.0
  %4408 = vmatprep.subr.mxu0 0.0
  %4409 = vmatpush1.xpose.msra.mxu0 0.0
  %4410 = vmatprep.subr.mxu0 0.0
  %4411 = vmatpush1.xpose.msra.mxu0 0.0
  %4412 = vmatprep.subr.mxu0 0.0
  %4413 = vmatpush1.xpose.msra.mxu0 0.0
  %4414 = vmatprep.subr.mxu0 0.0
  %4415 = vmatpush1.xpose.msra.mxu0 0.0
  %4416 = vmatprep.subr.mxu0 0.0
  %4417 = vmatpush1.xpose.msra.mxu0 0.0
  %4418 = vmatprep.mubr.f32.mxu0 0.0
  %4419 = vmatmul.mubr.f32.gmra.mrb[0].mxu0 %v4350
  %v4420 = vpop.f32.mrb[0].mxu0
  %v4421 = vadd.f32 0.0, %v4420
  %v4422 = vpop.f32.mrb[0].mxu0
  %4423 = vdwg.mxu0
  %v4424 = vsel %vm4275, %v4204, 0
  %v4426 = vsel %vm4275, %v4239, 0
  %4428 = vmatprep.subr.mxu0 0.0
  %4429 = vmatpush1.xpose.msra.mxu0 %v4426
  %4430 = vmatprep.subr.mxu0 0.0
  %4431 = vmatpush1.xpose.msra.mxu0 0.0
  %4432 = vmatprep.subr.mxu0 0.0
  %4433 = vmatpush1.xpose.msra.mxu0 0.0
  %4434 = vmatprep.subr.mxu0 0.0
  %4435 = vmatpush1.xpose.msra.mxu0 0.0
  %4436 = vmatprep.subr.mxu0 0.0
  %4437 = vmatpush1.xpose.msra.mxu0 0.0
  %4438 = vmatprep.subr.mxu0 0.0
  %4439 = vmatpush1.xpose.msra.mxu0 0.0
  %4440 = vmatprep.subr.mxu0 0.0
  %4441 = vmatpush1.xpose.msra.mxu0 0.0
  %4442 = vmatprep.subr.mxu0 0.0
  %4443 = vmatpush1.xpose.msra.mxu0 0.0
  %4444 = vmatprep.subr.mxu0 0.0
  %4445 = vmatpush1.xpose.msra.mxu0 0.0
  %4446 = vmatprep.subr.mxu0 0.0
  %4447 = vmatpush1.xpose.msra.mxu0 0.0
  %4448 = vmatprep.subr.mxu0 0.0
  %4449 = vmatpush1.xpose.msra.mxu0 0.0
  %4450 = vmatprep.subr.mxu0 0.0
  %4451 = vmatpush1.xpose.msra.mxu0 0.0
  %4452 = vmatprep.subr.mxu0 0.0
  %4453 = vmatpush1.xpose.msra.mxu0 0.0
  %4454 = vmatprep.subr.mxu0 0.0
  %4455 = vmatpush1.xpose.msra.mxu0 0.0
  %4456 = vmatprep.subr.mxu0 0.0
  %4457 = vmatpush1.xpose.msra.mxu0 0.0
  %4458 = vmatprep.subr.mxu0 0.0
  %4459 = vmatpush1.xpose.msra.mxu0 0.0
  %4460 = vmatprep.subr.mxu0 0.0
  %4461 = vmatpush1.xpose.msra.mxu0 0.0
  %4462 = vmatprep.subr.mxu0 0.0
  %4463 = vmatpush1.xpose.msra.mxu0 0.0
  %4464 = vmatprep.subr.mxu0 0.0
  %4465 = vmatpush1.xpose.msra.mxu0 0.0
  %4466 = vmatprep.subr.mxu0 0.0
  %4467 = vmatpush1.xpose.msra.mxu0 0.0
  %4468 = vmatprep.subr.mxu0 0.0
  %4469 = vmatpush1.xpose.msra.mxu0 0.0
  %4470 = vmatprep.subr.mxu0 0.0
  %4471 = vmatpush1.xpose.msra.mxu0 0.0
  %4472 = vmatprep.subr.mxu0 0.0
  %4473 = vmatpush1.xpose.msra.mxu0 0.0
  %4474 = vmatprep.subr.mxu0 0.0
  %4475 = vmatpush1.xpose.msra.mxu0 0.0
  %4476 = vmatprep.subr.mxu0 0.0
  %4477 = vmatpush1.xpose.msra.mxu0 0.0
  %4478 = vmatprep.subr.mxu0 0.0
  %4479 = vmatpush1.xpose.msra.mxu0 0.0
  %4480 = vmatprep.subr.mxu0 0.0
  %4481 = vmatpush1.xpose.msra.mxu0 0.0
  %4482 = vmatprep.subr.mxu0 0.0
  %4483 = vmatpush1.xpose.msra.mxu0 0.0
  %4484 = vmatprep.subr.mxu0 0.0
  %4485 = vmatpush1.xpose.msra.mxu0 0.0
  %4486 = vmatprep.subr.mxu0 0.0
  %4487 = vmatpush1.xpose.msra.mxu0 0.0
  %4488 = vmatprep.subr.mxu0 0.0
  %4489 = vmatpush1.xpose.msra.mxu0 0.0
  %4490 = vmatprep.subr.mxu0 0.0
  %4491 = vmatpush1.xpose.msra.mxu0 0.0
  %4492 = vmatprep.mubr.f32.mxu0 0.0
  %4493 = vmatmul.mubr.f32.gmra.mrb[0].mxu0 %v4424
  %v4494 = vpop.f32.mrb[0].mxu0
  %v4495 = vadd.f32 0.0, %v4494
  %v4496 = vpop.f32.mrb[0].mxu0
  %4497 = vdwg.mxu0
  %vm4498 = vcmask 9216
  %v4499 = vsel %vm4498, %v4347, -inf
  %4500 = vmax.xlane.f32.xlu0 %v4499
  %v4501 = vpop.xlane.xlu0 %4500
  %v4502 = vsel %vm4498, %v4421, -inf
  %4503 = vmax.xlane.f32.xlu0 %v4502
  %v4504 = vpop.xlane.xlu0 %4503
  %v4505 = vsel %vm4498, %v4495, -inf
  %4506 = vmax.xlane.f32.xlu0 %v4505
  %v4507 = vpop.xlane.xlu0 %4506
  %v4508 = vsub.f32 %v4347, %v4501
  %v4509 = vsub.f32 %v4421, %v4504
  %v4510 = vsub.f32 %v4495, %v4507
  %v4511 = vmul.f32 %v4508, 1.442695
  %v4512 = vpow.pop %v4511
  %v4513 = vmul.f32 %v4509, 1.442695
  %v4514 = vpow.pop %v4513
  %v4515 = vmul.f32 %v4510, 1.442695
  %v4516 = vpow.pop %v4515
  %v4517 = vsel %vm4498, %v4512, 0.0
  %4518 = vadd.xlane.f32.xlu0 %v4517
  %v4519 = vpop.xlane.xlu0 %4518
  %v4520 = vsel %vm4498, %v4514, 0.0
  %4521 = vadd.xlane.f32.xlu0 %v4520
  %v4522 = vpop.xlane.xlu0 %4521
  %v4523 = vsel %vm4498, %v4516, 0.0
  %4524 = vadd.xlane.f32.xlu0 %v4523
  %v4525 = vpop.xlane.xlu0 %4524
  %v4526 = vrcp.pop %v4519
  %v4527 = vmul.f32 %v4512, %v4526
  %v4528 = vrcp.pop %v4522
  %v4529 = vmul.f32 %v4514, %v4528
  %v4530 = vrcp.pop %v4525
  %v4531 = vmul.f32 %v4516, %v4530
  %vm4532 = vcmask 15360
  %v4534 = vsel %vm4532, %v4527, 0
  %vm4536 = vcmask 1041408
  %v4537 = vsel %vm4536, %v4272, 0
  %4539 = vmatprep.subr.mxu0 0.0
  %4540 = vmatpush1.msra.mxu0 %v4537
  %4541 = vmatprep.subr.mxu0 0.0
  %4542 = vmatpush1.msra.mxu0 0.0
  %4543 = vmatprep.subr.mxu0 0.0
  %4544 = vmatpush1.msra.mxu0 0.0
  %4545 = vmatprep.subr.mxu0 0.0
  %4546 = vmatpush1.msra.mxu0 0.0
  %4547 = vmatprep.subr.mxu0 0.0
  %4548 = vmatpush1.msra.mxu0 0.0
  %4549 = vmatprep.subr.mxu0 0.0
  %4550 = vmatpush1.msra.mxu0 0.0
  %4551 = vmatprep.subr.mxu0 0.0
  %4552 = vmatpush1.msra.mxu0 0.0
  %4553 = vmatprep.subr.mxu0 0.0
  %4554 = vmatpush1.msra.mxu0 0.0
  %4555 = vmatprep.subr.mxu0 0.0
  %4556 = vmatpush1.msra.mxu0 0.0
  %4557 = vmatprep.subr.mxu0 0.0
  %4558 = vmatpush1.msra.mxu0 0.0
  %4559 = vmatprep.subr.mxu0 0.0
  %4560 = vmatpush1.msra.mxu0 0.0
  %4561 = vmatprep.subr.mxu0 0.0
  %4562 = vmatpush1.msra.mxu0 0.0
  %4563 = vmatprep.subr.mxu0 0.0
  %4564 = vmatpush1.msra.mxu0 0.0
  %4565 = vmatprep.subr.mxu0 0.0
  %4566 = vmatpush1.msra.mxu0 0.0
  %4567 = vmatprep.subr.mxu0 0.0
  %4568 = vmatpush1.msra.mxu0 0.0
  %4569 = vmatprep.subr.mxu0 0.0
  %4570 = vmatpush1.msra.mxu0 0.0
  %4571 = vmatprep.subr.mxu0 0.0
  %4572 = vmatpush1.msra.mxu0 0.0
  %4573 = vmatprep.subr.mxu0 0.0
  %4574 = vmatpush1.msra.mxu0 0.0
  %4575 = vmatprep.subr.mxu0 0.0
  %4576 = vmatpush1.msra.mxu0 0.0
  %4577 = vmatprep.subr.mxu0 0.0
  %4578 = vmatpush1.msra.mxu0 0.0
  %4579 = vmatprep.subr.mxu0 0.0
  %4580 = vmatpush1.msra.mxu0 0.0
  %4581 = vmatprep.subr.mxu0 0.0
  %4582 = vmatpush1.msra.mxu0 0.0
  %4583 = vmatprep.subr.mxu0 0.0
  %4584 = vmatpush1.msra.mxu0 0.0
  %4585 = vmatprep.subr.mxu0 0.0
  %4586 = vmatpush1.msra.mxu0 0.0
  %4587 = vmatprep.subr.mxu0 0.0
  %4588 = vmatpush1.msra.mxu0 0.0
  %4589 = vmatprep.subr.mxu0 0.0
  %4590 = vmatpush1.msra.mxu0 0.0
  %4591 = vmatprep.subr.mxu0 0.0
  %4592 = vmatpush1.msra.mxu0 0.0
  %4593 = vmatprep.subr.mxu0 0.0
  %4594 = vmatpush1.msra.mxu0 0.0
  %4595 = vmatprep.subr.mxu0 0.0
  %4596 = vmatpush1.msra.mxu0 0.0
  %4597 = vmatprep.subr.mxu0 0.0
  %4598 = vmatpush1.msra.mxu0 0.0
  %4599 = vmatprep.subr.mxu0 0.0
  %4600 = vmatpush1.msra.mxu0 0.0
  %4601 = vmatprep.subr.mxu0 0.0
  %4602 = vmatpush1.msra.mxu0 0.0
  %4603 = vmatprep.mubr.f32.mxu0 0.0
  %4604 = vmatmul.mubr.f32.gmra.mrb[0].mxu0 %v4534
  %v4605 = vpop.f32.mrb[0].mxu0
  %v4606 = vadd.f32 0.0, %v4605
  %v4607 = vpop.f32.mrb[0].mxu0
  %4608 = vdwg.mxu0
  %v4610 = vsel %vm4532, %v4529, 0
  %v4612 = vsel %vm4536, %v4273, 0
  %4614 = vmatprep.subr.mxu0 0.0
  %4615 = vmatpush1.msra.mxu0 %v4612
  %4616 = vmatprep.subr.mxu0 0.0
  %4617 = vmatpush1.msra.mxu0 0.0
  %4618 = vmatprep.subr.mxu0 0.0
  %4619 = vmatpush1.msra.mxu0 0.0
  %4620 = vmatprep.subr.mxu0 0.0
  %4621 = vmatpush1.msra.mxu0 0.0
  %4622 = vmatprep.subr.mxu0 0.0
  %4623 = vmatpush1.msra.mxu0 0.0
  %4624 = vmatprep.subr.mxu0 0.0
  %4625 = vmatpush1.msra.mxu0 0.0
  %4626 = vmatprep.subr.mxu0 0.0
  %4627 = vmatpush1.msra.mxu0 0.0
  %4628 = vmatprep.subr.mxu0 0.0
  %4629 = vmatpush1.msra.mxu0 0.0
  %4630 = vmatprep.subr.mxu0 0.0
  %4631 = vmatpush1.msra.mxu0 0.0
  %4632 = vmatprep.subr.mxu0 0.0
  %4633 = vmatpush1.msra.mxu0 0.0
  %4634 = vmatprep.subr.mxu0 0.0
  %4635 = vmatpush1.msra.mxu0 0.0
  %4636 = vmatprep.subr.mxu0 0.0
  %4637 = vmatpush1.msra.mxu0 0.0
  %4638 = vmatprep.subr.mxu0 0.0
  %4639 = vmatpush1.msra.mxu0 0.0
  %4640 = vmatprep.subr.mxu0 0.0
  %4641 = vmatpush1.msra.mxu0 0.0
  %4642 = vmatprep.subr.mxu0 0.0
  %4643 = vmatpush1.msra.mxu0 0.0
  %4644 = vmatprep.subr.mxu0 0.0
  %4645 = vmatpush1.msra.mxu0 0.0
  %4646 = vmatprep.subr.mxu0 0.0
  %4647 = vmatpush1.msra.mxu0 0.0
  %4648 = vmatprep.subr.mxu0 0.0
  %4649 = vmatpush1.msra.mxu0 0.0
  %4650 = vmatprep.subr.mxu0 0.0
  %4651 = vmatpush1.msra.mxu0 0.0
  %4652 = vmatprep.subr.mxu0 0.0
  %4653 = vmatpush1.msra.mxu0 0.0
  %4654 = vmatprep.subr.mxu0 0.0
  %4655 = vmatpush1.msra.mxu0 0.0
  %4656 = vmatprep.subr.mxu0 0.0
  %4657 = vmatpush1.msra.mxu0 0.0
  %4658 = vmatprep.subr.mxu0 0.0
  %4659 = vmatpush1.msra.mxu0 0.0
  %4660 = vmatprep.subr.mxu0 0.0
  %4661 = vmatpush1.msra.mxu0 0.0
  %4662 = vmatprep.subr.mxu0 0.0
  %4663 = vmatpush1.msra.mxu0 0.0
  %4664 = vmatprep.subr.mxu0 0.0
  %4665 = vmatpush1.msra.mxu0 0.0
  %4666 = vmatprep.subr.mxu0 0.0
  %4667 = vmatpush1.msra.mxu0 0.0
  %4668 = vmatprep.subr.mxu0 0.0
  %4669 = vmatpush1.msra.mxu0 0.0
  %4670 = vmatprep.subr.mxu0 0.0
  %4671 = vmatpush1.msra.mxu0 0.0
  %4672 = vmatprep.subr.mxu0 0.0
  %4673 = vmatpush1.msra.mxu0 0.0
  %4674 = vmatprep.subr.mxu0 0.0
  %4675 = vmatpush1.msra.mxu0 0.0
  %4676 = vmatprep.subr.mxu0 0.0
  %4677 = vmatpush1.msra.mxu0 0.0
  %4678 = vmatprep.mubr.f32.mxu0 0.0
  %4679 = vmatmul.mubr.f32.gmra.mrb[0].mxu0 %v4610
  %v4680 = vpop.f32.mrb[0].mxu0
  %v4681 = vadd.f32 0.0, %v4680
  %v4682 = vpop.f32.mrb[0].mxu0
  %4683 = vdwg.mxu0
  %v4685 = vsel %vm4532, %v4531, 0
  %v4687 = vsel %vm4536, %v4274, 0
  %4689 = vmatprep.subr.mxu0 0.0
  %4690 = vmatpush1.msra.mxu0 %v4687
  %4691 = vmatprep.subr.mxu0 0.0
  %4692 = vmatpush1.msra.mxu0 0.0
  %4693 = vmatprep.subr.mxu0 0.0
  %4694 = vmatpush1.msra.mxu0 0.0
  %4695 = vmatprep.subr.mxu0 0.0
  %4696 = vmatpush1.msra.mxu0 0.0
  %4697 = vmatprep.subr.mxu0 0.0
  %4698 = vmatpush1.msra.mxu0 0.0
  %4699 = vmatprep.subr.mxu0 0.0
  %4700 = vmatpush1.msra.mxu0 0.0
  %4701 = vmatprep.subr.mxu0 0.0
  %4702 = vmatpush1.msra.mxu0 0.0
  %4703 = vmatprep.subr.mxu0 0.0
  %4704 = vmatpush1.msra.mxu0 0.0
  %4705 = vmatprep.subr.mxu0 0.0
  %4706 = vmatpush1.msra.mxu0 0.0
  %4707 = vmatprep.subr.mxu0 0.0
  %4708 = vmatpush1.msra.mxu0 0.0
  %4709 = vmatprep.subr.mxu0 0.0
  %4710 = vmatpush1.msra.mxu0 0.0
  %4711 = vmatprep.subr.mxu0 0.0
  %4712 = vmatpush1.msra.mxu0 0.0
  %4713 = vmatprep.subr.mxu0 0.0
  %4714 = vmatpush1.msra.mxu0 0.0
  %4715 = vmatprep.subr.mxu0 0.0
  %4716 = vmatpush1.msra.mxu0 0.0
  %4717 = vmatprep.subr.mxu0 0.0
  %4718 = vmatpush1.msra.mxu0 0.0
  %4719 = vmatprep.subr.mxu0 0.0
  %4720 = vmatpush1.msra.mxu0 0.0
  %4721 = vmatprep.subr.mxu0 0.0
  %4722 = vmatpush1.msra.mxu0 0.0
  %4723 = vmatprep.subr.mxu0 0.0
  %4724 = vmatpush1.msra.mxu0 0.0
  %4725 = vmatprep.subr.mxu0 0.0
  %4726 = vmatpush1.msra.mxu0 0.0
  %4727 = vmatprep.subr.mxu0 0.0
  %4728 = vmatpush1.msra.mxu0 0.0
  %4729 = vmatprep.subr.mxu0 0.0
  %4730 = vmatpush1.msra.mxu0 0.0
  %4731 = vmatprep.subr.mxu0 0.0
  %4732 = vmatpush1.msra.mxu0 0.0
  %4733 = vmatprep.subr.mxu0 0.0
  %4734 = vmatpush1.msra.mxu0 0.0
  %4735 = vmatprep.subr.mxu0 0.0
  %4736 = vmatpush1.msra.mxu0 0.0
  %4737 = vmatprep.subr.mxu0 0.0
  %4738 = vmatpush1.msra.mxu0 0.0
  %4739 = vmatprep.subr.mxu0 0.0
  %4740 = vmatpush1.msra.mxu0 0.0
  %4741 = vmatprep.subr.mxu0 0.0
  %4742 = vmatpush1.msra.mxu0 0.0
  %4743 = vmatprep.subr.mxu0 0.0
  %4744 = vmatpush1.msra.mxu0 0.0
  %4745 = vmatprep.subr.mxu0 0.0
  %4746 = vmatpush1.msra.mxu0 0.0
  %4747 = vmatprep.subr.mxu0 0.0
  %4748 = vmatpush1.msra.mxu0 0.0
  %4749 = vmatprep.subr.mxu0 0.0
  %4750 = vmatpush1.msra.mxu0 0.0
  %4751 = vmatprep.subr.mxu0 0.0
  %4752 = vmatpush1.msra.mxu0 0.0
  %4753 = vmatprep.mubr.f32.mxu0 0.0
  %4754 = vmatmul.mubr.f32.gmra.mrb[0].mxu0 %v4685
  %v4755 = vpop.f32.mrb[0].mxu0
  %v4756 = vadd.f32 0.0, %v4755
  %v4757 = vpop.f32.mrb[0].mxu0
  %4758 = vdwg.mxu0
  %v4759 = vrot.slane %v4202, 2
  %v4760 = vrot.slane %v4237, 2
  %v4761 = vsel %vm4275, %v4759, 0
  %v4763 = vsel %vm4275, %v4760, 0
  %4765 = vmatprep.subr.mxu0 0.0
  %4766 = vmatpush1.xpose.msra.mxu0 %v4763
  %4767 = vmatprep.subr.mxu0 0.0
  %4768 = vmatpush1.xpose.msra.mxu0 0.0
  %4769 = vmatprep.subr.mxu0 0.0
  %4770 = vmatpush1.xpose.msra.mxu0 0.0
  %4771 = vmatprep.subr.mxu0 0.0
  %4772 = vmatpush1.xpose.msra.mxu0 0.0
  %4773 = vmatprep.subr.mxu0 0.0
  %4774 = vmatpush1.xpose.msra.mxu0 0.0
  %4775 = vmatprep.subr.mxu0 0.0
  %4776 = vmatpush1.xpose.msra.mxu0 0.0
  %4777 = vmatprep.subr.mxu0 0.0
  %4778 = vmatpush1.xpose.msra.mxu0 0.0
  %4779 = vmatprep.subr.mxu0 0.0
  %4780 = vmatpush1.xpose.msra.mxu0 0.0
  %4781 = vmatprep.subr.mxu0 0.0
  %4782 = vmatpush1.xpose.msra.mxu0 0.0
  %4783 = vmatprep.subr.mxu0 0.0
  %4784 = vmatpush1.xpose.msra.mxu0 0.0
  %4785 = vmatprep.subr.mxu0 0.0
  %4786 = vmatpush1.xpose.msra.mxu0 0.0
  %4787 = vmatprep.subr.mxu0 0.0
  %4788 = vmatpush1.xpose.msra.mxu0 0.0
  %4789 = vmatprep.subr.mxu0 0.0
  %4790 = vmatpush1.xpose.msra.mxu0 0.0
  %4791 = vmatprep.subr.mxu0 0.0
  %4792 = vmatpush1.xpose.msra.mxu0 0.0
  %4793 = vmatprep.subr.mxu0 0.0
  %4794 = vmatpush1.xpose.msra.mxu0 0.0
  %4795 = vmatprep.subr.mxu0 0.0
  %4796 = vmatpush1.xpose.msra.mxu0 0.0
  %4797 = vmatprep.subr.mxu0 0.0
  %4798 = vmatpush1.xpose.msra.mxu0 0.0
  %4799 = vmatprep.subr.mxu0 0.0
  %4800 = vmatpush1.xpose.msra.mxu0 0.0
  %4801 = vmatprep.subr.mxu0 0.0
  %4802 = vmatpush1.xpose.msra.mxu0 0.0
  %4803 = vmatprep.subr.mxu0 0.0
  %4804 = vmatpush1.xpose.msra.mxu0 0.0
  %4805 = vmatprep.subr.mxu0 0.0
  %4806 = vmatpush1.xpose.msra.mxu0 0.0
  %4807 = vmatprep.subr.mxu0 0.0
  %4808 = vmatpush1.xpose.msra.mxu0 0.0
  %4809 = vmatprep.subr.mxu0 0.0
  %4810 = vmatpush1.xpose.msra.mxu0 0.0
  %4811 = vmatprep.subr.mxu0 0.0
  %4812 = vmatpush1.xpose.msra.mxu0 0.0
  %4813 = vmatprep.subr.mxu0 0.0
  %4814 = vmatpush1.xpose.msra.mxu0 0.0
  %4815 = vmatprep.subr.mxu0 0.0
  %4816 = vmatpush1.xpose.msra.mxu0 0.0
  %4817 = vmatprep.subr.mxu0 0.0
  %4818 = vmatpush1.xpose.msra.mxu0 0.0
  %4819 = vmatprep.subr.mxu0 0.0
  %4820 = vmatpush1.xpose.msra.mxu0 0.0
  %4821 = vmatprep.subr.mxu0 0.0
  %4822 = vmatpush1.xpose.msra.mxu0 0.0
  %4823 = vmatprep.subr.mxu0 0.0
  %4824 = vmatpush1.xpose.msra.mxu0 0.0
  %4825 = vmatprep.subr.mxu0 0.0
  %4826 = vmatpush1.xpose.msra.mxu0 0.0
  %4827 = vmatprep.subr.mxu0 0.0
  %4828 = vmatpush1.xpose.msra.mxu0 0.0
  %4829 = vmatprep.mubr.f32.mxu0 0.0
  %4830 = vmatmul.mubr.f32.gmra.mrb[0].mxu0 %v4761
  %v4831 = vpop.f32.mrb[0].mxu0
  %v4832 = vadd.f32 0.0, %v4831
  %v4833 = vpop.f32.mrb[0].mxu0
  %4834 = vdwg.mxu0
  %v4835 = vrot.slane %v4203, 2
  %v4836 = vrot.slane %v4238, 2
  %v4837 = vsel %vm4275, %v4835, 0
  %v4839 = vsel %vm4275, %v4836, 0
  %4841 = vmatprep.subr.mxu0 0.0
  %4842 = vmatpush1.xpose.msra.mxu0 %v4839
  %4843 = vmatprep.subr.mxu0 0.0
  %4844 = vmatpush1.xpose.msra.mxu0 0.0
  %4845 = vmatprep.subr.mxu0 0.0
  %4846 = vmatpush1.xpose.msra.mxu0 0.0
  %4847 = vmatprep.subr.mxu0 0.0
  %4848 = vmatpush1.xpose.msra.mxu0 0.0
  %4849 = vmatprep.subr.mxu0 0.0
  %4850 = vmatpush1.xpose.msra.mxu0 0.0
  %4851 = vmatprep.subr.mxu0 0.0
  %4852 = vmatpush1.xpose.msra.mxu0 0.0
  %4853 = vmatprep.subr.mxu0 0.0
  %4854 = vmatpush1.xpose.msra.mxu0 0.0
  %4855 = vmatprep.subr.mxu0 0.0
  %4856 = vmatpush1.xpose.msra.mxu0 0.0
  %4857 = vmatprep.subr.mxu0 0.0
  %4858 = vmatpush1.xpose.msra.mxu0 0.0
  %4859 = vmatprep.subr.mxu0 0.0
  %4860 = vmatpush1.xpose.msra.mxu0 0.0
  %4861 = vmatprep.subr.mxu0 0.0
  %4862 = vmatpush1.xpose.msra.mxu0 0.0
  %4863 = vmatprep.subr.mxu0 0.0
  %4864 = vmatpush1.xpose.msra.mxu0 0.0
  %4865 = vmatprep.subr.mxu0 0.0
  %4866 = vmatpush1.xpose.msra.mxu0 0.0
  %4867 = vmatprep.subr.mxu0 0.0
  %4868 = vmatpush1.xpose.msra.mxu0 0.0
  %4869 = vmatprep.subr.mxu0 0.0
  %4870 = vmatpush1.xpose.msra.mxu0 0.0
  %4871 = vmatprep.subr.mxu0 0.0
  %4872 = vmatpush1.xpose.msra.mxu0 0.0
  %4873 = vmatprep.subr.mxu0 0.0
  %4874 = vmatpush1.xpose.msra.mxu0 0.0
  %4875 = vmatprep.subr.mxu0 0.0
  %4876 = vmatpush1.xpose.msra.mxu0 0.0
  %4877 = vmatprep.subr.mxu0 0.0
  %4878 = vmatpush1.xpose.msra.mxu0 0.0
  %4879 = vmatprep.subr.mxu0 0.0
  %4880 = vmatpush1.xpose.msra.mxu0 0.0
  %4881 = vmatprep.subr.mxu0 0.0
  %4882 = vmatpush1.xpose.msra.mxu0 0.0
  %4883 = vmatprep.subr.mxu0 0.0
  %4884 = vmatpush1.xpose.msra.mxu0 0.0
  %4885 = vmatprep.subr.mxu0 0.0
  %4886 = vmatpush1.xpose.msra.mxu0 0.0
  %4887 = vmatprep.subr.mxu0 0.0
  %4888 = vmatpush1.xpose.msra.mxu0 0.0
  %4889 = vmatprep.subr.mxu0 0.0
  %4890 = vmatpush1.xpose.msra.mxu0 0.0
  %4891 = vmatprep.subr.mxu0 0.0
  %4892 = vmatpush1.xpose.msra.mxu0 0.0
  %4893 = vmatprep.subr.mxu0 0.0
  %4894 = vmatpush1.xpose.msra.mxu0 0.0
  %4895 = vmatprep.subr.mxu0 0.0
  %4896 = vmatpush1.xpose.msra.mxu0 0.0
  %4897 = vmatprep.subr.mxu0 0.0
  %4898 = vmatpush1.xpose.msra.mxu0 0.0
  %4899 = vmatprep.subr.mxu0 0.0
  %4900 = vmatpush1.xpose.msra.mxu0 0.0
  %4901 = vmatprep.subr.mxu0 0.0
  %4902 = vmatpush1.xpose.msra.mxu0 0.0
  %4903 = vmatprep.subr.mxu0 0.0
  %4904 = vmatpush1.xpose.msra.mxu0 0.0
  %4905 = vmatprep.mubr.f32.mxu0 0.0
  %4906 = vmatmul.mubr.f32.gmra.mrb[0].mxu0 %v4837
  %v4907 = vpop.f32.mrb[0].mxu0
  %v4908 = vadd.f32 0.0, %v4907
  %v4909 = vpop.f32.mrb[0].mxu0
  %4910 = vdwg.mxu0
  %v4911 = vrot.slane %v4204, 2
  %v4912 = vrot.slane %v4239, 2
  %v4913 = vsel %vm4275, %v4911, 0
  %v4915 = vsel %vm4275, %v4912, 0
  %4917 = vmatprep.subr.mxu0 0.0
  %4918 = vmatpush1.xpose.msra.mxu0 %v4915
  %4919 = vmatprep.subr.mxu0 0.0
  %4920 = vmatpush1.xpose.msra.mxu0 0.0
  %4921 = vmatprep.subr.mxu0 0.0
  %4922 = vmatpush1.xpose.msra.mxu0 0.0
  %4923 = vmatprep.subr.mxu0 0.0
  %4924 = vmatpush1.xpose.msra.mxu0 0.0
  %4925 = vmatprep.subr.mxu0 0.0
  %4926 = vmatpush1.xpose.msra.mxu0 0.0
  %4927 = vmatprep.subr.mxu0 0.0
  %4928 = vmatpush1.xpose.msra.mxu0 0.0
  %4929 = vmatprep.subr.mxu0 0.0
  %4930 = vmatpush1.xpose.msra.mxu0 0.0
  %4931 = vmatprep.subr.mxu0 0.0
  %4932 = vmatpush1.xpose.msra.mxu0 0.0
  %4933 = vmatprep.subr.mxu0 0.0
  %4934 = vmatpush1.xpose.msra.mxu0 0.0
  %4935 = vmatprep.subr.mxu0 0.0
  %4936 = vmatpush1.xpose.msra.mxu0 0.0
  %4937 = vmatprep.subr.mxu0 0.0
  %4938 = vmatpush1.xpose.msra.mxu0 0.0
  %4939 = vmatprep.subr.mxu0 0.0
  %4940 = vmatpush1.xpose.msra.mxu0 0.0
  %4941 = vmatprep.subr.mxu0 0.0
  %4942 = vmatpush1.xpose.msra.mxu0 0.0
  %4943 = vmatprep.subr.mxu0 0.0
  %4944 = vmatpush1.xpose.msra.mxu0 0.0
  %4945 = vmatprep.subr.mxu0 0.0
  %4946 = vmatpush1.xpose.msra.mxu0 0.0
  %4947 = vmatprep.subr.mxu0 0.0
  %4948 = vmatpush1.xpose.msra.mxu0 0.0
  %4949 = vmatprep.subr.mxu0 0.0
  %4950 = vmatpush1.xpose.msra.mxu0 0.0
  %4951 = vmatprep.subr.mxu0 0.0
  %4952 = vmatpush1.xpose.msra.mxu0 0.0
  %4953 = vmatprep.subr.mxu0 0.0
  %4954 = vmatpush1.xpose.msra.mxu0 0.0
  %4955 = vmatprep.subr.mxu0 0.0
  %4956 = vmatpush1.xpose.msra.mxu0 0.0
  %4957 = vmatprep.subr.mxu0 0.0
  %4958 = vmatpush1.xpose.msra.mxu0 0.0
  %4959 = vmatprep.subr.mxu0 0.0
  %4960 = vmatpush1.xpose.msra.mxu0 0.0
  %4961 = vmatprep.subr.mxu0 0.0
  %4962 = vmatpush1.xpose.msra.mxu0 0.0
  %4963 = vmatprep.subr.mxu0 0.0
  %4964 = vmatpush1.xpose.msra.mxu0 0.0
  %4965 = vmatprep.subr.mxu0 0.0
  %4966 = vmatpush1.xpose.msra.mxu0 0.0
  %4967 = vmatprep.subr.mxu0 0.0
  %4968 = vmatpush1.xpose.msra.mxu0 0.0
  %4969 = vmatprep.subr.mxu0 0.0
  %4970 = vmatpush1.xpose.msra.mxu0 0.0
  %4971 = vmatprep.subr.mxu0 0.0
  %4972 = vmatpush1.xpose.msra.mxu0 0.0
  %4973 = vmatprep.subr.mxu0 0.0
  %4974 = vmatpush1.xpose.msra.mxu0 0.0
  %4975 = vmatprep.subr.mxu0 0.0
  %4976 = vmatpush1.xpose.msra.mxu0 0.0
  %4977 = vmatprep.subr.mxu0 0.0
  %4978 = vmatpush1.xpose.msra.mxu0 0.0
  %4979 = vmatprep.subr.mxu0 0.0
  %4980 = vmatpush1.xpose.msra.mxu0 0.0
  %4981 = vmatprep.mubr.f32.mxu0 0.0
  %4982 = vmatmul.mubr.f32.gmra.mrb[0].mxu0 %v4913
  %v4983 = vpop.f32.mrb[0].mxu0
  %v4984 = vadd.f32 0.0, %v4983
  %v4985 = vpop.f32.mrb[0].mxu0
  %4986 = vdwg.mxu0
  %v4987 = vsel %vm4498, %v4832, -inf
  %4988 = vmax.xlane.f32.xlu0 %v4987
  %v4989 = vpop.xlane.xlu0 %4988
  %v4990 = vsel %vm4498, %v4908, -inf
  %4991 = vmax.xlane.f32.xlu0 %v4990
  %v4992 = vpop.xlane.xlu0 %4991
  %v4993 = vsel %vm4498, %v4984, -inf
  %4994 = vmax.xlane.f32.xlu0 %v4993
  %v4995 = vpop.xlane.xlu0 %4994
  %v4996 = vsub.f32 %v4832, %v4989
  %v4997 = vsub.f32 %v4908, %v4992
  %v4998 = vsub.f32 %v4984, %v4995
  %v4999 = vmul.f32 %v4996, 1.442695
  %v5000 = vpow.pop %v4999
  %v5001 = vmul.f32 %v4997, 1.442695
  %v5002 = vpow.pop %v5001
  %v5003 = vmul.f32 %v4998, 1.442695
  %v5004 = vpow.pop %v5003
  %v5005 = vsel %vm4498, %v5000, 0.0
  %5006 = vadd.xlane.f32.xlu0 %v5005
  %v5007 = vpop.xlane.xlu0 %5006
  %v5008 = vsel %vm4498, %v5002, 0.0
  %5009 = vadd.xlane.f32.xlu0 %v5008
  %v5010 = vpop.xlane.xlu0 %5009
  %v5011 = vsel %vm4498, %v5004, 0.0
  %5012 = vadd.xlane.f32.xlu0 %v5011
  %v5013 = vpop.xlane.xlu0 %5012
  %v5014 = vrcp.pop %v5007
  %v5015 = vmul.f32 %v5000, %v5014
  %v5016 = vrcp.pop %v5010
  %v5017 = vmul.f32 %v5002, %v5016
  %v5018 = vrcp.pop %v5013
  %v5019 = vmul.f32 %v5004, %v5018
  %v5020 = vrot.slane %v4272, 2
  %v5022 = vsel %vm4532, %v5015, 0
  %v5024 = vsel %vm4536, %v5020, 0
  %5026 = vmatprep.subr.mxu0 0.0
  %5027 = vmatpush1.msra.mxu0 %v5024
  %5028 = vmatprep.subr.mxu0 0.0
  %5029 = vmatpush1.msra.mxu0 0.0
  %5030 = vmatprep.subr.mxu0 0.0
  %5031 = vmatpush1.msra.mxu0 0.0
  %5032 = vmatprep.subr.mxu0 0.0
  %5033 = vmatpush1.msra.mxu0 0.0
  %5034 = vmatprep.subr.mxu0 0.0
  %5035 = vmatpush1.msra.mxu0 0.0
  %5036 = vmatprep.subr.mxu0 0.0
  %5037 = vmatpush1.msra.mxu0 0.0
  %5038 = vmatprep.subr.mxu0 0.0
  %5039 = vmatpush1.msra.mxu0 0.0
  %5040 = vmatprep.subr.mxu0 0.0
  %5041 = vmatpush1.msra.mxu0 0.0
  %5042 = vmatprep.subr.mxu0 0.0
  %5043 = vmatpush1.msra.mxu0 0.0
  %5044 = vmatprep.subr.mxu0 0.0
  %5045 = vmatpush1.msra.mxu0 0.0
  %5046 = vmatprep.subr.mxu0 0.0
  %5047 = vmatpush1.msra.mxu0 0.0
  %5048 = vmatprep.subr.mxu0 0.0
  %5049 = vmatpush1.msra.mxu0 0.0
  %5050 = vmatprep.subr.mxu0 0.0
  %5051 = vmatpush1.msra.mxu0 0.0
  %5052 = vmatprep.subr.mxu0 0.0
  %5053 = vmatpush1.msra.mxu0 0.0
  %5054 = vmatprep.subr.mxu0 0.0
  %5055 = vmatpush1.msra.mxu0 0.0
  %5056 = vmatprep.subr.mxu0 0.0
  %5057 = vmatpush1.msra.mxu0 0.0
  %5058 = vmatprep.subr.mxu0 0.0
  %5059 = vmatpush1.msra.mxu0 0.0
  %5060 = vmatprep.subr.mxu0 0.0
  %5061 = vmatpush1.msra.mxu0 0.0
  %5062 = vmatprep.subr.mxu0 0.0
  %5063 = vmatpush1.msra.mxu0 0.0
  %5064 = vmatprep.subr.mxu0 0.0
  %5065 = vmatpush1.msra.mxu0 0.0
  %5066 = vmatprep.subr.mxu0 0.0
  %5067 = vmatpush1.msra.mxu0 0.0
  %5068 = vmatprep.subr.mxu0 0.0
  %5069 = vmatpush1.msra.mxu0 0.0
  %5070 = vmatprep.subr.mxu0 0.0
  %5071 = vmatpush1.msra.mxu0 0.0
  %5072 = vmatprep.subr.mxu0 0.0
  %5073 = vmatpush1.msra.mxu0 0.0
  %5074 = vmatprep.subr.mxu0 0.0
  %5075 = vmatpush1.msra.mxu0 0.0
  %5076 = vmatprep.subr.mxu0 0.0
  %5077 = vmatpush1.msra.mxu0 0.0
  %5078 = vmatprep.subr.mxu0 0.0
  %5079 = vmatpush1.msra.mxu0 0.0
  %5080 = vmatprep.subr.mxu0 0.0
  %5081 = vmatpush1.msra.mxu0 0.0
  %5082 = vmatprep.subr.mxu0 0.0
  %5083 = vmatpush1.msra.mxu0 0.0
  %5084 = vmatprep.subr.mxu0 0.0
  %5085 = vmatpush1.msra.mxu0 0.0
  %5086 = vmatprep.subr.mxu0 0.0
  %5087 = vmatpush1.msra.mxu0 0.0
  %5088 = vmatprep.subr.mxu0 0.0
  %5089 = vmatpush1.msra.mxu0 0.0
  %5090 = vmatprep.mubr.f32.mxu0 0.0
  %5091 = vmatmul.mubr.f32.gmra.mrb[0].mxu0 %v5022
  %v5092 = vpop.f32.mrb[0].mxu0
  %v5093 = vadd.f32 0.0, %v5092
  %v5094 = vpop.f32.mrb[0].mxu0
  %5095 = vdwg.mxu0
  %v5096 = vrot.slane %v4273, 2
  %v5098 = vsel %vm4532, %v5017, 0
  %v5100 = vsel %vm4536, %v5096, 0
  %5102 = vmatprep.subr.mxu0 0.0
  %5103 = vmatpush1.msra.mxu0 %v5100
  %5104 = vmatprep.subr.mxu0 0.0
  %5105 = vmatpush1.msra.mxu0 0.0
  %5106 = vmatprep.subr.mxu0 0.0
  %5107 = vmatpush1.msra.mxu0 0.0
  %5108 = vmatprep.subr.mxu0 0.0
  %5109 = vmatpush1.msra.mxu0 0.0
  %5110 = vmatprep.subr.mxu0 0.0
  %5111 = vmatpush1.msra.mxu0 0.0
  %5112 = vmatprep.subr.mxu0 0.0
  %5113 = vmatpush1.msra.mxu0 0.0
  %5114 = vmatprep.subr.mxu0 0.0
  %5115 = vmatpush1.msra.mxu0 0.0
  %5116 = vmatprep.subr.mxu0 0.0
  %5117 = vmatpush1.msra.mxu0 0.0
  %5118 = vmatprep.subr.mxu0 0.0
  %5119 = vmatpush1.msra.mxu0 0.0
  %5120 = vmatprep.subr.mxu0 0.0
  %5121 = vmatpush1.msra.mxu0 0.0
  %5122 = vmatprep.subr.mxu0 0.0
  %5123 = vmatpush1.msra.mxu0 0.0
  %5124 = vmatprep.subr.mxu0 0.0
  %5125 = vmatpush1.msra.mxu0 0.0
  %5126 = vmatprep.subr.mxu0 0.0
  %5127 = vmatpush1.msra.mxu0 0.0
  %5128 = vmatprep.subr.mxu0 0.0
  %5129 = vmatpush1.msra.mxu0 0.0
  %5130 = vmatprep.subr.mxu0 0.0
  %5131 = vmatpush1.msra.mxu0 0.0
  %5132 = vmatprep.subr.mxu0 0.0
  %5133 = vmatpush1.msra.mxu0 0.0
  %5134 = vmatprep.subr.mxu0 0.0
  %5135 = vmatpush1.msra.mxu0 0.0
  %5136 = vmatprep.subr.mxu0 0.0
  %5137 = vmatpush1.msra.mxu0 0.0
  %5138 = vmatprep.subr.mxu0 0.0
  %5139 = vmatpush1.msra.mxu0 0.0
  %5140 = vmatprep.subr.mxu0 0.0
  %5141 = vmatpush1.msra.mxu0 0.0
  %5142 = vmatprep.subr.mxu0 0.0
  %5143 = vmatpush1.msra.mxu0 0.0
  %5144 = vmatprep.subr.mxu0 0.0
  %5145 = vmatpush1.msra.mxu0 0.0
  %5146 = vmatprep.subr.mxu0 0.0
  %5147 = vmatpush1.msra.mxu0 0.0
  %5148 = vmatprep.subr.mxu0 0.0
  %5149 = vmatpush1.msra.mxu0 0.0
  %5150 = vmatprep.subr.mxu0 0.0
  %5151 = vmatpush1.msra.mxu0 0.0
  %5152 = vmatprep.subr.mxu0 0.0
  %5153 = vmatpush1.msra.mxu0 0.0
  %5154 = vmatprep.subr.mxu0 0.0
  %5155 = vmatpush1.msra.mxu0 0.0
  %5156 = vmatprep.subr.mxu0 0.0
  %5157 = vmatpush1.msra.mxu0 0.0
  %5158 = vmatprep.subr.mxu0 0.0
  %5159 = vmatpush1.msra.mxu0 0.0
  %5160 = vmatprep.subr.mxu0 0.0
  %5161 = vmatpush1.msra.mxu0 0.0
  %5162 = vmatprep.subr.mxu0 0.0
  %5163 = vmatpush1.msra.mxu0 0.0
  %5164 = vmatprep.subr.mxu0 0.0
  %5165 = vmatpush1.msra.mxu0 0.0
  %5166 = vmatprep.mubr.f32.mxu0 0.0
  %5167 = vmatmul.mubr.f32.gmra.mrb[0].mxu0 %v5098
  %v5168 = vpop.f32.mrb[0].mxu0
  %v5169 = vadd.f32 0.0, %v5168
  %v5170 = vpop.f32.mrb[0].mxu0
  %5171 = vdwg.mxu0
  %v5172 = vrot.slane %v4274, 2
  %v5174 = vsel %vm4532, %v5019, 0
  %v5176 = vsel %vm4536, %v5172, 0
  %5178 = vmatprep.subr.mxu0 0.0
  %5179 = vmatpush1.msra.mxu0 %v5176
  %5180 = vmatprep.subr.mxu0 0.0
  %5181 = vmatpush1.msra.mxu0 0.0
  %5182 = vmatprep.subr.mxu0 0.0
  %5183 = vmatpush1.msra.mxu0 0.0
  %5184 = vmatprep.subr.mxu0 0.0
  %5185 = vmatpush1.msra.mxu0 0.0
  %5186 = vmatprep.subr.mxu0 0.0
  %5187 = vmatpush1.msra.mxu0 0.0
  %5188 = vmatprep.subr.mxu0 0.0
  %5189 = vmatpush1.msra.mxu0 0.0
  %5190 = vmatprep.subr.mxu0 0.0
  %5191 = vmatpush1.msra.mxu0 0.0
  %5192 = vmatprep.subr.mxu0 0.0
  %5193 = vmatpush1.msra.mxu0 0.0
  %5194 = vmatprep.subr.mxu0 0.0
  %5195 = vmatpush1.msra.mxu0 0.0
  %5196 = vmatprep.subr.mxu0 0.0
  %5197 = vmatpush1.msra.mxu0 0.0
  %5198 = vmatprep.subr.mxu0 0.0
  %5199 = vmatpush1.msra.mxu0 0.0
  %5200 = vmatprep.subr.mxu0 0.0
  %5201 = vmatpush1.msra.mxu0 0.0
  %5202 = vmatprep.subr.mxu0 0.0
  %5203 = vmatpush1.msra.mxu0 0.0
  %5204 = vmatprep.subr.mxu0 0.0
  %5205 = vmatpush1.msra.mxu0 0.0
  %5206 = vmatprep.subr.mxu0 0.0
  %5207 = vmatpush1.msra.mxu0 0.0
  %5208 = vmatprep.subr.mxu0 0.0
  %5209 = vmatpush1.msra.mxu0 0.0
  %5210 = vmatprep.subr.mxu0 0.0
  %5211 = vmatpush1.msra.mxu0 0.0
  %5212 = vmatprep.subr.mxu0 0.0
  %5213 = vmatpush1.msra.mxu0 0.0
  %5214 = vmatprep.subr.mxu0 0.0
  %5215 = vmatpush1.msra.mxu0 0.0
  %5216 = vmatprep.subr.mxu0 0.0
  %5217 = vmatpush1.msra.mxu0 0.0
  %5218 = vmatprep.subr.mxu0 0.0
  %5219 = vmatpush1.msra.mxu0 0.0
  %5220 = vmatprep.subr.mxu0 0.0
  %5221 = vmatpush1.msra.mxu0 0.0
  %5222 = vmatprep.subr.mxu0 0.0
  %5223 = vmatpush1.msra.mxu0 0.0
  %5224 = vmatprep.subr.mxu0 0.0
  %5225 = vmatpush1.msra.mxu0 0.0
  %5226 = vmatprep.subr.mxu0 0.0
  %5227 = vmatpush1.msra.mxu0 0.0
  %5228 = vmatprep.subr.mxu0 0.0
  %5229 = vmatpush1.msra.mxu0 0.0
  %5230 = vmatprep.subr.mxu0 0.0
  %5231 = vmatpush1.msra.mxu0 0.0
  %5232 = vmatprep.subr.mxu0 0.0
  %5233 = vmatpush1.msra.mxu0 0.0
  %5234 = vmatprep.subr.mxu0 0.0
  %5235 = vmatpush1.msra.mxu0 0.0
  %5236 = vmatprep.subr.mxu0 0.0
  %5237 = vmatpush1.msra.mxu0 0.0
  %5238 = vmatprep.subr.mxu0 0.0
  %5239 = vmatpush1.msra.mxu0 0.0
  %5240 = vmatprep.subr.mxu0 0.0
  %5241 = vmatpush1.msra.mxu0 0.0
  %5242 = vmatprep.mubr.f32.mxu0 0.0
  %5243 = vmatmul.mubr.f32.gmra.mrb[0].mxu0 %v5174
  %v5244 = vpop.f32.mrb[0].mxu0
  %v5245 = vadd.f32 0.0, %v5244
  %v5246 = vpop.f32.mrb[0].mxu0
  %5247 = vdwg.mxu0
  %v5248 = vrot.slane %v4202, 4
  %v5249 = vrot.slane %v4237, 4
  %v5250 = vsel %vm4275, %v5248, 0
  %v5252 = vsel %vm4275, %v5249, 0
  %5254 = vmatprep.subr.mxu0 0.0
  %5255 = vmatpush1.xpose.msra.mxu0 %v5252
  %5256 = vmatprep.subr.mxu0 0.0
  %5257 = vmatpush1.xpose.msra.mxu0 0.0
  %5258 = vmatprep.subr.mxu0 0.0
  %5259 = vmatpush1.xpose.msra.mxu0 0.0
  %5260 = vmatprep.subr.mxu0 0.0
  %5261 = vmatpush1.xpose.msra.mxu0 0.0
  %5262 = vmatprep.subr.mxu0 0.0
  %5263 = vmatpush1.xpose.msra.mxu0 0.0
  %5264 = vmatprep.subr.mxu0 0.0
  %5265 = vmatpush1.xpose.msra.mxu0 0.0
  %5266 = vmatprep.subr.mxu0 0.0
  %5267 = vmatpush1.xpose.msra.mxu0 0.0
  %5268 = vmatprep.subr.mxu0 0.0
  %5269 = vmatpush1.xpose.msra.mxu0 0.0
  %5270 = vmatprep.subr.mxu0 0.0
  %5271 = vmatpush1.xpose.msra.mxu0 0.0
  %5272 = vmatprep.subr.mxu0 0.0
  %5273 = vmatpush1.xpose.msra.mxu0 0.0
  %5274 = vmatprep.subr.mxu0 0.0
  %5275 = vmatpush1.xpose.msra.mxu0 0.0
  %5276 = vmatprep.subr.mxu0 0.0
  %5277 = vmatpush1.xpose.msra.mxu0 0.0
  %5278 = vmatprep.subr.mxu0 0.0
  %5279 = vmatpush1.xpose.msra.mxu0 0.0
  %5280 = vmatprep.subr.mxu0 0.0
  %5281 = vmatpush1.xpose.msra.mxu0 0.0
  %5282 = vmatprep.subr.mxu0 0.0
  %5283 = vmatpush1.xpose.msra.mxu0 0.0
  %5284 = vmatprep.subr.mxu0 0.0
  %5285 = vmatpush1.xpose.msra.mxu0 0.0
  %5286 = vmatprep.subr.mxu0 0.0
  %5287 = vmatpush1.xpose.msra.mxu0 0.0
  %5288 = vmatprep.subr.mxu0 0.0
  %5289 = vmatpush1.xpose.msra.mxu0 0.0
  %5290 = vmatprep.subr.mxu0 0.0
  %5291 = vmatpush1.xpose.msra.mxu0 0.0
  %5292 = vmatprep.subr.mxu0 0.0
  %5293 = vmatpush1.xpose.msra.mxu0 0.0
  %5294 = vmatprep.subr.mxu0 0.0
  %5295 = vmatpush1.xpose.msra.mxu0 0.0
  %5296 = vmatprep.subr.mxu0 0.0
  %5297 = vmatpush1.xpose.msra.mxu0 0.0
  %5298 = vmatprep.subr.mxu0 0.0
  %5299 = vmatpush1.xpose.msra.mxu0 0.0
  %5300 = vmatprep.subr.mxu0 0.0
  %5301 = vmatpush1.xpose.msra.mxu0 0.0
  %5302 = vmatprep.subr.mxu0 0.0
  %5303 = vmatpush1.xpose.msra.mxu0 0.0
  %5304 = vmatprep.subr.mxu0 0.0
  %5305 = vmatpush1.xpose.msra.mxu0 0.0
  %5306 = vmatprep.subr.mxu0 0.0
  %5307 = vmatpush1.xpose.msra.mxu0 0.0
  %5308 = vmatprep.subr.mxu0 0.0
  %5309 = vmatpush1.xpose.msra.mxu0 0.0
  %5310 = vmatprep.subr.mxu0 0.0
  %5311 = vmatpush1.xpose.msra.mxu0 0.0
  %5312 = vmatprep.subr.mxu0 0.0
  %5313 = vmatpush1.xpose.msra.mxu0 0.0
  %5314 = vmatprep.subr.mxu0 0.0
  %5315 = vmatpush1.xpose.msra.mxu0 0.0
  %5316 = vmatprep.subr.mxu0 0.0
  %5317 = vmatpush1.xpose.msra.mxu0 0.0
  %5318 = vmatprep.mubr.f32.mxu0 0.0
  %5319 = vmatmul.mubr.f32.gmra.mrb[0].mxu0 %v5250
  %v5320 = vpop.f32.mrb[0].mxu0
  %v5321 = vadd.f32 0.0, %v5320
  %v5322 = vpop.f32.mrb[0].mxu0
  %5323 = vdwg.mxu0
  %v5324 = vrot.slane %v4203, 4
  %v5325 = vrot.slane %v4238, 4
  %v5326 = vsel %vm4275, %v5324, 0
  %v5328 = vsel %vm4275, %v5325, 0
  %5330 = vmatprep.subr.mxu0 0.0
  %5331 = vmatpush1.xpose.msra.mxu0 %v5328
  %5332 = vmatprep.subr.mxu0 0.0
  %5333 = vmatpush1.xpose.msra.mxu0 0.0
  %5334 = vmatprep.subr.mxu0 0.0
  %5335 = vmatpush1.xpose.msra.mxu0 0.0
  %5336 = vmatprep.subr.mxu0 0.0
  %5337 = vmatpush1.xpose.msra.mxu0 0.0
  %5338 = vmatprep.subr.mxu0 0.0
  %5339 = vmatpush1.xpose.msra.mxu0 0.0
  %5340 = vmatprep.subr.mxu0 0.0
  %5341 = vmatpush1.xpose.msra.mxu0 0.0
  %5342 = vmatprep.subr.mxu0 0.0
  %5343 = vmatpush1.xpose.msra.mxu0 0.0
  %5344 = vmatprep.subr.mxu0 0.0
  %5345 = vmatpush1.xpose.msra.mxu0 0.0
  %5346 = vmatprep.subr.mxu0 0.0
  %5347 = vmatpush1.xpose.msra.mxu0 0.0
  %5348 = vmatprep.subr.mxu0 0.0
  %5349 = vmatpush1.xpose.msra.mxu0 0.0
  %5350 = vmatprep.subr.mxu0 0.0
  %5351 = vmatpush1.xpose.msra.mxu0 0.0
  %5352 = vmatprep.subr.mxu0 0.0
  %5353 = vmatpush1.xpose.msra.mxu0 0.0
  %5354 = vmatprep.subr.mxu0 0.0
  %5355 = vmatpush1.xpose.msra.mxu0 0.0
  %5356 = vmatprep.subr.mxu0 0.0
  %5357 = vmatpush1.xpose.msra.mxu0 0.0
  %5358 = vmatprep.subr.mxu0 0.0
  %5359 = vmatpush1.xpose.msra.mxu0 0.0
  %5360 = vmatprep.subr.mxu0 0.0
  %5361 = vmatpush1.xpose.msra.mxu0 0.0
  %5362 = vmatprep.subr.mxu0 0.0
  %5363 = vmatpush1.xpose.msra.mxu0 0.0
  %5364 = vmatprep.subr.mxu0 0.0
  %5365 = vmatpush1.xpose.msra.mxu0 0.0
  %5366 = vmatprep.subr.mxu0 0.0
  %5367 = vmatpush1.xpose.msra.mxu0 0.0
  %5368 = vmatprep.subr.mxu0 0.0
  %5369 = vmatpush1.xpose.msra.mxu0 0.0
  %5370 = vmatprep.subr.mxu0 0.0
  %5371 = vmatpush1.xpose.msra.mxu0 0.0
  %5372 = vmatprep.subr.mxu0 0.0
  %5373 = vmatpush1.xpose.msra.mxu0 0.0
  %5374 = vmatprep.subr.mxu0 0.0
  %5375 = vmatpush1.xpose.msra.mxu0 0.0
  %5376 = vmatprep.subr.mxu0 0.0
  %5377 = vmatpush1.xpose.msra.mxu0 0.0
  %5378 = vmatprep.subr.mxu0 0.0
  %5379 = vmatpush1.xpose.msra.mxu0 0.0
  %5380 = vmatprep.subr.mxu0 0.0
  %5381 = vmatpush1.xpose.msra.mxu0 0.0
  %5382 = vmatprep.subr.mxu0 0.0
  %5383 = vmatpush1.xpose.msra.mxu0 0.0
  %5384 = vmatprep.subr.mxu0 0.0
  %5385 = vmatpush1.xpose.msra.mxu0 0.0
  %5386 = vmatprep.subr.mxu0 0.0
  %5387 = vmatpush1.xpose.msra.mxu0 0.0
  %5388 = vmatprep.subr.mxu0 0.0
  %5389 = vmatpush1.xpose.msra.mxu0 0.0
  %5390 = vmatprep.subr.mxu0 0.0
  %5391 = vmatpush1.xpose.msra.mxu0 0.0
  %5392 = vmatprep.subr.mxu0 0.0
  %5393 = vmatpush1.xpose.msra.mxu0 0.0
  %5394 = vmatprep.mubr.f32.mxu0 0.0
  %5395 = vmatmul.mubr.f32.gmra.mrb[0].mxu0 %v5326
  %v5396 = vpop.f32.mrb[0].mxu0
  %v5397 = vadd.f32 0.0, %v5396
  %v5398 = vpop.f32.mrb[0].mxu0
  %5399 = vdwg.mxu0
  %v5400 = vrot.slane %v4204, 4
  %v5401 = vrot.slane %v4239, 4
  %v5402 = vsel %vm4275, %v5400, 0
  %v5404 = vsel %vm4275, %v5401, 0
  %5406 = vmatprep.subr.mxu0 0.0
  %5407 = vmatpush1.xpose.msra.mxu0 %v5404
  %5408 = vmatprep.subr.mxu0 0.0
  %5409 = vmatpush1.xpose.msra.mxu0 0.0
  %5410 = vmatprep.subr.mxu0 0.0
  %5411 = vmatpush1.xpose.msra.mxu0 0.0
  %5412 = vmatprep.subr.mxu0 0.0
  %5413 = vmatpush1.xpose.msra.mxu0 0.0
  %5414 = vmatprep.subr.mxu0 0.0
  %5415 = vmatpush1.xpose.msra.mxu0 0.0
  %5416 = vmatprep.subr.mxu0 0.0
  %5417 = vmatpush1.xpose.msra.mxu0 0.0
  %5418 = vmatprep.subr.mxu0 0.0
  %5419 = vmatpush1.xpose.msra.mxu0 0.0
  %5420 = vmatprep.subr.mxu0 0.0
  %5421 = vmatpush1.xpose.msra.mxu0 0.0
  %5422 = vmatprep.subr.mxu0 0.0
  %5423 = vmatpush1.xpose.msra.mxu0 0.0
  %5424 = vmatprep.subr.mxu0 0.0
  %5425 = vmatpush1.xpose.msra.mxu0 0.0
  %5426 = vmatprep.subr.mxu0 0.0
  %5427 = vmatpush1.xpose.msra.mxu0 0.0
  %5428 = vmatprep.subr.mxu0 0.0
  %5429 = vmatpush1.xpose.msra.mxu0 0.0
  %5430 = vmatprep.subr.mxu0 0.0
  %5431 = vmatpush1.xpose.msra.mxu0 0.0
  %5432 = vmatprep.subr.mxu0 0.0
  %5433 = vmatpush1.xpose.msra.mxu0 0.0
  %5434 = vmatprep.subr.mxu0 0.0
  %5435 = vmatpush1.xpose.msra.mxu0 0.0
  %5436 = vmatprep.subr.mxu0 0.0
  %5437 = vmatpush1.xpose.msra.mxu0 0.0
  %5438 = vmatprep.subr.mxu0 0.0
  %5439 = vmatpush1.xpose.msra.mxu0 0.0
  %5440 = vmatprep.subr.mxu0 0.0
  %5441 = vmatpush1.xpose.msra.mxu0 0.0
  %5442 = vmatprep.subr.mxu0 0.0
  %5443 = vmatpush1.xpose.msra.mxu0 0.0
  %5444 = vmatprep.subr.mxu0 0.0
  %5445 = vmatpush1.xpose.msra.mxu0 0.0
  %5446 = vmatprep.subr.mxu0 0.0
  %5447 = vmatpush1.xpose.msra.mxu0 0.0
  %5448 = vmatprep.subr.mxu0 0.0
  %5449 = vmatpush1.xpose.msra.mxu0 0.0
  %5450 = vmatprep.subr.mxu0 0.0
  %5451 = vmatpush1.xpose.msra.mxu0 0.0
  %5452 = vmatprep.subr.mxu0 0.0
  %5453 = vmatpush1.xpose.msra.mxu0 0.0
  %5454 = vmatprep.subr.mxu0 0.0
  %5455 = vmatpush1.xpose.msra.mxu0 0.0
  %5456 = vmatprep.subr.mxu0 0.0
  %5457 = vmatpush1.xpose.msra.mxu0 0.0
  %5458 = vmatprep.subr.mxu0 0.0
  %5459 = vmatpush1.xpose.msra.mxu0 0.0
  %5460 = vmatprep.subr.mxu0 0.0
  %5461 = vmatpush1.xpose.msra.mxu0 0.0
  %5462 = vmatprep.subr.mxu0 0.0
  %5463 = vmatpush1.xpose.msra.mxu0 0.0
  %5464 = vmatprep.subr.mxu0 0.0
  %5465 = vmatpush1.xpose.msra.mxu0 0.0
  %5466 = vmatprep.subr.mxu0 0.0
  %5467 = vmatpush1.xpose.msra.mxu0 0.0
  %5468 = vmatprep.subr.mxu0 0.0
  %5469 = vmatpush1.xpose.msra.mxu0 0.0
  %5470 = vmatprep.mubr.f32.mxu0 0.0
  %5471 = vmatmul.mubr.f32.gmra.mrb[0].mxu0 %v5402
  %v5472 = vpop.f32.mrb[0].mxu0
  %v5473 = vadd.f32 0.0, %v5472
  %v5474 = vpop.f32.mrb[0].mxu0
  %5475 = vdwg.mxu0
  %v5476 = vsel %vm4498, %v5321, -inf
  %5477 = vmax.xlane.f32.xlu0 %v5476
  %v5478 = vpop.xlane.xlu0 %5477
  %v5479 = vsel %vm4498, %v5397, -inf
  %5480 = vmax.xlane.f32.xlu0 %v5479
  %v5481 = vpop.xlane.xlu0 %5480
  %v5482 = vsel %vm4498, %v5473, -inf
  %5483 = vmax.xlane.f32.xlu0 %v5482
  %v5484 = vpop.xlane.xlu0 %5483
  %v5485 = vsub.f32 %v5321, %v5478
  %v5486 = vsub.f32 %v5397, %v5481
  %v5487 = vsub.f32 %v5473, %v5484
  %v5488 = vmul.f32 %v5485, 1.442695
  %v5489 = vpow.pop %v5488
  %v5490 = vmul.f32 %v5486, 1.442695
  %v5491 = vpow.pop %v5490
  %v5492 = vmul.f32 %v5487, 1.442695
  %v5493 = vpow.pop %v5492
  %v5494 = vsel %vm4498, %v5489, 0.0
  %5495 = vadd.xlane.f32.xlu0 %v5494
  %v5496 = vpop.xlane.xlu0 %5495
  %v5497 = vsel %vm4498, %v5491, 0.0
  %5498 = vadd.xlane.f32.xlu0 %v5497
  %v5499 = vpop.xlane.xlu0 %5498
  %v5500 = vsel %vm4498, %v5493, 0.0
  %5501 = vadd.xlane.f32.xlu0 %v5500
  %v5502 = vpop.xlane.xlu0 %5501
  %v5503 = vrcp.pop %v5496
  %v5504 = vmul.f32 %v5489, %v5503
  %v5505 = vrcp.pop %v5499
  %v5506 = vmul.f32 %v5491, %v5505
  %v5507 = vrcp.pop %v5502
  %v5508 = vmul.f32 %v5493, %v5507
  %v5509 = vrot.slane %v4272, 4
  %v5511 = vsel %vm4532, %v5504, 0
  %v5513 = vsel %vm4536, %v5509, 0
  %5515 = vmatprep.subr.mxu0 0.0
  %5516 = vmatpush1.msra.mxu0 %v5513
  %5517 = vmatprep.subr.mxu0 0.0
  %5518 = vmatpush1.msra.mxu0 0.0
  %5519 = vmatprep.subr.mxu0 0.0
  %5520 = vmatpush1.msra.mxu0 0.0
  %5521 = vmatprep.subr.mxu0 0.0
  %5522 = vmatpush1.msra.mxu0 0.0
  %5523 = vmatprep.subr.mxu0 0.0
  %5524 = vmatpush1.msra.mxu0 0.0
  %5525 = vmatprep.subr.mxu0 0.0
  %5526 = vmatpush1.msra.mxu0 0.0
  %5527 = vmatprep.subr.mxu0 0.0
  %5528 = vmatpush1.msra.mxu0 0.0
  %5529 = vmatprep.subr.mxu0 0.0
  %5530 = vmatpush1.msra.mxu0 0.0
  %5531 = vmatprep.subr.mxu0 0.0
  %5532 = vmatpush1.msra.mxu0 0.0
  %5533 = vmatprep.subr.mxu0 0.0
  %5534 = vmatpush1.msra.mxu0 0.0
  %5535 = vmatprep.subr.mxu0 0.0
  %5536 = vmatpush1.msra.mxu0 0.0
  %5537 = vmatprep.subr.mxu0 0.0
  %5538 = vmatpush1.msra.mxu0 0.0
  %5539 = vmatprep.subr.mxu0 0.0
  %5540 = vmatpush1.msra.mxu0 0.0
  %5541 = vmatprep.subr.mxu0 0.0
  %5542 = vmatpush1.msra.mxu0 0.0
  %5543 = vmatprep.subr.mxu0 0.0
  %5544 = vmatpush1.msra.mxu0 0.0
  %5545 = vmatprep.subr.mxu0 0.0
  %5546 = vmatpush1.msra.mxu0 0.0
  %5547 = vmatprep.subr.mxu0 0.0
  %5548 = vmatpush1.msra.mxu0 0.0
  %5549 = vmatprep.subr.mxu0 0.0
  %5550 = vmatpush1.msra.mxu0 0.0
  %5551 = vmatprep.subr.mxu0 0.0
  %5552 = vmatpush1.msra.mxu0 0.0
  %5553 = vmatprep.subr.mxu0 0.0
  %5554 = vmatpush1.msra.mxu0 0.0
  %5555 = vmatprep.subr.mxu0 0.0
  %5556 = vmatpush1.msra.mxu0 0.0
  %5557 = vmatprep.subr.mxu0 0.0
  %5558 = vmatpush1.msra.mxu0 0.0
  %5559 = vmatprep.subr.mxu0 0.0
  %5560 = vmatpush1.msra.mxu0 0.0
  %5561 = vmatprep.subr.mxu0 0.0
  %5562 = vmatpush1.msra.mxu0 0.0
  %5563 = vmatprep.subr.mxu0 0.0
  %5564 = vmatpush1.msra.mxu0 0.0
  %5565 = vmatprep.subr.mxu0 0.0
  %5566 = vmatpush1.msra.mxu0 0.0
  %5567 = vmatprep.subr.mxu0 0.0
  %5568 = vmatpush1.msra.mxu0 0.0
  %5569 = vmatprep.subr.mxu0 0.0
  %5570 = vmatpush1.msra.mxu0 0.0
  %5571 = vmatprep.subr.mxu0 0.0
  %5572 = vmatpush1.msra.mxu0 0.0
  %5573 = vmatprep.subr.mxu0 0.0
  %5574 = vmatpush1.msra.mxu0 0.0
  %5575 = vmatprep.subr.mxu0 0.0
  %5576 = vmatpush1.msra.mxu0 0.0
  %5577 = vmatprep.subr.mxu0 0.0
  %5578 = vmatpush1.msra.mxu0 0.0
  %5579 = vmatprep.mubr.f32.mxu0 0.0
  %5580 = vmatmul.mubr.f32.gmra.mrb[0].mxu0 %v5511
  %v5581 = vpop.f32.mrb[0].mxu0
  %v5582 = vadd.f32 0.0, %v5581
  %v5583 = vpop.f32.mrb[0].mxu0
  %5584 = vdwg.mxu0
  %v5585 = vrot.slane %v4273, 4
  %v5587 = vsel %vm4532, %v5506, 0
  %v5589 = vsel %vm4536, %v5585, 0
  %5591 = vmatprep.subr.mxu0 0.0
  %5592 = vmatpush1.msra.mxu0 %v5589
  %5593 = vmatprep.subr.mxu0 0.0
  %5594 = vmatpush1.msra.mxu0 0.0
  %5595 = vmatprep.subr.mxu0 0.0
  %5596 = vmatpush1.msra.mxu0 0.0
  %5597 = vmatprep.subr.mxu0 0.0
  %5598 = vmatpush1.msra.mxu0 0.0
  %5599 = vmatprep.subr.mxu0 0.0
  %5600 = vmatpush1.msra.mxu0 0.0
  %5601 = vmatprep.subr.mxu0 0.0
  %5602 = vmatpush1.msra.mxu0 0.0
  %5603 = vmatprep.subr.mxu0 0.0
  %5604 = vmatpush1.msra.mxu0 0.0
  %5605 = vmatprep.subr.mxu0 0.0
  %5606 = vmatpush1.msra.mxu0 0.0
  %5607 = vmatprep.subr.mxu0 0.0
  %5608 = vmatpush1.msra.mxu0 0.0
  %5609 = vmatprep.subr.mxu0 0.0
  %5610 = vmatpush1.msra.mxu0 0.0
  %5611 = vmatprep.subr.mxu0 0.0
  %5612 = vmatpush1.msra.mxu0 0.0
  %5613 = vmatprep.subr.mxu0 0.0
  %5614 = vmatpush1.msra.mxu0 0.0
  %5615 = vmatprep.subr.mxu0 0.0
  %5616 = vmatpush1.msra.mxu0 0.0
  %5617 = vmatprep.subr.mxu0 0.0
  %5618 = vmatpush1.msra.mxu0 0.0
  %5619 = vmatprep.subr.mxu0 0.0
  %5620 = vmatpush1.msra.mxu0 0.0
  %5621 = vmatprep.subr.mxu0 0.0
  %5622 = vmatpush1.msra.mxu0 0.0
  %5623 = vmatprep.subr.mxu0 0.0
  %5624 = vmatpush1.msra.mxu0 0.0
  %5625 = vmatprep.subr.mxu0 0.0
  %5626 = vmatpush1.msra.mxu0 0.0
  %5627 = vmatprep.subr.mxu0 0.0
  %5628 = vmatpush1.msra.mxu0 0.0
  %5629 = vmatprep.subr.mxu0 0.0
  %5630 = vmatpush1.msra.mxu0 0.0
  %5631 = vmatprep.subr.mxu0 0.0
  %5632 = vmatpush1.msra.mxu0 0.0
  %5633 = vmatprep.subr.mxu0 0.0
  %5634 = vmatpush1.msra.mxu0 0.0
  %5635 = vmatprep.subr.mxu0 0.0
  %5636 = vmatpush1.msra.mxu0 0.0
  %5637 = vmatprep.subr.mxu0 0.0
  %5638 = vmatpush1.msra.mxu0 0.0
  %5639 = vmatprep.subr.mxu0 0.0
  %5640 = vmatpush1.msra.mxu0 0.0
  %5641 = vmatprep.subr.mxu0 0.0
  %5642 = vmatpush1.msra.mxu0 0.0
  %5643 = vmatprep.subr.mxu0 0.0
  %5644 = vmatpush1.msra.mxu0 0.0
  %5645 = vmatprep.subr.mxu0 0.0
  %5646 = vmatpush1.msra.mxu0 0.0
  %5647 = vmatprep.subr.mxu0 0.0
  %5648 = vmatpush1.msra.mxu0 0.0
  %5649 = vmatprep.subr.mxu0 0.0
  %5650 = vmatpush1.msra.mxu0 0.0
  %5651 = vmatprep.subr.mxu0 0.0
  %5652 = vmatpush1.msra.mxu0 0.0
  %5653 = vmatprep.subr.mxu0 0.0
  %5654 = vmatpush1.msra.mxu0 0.0
  %5655 = vmatprep.mubr.f32.mxu0 0.0
  %5656 = vmatmul.mubr.f32.gmra.mrb[0].mxu0 %v5587
  %v5657 = vpop.f32.mrb[0].mxu0
  %v5658 = vadd.f32 0.0, %v5657
  %v5659 = vpop.f32.mrb[0].mxu0
  %5660 = vdwg.mxu0
  %v5661 = vrot.slane %v4274, 4
  %v5663 = vsel %vm4532, %v5508, 0
  %v5665 = vsel %vm4536, %v5661, 0
  %5667 = vmatprep.subr.mxu0 0.0
  %5668 = vmatpush1.msra.mxu0 %v5665
  %5669 = vmatprep.subr.mxu0 0.0
  %5670 = vmatpush1.msra.mxu0 0.0
  %5671 = vmatprep.subr.mxu0 0.0
  %5672 = vmatpush1.msra.mxu0 0.0
  %5673 = vmatprep.subr.mxu0 0.0
  %5674 = vmatpush1.msra.mxu0 0.0
  %5675 = vmatprep.subr.mxu0 0.0
  %5676 = vmatpush1.msra.mxu0 0.0
  %5677 = vmatprep.subr.mxu0 0.0
  %5678 = vmatpush1.msra.mxu0 0.0
  %5679 = vmatprep.subr.mxu0 0.0
  %5680 = vmatpush1.msra.mxu0 0.0
  %5681 = vmatprep.subr.mxu0 0.0
  %5682 = vmatpush1.msra.mxu0 0.0
  %5683 = vmatprep.subr.mxu0 0.0
  %5684 = vmatpush1.msra.mxu0 0.0
  %5685 = vmatprep.subr.mxu0 0.0
  %5686 = vmatpush1.msra.mxu0 0.0
  %5687 = vmatprep.subr.mxu0 0.0
  %5688 = vmatpush1.msra.mxu0 0.0
  %5689 = vmatprep.subr.mxu0 0.0
  %5690 = vmatpush1.msra.mxu0 0.0
  %5691 = vmatprep.subr.mxu0 0.0
  %5692 = vmatpush1.msra.mxu0 0.0
  %5693 = vmatprep.subr.mxu0 0.0
  %5694 = vmatpush1.msra.mxu0 0.0
  %5695 = vmatprep.subr.mxu0 0.0
  %5696 = vmatpush1.msra.mxu0 0.0
  %5697 = vmatprep.subr.mxu0 0.0
  %5698 = vmatpush1.msra.mxu0 0.0
  %5699 = vmatprep.subr.mxu0 0.0
  %5700 = vmatpush1.msra.mxu0 0.0
  %5701 = vmatprep.subr.mxu0 0.0
  %5702 = vmatpush1.msra.mxu0 0.0
  %5703 = vmatprep.subr.mxu0 0.0
  %5704 = vmatpush1.msra.mxu0 0.0
  %5705 = vmatprep.subr.mxu0 0.0
  %5706 = vmatpush1.msra.mxu0 0.0
  %5707 = vmatprep.subr.mxu0 0.0
  %5708 = vmatpush1.msra.mxu0 0.0
  %5709 = vmatprep.subr.mxu0 0.0
  %5710 = vmatpush1.msra.mxu0 0.0
  %5711 = vmatprep.subr.mxu0 0.0
  %5712 = vmatpush1.msra.mxu0 0.0
  %5713 = vmatprep.subr.mxu0 0.0
  %5714 = vmatpush1.msra.mxu0 0.0
  %5715 = vmatprep.subr.mxu0 0.0
  %5716 = vmatpush1.msra.mxu0 0.0
  %5717 = vmatprep.subr.mxu0 0.0
  %5718 = vmatpush1.msra.mxu0 0.0
  %5719 = vmatprep.subr.mxu0 0.0
  %5720 = vmatpush1.msra.mxu0 0.0
  %5721 = vmatprep.subr.mxu0 0.0
  %5722 = vmatpush1.msra.mxu0 0.0
  %5723 = vmatprep.subr.mxu0 0.0
  %5724 = vmatpush1.msra.mxu0 0.0
  %5725 = vmatprep.subr.mxu0 0.0
  %5726 = vmatpush1.msra.mxu0 0.0
  %5727 = vmatprep.subr.mxu0 0.0
  %5728 = vmatpush1.msra.mxu0 0.0
  %5729 = vmatprep.subr.mxu0 0.0
  %5730 = vmatpush1.msra.mxu0 0.0
  %5731 = vmatprep.mubr.f32.mxu0 0.0
  %5732 = vmatmul.mubr.f32.gmra.mrb[0].mxu0 %v5663
  %v5733 = vpop.f32.mrb[0].mxu0
  %v5734 = vadd.f32 0.0, %v5733
  %v5735 = vpop.f32.mrb[0].mxu0
  %5736 = vdwg.mxu0
  %v5737 = vrot.slane %v4202, 6
  %v5738 = vrot.slane %v4237, 6
  %v5739 = vsel %vm4275, %v5737, 0
  %v5741 = vsel %vm4275, %v5738, 0
  %5743 = vmatprep.subr.mxu0 0.0
  %5744 = vmatpush1.xpose.msra.mxu0 %v5741
  %5745 = vmatprep.subr.mxu0 0.0
  %5746 = vmatpush1.xpose.msra.mxu0 0.0
  %5747 = vmatprep.subr.mxu0 0.0
  %5748 = vmatpush1.xpose.msra.mxu0 0.0
  %5749 = vmatprep.subr.mxu0 0.0
  %5750 = vmatpush1.xpose.msra.mxu0 0.0
  %5751 = vmatprep.subr.mxu0 0.0
  %5752 = vmatpush1.xpose.msra.mxu0 0.0
  %5753 = vmatprep.subr.mxu0 0.0
  %5754 = vmatpush1.xpose.msra.mxu0 0.0
  %5755 = vmatprep.subr.mxu0 0.0
  %5756 = vmatpush1.xpose.msra.mxu0 0.0
  %5757 = vmatprep.subr.mxu0 0.0
  %5758 = vmatpush1.xpose.msra.mxu0 0.0
  %5759 = vmatprep.subr.mxu0 0.0
  %5760 = vmatpush1.xpose.msra.mxu0 0.0
  %5761 = vmatprep.subr.mxu0 0.0
  %5762 = vmatpush1.xpose.msra.mxu0 0.0
  %5763 = vmatprep.subr.mxu0 0.0
  %5764 = vmatpush1.xpose.msra.mxu0 0.0
  %5765 = vmatprep.subr.mxu0 0.0
  %5766 = vmatpush1.xpose.msra.mxu0 0.0
  %5767 = vmatprep.subr.mxu0 0.0
  %5768 = vmatpush1.xpose.msra.mxu0 0.0
  %5769 = vmatprep.subr.mxu0 0.0
  %5770 = vmatpush1.xpose.msra.mxu0 0.0
  %5771 = vmatprep.subr.mxu0 0.0
  %5772 = vmatpush1.xpose.msra.mxu0 0.0
  %5773 = vmatprep.subr.mxu0 0.0
  %5774 = vmatpush1.xpose.msra.mxu0 0.0
  %5775 = vmatprep.subr.mxu0 0.0
  %5776 = vmatpush1.xpose.msra.mxu0 0.0
  %5777 = vmatprep.subr.mxu0 0.0
  %5778 = vmatpush1.xpose.msra.mxu0 0.0
  %5779 = vmatprep.subr.mxu0 0.0
  %5780 = vmatpush1.xpose.msra.mxu0 0.0
  %5781 = vmatprep.subr.mxu0 0.0
  %5782 = vmatpush1.xpose.msra.mxu0 0.0
  %5783 = vmatprep.subr.mxu0 0.0
  %5784 = vmatpush1.xpose.msra.mxu0 0.0
  %5785 = vmatprep.subr.mxu0 0.0
  %5786 = vmatpush1.xpose.msra.mxu0 0.0
  %5787 = vmatprep.subr.mxu0 0.0
  %5788 = vmatpush1.xpose.msra.mxu0 0.0
  %5789 = vmatprep.subr.mxu0 0.0
  %5790 = vmatpush1.xpose.msra.mxu0 0.0
  %5791 = vmatprep.subr.mxu0 0.0
  %5792 = vmatpush1.xpose.msra.mxu0 0.0
  %5793 = vmatprep.subr.mxu0 0.0
  %5794 = vmatpush1.xpose.msra.mxu0 0.0
  %5795 = vmatprep.subr.mxu0 0.0
  %5796 = vmatpush1.xpose.msra.mxu0 0.0
  %5797 = vmatprep.subr.mxu0 0.0
  %5798 = vmatpush1.xpose.msra.mxu0 0.0
  %5799 = vmatprep.subr.mxu0 0.0
  %5800 = vmatpush1.xpose.msra.mxu0 0.0
  %5801 = vmatprep.subr.mxu0 0.0
  %5802 = vmatpush1.xpose.msra.mxu0 0.0
  %5803 = vmatprep.subr.mxu0 0.0
  %5804 = vmatpush1.xpose.msra.mxu0 0.0
  %5805 = vmatprep.subr.mxu0 0.0
  %5806 = vmatpush1.xpose.msra.mxu0 0.0
  %5807 = vmatprep.mubr.f32.mxu0 0.0
  %5808 = vmatmul.mubr.f32.gmra.mrb[0].mxu0 %v5739
  %v5809 = vpop.f32.mrb[0].mxu0
  %v5810 = vadd.f32 0.0, %v5809
  %v5811 = vpop.f32.mrb[0].mxu0
  %5812 = vdwg.mxu0
  %v5813 = vrot.slane %v4203, 6
  %v5814 = vrot.slane %v4238, 6
  %v5815 = vsel %vm4275, %v5813, 0
  %v5817 = vsel %vm4275, %v5814, 0
  %5819 = vmatprep.subr.mxu0 0.0
  %5820 = vmatpush1.xpose.msra.mxu0 %v5817
  %5821 = vmatprep.subr.mxu0 0.0
  %5822 = vmatpush1.xpose.msra.mxu0 0.0
  %5823 = vmatprep.subr.mxu0 0.0
  %5824 = vmatpush1.xpose.msra.mxu0 0.0
  %5825 = vmatprep.subr.mxu0 0.0
  %5826 = vmatpush1.xpose.msra.mxu0 0.0
  %5827 = vmatprep.subr.mxu0 0.0
  %5828 = vmatpush1.xpose.msra.mxu0 0.0
  %5829 = vmatprep.subr.mxu0 0.0
  %5830 = vmatpush1.xpose.msra.mxu0 0.0
  %5831 = vmatprep.subr.mxu0 0.0
  %5832 = vmatpush1.xpose.msra.mxu0 0.0
  %5833 = vmatprep.subr.mxu0 0.0
  %5834 = vmatpush1.xpose.msra.mxu0 0.0
  %5835 = vmatprep.subr.mxu0 0.0
  %5836 = vmatpush1.xpose.msra.mxu0 0.0
  %5837 = vmatprep.subr.mxu0 0.0
  %5838 = vmatpush1.xpose.msra.mxu0 0.0
  %5839 = vmatprep.subr.mxu0 0.0
  %5840 = vmatpush1.xpose.msra.mxu0 0.0
  %5841 = vmatprep.subr.mxu0 0.0
  %5842 = vmatpush1.xpose.msra.mxu0 0.0
  %5843 = vmatprep.subr.mxu0 0.0
  %5844 = vmatpush1.xpose.msra.mxu0 0.0
  %5845 = vmatprep.subr.mxu0 0.0
  %5846 = vmatpush1.xpose.msra.mxu0 0.0
  %5847 = vmatprep.subr.mxu0 0.0
  %5848 = vmatpush1.xpose.msra.mxu0 0.0
  %5849 = vmatprep.subr.mxu0 0.0
  %5850 = vmatpush1.xpose.msra.mxu0 0.0
  %5851 = vmatprep.subr.mxu0 0.0
  %5852 = vmatpush1.xpose.msra.mxu0 0.0
  %5853 = vmatprep.subr.mxu0 0.0
  %5854 = vmatpush1.xpose.msra.mxu0 0.0
  %5855 = vmatprep.subr.mxu0 0.0
  %5856 = vmatpush1.xpose.msra.mxu0 0.0
  %5857 = vmatprep.subr.mxu0 0.0
  %5858 = vmatpush1.xpose.msra.mxu0 0.0
  %5859 = vmatprep.subr.mxu0 0.0
  %5860 = vmatpush1.xpose.msra.mxu0 0.0
  %5861 = vmatprep.subr.mxu0 0.0
  %5862 = vmatpush1.xpose.msra.mxu0 0.0
  %5863 = vmatprep.subr.mxu0 0.0
  %5864 = vmatpush1.xpose.msra.mxu0 0.0
  %5865 = vmatprep.subr.mxu0 0.0
  %5866 = vmatpush1.xpose.msra.mxu0 0.0
  %5867 = vmatprep.subr.mxu0 0.0
  %5868 = vmatpush1.xpose.msra.mxu0 0.0
  %5869 = vmatprep.subr.mxu0 0.0
  %5870 = vmatpush1.xpose.msra.mxu0 0.0
  %5871 = vmatprep.subr.mxu0 0.0
  %5872 = vmatpush1.xpose.msra.mxu0 0.0
  %5873 = vmatprep.subr.mxu0 0.0
  %5874 = vmatpush1.xpose.msra.mxu0 0.0
  %5875 = vmatprep.subr.mxu0 0.0
  %5876 = vmatpush1.xpose.msra.mxu0 0.0
  %5877 = vmatprep.subr.mxu0 0.0
  %5878 = vmatpush1.xpose.msra.mxu0 0.0
  %5879 = vmatprep.subr.mxu0 0.0
  %5880 = vmatpush1.xpose.msra.mxu0 0.0
  %5881 = vmatprep.subr.mxu0 0.0
  %5882 = vmatpush1.xpose.msra.mxu0 0.0
  %5883 = vmatprep.mubr.f32.mxu0 0.0
  %5884 = vmatmul.mubr.f32.gmra.mrb[0].mxu0 %v5815
  %v5885 = vpop.f32.mrb[0].mxu0
  %v5886 = vadd.f32 0.0, %v5885
  %v5887 = vpop.f32.mrb[0].mxu0
  %5888 = vdwg.mxu0
  %v5889 = vrot.slane %v4204, 6
  %v5890 = vrot.slane %v4239, 6
  %v5891 = vsel %vm4275, %v5889, 0
  %v5893 = vsel %vm4275, %v5890, 0
  %5895 = vmatprep.subr.mxu0 0.0
  %5896 = vmatpush1.xpose.msra.mxu0 %v5893
  %5897 = vmatprep.subr.mxu0 0.0
  %5898 = vmatpush1.xpose.msra.mxu0 0.0
  %5899 = vmatprep.subr.mxu0 0.0
  %5900 = vmatpush1.xpose.msra.mxu0 0.0
  %5901 = vmatprep.subr.mxu0 0.0
  %5902 = vmatpush1.xpose.msra.mxu0 0.0
  %5903 = vmatprep.subr.mxu0 0.0
  %5904 = vmatpush1.xpose.msra.mxu0 0.0
  %5905 = vmatprep.subr.mxu0 0.0
  %5906 = vmatpush1.xpose.msra.mxu0 0.0
  %5907 = vmatprep.subr.mxu0 0.0
  %5908 = vmatpush1.xpose.msra.mxu0 0.0
  %5909 = vmatprep.subr.mxu0 0.0
  %5910 = vmatpush1.xpose.msra.mxu0 0.0
  %5911 = vmatprep.subr.mxu0 0.0
  %5912 = vmatpush1.xpose.msra.mxu0 0.0
  %5913 = vmatprep.subr.mxu0 0.0
  %5914 = vmatpush1.xpose.msra.mxu0 0.0
  %5915 = vmatprep.subr.mxu0 0.0
  %5916 = vmatpush1.xpose.msra.mxu0 0.0
  %5917 = vmatprep.subr.mxu0 0.0
  %5918 = vmatpush1.xpose.msra.mxu0 0.0
  %5919 = vmatprep.subr.mxu0 0.0
  %5920 = vmatpush1.xpose.msra.mxu0 0.0
  %5921 = vmatprep.subr.mxu0 0.0
  %5922 = vmatpush1.xpose.msra.mxu0 0.0
  %5923 = vmatprep.subr.mxu0 0.0
  %5924 = vmatpush1.xpose.msra.mxu0 0.0
  %5925 = vmatprep.subr.mxu0 0.0
  %5926 = vmatpush1.xpose.msra.mxu0 0.0
  %5927 = vmatprep.subr.mxu0 0.0
  %5928 = vmatpush1.xpose.msra.mxu0 0.0
  %5929 = vmatprep.subr.mxu0 0.0
  %5930 = vmatpush1.xpose.msra.mxu0 0.0
  %5931 = vmatprep.subr.mxu0 0.0
  %5932 = vmatpush1.xpose.msra.mxu0 0.0
  %5933 = vmatprep.subr.mxu0 0.0
  %5934 = vmatpush1.xpose.msra.mxu0 0.0
  %5935 = vmatprep.subr.mxu0 0.0
  %5936 = vmatpush1.xpose.msra.mxu0 0.0
  %5937 = vmatprep.subr.mxu0 0.0
  %5938 = vmatpush1.xpose.msra.mxu0 0.0
  %5939 = vmatprep.subr.mxu0 0.0
  %5940 = vmatpush1.xpose.msra.mxu0 0.0
  %5941 = vmatprep.subr.mxu0 0.0
  %5942 = vmatpush1.xpose.msra.mxu0 0.0
  %5943 = vmatprep.subr.mxu0 0.0
  %5944 = vmatpush1.xpose.msra.mxu0 0.0
  %5945 = vmatprep.subr.mxu0 0.0
  %5946 = vmatpush1.xpose.msra.mxu0 0.0
  %5947 = vmatprep.subr.mxu0 0.0
  %5948 = vmatpush1.xpose.msra.mxu0 0.0
  %5949 = vmatprep.subr.mxu0 0.0
  %5950 = vmatpush1.xpose.msra.mxu0 0.0
  %5951 = vmatprep.subr.mxu0 0.0
  %5952 = vmatpush1.xpose.msra.mxu0 0.0
  %5953 = vmatprep.subr.mxu0 0.0
  %5954 = vmatpush1.xpose.msra.mxu0 0.0
  %5955 = vmatprep.subr.mxu0 0.0
  %5956 = vmatpush1.xpose.msra.mxu0 0.0
  %5957 = vmatprep.subr.mxu0 0.0
  %5958 = vmatpush1.xpose.msra.mxu0 0.0
  %5959 = vmatprep.mubr.f32.mxu0 0.0
  %5960 = vmatmul.mubr.f32.gmra.mrb[0].mxu0 %v5891
  %v5961 = vpop.f32.mrb[0].mxu0
  %v5962 = vadd.f32 0.0, %v5961
  %v5963 = vpop.f32.mrb[0].mxu0
  %5964 = vdwg.mxu0
  %v5965 = vsel %vm4498, %v5810, -inf
  %5966 = vmax.xlane.f32.xlu0 %v5965
  %v5967 = vpop.xlane.xlu0 %5966
  %v5968 = vsel %vm4498, %v5886, -inf
  %5969 = vmax.xlane.f32.xlu0 %v5968
  %v5970 = vpop.xlane.xlu0 %5969
  %v5971 = vsel %vm4498, %v5962, -inf
  %5972 = vmax.xlane.f32.xlu0 %v5971
  %v5973 = vpop.xlane.xlu0 %5972
  %v5974 = vsub.f32 %v5810, %v5967
  %v5975 = vsub.f32 %v5886, %v5970
  %v5976 = vsub.f32 %v5962, %v5973
  %v5977 = vmul.f32 %v5974, 1.442695
  %v5978 = vpow.pop %v5977
  %v5979 = vmul.f32 %v5975, 1.442695
  %v5980 = vpow.pop %v5979
  %v5981 = vmul.f32 %v5976, 1.442695
  %v5982 = vpow.pop %v5981
  %v5983 = vsel %vm4498, %v5978, 0.0
  %5984 = vadd.xlane.f32.xlu0 %v5983
  %v5985 = vpop.xlane.xlu0 %5984
  %v5986 = vsel %vm4498, %v5980, 0.0
  %5987 = vadd.xlane.f32.xlu0 %v5986
  %v5988 = vpop.xlane.xlu0 %5987
  %v5989 = vsel %vm4498, %v5982, 0.0
  %5990 = vadd.xlane.f32.xlu0 %v5989
  %v5991 = vpop.xlane.xlu0 %5990
  %v5992 = vrcp.pop %v5985
  %v5993 = vmul.f32 %v5978, %v5992
  %v5994 = vrcp.pop %v5988
  %v5995 = vmul.f32 %v5980, %v5994
  %v5996 = vrcp.pop %v5991
  %v5997 = vmul.f32 %v5982, %v5996
  %v5998 = vrot.slane %v4272, 6
  %v6000 = vsel %vm4532, %v5993, 0
  %v6002 = vsel %vm4536, %v5998, 0
  %6004 = vmatprep.subr.mxu0 0.0
  %6005 = vmatpush1.msra.mxu0 %v6002
  %6006 = vmatprep.subr.mxu0 0.0
  %6007 = vmatpush1.msra.mxu0 0.0
  %6008 = vmatprep.subr.mxu0 0.0
  %6009 = vmatpush1.msra.mxu0 0.0
  %6010 = vmatprep.subr.mxu0 0.0
  %6011 = vmatpush1.msra.mxu0 0.0
  %6012 = vmatprep.subr.mxu0 0.0
  %6013 = vmatpush1.msra.mxu0 0.0
  %6014 = vmatprep.subr.mxu0 0.0
  %6015 = vmatpush1.msra.mxu0 0.0
  %6016 = vmatprep.subr.mxu0 0.0
  %6017 = vmatpush1.msra.mxu0 0.0
  %6018 = vmatprep.subr.mxu0 0.0
  %6019 = vmatpush1.msra.mxu0 0.0
  %6020 = vmatprep.subr.mxu0 0.0
  %6021 = vmatpush1.msra.mxu0 0.0
  %6022 = vmatprep.subr.mxu0 0.0
  %6023 = vmatpush1.msra.mxu0 0.0
  %6024 = vmatprep.subr.mxu0 0.0
  %6025 = vmatpush1.msra.mxu0 0.0
  %6026 = vmatprep.subr.mxu0 0.0
  %6027 = vmatpush1.msra.mxu0 0.0
  %6028 = vmatprep.subr.mxu0 0.0
  %6029 = vmatpush1.msra.mxu0 0.0
  %6030 = vmatprep.subr.mxu0 0.0
  %6031 = vmatpush1.msra.mxu0 0.0
  %6032 = vmatprep.subr.mxu0 0.0
  %6033 = vmatpush1.msra.mxu0 0.0
  %6034 = vmatprep.subr.mxu0 0.0
  %6035 = vmatpush1.msra.mxu0 0.0
  %6036 = vmatprep.subr.mxu0 0.0
  %6037 = vmatpush1.msra.mxu0 0.0
  %6038 = vmatprep.subr.mxu0 0.0
  %6039 = vmatpush1.msra.mxu0 0.0
  %6040 = vmatprep.subr.mxu0 0.0
  %6041 = vmatpush1.msra.mxu0 0.0
  %6042 = vmatprep.subr.mxu0 0.0
  %6043 = vmatpush1.msra.mxu0 0.0
  %6044 = vmatprep.subr.mxu0 0.0
  %6045 = vmatpush1.msra.mxu0 0.0
  %6046 = vmatprep.subr.mxu0 0.0
  %6047 = vmatpush1.msra.mxu0 0.0
  %6048 = vmatprep.subr.mxu0 0.0
  %6049 = vmatpush1.msra.mxu0 0.0
  %6050 = vmatprep.subr.mxu0 0.0
  %6051 = vmatpush1.msra.mxu0 0.0
  %6052 = vmatprep.subr.mxu0 0.0
  %6053 = vmatpush1.msra.mxu0 0.0
  %6054 = vmatprep.subr.mxu0 0.0
  %6055 = vmatpush1.msra.mxu0 0.0
  %6056 = vmatprep.subr.mxu0 0.0
  %6057 = vmatpush1.msra.mxu0 0.0
  %6058 = vmatprep.subr.mxu0 0.0
  %6059 = vmatpush1.msra.mxu0 0.0
  %6060 = vmatprep.subr.mxu0 0.0
  %6061 = vmatpush1.msra.mxu0 0.0
  %6062 = vmatprep.subr.mxu0 0.0
  %6063 = vmatpush1.msra.mxu0 0.0
  %6064 = vmatprep.subr.mxu0 0.0
  %6065 = vmatpush1.msra.mxu0 0.0
  %6066 = vmatprep.subr.mxu0 0.0
  %6067 = vmatpush1.msra.mxu0 0.0
  %6068 = vmatprep.mubr.f32.mxu0 0.0
  %6069 = vmatmul.mubr.f32.gmra.mrb[0].mxu0 %v6000
  %v6070 = vpop.f32.mrb[0].mxu0
  %v6071 = vadd.f32 0.0, %v6070
  %v6072 = vpop.f32.mrb[0].mxu0
  %6073 = vdwg.mxu0
  %v6074 = vrot.slane %v4273, 6
  %v6076 = vsel %vm4532, %v5995, 0
  %v6078 = vsel %vm4536, %v6074, 0
  %6080 = vmatprep.subr.mxu0 0.0
  %6081 = vmatpush1.msra.mxu0 %v6078
  %6082 = vmatprep.subr.mxu0 0.0
  %6083 = vmatpush1.msra.mxu0 0.0
  %6084 = vmatprep.subr.mxu0 0.0
  %6085 = vmatpush1.msra.mxu0 0.0
  %6086 = vmatprep.subr.mxu0 0.0
  %6087 = vmatpush1.msra.mxu0 0.0
  %6088 = vmatprep.subr.mxu0 0.0
  %6089 = vmatpush1.msra.mxu0 0.0
  %6090 = vmatprep.subr.mxu0 0.0
  %6091 = vmatpush1.msra.mxu0 0.0
  %6092 = vmatprep.subr.mxu0 0.0
  %6093 = vmatpush1.msra.mxu0 0.0
  %6094 = vmatprep.subr.mxu0 0.0
  %6095 = vmatpush1.msra.mxu0 0.0
  %6096 = vmatprep.subr.mxu0 0.0
  %6097 = vmatpush1.msra.mxu0 0.0
  %6098 = vmatprep.subr.mxu0 0.0
  %6099 = vmatpush1.msra.mxu0 0.0
  %6100 = vmatprep.subr.mxu0 0.0
  %6101 = vmatpush1.msra.mxu0 0.0
  %6102 = vmatprep.subr.mxu0 0.0
  %6103 = vmatpush1.msra.mxu0 0.0
  %6104 = vmatprep.subr.mxu0 0.0
  %6105 = vmatpush1.msra.mxu0 0.0
  %6106 = vmatprep.subr.mxu0 0.0
  %6107 = vmatpush1.msra.mxu0 0.0
  %6108 = vmatprep.subr.mxu0 0.0
  %6109 = vmatpush1.msra.mxu0 0.0
  %6110 = vmatprep.subr.mxu0 0.0
  %6111 = vmatpush1.msra.mxu0 0.0
  %6112 = vmatprep.subr.mxu0 0.0
  %6113 = vmatpush1.msra.mxu0 0.0
  %6114 = vmatprep.subr.mxu0 0.0
  %6115 = vmatpush1.msra.mxu0 0.0
  %6116 = vmatprep.subr.mxu0 0.0
  %6117 = vmatpush1.msra.mxu0 0.0
  %6118 = vmatprep.subr.mxu0 0.0
  %6119 = vmatpush1.msra.mxu0 0.0
  %6120 = vmatprep.subr.mxu0 0.0
  %6121 = vmatpush1.msra.mxu0 0.0
  %6122 = vmatprep.subr.mxu0 0.0
  %6123 = vmatpush1.msra.mxu0 0.0
  %6124 = vmatprep.subr.mxu0 0.0
  %6125 = vmatpush1.msra.mxu0 0.0
  %6126 = vmatprep.subr.mxu0 0.0
  %6127 = vmatpush1.msra.mxu0 0.0
  %6128 = vmatprep.subr.mxu0 0.0
  %6129 = vmatpush1.msra.mxu0 0.0
  %6130 = vmatprep.subr.mxu0 0.0
  %6131 = vmatpush1.msra.mxu0 0.0
  %6132 = vmatprep.subr.mxu0 0.0
  %6133 = vmatpush1.msra.mxu0 0.0
  %6134 = vmatprep.subr.mxu0 0.0
  %6135 = vmatpush1.msra.mxu0 0.0
  %6136 = vmatprep.subr.mxu0 0.0
  %6137 = vmatpush1.msra.mxu0 0.0
  %6138 = vmatprep.subr.mxu0 0.0
  %6139 = vmatpush1.msra.mxu0 0.0
  %6140 = vmatprep.subr.mxu0 0.0
  %6141 = vmatpush1.msra.mxu0 0.0
  %6142 = vmatprep.subr.mxu0 0.0
  %6143 = vmatpush1.msra.mxu0 0.0
  %6144 = vmatprep.mubr.f32.mxu0 0.0
  %6145 = vmatmul.mubr.f32.gmra.mrb[0].mxu0 %v6076
  %v6146 = vpop.f32.mrb[0].mxu0
  %v6147 = vadd.f32 0.0, %v6146
  %v6148 = vpop.f32.mrb[0].mxu0
  %6149 = vdwg.mxu0
  %v6150 = vrot.slane %v4274, 6
  %v6152 = vsel %vm4532, %v5997, 0
  %v6154 = vsel %vm4536, %v6150, 0
  %6156 = vmatprep.subr.mxu0 0.0
  %6157 = vmatpush1.msra.mxu0 %v6154
  %6158 = vmatprep.subr.mxu0 0.0
  %6159 = vmatpush1.msra.mxu0 0.0
  %6160 = vmatprep.subr.mxu0 0.0
  %6161 = vmatpush1.msra.mxu0 0.0
  %6162 = vmatprep.subr.mxu0 0.0
  %6163 = vmatpush1.msra.mxu0 0.0
  %6164 = vmatprep.subr.mxu0 0.0
  %6165 = vmatpush1.msra.mxu0 0.0
  %6166 = vmatprep.subr.mxu0 0.0
  %6167 = vmatpush1.msra.mxu0 0.0
  %6168 = vmatprep.subr.mxu0 0.0
  %6169 = vmatpush1.msra.mxu0 0.0
  %6170 = vmatprep.subr.mxu0 0.0
  %6171 = vmatpush1.msra.mxu0 0.0
  %6172 = vmatprep.subr.mxu0 0.0
  %6173 = vmatpush1.msra.mxu0 0.0
  %6174 = vmatprep.subr.mxu0 0.0
  %6175 = vmatpush1.msra.mxu0 0.0
  %6176 = vmatprep.subr.mxu0 0.0
  %6177 = vmatpush1.msra.mxu0 0.0
  %6178 = vmatprep.subr.mxu0 0.0
  %6179 = vmatpush1.msra.mxu0 0.0
  %6180 = vmatprep.subr.mxu0 0.0
  %6181 = vmatpush1.msra.mxu0 0.0
  %6182 = vmatprep.subr.mxu0 0.0
  %6183 = vmatpush1.msra.mxu0 0.0
  %6184 = vmatprep.subr.mxu0 0.0
  %6185 = vmatpush1.msra.mxu0 0.0
  %6186 = vmatprep.subr.mxu0 0.0
  %6187 = vmatpush1.msra.mxu0 0.0
  %6188 = vmatprep.subr.mxu0 0.0
  %6189 = vmatpush1.msra.mxu0 0.0
  %6190 = vmatprep.subr.mxu0 0.0
  %6191 = vmatpush1.msra.mxu0 0.0
  %6192 = vmatprep.subr.mxu0 0.0
  %6193 = vmatpush1.msra.mxu0 0.0
  %6194 = vmatprep.subr.mxu0 0.0
  %6195 = vmatpush1.msra.mxu0 0.0
  %6196 = vmatprep.subr.mxu0 0.0
  %6197 = vmatpush1.msra.mxu0 0.0
  %6198 = vmatprep.subr.mxu0 0.0
  %6199 = vmatpush1.msra.mxu0 0.0
  %6200 = vmatprep.subr.mxu0 0.0
  %6201 = vmatpush1.msra.mxu0 0.0
  %6202 = vmatprep.subr.mxu0 0.0
  %6203 = vmatpush1.msra.mxu0 0.0
  %6204 = vmatprep.subr.mxu0 0.0
  %6205 = vmatpush1.msra.mxu0 0.0
  %6206 = vmatprep.subr.mxu0 0.0
  %6207 = vmatpush1.msra.mxu0 0.0
  %6208 = vmatprep.subr.mxu0 0.0
  %6209 = vmatpush1.msra.mxu0 0.0
  %6210 = vmatprep.subr.mxu0 0.0
  %6211 = vmatpush1.msra.mxu0 0.0
  %6212 = vmatprep.subr.mxu0 0.0
  %6213 = vmatpush1.msra.mxu0 0.0
  %6214 = vmatprep.subr.mxu0 0.0
  %6215 = vmatpush1.msra.mxu0 0.0
  %6216 = vmatprep.subr.mxu0 0.0
  %6217 = vmatpush1.msra.mxu0 0.0
  %6218 = vmatprep.subr.mxu0 0.0
  %6219 = vmatpush1.msra.mxu0 0.0
  %6220 = vmatprep.mubr.f32.mxu0 0.0
  %6221 = vmatmul.mubr.f32.gmra.mrb[0].mxu0 %v6152
  %v6222 = vpop.f32.mrb[0].mxu0
  %v6223 = vadd.f32 0.0, %v6222
  %v6224 = vpop.f32.mrb[0].mxu0
  %6225 = vdwg.mxu0
  %6229 = vrot.lane.b32.xlu0 %v5093, 16
  %v6230 = vpop.permute.xlu0 %6229
  %6231 = vrot.lane.b32.xlu0 %v5169, 16
  %v6232 = vpop.permute.xlu0 %6231
  %6233 = vrot.lane.b32.xlu0 %v5245, 16
  %v6234 = vpop.permute.xlu0 %6233
  %6241 = vrot.lane.b32.xlu0 %v5582, 32
  %v6242 = vpop.permute.xlu0 %6241
  %6243 = vrot.lane.b32.xlu0 %v5658, 32
  %v6244 = vpop.permute.xlu0 %6243
  %6245 = vrot.lane.b32.xlu0 %v5734, 32
  %v6246 = vpop.permute.xlu0 %6245
  %6253 = vrot.lane.b32.xlu0 %v6071, 48
  %v6254 = vpop.permute.xlu0 %6253
  %6255 = vrot.lane.b32.xlu0 %v6147, 48
  %v6256 = vpop.permute.xlu0 %6255
  %6257 = vrot.lane.b32.xlu0 %v6223, 48
  %v6258 = vpop.permute.xlu0 %6257
  %v6262 = vsel %vm4275, %v4606, %v6230
  %v6263 = vsel %vm4275, %v4681, %v6232
  %v6264 = vsel %vm4275, %v4756, %v6234
  %v6265 = vsel %vm3032, %v6262, %v6242
  %v6266 = vsel %vm3032, %v6263, %v6244
  %v6267 = vsel %vm3032, %v6264, %v6246
  %vm6268 = vcmask 392192
  %v6269 = vsel %vm6268, %v6265, %v6254
  %v6270 = vsel %vm6268, %v6266, %v6256
  %v6271 = vsel %vm6268, %v6267, %v6258
  %v6272 = vld [vmem:[%s5] sm:$0xff]
  %v6273 = vld [vmem:[%s5 + $0x10] sm:$0xff]
  %v6274 = vld [vmem:[%s5 + $0x20] sm:$0xff]
  %v6275 = vld [vmem:[%s5 + $0x30] sm:$0xff]
  %v6276 = vld [vmem:[%s5 + $0x40] sm:$0xff]
  %v6277 = vld [vmem:[%s5 + $0x50] sm:$0xff]
  %v6278 = vld [vmem:[%s5 + $0x60] sm:$0xff]
  %v6279 = vld [vmem:[%s5 + $0x70] sm:$0xff]
  %v6280 = vld [vmem:[%s7 + $0x1] sm:$0x1]
  %v6282 = vlaneseq
  %v6283 = vshrl.u32 %v6282, 7
  %v6284 = vsub.s32 0, %v6283
  %v6285 = vrot.slane %v6280, %v6284
  %v6289 = vcombine.low %v6269, %v6270
  %v6291 = vunpack.c.l.s4 1983009808
  %v6292 = vunpack.c.0.s8 %v6291
  %v6293 = vlaneseq
  %v6294 = vshrl.u32 %v6293, 7
  %v6295 = vsub.s32 %v6292, %v6294
  %v6296 = vrot.slane %v6289, %v6295
  %v6298 = vunpack.c.l.s4 1983009808
  %v6299 = vunpack.c.0.s8 %v6298
  %v6300 = vlaneseq
  %v6301 = vshrl.u32 %v6300, 7
  %v6302 = vsub.s32 %v6299, %v6301
  %v6303 = vrot.slane %v6271, %v6302
  %v6304 = vcombine.low %v6296, %v6303
  %v6305 = vcombine.low %v6285, %v6285
  %v6307 = vunpack.c.l.s4 1983009808
  %v6308 = vunpack.c.0.s8 %v6307
  %v6309 = vlaneseq
  %v6310 = vshrl.u32 %v6309, 7
  %v6311 = vsub.s32 %v6308, %v6310
  %v6312 = vrot.slane %v6305, %v6311
  %v6314 = vunpack.c.l.s4 1983009808
  %v6315 = vunpack.c.0.s8 %v6314
  %v6316 = vlaneseq
  %v6317 = vshrl.u32 %v6316, 7
  %v6318 = vsub.s32 %v6315, %v6317
  %v6319 = vrot.slane %v6285, %v6318
  %v6320 = vcombine.low %v6312, %v6319
  %v6322 = vsel %vm289, %v6304, 0
  %6324 = vmatprep.subr.mxu0 0.0
  %6325 = vmatpush1.msra.mxu0 %v6272
  %6326 = vmatprep.subr.mxu0 0.0
  %6327 = vmatpush1.msra.mxu0 %v6273
  %6328 = vmatprep.subr.mxu0 0.0
  %6329 = vmatpush1.msra.mxu0 %v6274
  %6330 = vmatprep.subr.mxu0 0.0
  %6331 = vmatpush1.msra.mxu0 %v6275
  %6332 = vmatprep.subr.mxu0 0.0
  %6333 = vmatpush1.msra.mxu0 %v6276
  %6334 = vmatprep.subr.mxu0 0.0
  %6335 = vmatpush1.msra.mxu0 %v6277
  %6336 = vmatprep.subr.mxu0 0.0
  %6337 = vmatpush1.msra.mxu0 %v6278
  %6338 = vmatprep.subr.mxu0 0.0
  %6339 = vmatpush1.msra.mxu0 %v6279
  %6340 = vmatprep.subr.mxu0 0.0
  %6341 = vmatpush1.msra.mxu0 0.0
  %6342 = vmatprep.subr.mxu0 0.0
  %6343 = vmatpush1.msra.mxu0 0.0
  %6344 = vmatprep.subr.mxu0 0.0
  %6345 = vmatpush1.msra.mxu0 0.0
  %6346 = vmatprep.subr.mxu0 0.0
  %6347 = vmatpush1.msra.mxu0 0.0
  %6348 = vmatprep.subr.mxu0 0.0
  %6349 = vmatpush1.msra.mxu0 0.0
  %6350 = vmatprep.subr.mxu0 0.0
  %6351 = vmatpush1.msra.mxu0 0.0
  %6352 = vmatprep.subr.mxu0 0.0
  %6353 = vmatpush1.msra.mxu0 0.0
  %6354 = vmatprep.subr.mxu0 0.0
  %6355 = vmatpush1.msra.mxu0 0.0
  %6356 = vmatprep.subr.mxu0 0.0
  %6357 = vmatpush1.msra.mxu0 0.0
  %6358 = vmatprep.subr.mxu0 0.0
  %6359 = vmatpush1.msra.mxu0 0.0
  %6360 = vmatprep.subr.mxu0 0.0
  %6361 = vmatpush1.msra.mxu0 0.0
  %6362 = vmatprep.subr.mxu0 0.0
  %6363 = vmatpush1.msra.mxu0 0.0
  %6364 = vmatprep.subr.mxu0 0.0
  %6365 = vmatpush1.msra.mxu0 0.0
  %6366 = vmatprep.subr.mxu0 0.0
  %6367 = vmatpush1.msra.mxu0 0.0
  %6368 = vmatprep.subr.mxu0 0.0
  %6369 = vmatpush1.msra.mxu0 0.0
  %6370 = vmatprep.subr.mxu0 0.0
  %6371 = vmatpush1.msra.mxu0 0.0
  %6372 = vmatprep.subr.mxu0 0.0
  %6373 = vmatpush1.msra.mxu0 0.0
  %6374 = vmatprep.subr.mxu0 0.0
  %6375 = vmatpush1.msra.mxu0 0.0
  %6376 = vmatprep.subr.mxu0 0.0
  %6377 = vmatpush1.msra.mxu0 0.0
  %6378 = vmatprep.subr.mxu0 0.0
  %6379 = vmatpush1.msra.mxu0 0.0
  %6380 = vmatprep.subr.mxu0 0.0
  %6381 = vmatpush1.msra.mxu0 0.0
  %6382 = vmatprep.subr.mxu0 0.0
  %6383 = vmatpush1.msra.mxu0 0.0
  %6384 = vmatprep.subr.mxu0 0.0
  %6385 = vmatpush1.msra.mxu0 0.0
  %6386 = vmatprep.subr.mxu0 0.0
  %6387 = vmatpush1.msra.mxu0 0.0
  %6388 = vmatprep.mubr.f32.mxu0 0.0
  %6389 = vmatmul.mubr.f32.gmra.mrb[0].mxu0 %v6322
  %v6390 = vpop.f32.mrb[0].mxu0
  %v6391 = vadd.f32 %v6320, %v6390
  %v6392 = vpop.f32.mrb[0].mxu0
  %6393 = vdwg.mxu0
  %v6395 = vcombine.high %v6391, %v6391
  %v6397 = vunpack.c.l.s4 1983009808
  %v6398 = vunpack.c.0.s8 %v6397
  %v6399 = vlaneseq
  %v6400 = vshrl.u32 %v6399, 7
  %v6401 = vsub.s32 %v6398, %v6400
  %v6402 = vrot.slane %v6391, %v6401
  %v6404 = vunpack.c.l.s4 1983009808
  %v6405 = vunpack.c.0.s8 %v6404
  %v6406 = vlaneseq
  %v6407 = vshrl.u32 %v6406, 7
  %v6408 = vsub.s32 %v6405, %v6407
  %v6409 = vrot.slane %v6395, %v6408
  %v6410 = vcombine.high %v6402, %v6402
  %v6414 = vsel %vm3403, %v6402, 0.0
  %v6415 = vsel %vm3403, %v6410, 0.0
  %v6416 = vadd.f32 %v6414, %v6415
  %v6417 = vsel %vm3403, %v6409, 0.0
  %v6418 = vadd.f32 %v6416, %v6417
  %v6419 = vrcp.pop 3.0
  %v6420 = vmul.f32 %v6418, %v6419
  %v6421 = vld [vmem:[%s5 + $0x8] sm:$0xff]
  %v6422 = vld [vmem:[%s5 + $0x18] sm:$0xff]
  %v6423 = vld [vmem:[%s5 + $0x28] sm:$0xff]
  %v6424 = vld [vmem:[%s5 + $0x38] sm:$0xff]
  %v6425 = vld [vmem:[%s5 + $0x48] sm:$0xff]
  %v6426 = vld [vmem:[%s5 + $0x58] sm:$0xff]
  %v6427 = vld [vmem:[%s5 + $0x68] sm:$0xff]
  %v6428 = vld [vmem:[%s5 + $0x78] sm:$0xff]
  %v6429 = vld [vmem:[%s7 + $0x2] sm:$0x1]
  %v6431 = vlaneseq
  %v6432 = vshrl.u32 %v6431, 7
  %v6433 = vsub.s32 0, %v6432
  %v6434 = vrot.slane %v6429, %v6433
  %v6437 = vsel %vm289, %v6420, 0
  %6439 = vmatprep.subr.mxu0 0.0
  %6440 = vmatpush1.msra.mxu0 %v6421
  %6441 = vmatprep.subr.mxu0 0.0
  %6442 = vmatpush1.msra.mxu0 %v6422
  %6443 = vmatprep.subr.mxu0 0.0
  %6444 = vmatpush1.msra.mxu0 %v6423
  %6445 = vmatprep.subr.mxu0 0.0
  %6446 = vmatpush1.msra.mxu0 %v6424
  %6447 = vmatprep.subr.mxu0 0.0
  %6448 = vmatpush1.msra.mxu0 %v6425
  %6449 = vmatprep.subr.mxu0 0.0
  %6450 = vmatpush1.msra.mxu0 %v6426
  %6451 = vmatprep.subr.mxu0 0.0
  %6452 = vmatpush1.msra.mxu0 %v6427
  %6453 = vmatprep.subr.mxu0 0.0
  %6454 = vmatpush1.msra.mxu0 %v6428
  %6455 = vmatprep.subr.mxu0 0.0
  %6456 = vmatpush1.msra.mxu0 0.0
  %6457 = vmatprep.subr.mxu0 0.0
  %6458 = vmatpush1.msra.mxu0 0.0
  %6459 = vmatprep.subr.mxu0 0.0
  %6460 = vmatpush1.msra.mxu0 0.0
  %6461 = vmatprep.subr.mxu0 0.0
  %6462 = vmatpush1.msra.mxu0 0.0
  %6463 = vmatprep.subr.mxu0 0.0
  %6464 = vmatpush1.msra.mxu0 0.0
  %6465 = vmatprep.subr.mxu0 0.0
  %6466 = vmatpush1.msra.mxu0 0.0
  %6467 = vmatprep.subr.mxu0 0.0
  %6468 = vmatpush1.msra.mxu0 0.0
  %6469 = vmatprep.subr.mxu0 0.0
  %6470 = vmatpush1.msra.mxu0 0.0
  %6471 = vmatprep.subr.mxu0 0.0
  %6472 = vmatpush1.msra.mxu0 0.0
  %6473 = vmatprep.subr.mxu0 0.0
  %6474 = vmatpush1.msra.mxu0 0.0
  %6475 = vmatprep.subr.mxu0 0.0
  %6476 = vmatpush1.msra.mxu0 0.0
  %6477 = vmatprep.subr.mxu0 0.0
  %6478 = vmatpush1.msra.mxu0 0.0
  %6479 = vmatprep.subr.mxu0 0.0
  %6480 = vmatpush1.msra.mxu0 0.0
  %6481 = vmatprep.subr.mxu0 0.0
  %6482 = vmatpush1.msra.mxu0 0.0
  %6483 = vmatprep.subr.mxu0 0.0
  %6484 = vmatpush1.msra.mxu0 0.0
  %6485 = vmatprep.subr.mxu0 0.0
  %6486 = vmatpush1.msra.mxu0 0.0
  %6487 = vmatprep.subr.mxu0 0.0
  %6488 = vmatpush1.msra.mxu0 0.0
  %6489 = vmatprep.subr.mxu0 0.0
  %6490 = vmatpush1.msra.mxu0 0.0
  %6491 = vmatprep.subr.mxu0 0.0
  %6492 = vmatpush1.msra.mxu0 0.0
  %6493 = vmatprep.subr.mxu0 0.0
  %6494 = vmatpush1.msra.mxu0 0.0
  %6495 = vmatprep.subr.mxu0 0.0
  %6496 = vmatpush1.msra.mxu0 0.0
  %6497 = vmatprep.subr.mxu0 0.0
  %6498 = vmatpush1.msra.mxu0 0.0
  %6499 = vmatprep.subr.mxu0 0.0
  %6500 = vmatpush1.msra.mxu0 0.0
  %6501 = vmatprep.subr.mxu0 0.0
  %6502 = vmatpush1.msra.mxu0 0.0
  %6503 = vmatprep.mubr.f32.mxu0 0.0
  %6504 = vmatmul.mubr.f32.gmra.mrb[0].mxu0 %v6437
  %v6505 = vpop.f32.mrb[0].mxu0
  %v6506 = vadd.f32 %v6434, %v6505
  %v6507 = vpop.f32.mrb[0].mxu0
  %6508 = vdwg.mxu0
  %v6509 = vmax.f32 %v6506, 0.0
  %v6510 = vld [vmem:[%s6] sm:$0xff]
  %v6511 = vld [vmem:[%s6 + $0x8] sm:$0xff]
  %v6512 = vld [vmem:[%s6 + $0x10] sm:$0xff]
  %v6513 = vld [vmem:[%s6 + $0x18] sm:$0xff]
  %v6514 = vld [vmem:[%s7 + $0x3] sm:$0x1]
  %v6516 = vlaneseq
  %v6517 = vshrl.u32 %v6516, 7
  %v6518 = vsub.s32 0, %v6517
  %v6519 = vrot.slane %v6514, %v6518
  %v6522 = vsel %vm3032, %v6509, 0
  %6524 = vmatprep.subr.mxu0 0.0
  %6525 = vmatpush1.msra.mxu0 %v6510
  %6526 = vmatprep.subr.mxu0 0.0
  %6527 = vmatpush1.msra.mxu0 %v6511
  %6528 = vmatprep.subr.mxu0 0.0
  %6529 = vmatpush1.msra.mxu0 %v6512
  %6530 = vmatprep.subr.mxu0 0.0
  %6531 = vmatpush1.msra.mxu0 %v6513
  %6532 = vmatprep.subr.mxu0 0.0
  %6533 = vmatpush1.msra.mxu0 0.0
  %6534 = vmatprep.subr.mxu0 0.0
  %6535 = vmatpush1.msra.mxu0 0.0
  %6536 = vmatprep.subr.mxu0 0.0
  %6537 = vmatpush1.msra.mxu0 0.0
  %6538 = vmatprep.subr.mxu0 0.0
  %6539 = vmatpush1.msra.mxu0 0.0
  %6540 = vmatprep.subr.mxu0 0.0
  %6541 = vmatpush1.msra.mxu0 0.0
  %6542 = vmatprep.subr.mxu0 0.0
  %6543 = vmatpush1.msra.mxu0 0.0
  %6544 = vmatprep.subr.mxu0 0.0
  %6545 = vmatpush1.msra.mxu0 0.0
  %6546 = vmatprep.subr.mxu0 0.0
  %6547 = vmatpush1.msra.mxu0 0.0
  %6548 = vmatprep.subr.mxu0 0.0
  %6549 = vmatpush1.msra.mxu0 0.0
  %6550 = vmatprep.subr.mxu0 0.0
  %6551 = vmatpush1.msra.mxu0 0.0
  %6552 = vmatprep.subr.mxu0 0.0
  %6553 = vmatpush1.msra.mxu0 0.0
  %6554 = vmatprep.subr.mxu0 0.0
  %6555 = vmatpush1.msra.mxu0 0.0
  %6556 = vmatprep.subr.mxu0 0.0
  %6557 = vmatpush1.msra.mxu0 0.0
  %6558 = vmatprep.subr.mxu0 0.0
  %6559 = vmatpush1.msra.mxu0 0.0
  %6560 = vmatprep.subr.mxu0 0.0
  %6561 = vmatpush1.msra.mxu0 0.0
  %6562 = vmatprep.subr.mxu0 0.0
  %6563 = vmatpush1.msra.mxu0 0.0
  %6564 = vmatprep.subr.mxu0 0.0
  %6565 = vmatpush1.msra.mxu0 0.0
  %6566 = vmatprep.subr.mxu0 0.0
  %6567 = vmatpush1.msra.mxu0 0.0
  %6568 = vmatprep.subr.mxu0 0.0
  %6569 = vmatpush1.msra.mxu0 0.0
  %6570 = vmatprep.subr.mxu0 0.0
  %6571 = vmatpush1.msra.mxu0 0.0
  %6572 = vmatprep.subr.mxu0 0.0
  %6573 = vmatpush1.msra.mxu0 0.0
  %6574 = vmatprep.subr.mxu0 0.0
  %6575 = vmatpush1.msra.mxu0 0.0
  %6576 = vmatprep.subr.mxu0 0.0
  %6577 = vmatpush1.msra.mxu0 0.0
  %6578 = vmatprep.subr.mxu0 0.0
  %6579 = vmatpush1.msra.mxu0 0.0
  %6580 = vmatprep.subr.mxu0 0.0
  %6581 = vmatpush1.msra.mxu0 0.0
  %6582 = vmatprep.subr.mxu0 0.0
  %6583 = vmatpush1.msra.mxu0 0.0
  %6584 = vmatprep.subr.mxu0 0.0
  %6585 = vmatpush1.msra.mxu0 0.0
  %6586 = vmatprep.subr.mxu0 0.0
  %6587 = vmatpush1.msra.mxu0 0.0
  %6588 = vmatprep.mubr.f32.mxu0 0.0
  %6589 = vmatmul.mubr.f32.gmra.mrb[0].mxu0 %v6522
  %v6590 = vpop.f32.mrb[0].mxu0
  %v6591 = vadd.f32 %v6519, %v6590
  %v6592 = vpop.f32.mrb[0].mxu0
  %6593 = vdwg.mxu0
  %6594 = vst [vmem:[%s8] sm:$0x3] %v6591
  // Predicated region
  $region34: #{forward.1} parent=0 // pred_check
    _
  $region35: #{forward.1} parent=0 // pred_check_branch
    %6596 = sbr.rel (0) target = $region37
  $region36: #{forward.1} parent=0 // pred_region
    _
  $region37: #{forward.1} parent=0 // pred_fallthru
    _
  // Predicated region
  $region38: #{forward.1} parent=0 // pred_check
    _
  $region39: #{forward.1} parent=0 // pred_check_branch
    %6598 = sbr.rel (0) target = $region41
  $region40: #{forward.1} parent=0 // pred_region
    _
  $region41: #{forward.1} parent=0 // pred_fallthru
    _

</llo_original>
